<compile_context>
chip_gen: v5e
topology: v5e:2x2
jax: 0.10.0
libtpu: 0.0.40
codegen_flags: <defaults>
</compile_context>

<pallas_src>
import functools

import jax
import jax.numpy as jnp
from jax import lax
from jax.experimental import pallas as pl
from jax.experimental.pallas import tpu as pltpu


# ---------------------------------------------------------------------------
# Pass 1 kernel: 3x3 conv as ONE big-K matmul per row tile (im2col built in
# VMEM directly from the pipelined input refs) + per-channel sum / sum-of-squares
# partials for GroupNorm.  Conv output (no bias) is stored in bf16.
# ---------------------------------------------------------------------------
def conv_stats_kernel(x_ref, h_ref, w_ref, y_ref, stats_ref, col_ref, *, stride):
    # x_ref    : (1, TR, s, Wq, Cg)  row tile of the width-padded input, rows
    #                                grouped by the stride ("row pairing")
    # h_ref    : (1, 1, 2, Wq, Cg)   halo rows: [above, below] (below used s==1)
    # w_ref    : (K, Cout)           conv taps flattened, K = 3*KX*Cg
    # y_ref    : (1, TR, Wo, Cout)   bf16 conv output (no bias, pre-GroupNorm)
    # stats_ref: (1, 1, 2, Cout)     per-tile per-channel [sum, sum_sq] (f32)
    # col_ref  : (TR, Wo, K)         VMEM im2col scratch
    s = stride
    TR, Wo, Cout = y_ref.shape[1], y_ref.shape[2], y_ref.shape[3]
    Cg = x_ref.shape[4]
    K = w_ref.shape[0]
    KX = K // (3 * Cg)

    # Build the im2col buffer: column block t = ky*KX + kx holds the input rows
    # o*s + ky - 1 (unpadded coords) shifted by kx along width.  With the row
    # pairing, that is a CONTIGUOUS slice x_ref[0, q0:q1, sub] (no strided loads):
    #   sub  = (ky - 1) % s          (constant in the output row o)
    #   qoff = (ky - 1 - sub) // s   in {-1, 0, +1}; only the first / last output
    #                                row spills into the halo block.
    for ky in range(3):
        sub = (ky - 1) % s
        qoff = (ky - 1 - sub) // s
        for kx in range(KX):
            cs = (ky * KX + kx) * Cg
            ce = cs + Cg
            if qoff == -1:
                col_ref[0:1, :, cs:ce] = h_ref[0, 0, 0:1, kx:kx + Wo, :]
                if TR > 1:
                    col_ref[1:TR, :, cs:ce] = x_ref[0, 0:TR - 1, sub,
                                                    kx:kx + Wo, :]
            elif qoff == 1:
                if TR > 1:
                    col_ref[0:TR - 1, :, cs:ce] = x_ref[0, 1:TR, sub,
                                                        kx:kx + Wo, :]
                col_ref[TR - 1:TR, :, cs:ce] = h_ref[0, 0, 1:2, kx:kx + Wo, :]
            else:
                col_ref[:, :, cs:ce] = x_ref[0, :, sub, kx:kx + Wo, :]

    # One MXU matmul for the whole tile: (TR*Wo, K) @ (K, Cout), f32 accumulate.
    lhs = col_ref[...].reshape(TR * Wo, K)
    acc = jnp.dot(lhs, w_ref[...], preferred_element_type=jnp.float32)

    y_ref[0] = acc.reshape(TR, Wo, Cout).astype(y_ref.dtype)
    stats_ref[0, 0, 0:1, :] = jnp.sum(acc, axis=0, keepdims=True)
    stats_ref[0, 0, 1:2, :] = jnp.sum(acc * acc, axis=0, keepdims=True)


# ---------------------------------------------------------------------------
# Pass 2 kernel: y * scale + shift (GroupNorm folded into a per-channel affine)
# followed by LeakyReLU(0.2).  Operates on a lane-dense flattened (Wo*Cout)
# last dim and writes the NEXT layer's width-padded input directly (zero pad
# columns emitted in-kernel), so no jnp.pad / extra HBM round trip is needed.
# ---------------------------------------------------------------------------
def norm_act_kernel(y_ref, sc_ref, sh_ref, o_ref, *, cpad):
    # y_ref : (1, TR2, Wo*C) bf16 ; sc/sh : (1, 1, Wo*C) f32
    # o_ref : (1, TR2, (Wo+2)*C) bf16  (left/right zero pad columns included)
    z = y_ref[0].astype(jnp.float32) * sc_ref[0] + sh_ref[0]
    z = jnp.where(z > 0, z, 0.2 * z).astype(o_ref.dtype)
    woc = y_ref.shape[-1]
    rows = y_ref.shape[1]
    zeros = jnp.zeros((rows, cpad), o_ref.dtype)
    o_ref[0, :, 0:cpad] = zeros
    o_ref[0, :, cpad:cpad + woc] = z
    o_ref[0, :, cpad + woc:cpad + woc + cpad] = zeros


# ---------------------------------------------------------------------------
# GroupNorm(2) statistics -> per-(sample, channel) scale / shift (tiny, in JAX).
# Bias is folded analytically so pass 1 never touches it.
# ---------------------------------------------------------------------------
def _gn_affine(stats, b, gamma, beta, P, groups=2, eps=1e-5):
    # stats: (N, 2, C) with per-channel [sum(y), sum(y*y)] over P pixels, where
    # y is the conv output WITHOUT bias (f32).
    N, _, C = stats.shape
    Cpg = C // groups
    s1 = stats[:, 0, :] / P                      # E[y]
    s2 = stats[:, 1, :] / P                      # E[y^2]
    m_c = s1 + b[None, :]                        # E[y + b]
    e2_c = s2 + (2.0 * b)[None, :] * s1 + (b * b)[None, :]   # E[(y+b)^2]
    mu_g = m_c.reshape(N, groups, Cpg).mean(axis=2)
    e2_g = e2_c.reshape(N, groups, Cpg).mean(axis=2)
    var_g = jnp.maximum(e2_g - mu_g * mu_g, 0.0)
    rsig_g = lax.rsqrt(var_g + eps)
    rsig_c = jnp.repeat(rsig_g, Cpg, axis=1)
    mu_c = jnp.repeat(mu_g, Cpg, axis=1)
    scale = gamma[None, :] * rsig_c
    shift = (b[None, :] - mu_c) * scale + beta[None, :]
    return scale.astype(jnp.float32), shift.astype(jnp.float32)


# ---------------------------------------------------------------------------
# VMEM sizing helpers.
# ---------------------------------------------------------------------------
def _vmem_capacity():
    try:
        info = pltpu.get_tpu_info()
        for attr in ("vmem_capacity_bytes", "vmem_size_bytes", "vmem_bytes"):
            v = getattr(info, attr, None)
            if v:
                return int(v)
    except Exception:
        pass
    return 64 << 20            # conservative (v7x per-TC) fallback


def _pick_row_tile(Ho, s, Wq, Cg, Wo, Cout, K, row_cap, budget):
    """Largest divisor of Ho whose resident VMEM (dbl-buffered in/out + im2col
    scratch + f32 accumulator) stays within the byte budget."""
    per_tr = ((s * Wq * Cg * 2) * 2          # input block, double-buffered, bf16
              + (Wo * Cout * 2) * 2          # y output block, double-buffered
              + Wo * K * 2                   # im2col scratch (single)
              + Wo * Cout * 4 * 2)           # f32 accumulator headroom
    fixed = 2 * (2 * Wq * Cg * 2) + 2 * (K * Cout * 2)   # halo + weights
    tr = max(1, min(Ho, (budget - fixed) // max(per_tr, 1)))
    if row_cap is not None:
        tr = max(1, min(tr, row_cap))
    while Ho % tr:
        tr -= 1
    return int(tr)


def _pick_norm_rows(Ho, Wo, Cout, budget):
    per_row = (Wo * Cout * 2) * 2 + ((Wo + 2) * Cout * 2) * 2
    if per_row * Ho <= budget:
        return Ho
    cands = [d for d in range(8, Ho, 8) if Ho % d == 0 and per_row * d <= budget]
    return max(cands) if cands else Ho


# ---------------------------------------------------------------------------
# One ConvSC layer.  Input is the width-padded NHWC bf16 activation
# (N, H, W+2, Cin); output is the next layer's width-padded input
# (N, Ho, Wo+2, Cout) in bf16.
# ---------------------------------------------------------------------------
def convsc_layer(xwp, w, b, gamma, beta, stride, row_cap=None):
    N, H, Wp, Cin = xwp.shape
    W = Wp - 2
    Cout = w.shape[-1]
    s = int(stride)
    assert Cout % 2 == 0, "GroupNorm with 2 groups needs an even channel count"
    assert H % s == 0 and W % s == 0, "spatial dims must be divisible by stride"
    Ho, Wo = H // s, W // s

    # ---- arrange input & weights so the conv is one big matmul per tile -----
    if s == 2:
        # Pair adjacent (padded) columns into channels: the stride-2 3x3 conv
        # becomes 3x2 taps contracting over 2*Cin (4th horizontal tap is zero),
        # so no strided in-kernel loads are ever needed.
        Wq, Cg, KX = Wp // 2, 2 * Cin, 2
        xr = xwp.reshape(N, H, Wq, Cg)
        w_k = jnp.concatenate([w, jnp.zeros((3, 1, Cin, Cout), w.dtype)], axis=1)
    else:
        Wq, Cg, KX = Wp, Cin, 3
        xr = xwp
        w_k = w
    K = 3 * KX * Cg
    w_mat = w_k.reshape(K, Cout).astype(jnp.bfloat16)
    xr = xr.astype(jnp.bfloat16)
    xr5 = xr.reshape(N, Ho, s, Wq, Cg)    # free row-major reshape (row pairing)

    vmem_cap = _vmem_capacity()
    vmem_limit = int(max(32 << 20, min(vmem_cap - (8 << 20), vmem_cap * 0.85)))
    budget = vmem_limit // 2

    TR = _pick_row_tile(Ho, s, Wq, Cg, Wo, Cout, K, row_cap, budget)
    RT = Ho // TR

    # ---- tiny halo array: row above each tile (+ row below for stride 1) ----
    zrow = jnp.zeros((N, 1, Wq, Cg), xr.dtype)
    above = jnp.concatenate(
        [zrow, xr[:, TR * s - 1::TR * s][:, :RT - 1]], axis=1)       # (N, RT, ...)
    if s == 1:
        below = jnp.concatenate([xr[:, TR::TR], zrow], axis=1)
    else:
        below = jnp.zeros((N, RT, Wq, Cg), xr.dtype)                 # unused
    halo = jnp.stack([above, below], axis=2)                         # (N,RT,2,Wq,Cg)

    conv_cost = pl.CostEstimate(
        flops=int(2 * N * Ho * Wo * K * Cout),
        transcendentals=0,
        bytes_accessed=int(N * H * Wq * Cg * 2 + N * RT * 2 * Wq * Cg * 2
                           + K * Cout * 2 + N * Ho * Wo * Cout * 2
                           + N * RT * 2 * Cout * 4))

    y, part_stats = pl.pallas_call(
        functools.partial(conv_stats_kernel, stride=s),
        out_shape=(jax.ShapeDtypeStruct((N, Ho, Wo, Cout), jnp.bfloat16),
                   jax.ShapeDtypeStruct((N, RT, 2, Cout), jnp.float32)),
        grid_spec=pltpu.PrefetchScalarGridSpec(
            num_scalar_prefetch=0,
            grid=(N, RT),
            in_specs=[
                pl.BlockSpec((1, TR, s, Wq, Cg), lambda n, r: (n, r, 0, 0, 0)),
                pl.BlockSpec((1, 1, 2, Wq, Cg), lambda n, r: (n, r, 0, 0, 0)),
                pl.BlockSpec((K, Cout), lambda n, r: (0, 0)),
            ],
            out_specs=[
                pl.BlockSpec((1, TR, Wo, Cout), lambda n, r: (n, r, 0, 0)),
                pl.BlockSpec((1, 1, 2, Cout), lambda n, r: (n, r, 0, 0)),
            ],
            scratch_shapes=[pltpu.VMEM((TR, Wo, K), jnp.bfloat16)],
        ),
        compiler_params=pltpu.CompilerParams(
            dimension_semantics=("parallel", "parallel"),
            vmem_limit_bytes=vmem_limit),
        cost_estimate=conv_cost,
    )(xr5, halo, w_mat)

    # ---- fold bias + GroupNorm + gamma/beta into a per-(n, channel) affine ---
    stats = part_stats.sum(axis=1)                   # (N, 2, Cout), f32
    scale, shift = _gn_affine(stats, b, gamma, beta, P=Ho * Wo)
    scale_t = jnp.tile(scale, (1, Wo)).reshape(N, 1, Wo * Cout)
    shift_t = jnp.tile(shift, (1, Wo)).reshape(N, 1, Wo * Cout)

    # ---- pass 2: normalize + LeakyReLU, writing the padded next-layer input --
    TR2 = _pick_norm_rows(Ho, Wo, Cout, budget)
    RT2 = Ho // TR2
    y2 = y.reshape(N, Ho, Wo * Cout)

    act_cost = pl.CostEstimate(
        flops=int(4 * N * Ho * Wo * Cout),
        transcendentals=0,
        bytes_accessed=int(N * Ho * Wo * Cout * 2
                           + N * Ho * (Wo + 2) * Cout * 2
                           + 2 * N * Wo * Cout * 4))

    out_flat = pl.pallas_call(
        functools.partial(norm_act_kernel, cpad=Cout),
        out_shape=jax.ShapeDtypeStruct((N, Ho, (Wo + 2) * Cout), jnp.bfloat16),
        grid_spec=pltpu.PrefetchScalarGridSpec(
            num_scalar_prefetch=0,
            grid=(N, RT2),
            in_specs=[
                pl.BlockSpec((1, TR2, Wo * Cout), lambda n, r: (n, r, 0)),
                pl.BlockSpec((1, 1, Wo * Cout), lambda n, r: (n, 0, 0)),
                pl.BlockSpec((1, 1, Wo * Cout), lambda n, r: (n, 0, 0)),
            ],
            out_specs=pl.BlockSpec((1, TR2, (Wo + 2) * Cout),
                                   lambda n, r: (n, r, 0)),
        ),
        compiler_params=pltpu.CompilerParams(
            dimension_semantics=("parallel", "parallel"),
            vmem_limit_bytes=vmem_limit),
        cost_estimate=act_cost,
    )(y2, scale_t, shift_t)

    return out_flat.reshape(N, Ho, Wo + 2, Cout)


# ---------------------------------------------------------------------------
# EncoderDeep: 6 ConvSC layers, strides (1, 1, 2, 1, 2, 1).
# All intermediates stay NHWC/bf16 and width-padded; single NCHW<->NHWC
# transpose at each module boundary.
# ---------------------------------------------------------------------------
@functools.partial(jax.jit, static_argnames=("strides", "row_cap"))
def encoder_forward(x_nchw, params, *, strides, row_cap=None):
    x = jnp.transpose(x_nchw, (0, 2, 3, 1)).astype(jnp.bfloat16)   # NCHW -> NHWC
    h = jnp.pad(x, ((0, 0), (0, 0), (1, 1), (0, 0)))               # width pad once
    acts = []
    for (w, b, g, be), s in zip(params, strides):
        h = convsc_layer(h, w, b, g, be, s, row_cap)               # padded output
        acts.append(h[:, :, 1:-1, :])                              # unpadded view
    enc1, enc2, enc3, enc4, enc5, latent = acts
    to_nchw = lambda t: jnp.transpose(t, (0, 3, 1, 2)).astype(jnp.float32)
    return to_nchw(latent), [to_nchw(enc5), to_nchw(enc4), to_nchw(enc3),
                             to_nchw(enc2), to_nchw(enc1)]


def init_params(key, C_in, C_hid):
    specs = [
        (C_in, C_hid, 1),
        (C_hid, 2 * C_hid, 1),
        (2 * C_hid, 4 * C_hid, 2),
        (4 * C_hid, 4 * C_hid, 1),
        (4 * C_hid, 8 * C_hid, 2),
        (8 * C_hid, 8 * C_hid, 1),
    ]
    params, strides = [], []
    for cin, cout, s in specs:
        key, kw, kb = jax.random.split(key, 3)
        bound = 1.0 / (9.0 * cin) ** 0.5               # Conv2d default-style init
        w = jax.random.uniform(kw, (3, 3, cin, cout), jnp.float32, -bound, bound)
        b = jax.random.uniform(kb, (cout,), jnp.float32, -bound, bound)
        params.append((w, b, jnp.ones((cout,), jnp.float32),
                       jnp.zeros((cout,), jnp.float32)))
        strides.append(s)
    return tuple(params), tuple(strides)


# ---------------------------------------------------------------------------
# Pure-JAX reference with the same precision chain (bf16 weights/activations,
# f32 conv accumulation, f32 GroupNorm statistics, bf16-stored conv output).
# ---------------------------------------------------------------------------
def _ref_convsc(x, w, b, gamma, beta, stride, groups=2, eps=1e-5):
    y = lax.conv_general_dilated(
        x, w.astype(jnp.bfloat16), window_strides=(stride, stride),
        padding=((1, 1), (1, 1)), dimension_numbers=("NHWC", "HWIO", "NHWC"),
        preferred_element_type=jnp.float32)            # conv WITHOUT bias, f32
    N, Ho, Wo, C = y.shape
    yb = y + b
    yg = yb.reshape(N, Ho, Wo, groups, C // groups)
    mu = jnp.mean(yg, axis=(1, 2, 4), keepdims=True)
    var = jnp.mean((yg - mu) ** 2, axis=(1, 2, 4), keepdims=True)
    rs = lax.rsqrt(var + eps)
    # pass 2 of the kernel normalizes the bf16-stored conv output:
    ybf = y.astype(jnp.bfloat16).astype(jnp.float32) + b
    zn = ((ybf.reshape(N, Ho, Wo, groups, C // groups) - mu) * rs
          ).reshape(N, Ho, Wo, C)
    z = zn * gamma + beta
    z = jnp.where(z > 0, z, 0.2 * z)
    return z.astype(jnp.bfloat16)


def _ref_encoder(x_nchw, params, strides):
    h = jnp.transpose(x_nchw, (0, 2, 3, 1)).astype(jnp.bfloat16)
    feats = []
    for (w, b, g, be), s in zip(params, strides):
        h = _ref_convsc(h, w, b, g, be, s)
        feats.append(h)
    enc1, enc2, enc3, enc4, enc5, latent = feats
    to_nchw = lambda t: jnp.transpose(t, (0, 3, 1, 2)).astype(jnp.float32)
    return to_nchw(latent), [to_nchw(enc5), to_nchw(enc4), to_nchw(enc3),
                             to_nchw(enc2), to_nchw(enc1)]


if __name__ == "__main__":
    key = jax.random.PRNGKey(0)
    kx, kp = jax.random.split(key)

    N, C_in, H, W = 2, 4, 16, 16
    C_hid = 8
    x = jax.random.normal(kx, (N, C_in, H, W), jnp.float32)    # NCHW, like torch

    params, strides = init_params(kp, C_in, C_hid)

    # row_cap=4 forces several row tiles per sample at this tiny resolution so the
    # halo / partial-stats paths are exercised; real workloads use the VMEM budget.
    latent, skips = encoder_forward(x, params, strides=strides, row_cap=4)
    latent = jax.block_until_ready(latent)
    skips = [jax.block_until_ready(sk) for sk in skips]

    # Shape checks (mirror the torch module).
    assert latent.shape == (N, 8 * C_hid, H // 4, W // 4), latent.shape
    expected_skip_shapes = [
        (N, 8 * C_hid, H // 4, W // 4),   # enc5
        (N, 4 * C_hid, H // 2, W // 2),   # enc4
        (N, 4 * C_hid, H // 2, W // 2),   # enc3
        (N, 2 * C_hid, H, W),             # enc2
        (N, 1 * C_hid, H, W),             # enc1
    ]
    for got, exp in zip(skips, expected_skip_shapes):
        assert got.shape == exp, (got.shape, exp)

    # Numerical check vs the precision-matched pure-JAX reference.
    ref_latent, ref_skips = _ref_encoder(x, params, strides)
    ref_latent = jax.block_until_ready(ref_latent)

    assert bool(jnp.all(jnp.isfinite(latent)))
    max_err = float(jnp.max(jnp.abs(latent - ref_latent)))
    mean_err = float(jnp.mean(jnp.abs(latent - ref_latent)))
    max_err1 = float(jnp.max(jnp.abs(skips[-1] - ref_skips[-1])))
    assert max_err < 1.5e-1, f"latent max mismatch vs reference: {max_err}"
    assert mean_err < 1e-2, f"latent mean mismatch vs reference: {mean_err}"
    assert max_err1 < 1.5e-1, f"enc1 max mismatch vs reference: {max_err1}"

    print("KERNEL_OK")
</pallas_src>

<mosaic_0001>
module attributes {stable_mosaic.version = 11 : i64} {
  func.func @conv_stats_kernel(%arg0: i32, %arg1: i32, %arg2: memref<1x4x1x18x4xbf16, #tpu.memory_space<vmem>>, %arg3: memref<1x1x2x18x4xbf16, #tpu.memory_space<vmem>>, %arg4: memref<36x8xbf16, #tpu.memory_space<vmem>>, %arg5: memref<1x4x16x8xbf16, #tpu.memory_space<vmem>>, %arg6: memref<1x1x2x8xf32, #tpu.memory_space<vmem>>, %arg7: memref<4x16x36xbf16, #tpu.memory_space<vmem>>) attributes {dimension_semantics = [#tpu.dimension_semantics<parallel>, #tpu.dimension_semantics<parallel>], iteration_bounds = array<i64: 2, 4>, scalar_prefetch = 0 : i64, scratch_operands = 1 : i64, tpu.core_type = #tpu.core_type<tc>, window_params = [{transform_indices = @transform_0, window_bounds = array<i64: 1, 4, 1, 18, 4>}, {transform_indices = @transform_1, window_bounds = array<i64: 1, 1, 2, 18, 4>}, {pipeline_mode = #tpu.pipeline_mode<synchronous>, transform_indices = @transform_2, window_bounds = array<i64: 36, 8>}, {transform_indices = @transform_3, window_bounds = array<i64: 1, 4, 16, 8>}, {transform_indices = @transform_4, window_bounds = array<i64: 1, 1, 2, 8>}]} {
    %c0 = arith.constant 0 : index
    %c0_0 = arith.constant 0 : index
    %c0_1 = arith.constant 0 : index
    %c0_2 = arith.constant 0 : index
    %c0_3 = arith.constant 0 : index
    %0 = vector.load %arg3[%c0, %c0_0, %c0_1, %c0_2, %c0_3] : memref<1x1x2x18x4xbf16, #tpu.memory_space<vmem>>, vector<1x1x1x16x4xbf16>
    %1 = vector.shape_cast %0 : vector<1x1x1x16x4xbf16> to vector<1x16x4xbf16>
    %c0_4 = arith.constant 0 : index
    %c0_5 = arith.constant 0 : index
    %c0_6 = arith.constant 0 : index
    %2 = vector.load %arg7[%c0_4, %c0_5, %c0_6] : memref<4x16x36xbf16, #tpu.memory_space<vmem>>, vector<1x16x4xbf16>
    tpu.vector_store %arg7[%c0_4, %c0_5, %c0_6], %1 {strides = array<i32>} : memref<4x16x36xbf16, #tpu.memory_space<vmem>>, vector<1x16x4xbf16>,
    %c0_7 = arith.constant 0 : index
    %c0_8 = arith.constant 0 : index
    %c0_9 = arith.constant 0 : index
    %c0_10 = arith.constant 0 : index
    %c0_11 = arith.constant 0 : index
    %3 = vector.load %arg2[%c0_7, %c0_8, %c0_9, %c0_10, %c0_11] : memref<1x4x1x18x4xbf16, #tpu.memory_space<vmem>>, vector<1x3x1x16x4xbf16>
    %4 = vector.shape_cast %3 : vector<1x3x1x16x4xbf16> to vector<3x16x4xbf16>
    %c1 = arith.constant 1 : index
    %c0_12 = arith.constant 0 : index
    %c0_13 = arith.constant 0 : index
    %5 = vector.load %arg7[%c1, %c0_12, %c0_13] : memref<4x16x36xbf16, #tpu.memory_space<vmem>>, vector<3x16x4xbf16>
    tpu.vector_store %arg7[%c1, %c0_12, %c0_13], %4 {strides = array<i32>} : memref<4x16x36xbf16, #tpu.memory_space<vmem>>, vector<3x16x4xbf16>,
    %c0_14 = arith.constant 0 : index
    %c0_15 = arith.constant 0 : index
    %c0_16 = arith.constant 0 : index
    %c1_17 = arith.constant 1 : index
    %c0_18 = arith.constant 0 : index
    %6 = vector.load %arg3[%c0_14, %c0_15, %c0_16, %c1_17, %c0_18] : memref<1x1x2x18x4xbf16, #tpu.memory_space<vmem>>, vector<1x1x1x16x4xbf16>
    %7 = vector.shape_cast %6 : vector<1x1x1x16x4xbf16> to vector<1x16x4xbf16>
    %c0_19 = arith.constant 0 : index
    %c0_20 = arith.constant 0 : index
    %c4 = arith.constant 4 : index
    %8 = vector.load %arg7[%c0_19, %c0_20, %c4] : memref<4x16x36xbf16, #tpu.memory_space<vmem>>, vector<1x16x4xbf16>
    tpu.vector_store %arg7[%c0_19, %c0_20, %c4], %7 {strides = array<i32>} : memref<4x16x36xbf16, #tpu.memory_space<vmem>>, vector<1x16x4xbf16>,
    %c0_21 = arith.constant 0 : index
    %c0_22 = arith.constant 0 : index
    %c0_23 = arith.constant 0 : index
    %c1_24 = arith.constant 1 : index
    %c0_25 = arith.constant 0 : index
    %9 = vector.load %arg2[%c0_21, %c0_22, %c0_23, %c1_24, %c0_25] : memref<1x4x1x18x4xbf16, #tpu.memory_space<vmem>>, vector<1x3x1x16x4xbf16>
    %10 = vector.shape_cast %9 : vector<1x3x1x16x4xbf16> to vector<3x16x4xbf16>
    %c1_26 = arith.constant 1 : index
    %c0_27 = arith.constant 0 : index
    %c4_28 = arith.constant 4 : index
    %11 = vector.load %arg7[%c1_26, %c0_27, %c4_28] : memref<4x16x36xbf16, #tpu.memory_space<vmem>>, vector<3x16x4xbf16>
    tpu.vector_store %arg7[%c1_26, %c0_27, %c4_28], %10 {strides = array<i32>} : memref<4x16x36xbf16, #tpu.memory_space<vmem>>, vector<3x16x4xbf16>,
    %c0_29 = arith.constant 0 : index
    %c0_30 = arith.constant 0 : index
    %c0_31 = arith.constant 0 : index
    %c2 = arith.constant 2 : index
    %c0_32 = arith.constant 0 : index
    %12 = vector.load %arg3[%c0_29, %c0_30, %c0_31, %c2, %c0_32] : memref<1x1x2x18x4xbf16, #tpu.memory_space<vmem>>, vector<1x1x1x16x4xbf16>
    %13 = vector.shape_cast %12 : vector<1x1x1x16x4xbf16> to vector<1x16x4xbf16>
    %c0_33 = arith.constant 0 : index
    %c0_34 = arith.constant 0 : index
    %c8 = arith.constant 8 : index
    %14 = vector.load %arg7[%c0_33, %c0_34, %c8] : memref<4x16x36xbf16, #tpu.memory_space<vmem>>, vector<1x16x4xbf16>
    tpu.vector_store %arg7[%c0_33, %c0_34, %c8], %13 {strides = array<i32>} : memref<4x16x36xbf16, #tpu.memory_space<vmem>>, vector<1x16x4xbf16>,
    %c0_35 = arith.constant 0 : index
    %c0_36 = arith.constant 0 : index
    %c0_37 = arith.constant 0 : index
    %c2_38 = arith.constant 2 : index
    %c0_39 = arith.constant 0 : index
    %15 = vector.load %arg2[%c0_35, %c0_36, %c0_37, %c2_38, %c0_39] : memref<1x4x1x18x4xbf16, #tpu.memory_space<vmem>>, vector<1x3x1x16x4xbf16>
    %16 = vector.shape_cast %15 : vector<1x3x1x16x4xbf16> to vector<3x16x4xbf16>
    %c1_40 = arith.constant 1 : index
    %c0_41 = arith.constant 0 : index
    %c8_42 = arith.constant 8 : index
    %17 = vector.load %arg7[%c1_40, %c0_41, %c8_42] : memref<4x16x36xbf16, #tpu.memory_space<vmem>>, vector<3x16x4xbf16>
    tpu.vector_store %arg7[%c1_40, %c0_41, %c8_42], %16 {strides = array<i32>} : memref<4x16x36xbf16, #tpu.memory_space<vmem>>, vector<3x16x4xbf16>,
    %c0_43 = arith.constant 0 : index
    %c0_44 = arith.constant 0 : index
    %c0_45 = arith.constant 0 : index
    %c0_46 = arith.constant 0 : index
    %c0_47 = arith.constant 0 : index
    %18 = vector.load %arg2[%c0_43, %c0_44, %c0_45, %c0_46, %c0_47] : memref<1x4x1x18x4xbf16, #tpu.memory_space<vmem>>, vector<1x4x1x16x4xbf16>
    %19 = vector.shape_cast %18 : vector<1x4x1x16x4xbf16> to vector<4x16x4xbf16>
    %c0_48 = arith.constant 0 : index
    %c0_49 = arith.constant 0 : index
    %c12 = arith.constant 12 : index
    %20 = vector.load %arg7[%c0_48, %c0_49, %c12] : memref<4x16x36xbf16, #tpu.memory_space<vmem>>, vector<4x16x4xbf16>
    tpu.vector_store %arg7[%c0_48, %c0_49, %c12], %19 {strides = array<i32>} : memref<4x16x36xbf16, #tpu.memory_space<vmem>>, vector<4x16x4xbf16>,
    %c0_50 = arith.constant 0 : index
    %c0_51 = arith.constant 0 : index
    %c0_52 = arith.constant 0 : index
    %c1_53 = arith.constant 1 : index
    %c0_54 = arith.constant 0 : index
    %21 = vector.load %arg2[%c0_50, %c0_51, %c0_52, %c1_53, %c0_54] : memref<1x4x1x18x4xbf16, #tpu.memory_space<vmem>>, vector<1x4x1x16x4xbf16>
    %22 = vector.shape_cast %21 : vector<1x4x1x16x4xbf16> to vector<4x16x4xbf16>
    %c0_55 = arith.constant 0 : index
    %c0_56 = arith.constant 0 : index
    %c16 = arith.constant 16 : index
    %23 = vector.load %arg7[%c0_55, %c0_56, %c16] : memref<4x16x36xbf16, #tpu.memory_space<vmem>>, vector<4x16x4xbf16>
    tpu.vector_store %arg7[%c0_55, %c0_56, %c16], %22 {strides = array<i32>} : memref<4x16x36xbf16, #tpu.memory_space<vmem>>, vector<4x16x4xbf16>,
    %c0_57 = arith.constant 0 : index
    %c0_58 = arith.constant 0 : index
    %c0_59 = arith.constant 0 : index
    %c2_60 = arith.constant 2 : index
    %c0_61 = arith.constant 0 : index
    %24 = vector.load %arg2[%c0_57, %c0_58, %c0_59, %c2_60, %c0_61] : memref<1x4x1x18x4xbf16, #tpu.memory_space<vmem>>, vector<1x4x1x16x4xbf16>
    %25 = vector.shape_cast %24 : vector<1x4x1x16x4xbf16> to vector<4x16x4xbf16>
    %c0_62 = arith.constant 0 : index
    %c0_63 = arith.constant 0 : index
    %c20 = arith.constant 20 : index
    %26 = vector.load %arg7[%c0_62, %c0_63, %c20] : memref<4x16x36xbf16, #tpu.memory_space<vmem>>, vector<4x16x4xbf16>
    tpu.vector_store %arg7[%c0_62, %c0_63, %c20], %25 {strides = array<i32>} : memref<4x16x36xbf16, #tpu.memory_space<vmem>>, vector<4x16x4xbf16>,
    %c0_64 = arith.constant 0 : index
    %c1_65 = arith.constant 1 : index
    %c0_66 = arith.constant 0 : index
    %c0_67 = arith.constant 0 : index
    %c0_68 = arith.constant 0 : index
    %27 = vector.load %arg2[%c0_64, %c1_65, %c0_66, %c0_67, %c0_68] : memref<1x4x1x18x4xbf16, #tpu.memory_space<vmem>>, vector<1x3x1x16x4xbf16>
    %28 = vector.shape_cast %27 : vector<1x3x1x16x4xbf16> to vector<3x16x4xbf16>
    %c0_69 = arith.constant 0 : index
    %c0_70 = arith.constant 0 : index
    %c24 = arith.constant 24 : index
    %29 = vector.load %arg7[%c0_69, %c0_70, %c24] : memref<4x16x36xbf16, #tpu.memory_space<vmem>>, vector<3x16x4xbf16>
    tpu.vector_store %arg7[%c0_69, %c0_70, %c24], %28 {strides = array<i32>} : memref<4x16x36xbf16, #tpu.memory_space<vmem>>, vector<3x16x4xbf16>,
    %c0_71 = arith.constant 0 : index
    %c0_72 = arith.constant 0 : index
    %c1_73 = arith.constant 1 : index
    %c0_74 = arith.constant 0 : index
    %c0_75 = arith.constant 0 : index
    %30 = vector.load %arg3[%c0_71, %c0_72, %c1_73, %c0_74, %c0_75] : memref<1x1x2x18x4xbf16, #tpu.memory_space<vmem>>, vector<1x1x1x16x4xbf16>
    %31 = vector.shape_cast %30 : vector<1x1x1x16x4xbf16> to vector<1x16x4xbf16>
    %c3 = arith.constant 3 : index
    %c0_76 = arith.constant 0 : index
    %c24_77 = arith.constant 24 : index
    %32 = vector.load %arg7[%c3, %c0_76, %c24_77] : memref<4x16x36xbf16, #tpu.memory_space<vmem>>, vector<1x16x4xbf16>
    tpu.vector_store %arg7[%c3, %c0_76, %c24_77], %31 {strides = array<i32>} : memref<4x16x36xbf16, #tpu.memory_space<vmem>>, vector<1x16x4xbf16>,
    %c0_78 = arith.constant 0 : index
    %c1_79 = arith.constant 1 : index
    %c0_80 = arith.constant 0 : index
    %c1_81 = arith.constant 1 : index
    %c0_82 = arith.constant 0 : index
    %33 = vector.load %arg2[%c0_78, %c1_79, %c0_80, %c1_81, %c0_82] : memref<1x4x1x18x4xbf16, #tpu.memory_space<vmem>>, vector<1x3x1x16x4xbf16>
    %34 = vector.shape_cast %33 : vector<1x3x1x16x4xbf16> to vector<3x16x4xbf16>
    %c0_83 = arith.constant 0 : index
    %c0_84 = arith.constant 0 : index
    %c28 = arith.constant 28 : index
    %35 = vector.load %arg7[%c0_83, %c0_84, %c28] : memref<4x16x36xbf16, #tpu.memory_space<vmem>>, vector<3x16x4xbf16>
    tpu.vector_store %arg7[%c0_83, %c0_84, %c28], %34 {strides = array<i32>} : memref<4x16x36xbf16, #tpu.memory_space<vmem>>, vector<3x16x4xbf16>,
    %c0_85 = arith.constant 0 : index
    %c0_86 = arith.constant 0 : index
    %c1_87 = arith.constant 1 : index
    %c1_88 = arith.constant 1 : index
    %c0_89 = arith.constant 0 : index
    %36 = vector.load %arg3[%c0_85, %c0_86, %c1_87, %c1_88, %c0_89] : memref<1x1x2x18x4xbf16, #tpu.memory_space<vmem>>, vector<1x1x1x16x4xbf16>
    %37 = vector.shape_cast %36 : vector<1x1x1x16x4xbf16> to vector<1x16x4xbf16>
    %c3_90 = arith.constant 3 : index
    %c0_91 = arith.constant 0 : index
    %c28_92 = arith.constant 28 : index
    %38 = vector.load %arg7[%c3_90, %c0_91, %c28_92] : memref<4x16x36xbf16, #tpu.memory_space<vmem>>, vector<1x16x4xbf16>
    tpu.vector_store %arg7[%c3_90, %c0_91, %c28_92], %37 {strides = array<i32>} : memref<4x16x36xbf16, #tpu.memory_space<vmem>>, vector<1x16x4xbf16>,
    %c0_93 = arith.constant 0 : index
    %c1_94 = arith.constant 1 : index
    %c0_95 = arith.constant 0 : index
    %c2_96 = arith.constant 2 : index
    %c0_97 = arith.constant 0 : index
    %39 = vector.load %arg2[%c0_93, %c1_94, %c0_95, %c2_96, %c0_97] : memref<1x4x1x18x4xbf16, #tpu.memory_space<vmem>>, vector<1x3x1x16x4xbf16>
    %40 = vector.shape_cast %39 : vector<1x3x1x16x4xbf16> to vector<3x16x4xbf16>
    %c0_98 = arith.constant 0 : index
    %c0_99 = arith.constant 0 : index
    %c32 = arith.constant 32 : index
    %41 = vector.load %arg7[%c0_98, %c0_99, %c32] : memref<4x16x36xbf16, #tpu.memory_space<vmem>>, vector<3x16x4xbf16>
    tpu.vector_store %arg7[%c0_98, %c0_99, %c32], %40 {strides = array<i32>} : memref<4x16x36xbf16, #tpu.memory_space<vmem>>, vector<3x16x4xbf16>,
    %c0_100 = arith.constant 0 : index
    %c0_101 = arith.constant 0 : index
    %c1_102 = arith.constant 1 : index
    %c2_103 = arith.constant 2 : index
    %c0_104 = arith.constant 0 : index
    %42 = vector.load %arg3[%c0_100, %c0_101, %c1_102, %c2_103, %c0_104] : memref<1x1x2x18x4xbf16, #tpu.memory_space<vmem>>, vector<1x1x1x16x4xbf16>
    %43 = vector.shape_cast %42 : vector<1x1x1x16x4xbf16> to vector<1x16x4xbf16>
    %c3_105 = arith.constant 3 : index
    %c0_106 = arith.constant 0 : index
    %c32_107 = arith.constant 32 : index
    %44 = vector.load %arg7[%c3_105, %c0_106, %c32_107] : memref<4x16x36xbf16, #tpu.memory_space<vmem>>, vector<1x16x4xbf16>
    tpu.vector_store %arg7[%c3_105, %c0_106, %c32_107], %43 {strides = array<i32>} : memref<4x16x36xbf16, #tpu.memory_space<vmem>>, vector<1x16x4xbf16>,
    %c0_108 = arith.constant 0 : index
    %c0_109 = arith.constant 0 : index
    %c0_110 = arith.constant 0 : index
    %45 = vector.load %arg7[%c0_108, %c0_109, %c0_110] : memref<4x16x36xbf16, #tpu.memory_space<vmem>>, vector<4x16x36xbf16>
    %46 = vector.shape_cast %45 : vector<4x16x36xbf16> to vector<64x36xbf16>
    %c0_111 = arith.constant 0 : index
    %c0_112 = arith.constant 0 : index
    %47 = vector.load %arg4[%c0_111, %c0_112] : memref<36x8xbf16, #tpu.memory_space<vmem>>, vector<36x8xbf16>
    %cst = arith.constant dense<0.000000e+00> : vector<64x8xf32>
    %48 = tpu.matmul %46, %47, %cst {dimension_numbers = #tpu.dot_dimension_numbers<[1], [0], [0], [1], [0, 0, 1, 1], [], []>} : vector<64x36xbf16>, vector<36x8xbf16>, vector<64x8xf32> -> vector<64x8xf32>
    %49 = vector.shape_cast %48 : vector<64x8xf32> to vector<4x16x8xf32>
    %50 = arith.truncf %49 : vector<4x16x8xf32> to vector<4x16x8xbf16>
    %c0_113 = arith.constant 0 : index
    %c0_114 = arith.constant 0 : index
    %c0_115 = arith.constant 0 : index
    %c0_116 = arith.constant 0 : index
    %51 = vector.load %arg5[%c0_113, %c0_114, %c0_115, %c0_116] : memref<1x4x16x8xbf16, #tpu.memory_space<vmem>>, vector<1x4x16x8xbf16>
    %52 = vector.shape_cast %51 : vector<1x4x16x8xbf16> to vector<4x16x8xbf16>
    %53 = vector.shape_cast %50 : vector<4x16x8xbf16> to vector<1x4x16x8xbf16>
    tpu.vector_store %arg5[%c0_113, %c0_114, %c0_115, %c0_116], %53 {strides = array<i32>} : memref<1x4x16x8xbf16, #tpu.memory_space<vmem>>, vector<1x4x16x8xbf16>,
    %cst_117 = arith.constant dense<0.000000e+00> : vector<8xf32>
    %54 = vector.multi_reduction <add>, %48, %cst_117 [0] : vector<64x8xf32> to vector<8xf32>
    %55 = vector.shape_cast %54 : vector<8xf32> to vector<1x8xf32>
    %c0_118 = arith.constant 0 : index
    %c0_119 = arith.constant 0 : index
    %c0_120 = arith.constant 0 : index
    %c0_121 = arith.constant 0 : index
    %56 = vector.load %arg6[%c0_118, %c0_119, %c0_120, %c0_121] : memref<1x1x2x8xf32, #tpu.memory_space<vmem>>, vector<1x1x1x8xf32>
    %57 = vector.shape_cast %56 : vector<1x1x1x8xf32> to vector<1x8xf32>
    %58 = vector.shape_cast %55 : vector<1x8xf32> to vector<1x1x1x8xf32>
    tpu.vector_store %arg6[%c0_118, %c0_119, %c0_120, %c0_121], %58 {strides = array<i32>} : memref<1x1x2x8xf32, #tpu.memory_space<vmem>>, vector<1x1x1x8xf32>,
    %59 = arith.mulf %48, %48 : vector<64x8xf32>
    %cst_122 = arith.constant dense<0.000000e+00> : vector<8xf32>
    %60 = vector.multi_reduction <add>, %59, %cst_122 [0] : vector<64x8xf32> to vector<8xf32>
    %61 = vector.shape_cast %60 : vector<8xf32> to vector<1x8xf32>
    %c0_123 = arith.constant 0 : index
    %c0_124 = arith.constant 0 : index
    %c1_125 = arith.constant 1 : index
    %c0_126 = arith.constant 0 : index
    %62 = vector.load %arg6[%c0_123, %c0_124, %c1_125, %c0_126] : memref<1x1x2x8xf32, #tpu.memory_space<vmem>>, vector<1x1x1x8xf32>
    %63 = vector.shape_cast %62 : vector<1x1x1x8xf32> to vector<1x8xf32>
    %64 = vector.shape_cast %61 : vector<1x8xf32> to vector<1x1x1x8xf32>
    tpu.vector_store %arg6[%c0_123, %c0_124, %c1_125, %c0_126], %64 {strides = array<i32>} : memref<1x1x2x8xf32, #tpu.memory_space<vmem>>, vector<1x1x1x8xf32>,
    return
  }
  func.func @transform_0(%arg0: i32, %arg1: i32) -> (i32, i32, i32, i32, i32) {
    %c0_i32 = arith.constant 0 : i32
    %c0_i32_0 = arith.constant 0 : i32
    %c0_i32_1 = arith.constant 0 : i32
    %c0_i32_2 = arith.constant 0 : i32
    return %arg0, %arg1, %c0_i32, %c0_i32_0, %c0_i32_1 : i32, i32, i32, i32, i32
  }
  func.func @transform_1(%arg0: i32, %arg1: i32) -> (i32, i32, i32, i32, i32) {
    %c0_i32 = arith.constant 0 : i32
    %c0_i32_0 = arith.constant 0 : i32
    %c0_i32_1 = arith.constant 0 : i32
    %c0_i32_2 = arith.constant 0 : i32
    return %arg0, %arg1, %c0_i32, %c0_i32_0, %c0_i32_1 : i32, i32, i32, i32, i32
  }
  func.func @transform_2(%arg0: i32, %arg1: i32) -> (i32, i32) {
    %c0_i32 = arith.constant 0 : i32
    %c0_i32_0 = arith.constant 0 : i32
    %c0_i32_1 = arith.constant 0 : i32
    return %c0_i32, %c0_i32_0 : i32, i32
  }
  func.func @transform_3(%arg0: i32, %arg1: i32) -> (i32, i32, i32, i32) {
    %c0_i32 = arith.constant 0 : i32
    %c0_i32_0 = arith.constant 0 : i32
    %c0_i32_1 = arith.constant 0 : i32
    return %arg0, %arg1, %c0_i32, %c0_i32_0 : i32, i32, i32, i32
  }
  func.func @transform_4(%arg0: i32, %arg1: i32) -> (i32, i32, i32, i32) {
    %c0_i32 = arith.constant 0 : i32
    %c0_i32_0 = arith.constant 0 : i32
    %c0_i32_1 = arith.constant 0 : i32
    return %arg0, %arg1, %c0_i32, %c0_i32_0 : i32, i32, i32, i32
  }
}

module attributes {stable_mosaic.version = 11 : i64} {
  func.func @norm_act_kernel(%arg0: i32, %arg1: i32, %arg2: memref<1x16x128xbf16, #tpu.memory_space<vmem>>, %arg3: memref<1x1x128xf32, #tpu.memory_space<vmem>>, %arg4: memref<1x1x128xf32, #tpu.memory_space<vmem>>, %arg5: memref<1x16x144xbf16, #tpu.memory_space<vmem>>) attributes {dimension_semantics = [#tpu.dimension_semantics<parallel>, #tpu.dimension_semantics<parallel>], iteration_bounds = array<i64: 2, 1>, scalar_prefetch = 0 : i64, scratch_operands = 0 : i64, tpu.core_type = #tpu.core_type<tc>, window_params = [{transform_indices = @transform_0, window_bounds = array<i64: 1, 16, 128>}, {transform_indices = @transform_1, window_bounds = array<i64: 1, 1, 128>}, {transform_indices = @transform_2, window_bounds = array<i64: 1, 1, 128>}, {transform_indices = @transform_3, window_bounds = array<i64: 1, 16, 144>}]} {
    %c0 = arith.constant 0 : index
    %c0_0 = arith.constant 0 : index
    %c0_1 = arith.constant 0 : index
    %0 = vector.load %arg2[%c0, %c0_0, %c0_1] : memref<1x16x128xbf16, #tpu.memory_space<vmem>>, vector<1x16x128xbf16>
    %1 = vector.shape_cast %0 : vector<1x16x128xbf16> to vector<16x128xbf16>
    %2 = arith.extf %1 : vector<16x128xbf16> to vector<16x128xf32>
    %c0_2 = arith.constant 0 : index
    %c0_3 = arith.constant 0 : index
    %c0_4 = arith.constant 0 : index
    %3 = vector.load %arg3[%c0_2, %c0_3, %c0_4] : memref<1x1x128xf32, #tpu.memory_space<vmem>>, vector<1x1x128xf32>
    %4 = vector.shape_cast %3 : vector<1x1x128xf32> to vector<1x128xf32>
    %5 = vector.broadcast %4 : vector<1x128xf32> to vector<16x128xf32>
    %6 = arith.mulf %2, %5 : vector<16x128xf32>
    %c0_5 = arith.constant 0 : index
    %c0_6 = arith.constant 0 : index
    %c0_7 = arith.constant 0 : index
    %7 = vector.load %arg4[%c0_5, %c0_6, %c0_7] : memref<1x1x128xf32, #tpu.memory_space<vmem>>, vector<1x1x128xf32>
    %8 = vector.shape_cast %7 : vector<1x1x128xf32> to vector<1x128xf32>
    %9 = vector.broadcast %8 : vector<1x128xf32> to vector<16x128xf32>
    %10 = arith.addf %6, %9 : vector<16x128xf32>
    %cst = arith.constant 0.000000e+00 : f32
    %11 = vector.broadcast %cst : f32 to vector<16x128xf32>
    %12 = arith.cmpf ogt, %10, %11 : vector<16x128xf32>
    %cst_8 = arith.constant 2.000000e-01 : f32
    %13 = vector.broadcast %cst_8 : f32 to vector<16x128xf32>
    %14 = arith.mulf %13, %10 : vector<16x128xf32>
    %15 = arith.select %12, %10, %14 : vector<16x128xi1>, vector<16x128xf32>
    %16 = arith.truncf %15 : vector<16x128xf32> to vector<16x128xbf16>
    %cst_9 = arith.constant 0.000000e+00 : bf16
    %17 = vector.broadcast %cst_9 : bf16 to vector<16x8xbf16>
    %c0_10 = arith.constant 0 : index
    %c0_11 = arith.constant 0 : index
    %c0_12 = arith.constant 0 : index
    %18 = vector.load %arg5[%c0_10, %c0_11, %c0_12] : memref<1x16x144xbf16, #tpu.memory_space<vmem>>, vector<1x16x8xbf16>
    %19 = vector.shape_cast %18 : vector<1x16x8xbf16> to vector<16x8xbf16>
    %20 = vector.shape_cast %17 : vector<16x8xbf16> to vector<1x16x8xbf16>
    tpu.vector_store %arg5[%c0_10, %c0_11, %c0_12], %20 {strides = array<i32>} : memref<1x16x144xbf16, #tpu.memory_space<vmem>>, vector<1x16x8xbf16>,
    %c0_13 = arith.constant 0 : index
    %c0_14 = arith.constant 0 : index
    %c8 = arith.constant 8 : index
    %21 = vector.load %arg5[%c0_13, %c0_14, %c8] : memref<1x16x144xbf16, #tpu.memory_space<vmem>>, vector<1x16x128xbf16>
    %22 = vector.shape_cast %21 : vector<1x16x128xbf16> to vector<16x128xbf16>
    %23 = vector.shape_cast %16 : vector<16x128xbf16> to vector<1x16x128xbf16>
    tpu.vector_store %arg5[%c0_13, %c0_14, %c8], %23 {strides = array<i32>} : memref<1x16x144xbf16, #tpu.memory_space<vmem>>, vector<1x16x128xbf16>,
    %c0_15 = arith.constant 0 : index
    %c0_16 = arith.constant 0 : index
    %c136 = arith.constant 136 : index
    %24 = vector.load %arg5[%c0_15, %c0_16, %c136] : memref<1x16x144xbf16, #tpu.memory_space<vmem>>, vector<1x16x8xbf16>
    %25 = vector.shape_cast %24 : vector<1x16x8xbf16> to vector<16x8xbf16>
    %26 = vector.shape_cast %17 : vector<16x8xbf16> to vector<1x16x8xbf16>
    tpu.vector_store %arg5[%c0_15, %c0_16, %c136], %26 {strides = array<i32>} : memref<1x16x144xbf16, #tpu.memory_space<vmem>>, vector<1x16x8xbf16>,
    return
  }
  func.func @transform_0(%arg0: i32, %arg1: i32) -> (i32, i32, i32) {
    %c0_i32 = arith.constant 0 : i32
    %c0_i32_0 = arith.constant 0 : i32
    return %arg0, %arg1, %c0_i32 : i32, i32, i32
  }
  func.func @transform_1(%arg0: i32, %arg1: i32) -> (i32, i32, i32) {
    %c0_i32 = arith.constant 0 : i32
    %c0_i32_0 = arith.constant 0 : i32
    %c0_i32_1 = arith.constant 0 : i32
    return %arg0, %c0_i32, %c0_i32_0 : i32, i32, i32
  }
  func.func @transform_2(%arg0: i32, %arg1: i32) -> (i32, i32, i32) {
    %c0_i32 = arith.constant 0 : i32
    %c0_i32_0 = arith.constant 0 : i32
    %c0_i32_1 = arith.constant 0 : i32
    return %arg0, %c0_i32, %c0_i32_0 : i32, i32, i32
  }
  func.func @transform_3(%arg0: i32, %arg1: i32) -> (i32, i32, i32) {
    %c0_i32 = arith.constant 0 : i32
    %c0_i32_0 = arith.constant 0 : i32
    return %arg0, %arg1, %c0_i32 : i32, i32, i32
  }
}

module attributes {stable_mosaic.version = 11 : i64} {
  func.func @conv_stats_kernel(%arg0: i32, %arg1: i32, %arg2: memref<1x4x1x18x8xbf16, #tpu.memory_space<vmem>>, %arg3: memref<1x1x2x18x8xbf16, #tpu.memory_space<vmem>>, %arg4: memref<72x16xbf16, #tpu.memory_space<vmem>>, %arg5: memref<1x4x16x16xbf16, #tpu.memory_space<vmem>>, %arg6: memref<1x1x2x16xf32, #tpu.memory_space<vmem>>, %arg7: memref<4x16x72xbf16, #tpu.memory_space<vmem>>) attributes {dimension_semantics = [#tpu.dimension_semantics<parallel>, #tpu.dimension_semantics<parallel>], iteration_bounds = array<i64: 2, 4>, scalar_prefetch = 0 : i64, scratch_operands = 1 : i64, tpu.core_type = #tpu.core_type<tc>, window_params = [{transform_indices = @transform_0, window_bounds = array<i64: 1, 4, 1, 18, 8>}, {transform_indices = @transform_1, window_bounds = array<i64: 1, 1, 2, 18, 8>}, {pipeline_mode = #tpu.pipeline_mode<synchronous>, transform_indices = @transform_2, window_bounds = array<i64: 72, 16>}, {transform_indices = @transform_3, window_bounds = array<i64: 1, 4, 16, 16>}, {transform_indices = @transform_4, window_bounds = array<i64: 1, 1, 2, 16>}]} {
    %c0 = arith.constant 0 : index
    %c0_0 = arith.constant 0 : index
    %c0_1 = arith.constant 0 : index
    %c0_2 = arith.constant 0 : index
    %c0_3 = arith.constant 0 : index
    %0 = vector.load %arg3[%c0, %c0_0, %c0_1, %c0_2, %c0_3] : memref<1x1x2x18x8xbf16, #tpu.memory_space<vmem>>, vector<1x1x1x16x8xbf16>
    %1 = vector.shape_cast %0 : vector<1x1x1x16x8xbf16> to vector<1x16x8xbf16>
    %c0_4 = arith.constant 0 : index
    %c0_5 = arith.constant 0 : index
    %c0_6 = arith.constant 0 : index
    %2 = vector.load %arg7[%c0_4, %c0_5, %c0_6] : memref<4x16x72xbf16, #tpu.memory_space<vmem>>, vector<1x16x8xbf16>
    tpu.vector_store %arg7[%c0_4, %c0_5, %c0_6], %1 {strides = array<i32>} : memref<4x16x72xbf16, #tpu.memory_space<vmem>>, vector<1x16x8xbf16>,
    %c0_7 = arith.constant 0 : index
    %c0_8 = arith.constant 0 : index
    %c0_9 = arith.constant 0 : index
    %c0_10 = arith.constant 0 : index
    %c0_11 = arith.constant 0 : index
    %3 = vector.load %arg2[%c0_7, %c0_8, %c0_9, %c0_10, %c0_11] : memref<1x4x1x18x8xbf16, #tpu.memory_space<vmem>>, vector<1x3x1x16x8xbf16>
    %4 = vector.shape_cast %3 : vector<1x3x1x16x8xbf16> to vector<3x16x8xbf16>
    %c1 = arith.constant 1 : index
    %c0_12 = arith.constant 0 : index
    %c0_13 = arith.constant 0 : index
    %5 = vector.load %arg7[%c1, %c0_12, %c0_13] : memref<4x16x72xbf16, #tpu.memory_space<vmem>>, vector<3x16x8xbf16>
    tpu.vector_store %arg7[%c1, %c0_12, %c0_13], %4 {strides = array<i32>} : memref<4x16x72xbf16, #tpu.memory_space<vmem>>, vector<3x16x8xbf16>,
    %c0_14 = arith.constant 0 : index
    %c0_15 = arith.constant 0 : index
    %c0_16 = arith.constant 0 : index
    %c1_17 = arith.constant 1 : index
    %c0_18 = arith.constant 0 : index
    %6 = vector.load %arg3[%c0_14, %c0_15, %c0_16, %c1_17, %c0_18] : memref<1x1x2x18x8xbf16, #tpu.memory_space<vmem>>, vector<1x1x1x16x8xbf16>
    %7 = vector.shape_cast %6 : vector<1x1x1x16x8xbf16> to vector<1x16x8xbf16>
    %c0_19 = arith.constant 0 : index
    %c0_20 = arith.constant 0 : index
    %c8 = arith.constant 8 : index
    %8 = vector.load %arg7[%c0_19, %c0_20, %c8] : memref<4x16x72xbf16, #tpu.memory_space<vmem>>, vector<1x16x8xbf16>
    tpu.vector_store %arg7[%c0_19, %c0_20, %c8], %7 {strides = array<i32>} : memref<4x16x72xbf16, #tpu.memory_space<vmem>>, vector<1x16x8xbf16>,
    %c0_21 = arith.constant 0 : index
    %c0_22 = arith.constant 0 : index
    %c0_23 = arith.constant 0 : index
    %c1_24 = arith.constant 1 : index
    %c0_25 = arith.constant 0 : index
    %9 = vector.load %arg2[%c0_21, %c0_22, %c0_23, %c1_24, %c0_25] : memref<1x4x1x18x8xbf16, #tpu.memory_space<vmem>>, vector<1x3x1x16x8xbf16>
    %10 = vector.shape_cast %9 : vector<1x3x1x16x8xbf16> to vector<3x16x8xbf16>
    %c1_26 = arith.constant 1 : index
    %c0_27 = arith.constant 0 : index
    %c8_28 = arith.constant 8 : index
    %11 = vector.load %arg7[%c1_26, %c0_27, %c8_28] : memref<4x16x72xbf16, #tpu.memory_space<vmem>>, vector<3x16x8xbf16>
    tpu.vector_store %arg7[%c1_26, %c0_27, %c8_28], %10 {strides = array<i32>} : memref<4x16x72xbf16, #tpu.memory_space<vmem>>, vector<3x16x8xbf16>,
    %c0_29 = arith.constant 0 : index
    %c0_30 = arith.constant 0 : index
    %c0_31 = arith.constant 0 : index
    %c2 = arith.constant 2 : index
    %c0_32 = arith.constant 0 : index
    %12 = vector.load %arg3[%c0_29, %c0_30, %c0_31, %c2, %c0_32] : memref<1x1x2x18x8xbf16, #tpu.memory_space<vmem>>, vector<1x1x1x16x8xbf16>
    %13 = vector.shape_cast %12 : vector<1x1x1x16x8xbf16> to vector<1x16x8xbf16>
    %c0_33 = arith.constant 0 : index
    %c0_34 = arith.constant 0 : index
    %c16 = arith.constant 16 : index
    %14 = vector.load %arg7[%c0_33, %c0_34, %c16] : memref<4x16x72xbf16, #tpu.memory_space<vmem>>, vector<1x16x8xbf16>
    tpu.vector_store %arg7[%c0_33, %c0_34, %c16], %13 {strides = array<i32>} : memref<4x16x72xbf16, #tpu.memory_space<vmem>>, vector<1x16x8xbf16>,
    %c0_35 = arith.constant 0 : index
    %c0_36 = arith.constant 0 : index
    %c0_37 = arith.constant 0 : index
    %c2_38 = arith.constant 2 : index
    %c0_39 = arith.constant 0 : index
    %15 = vector.load %arg2[%c0_35, %c0_36, %c0_37, %c2_38, %c0_39] : memref<1x4x1x18x8xbf16, #tpu.memory_space<vmem>>, vector<1x3x1x16x8xbf16>
    %16 = vector.shape_cast %15 : vector<1x3x1x16x8xbf16> to vector<3x16x8xbf16>
    %c1_40 = arith.constant 1 : index
    %c0_41 = arith.constant 0 : index
    %c16_42 = arith.constant 16 : index
    %17 = vector.load %arg7[%c1_40, %c0_41, %c16_42] : memref<4x16x72xbf16, #tpu.memory_space<vmem>>, vector<3x16x8xbf16>
    tpu.vector_store %arg7[%c1_40, %c0_41, %c16_42], %16 {strides = array<i32>} : memref<4x16x72xbf16, #tpu.memory_space<vmem>>, vector<3x16x8xbf16>,
    %c0_43 = arith.constant 0 : index
    %c0_44 = arith.constant 0 : index
    %c0_45 = arith.constant 0 : index
    %c0_46 = arith.constant 0 : index
    %c0_47 = arith.constant 0 : index
    %18 = vector.load %arg2[%c0_43, %c0_44, %c0_45, %c0_46, %c0_47] : memref<1x4x1x18x8xbf16, #tpu.memory_space<vmem>>, vector<1x4x1x16x8xbf16>
    %19 = vector.shape_cast %18 : vector<1x4x1x16x8xbf16> to vector<4x16x8xbf16>
    %c0_48 = arith.constant 0 : index
    %c0_49 = arith.constant 0 : index
    %c24 = arith.constant 24 : index
    %20 = vector.load %arg7[%c0_48, %c0_49, %c24] : memref<4x16x72xbf16, #tpu.memory_space<vmem>>, vector<4x16x8xbf16>
    tpu.vector_store %arg7[%c0_48, %c0_49, %c24], %19 {strides = array<i32>} : memref<4x16x72xbf16, #tpu.memory_space<vmem>>, vector<4x16x8xbf16>,
    %c0_50 = arith.constant 0 : index
    %c0_51 = arith.constant 0 : index
    %c0_52 = arith.constant 0 : index
    %c1_53 = arith.constant 1 : index
    %c0_54 = arith.constant 0 : index
    %21 = vector.load %arg2[%c0_50, %c0_51, %c0_52, %c1_53, %c0_54] : memref<1x4x1x18x8xbf16, #tpu.memory_space<vmem>>, vector<1x4x1x16x8xbf16>
    %22 = vector.shape_cast %21 : vector<1x4x1x16x8xbf16> to vector<4x16x8xbf16>
    %c0_55 = arith.constant 0 : index
    %c0_56 = arith.constant 0 : index
    %c32 = arith.constant 32 : index
    %23 = vector.load %arg7[%c0_55, %c0_56, %c32] : memref<4x16x72xbf16, #tpu.memory_space<vmem>>, vector<4x16x8xbf16>
    tpu.vector_store %arg7[%c0_55, %c0_56, %c32], %22 {strides = array<i32>} : memref<4x16x72xbf16, #tpu.memory_space<vmem>>, vector<4x16x8xbf16>,
    %c0_57 = arith.constant 0 : index
    %c0_58 = arith.constant 0 : index
    %c0_59 = arith.constant 0 : index
    %c2_60 = arith.constant 2 : index
    %c0_61 = arith.constant 0 : index
    %24 = vector.load %arg2[%c0_57, %c0_58, %c0_59, %c2_60, %c0_61] : memref<1x4x1x18x8xbf16, #tpu.memory_space<vmem>>, vector<1x4x1x16x8xbf16>
    %25 = vector.shape_cast %24 : vector<1x4x1x16x8xbf16> to vector<4x16x8xbf16>
    %c0_62 = arith.constant 0 : index
    %c0_63 = arith.constant 0 : index
    %c40 = arith.constant 40 : index
    %26 = vector.load %arg7[%c0_62, %c0_63, %c40] : memref<4x16x72xbf16, #tpu.memory_space<vmem>>, vector<4x16x8xbf16>
    tpu.vector_store %arg7[%c0_62, %c0_63, %c40], %25 {strides = array<i32>} : memref<4x16x72xbf16, #tpu.memory_space<vmem>>, vector<4x16x8xbf16>,
    %c0_64 = arith.constant 0 : index
    %c1_65 = arith.constant 1 : index
    %c0_66 = arith.constant 0 : index
    %c0_67 = arith.constant 0 : index
    %c0_68 = arith.constant 0 : index
    %27 = vector.load %arg2[%c0_64, %c1_65, %c0_66, %c0_67, %c0_68] : memref<1x4x1x18x8xbf16, #tpu.memory_space<vmem>>, vector<1x3x1x16x8xbf16>
    %28 = vector.shape_cast %27 : vector<1x3x1x16x8xbf16> to vector<3x16x8xbf16>
    %c0_69 = arith.constant 0 : index
    %c0_70 = arith.constant 0 : index
    %c48 = arith.constant 48 : index
    %29 = vector.load %arg7[%c0_69, %c0_70, %c48] : memref<4x16x72xbf16, #tpu.memory_space<vmem>>, vector<3x16x8xbf16>
    tpu.vector_store %arg7[%c0_69, %c0_70, %c48], %28 {strides = array<i32>} : memref<4x16x72xbf16, #tpu.memory_space<vmem>>, vector<3x16x8xbf16>,
    %c0_71 = arith.constant 0 : index
    %c0_72 = arith.constant 0 : index
    %c1_73 = arith.constant 1 : index
    %c0_74 = arith.constant 0 : index
    %c0_75 = arith.constant 0 : index
    %30 = vector.load %arg3[%c0_71, %c0_72, %c1_73, %c0_74, %c0_75] : memref<1x1x2x18x8xbf16, #tpu.memory_space<vmem>>, vector<1x1x1x16x8xbf16>
    %31 = vector.shape_cast %30 : vector<1x1x1x16x8xbf16> to vector<1x16x8xbf16>
    %c3 = arith.constant 3 : index
    %c0_76 = arith.constant 0 : index
    %c48_77 = arith.constant 48 : index
    %32 = vector.load %arg7[%c3, %c0_76, %c48_77] : memref<4x16x72xbf16, #tpu.memory_space<vmem>>, vector<1x16x8xbf16>
    tpu.vector_store %arg7[%c3, %c0_76, %c48_77], %31 {strides = array<i32>} : memref<4x16x72xbf16, #tpu.memory_space<vmem>>, vector<1x16x8xbf16>,
    %c0_78 = arith.constant 0 : index
    %c1_79 = arith.constant 1 : index
    %c0_80 = arith.constant 0 : index
    %c1_81 = arith.constant 1 : index
    %c0_82 = arith.constant 0 : index
    %33 = vector.load %arg2[%c0_78, %c1_79, %c0_80, %c1_81, %c0_82] : memref<1x4x1x18x8xbf16, #tpu.memory_space<vmem>>, vector<1x3x1x16x8xbf16>
    %34 = vector.shape_cast %33 : vector<1x3x1x16x8xbf16> to vector<3x16x8xbf16>
    %c0_83 = arith.constant 0 : index
    %c0_84 = arith.constant 0 : index
    %c56 = arith.constant 56 : index
    %35 = vector.load %arg7[%c0_83, %c0_84, %c56] : memref<4x16x72xbf16, #tpu.memory_space<vmem>>, vector<3x16x8xbf16>
    tpu.vector_store %arg7[%c0_83, %c0_84, %c56], %34 {strides = array<i32>} : memref<4x16x72xbf16, #tpu.memory_space<vmem>>, vector<3x16x8xbf16>,
    %c0_85 = arith.constant 0 : index
    %c0_86 = arith.constant 0 : index
    %c1_87 = arith.constant 1 : index
    %c1_88 = arith.constant 1 : index
    %c0_89 = arith.constant 0 : index
    %36 = vector.load %arg3[%c0_85, %c0_86, %c1_87, %c1_88, %c0_89] : memref<1x1x2x18x8xbf16, #tpu.memory_space<vmem>>, vector<1x1x1x16x8xbf16>
    %37 = vector.shape_cast %36 : vector<1x1x1x16x8xbf16> to vector<1x16x8xbf16>
    %c3_90 = arith.constant 3 : index
    %c0_91 = arith.constant 0 : index
    %c56_92 = arith.constant 56 : index
    %38 = vector.load %arg7[%c3_90, %c0_91, %c56_92] : memref<4x16x72xbf16, #tpu.memory_space<vmem>>, vector<1x16x8xbf16>
    tpu.vector_store %arg7[%c3_90, %c0_91, %c56_92], %37 {strides = array<i32>} : memref<4x16x72xbf16, #tpu.memory_space<vmem>>, vector<1x16x8xbf16>,
    %c0_93 = arith.constant 0 : index
    %c1_94 = arith.constant 1 : index
    %c0_95 = arith.constant 0 : index
    %c2_96 = arith.constant 2 : index
    %c0_97 = arith.constant 0 : index
    %39 = vector.load %arg2[%c0_93, %c1_94, %c0_95, %c2_96, %c0_97] : memref<1x4x1x18x8xbf16, #tpu.memory_space<vmem>>, vector<1x3x1x16x8xbf16>
    %40 = vector.shape_cast %39 : vector<1x3x1x16x8xbf16> to vector<3x16x8xbf16>
    %c0_98 = arith.constant 0 : index
    %c0_99 = arith.constant 0 : index
    %c64 = arith.constant 64 : index
    %41 = vector.load %arg7[%c0_98, %c0_99, %c64] : memref<4x16x72xbf16, #tpu.memory_space<vmem>>, vector<3x16x8xbf16>
    tpu.vector_store %arg7[%c0_98, %c0_99, %c64], %40 {strides = array<i32>} : memref<4x16x72xbf16, #tpu.memory_space<vmem>>, vector<3x16x8xbf16>,
    %c0_100 = arith.constant 0 : index
    %c0_101 = arith.constant 0 : index
    %c1_102 = arith.constant 1 : index
    %c2_103 = arith.constant 2 : index
    %c0_104 = arith.constant 0 : index
    %42 = vector.load %arg3[%c0_100, %c0_101, %c1_102, %c2_103, %c0_104] : memref<1x1x2x18x8xbf16, #tpu.memory_space<vmem>>, vector<1x1x1x16x8xbf16>
    %43 = vector.shape_cast %42 : vector<1x1x1x16x8xbf16> to vector<1x16x8xbf16>
    %c3_105 = arith.constant 3 : index
    %c0_106 = arith.constant 0 : index
    %c64_107 = arith.constant 64 : index
    %44 = vector.load %arg7[%c3_105, %c0_106, %c64_107] : memref<4x16x72xbf16, #tpu.memory_space<vmem>>, vector<1x16x8xbf16>
    tpu.vector_store %arg7[%c3_105, %c0_106, %c64_107], %43 {strides = array<i32>} : memref<4x16x72xbf16, #tpu.memory_space<vmem>>, vector<1x16x8xbf16>,
    %c0_108 = arith.constant 0 : index
    %c0_109 = arith.constant 0 : index
    %c0_110 = arith.constant 0 : index
    %45 = vector.load %arg7[%c0_108, %c0_109, %c0_110] : memref<4x16x72xbf16, #tpu.memory_space<vmem>>, vector<4x16x72xbf16>
    %46 = vector.shape_cast %45 : vector<4x16x72xbf16> to vector<64x72xbf16>
    %c0_111 = arith.constant 0 : index
    %c0_112 = arith.constant 0 : index
    %47 = vector.load %arg4[%c0_111, %c0_112] : memref<72x16xbf16, #tpu.memory_space<vmem>>, vector<72x16xbf16>
    %cst = arith.constant dense<0.000000e+00> : vector<64x16xf32>
    %48 = tpu.matmul %46, %47, %cst {dimension_numbers = #tpu.dot_dimension_numbers<[1], [0], [0], [1], [0, 0, 1, 1], [], []>} : vector<64x72xbf16>, vector<72x16xbf16>, vector<64x16xf32> -> vector<64x16xf32>
    %49 = vector.shape_cast %48 : vector<64x16xf32> to vector<4x16x16xf32>
    %50 = arith.truncf %49 : vector<4x16x16xf32> to vector<4x16x16xbf16>
    %c0_113 = arith.constant 0 : index
    %c0_114 = arith.constant 0 : index
    %c0_115 = arith.constant 0 : index
    %c0_116 = arith.constant 0 : index
    %51 = vector.load %arg5[%c0_113, %c0_114, %c0_115, %c0_116] : memref<1x4x16x16xbf16, #tpu.memory_space<vmem>>, vector<1x4x16x16xbf16>
    %52 = vector.shape_cast %51 : vector<1x4x16x16xbf16> to vector<4x16x16xbf16>
    %53 = vector.shape_cast %50 : vector<4x16x16xbf16> to vector<1x4x16x16xbf16>
    tpu.vector_store %arg5[%c0_113, %c0_114, %c0_115, %c0_116], %53 {strides = array<i32>} : memref<1x4x16x16xbf16, #tpu.memory_space<vmem>>, vector<1x4x16x16xbf16>,
    %cst_117 = arith.constant dense<0.000000e+00> : vector<16xf32>
    %54 = vector.multi_reduction <add>, %48, %cst_117 [0] : vector<64x16xf32> to vector<16xf32>
    %55 = vector.shape_cast %54 : vector<16xf32> to vector<1x16xf32>
    %c0_118 = arith.constant 0 : index
    %c0_119 = arith.constant 0 : index
    %c0_120 = arith.constant 0 : index
    %c0_121 = arith.constant 0 : index
    %56 = vector.load %arg6[%c0_118, %c0_119, %c0_120, %c0_121] : memref<1x1x2x16xf32, #tpu.memory_space<vmem>>, vector<1x1x1x16xf32>
    %57 = vector.shape_cast %56 : vector<1x1x1x16xf32> to vector<1x16xf32>
    %58 = vector.shape_cast %55 : vector<1x16xf32> to vector<1x1x1x16xf32>
    tpu.vector_store %arg6[%c0_118, %c0_119, %c0_120, %c0_121], %58 {strides = array<i32>} : memref<1x1x2x16xf32, #tpu.memory_space<vmem>>, vector<1x1x1x16xf32>,
    %59 = arith.mulf %48, %48 : vector<64x16xf32>
    %cst_122 = arith.constant dense<0.000000e+00> : vector<16xf32>
    %60 = vector.multi_reduction <add>, %59, %cst_122 [0] : vector<64x16xf32> to vector<16xf32>
    %61 = vector.shape_cast %60 : vector<16xf32> to vector<1x16xf32>
    %c0_123 = arith.constant 0 : index
    %c0_124 = arith.constant 0 : index
    %c1_125 = arith.constant 1 : index
    %c0_126 = arith.constant 0 : index
    %62 = vector.load %arg6[%c0_123, %c0_124, %c1_125, %c0_126] : memref<1x1x2x16xf32, #tpu.memory_space<vmem>>, vector<1x1x1x16xf32>
    %63 = vector.shape_cast %62 : vector<1x1x1x16xf32> to vector<1x16xf32>
    %64 = vector.shape_cast %61 : vector<1x16xf32> to vector<1x1x1x16xf32>
    tpu.vector_store %arg6[%c0_123, %c0_124, %c1_125, %c0_126], %64 {strides = array<i32>} : memref<1x1x2x16xf32, #tpu.memory_space<vmem>>, vector<1x1x1x16xf32>,
    return
  }
  func.func @transform_0(%arg0: i32, %arg1: i32) -> (i32, i32, i32, i32, i32) {
    %c0_i32 = arith.constant 0 : i32
    %c0_i32_0 = arith.constant 0 : i32
    %c0_i32_1 = arith.constant 0 : i32
    %c0_i32_2 = arith.constant 0 : i32
    return %arg0, %arg1, %c0_i32, %c0_i32_0, %c0_i32_1 : i32, i32, i32, i32, i32
  }
  func.func @transform_1(%arg0: i32, %arg1: i32) -> (i32, i32, i32, i32, i32) {
    %c0_i32 = arith.constant 0 : i32
    %c0_i32_0 = arith.constant 0 : i32
    %c0_i32_1 = arith.constant 0 : i32
    %c0_i32_2 = arith.constant 0 : i32
    return %arg0, %arg1, %c0_i32, %c0_i32_0, %c0_i32_1 : i32, i32, i32, i32, i32
  }
  func.func @transform_2(%arg0: i32, %arg1: i32) -> (i32, i32) {
    %c0_i32 = arith.constant 0 : i32
    %c0_i32_0 = arith.constant 0 : i32
    %c0_i32_1 = arith.constant 0 : i32
    return %c0_i32, %c0_i32_0 : i32, i32
  }
  func.func @transform_3(%arg0: i32, %arg1: i32) -> (i32, i32, i32, i32) {
    %c0_i32 = arith.constant 0 : i32
    %c0_i32_0 = arith.constant 0 : i32
    %c0_i32_1 = arith.constant 0 : i32
    return %arg0, %arg1, %c0_i32, %c0_i32_0 : i32, i32, i32, i32
  }
  func.func @transform_4(%arg0: i32, %arg1: i32) -> (i32, i32, i32, i32) {
    %c0_i32 = arith.constant 0 : i32
    %c0_i32_0 = arith.constant 0 : i32
    %c0_i32_1 = arith.constant 0 : i32
    return %arg0, %arg1, %c0_i32, %c0_i32_0 : i32, i32, i32, i32
  }
}

module attributes {stable_mosaic.version = 11 : i64} {
  func.func @norm_act_kernel(%arg0: i32, %arg1: i32, %arg2: memref<1x16x256xbf16, #tpu.memory_space<vmem>>, %arg3: memref<1x1x256xf32, #tpu.memory_space<vmem>>, %arg4: memref<1x1x256xf32, #tpu.memory_space<vmem>>, %arg5: memref<1x16x288xbf16, #tpu.memory_space<vmem>>) attributes {dimension_semantics = [#tpu.dimension_semantics<parallel>, #tpu.dimension_semantics<parallel>], iteration_bounds = array<i64: 2, 1>, scalar_prefetch = 0 : i64, scratch_operands = 0 : i64, tpu.core_type = #tpu.core_type<tc>, window_params = [{transform_indices = @transform_0, window_bounds = array<i64: 1, 16, 256>}, {transform_indices = @transform_1, window_bounds = array<i64: 1, 1, 256>}, {transform_indices = @transform_2, window_bounds = array<i64: 1, 1, 256>}, {transform_indices = @transform_3, window_bounds = array<i64: 1, 16, 288>}]} {
    %c0 = arith.constant 0 : index
    %c0_0 = arith.constant 0 : index
    %c0_1 = arith.constant 0 : index
    %0 = vector.load %arg2[%c0, %c0_0, %c0_1] : memref<1x16x256xbf16, #tpu.memory_space<vmem>>, vector<1x16x256xbf16>
    %1 = vector.shape_cast %0 : vector<1x16x256xbf16> to vector<16x256xbf16>
    %2 = arith.extf %1 : vector<16x256xbf16> to vector<16x256xf32>
    %c0_2 = arith.constant 0 : index
    %c0_3 = arith.constant 0 : index
    %c0_4 = arith.constant 0 : index
    %3 = vector.load %arg3[%c0_2, %c0_3, %c0_4] : memref<1x1x256xf32, #tpu.memory_space<vmem>>, vector<1x1x256xf32>
    %4 = vector.shape_cast %3 : vector<1x1x256xf32> to vector<1x256xf32>
    %5 = vector.broadcast %4 : vector<1x256xf32> to vector<16x256xf32>
    %6 = arith.mulf %2, %5 : vector<16x256xf32>
    %c0_5 = arith.constant 0 : index
    %c0_6 = arith.constant 0 : index
    %c0_7 = arith.constant 0 : index
    %7 = vector.load %arg4[%c0_5, %c0_6, %c0_7] : memref<1x1x256xf32, #tpu.memory_space<vmem>>, vector<1x1x256xf32>
    %8 = vector.shape_cast %7 : vector<1x1x256xf32> to vector<1x256xf32>
    %9 = vector.broadcast %8 : vector<1x256xf32> to vector<16x256xf32>
    %10 = arith.addf %6, %9 : vector<16x256xf32>
    %cst = arith.constant 0.000000e+00 : f32
    %11 = vector.broadcast %cst : f32 to vector<16x256xf32>
    %12 = arith.cmpf ogt, %10, %11 : vector<16x256xf32>
    %cst_8 = arith.constant 2.000000e-01 : f32
    %13 = vector.broadcast %cst_8 : f32 to vector<16x256xf32>
    %14 = arith.mulf %13, %10 : vector<16x256xf32>
    %15 = arith.select %12, %10, %14 : vector<16x256xi1>, vector<16x256xf32>
    %16 = arith.truncf %15 : vector<16x256xf32> to vector<16x256xbf16>
    %cst_9 = arith.constant 0.000000e+00 : bf16
    %17 = vector.broadcast %cst_9 : bf16 to vector<16x16xbf16>
    %c0_10 = arith.constant 0 : index
    %c0_11 = arith.constant 0 : index
    %c0_12 = arith.constant 0 : index
    %18 = vector.load %arg5[%c0_10, %c0_11, %c0_12] : memref<1x16x288xbf16, #tpu.memory_space<vmem>>, vector<1x16x16xbf16>
    %19 = vector.shape_cast %18 : vector<1x16x16xbf16> to vector<16x16xbf16>
    %20 = vector.shape_cast %17 : vector<16x16xbf16> to vector<1x16x16xbf16>
    tpu.vector_store %arg5[%c0_10, %c0_11, %c0_12], %20 {strides = array<i32>} : memref<1x16x288xbf16, #tpu.memory_space<vmem>>, vector<1x16x16xbf16>,
    %c0_13 = arith.constant 0 : index
    %c0_14 = arith.constant 0 : index
    %c16 = arith.constant 16 : index
    %21 = vector.load %arg5[%c0_13, %c0_14, %c16] : memref<1x16x288xbf16, #tpu.memory_space<vmem>>, vector<1x16x256xbf16>
    %22 = vector.shape_cast %21 : vector<1x16x256xbf16> to vector<16x256xbf16>
    %23 = vector.shape_cast %16 : vector<16x256xbf16> to vector<1x16x256xbf16>
    tpu.vector_store %arg5[%c0_13, %c0_14, %c16], %23 {strides = array<i32>} : memref<1x16x288xbf16, #tpu.memory_space<vmem>>, vector<1x16x256xbf16>,
    %c0_15 = arith.constant 0 : index
    %c0_16 = arith.constant 0 : index
    %c272 = arith.constant 272 : index
    %24 = vector.load %arg5[%c0_15, %c0_16, %c272] : memref<1x16x288xbf16, #tpu.memory_space<vmem>>, vector<1x16x16xbf16>
    %25 = vector.shape_cast %24 : vector<1x16x16xbf16> to vector<16x16xbf16>
    %26 = vector.shape_cast %17 : vector<16x16xbf16> to vector<1x16x16xbf16>
    tpu.vector_store %arg5[%c0_15, %c0_16, %c272], %26 {strides = array<i32>} : memref<1x16x288xbf16, #tpu.memory_space<vmem>>, vector<1x16x16xbf16>,
    return
  }
  func.func @transform_0(%arg0: i32, %arg1: i32) -> (i32, i32, i32) {
    %c0_i32 = arith.constant 0 : i32
    %c0_i32_0 = arith.constant 0 : i32
    return %arg0, %arg1, %c0_i32 : i32, i32, i32
  }
  func.func @transform_1(%arg0: i32, %arg1: i32) -> (i32, i32, i32) {
    %c0_i32 = arith.constant 0 : i32
    %c0_i32_0 = arith.constant 0 : i32
    %c0_i32_1 = arith.constant 0 : i32
    return %arg0, %c0_i32, %c0_i32_0 : i32, i32, i32
  }
  func.func @transform_2(%arg0: i32, %arg1: i32) -> (i32, i32, i32) {
    %c0_i32 = arith.constant 0 : i32
    %c0_i32_0 = arith.constant 0 : i32
    %c0_i32_1 = arith.constant 0 : i32
    return %arg0, %c0_i32, %c0_i32_0 : i32, i32, i32
  }
  func.func @transform_3(%arg0: i32, %arg1: i32) -> (i32, i32, i32) {
    %c0_i32 = arith.constant 0 : i32
    %c0_i32_0 = arith.constant 0 : i32
    return %arg0, %arg1, %c0_i32 : i32, i32, i32
  }
}

module attributes {stable_mosaic.version = 11 : i64} {
  func.func @conv_stats_kernel(%arg0: i32, %arg1: i32, %arg2: memref<1x4x2x9x32xbf16, #tpu.memory_space<vmem>>, %arg3: memref<1x1x2x9x32xbf16, #tpu.memory_space<vmem>>, %arg4: memref<192x32xbf16, #tpu.memory_space<vmem>>, %arg5: memref<1x4x8x32xbf16, #tpu.memory_space<vmem>>, %arg6: memref<1x1x2x32xf32, #tpu.memory_space<vmem>>, %arg7: memref<4x8x192xbf16, #tpu.memory_space<vmem>>) attributes {dimension_semantics = [#tpu.dimension_semantics<parallel>, #tpu.dimension_semantics<parallel>], iteration_bounds = array<i64: 2, 2>, scalar_prefetch = 0 : i64, scratch_operands = 1 : i64, tpu.core_type = #tpu.core_type<tc>, window_params = [{transform_indices = @transform_0, window_bounds = array<i64: 1, 4, 2, 9, 32>}, {transform_indices = @transform_1, window_bounds = array<i64: 1, 1, 2, 9, 32>}, {pipeline_mode = #tpu.pipeline_mode<synchronous>, transform_indices = @transform_2, window_bounds = array<i64: 192, 32>}, {transform_indices = @transform_3, window_bounds = array<i64: 1, 4, 8, 32>}, {transform_indices = @transform_4, window_bounds = array<i64: 1, 1, 2, 32>}]} {
    %c0 = arith.constant 0 : index
    %c0_0 = arith.constant 0 : index
    %c0_1 = arith.constant 0 : index
    %c0_2 = arith.constant 0 : index
    %c0_3 = arith.constant 0 : index
    %0 = vector.load %arg3[%c0, %c0_0, %c0_1, %c0_2, %c0_3] : memref<1x1x2x9x32xbf16, #tpu.memory_space<vmem>>, vector<1x1x1x8x32xbf16>
    %1 = vector.shape_cast %0 : vector<1x1x1x8x32xbf16> to vector<1x8x32xbf16>
    %c0_4 = arith.constant 0 : index
    %c0_5 = arith.constant 0 : index
    %c0_6 = arith.constant 0 : index
    %2 = vector.load %arg7[%c0_4, %c0_5, %c0_6] : memref<4x8x192xbf16, #tpu.memory_space<vmem>>, vector<1x8x32xbf16>
    tpu.vector_store %arg7[%c0_4, %c0_5, %c0_6], %1 {strides = array<i32>} : memref<4x8x192xbf16, #tpu.memory_space<vmem>>, vector<1x8x32xbf16>,
    %c0_7 = arith.constant 0 : index
    %c0_8 = arith.constant 0 : index
    %c1 = arith.constant 1 : index
    %c0_9 = arith.constant 0 : index
    %c0_10 = arith.constant 0 : index
    %3 = vector.load %arg2[%c0_7, %c0_8, %c1, %c0_9, %c0_10] : memref<1x4x2x9x32xbf16, #tpu.memory_space<vmem>>, vector<1x3x1x8x32xbf16>
    %4 = vector.shape_cast %3 : vector<1x3x1x8x32xbf16> to vector<3x8x32xbf16>
    %c1_11 = arith.constant 1 : index
    %c0_12 = arith.constant 0 : index
    %c0_13 = arith.constant 0 : index
    %5 = vector.load %arg7[%c1_11, %c0_12, %c0_13] : memref<4x8x192xbf16, #tpu.memory_space<vmem>>, vector<3x8x32xbf16>
    tpu.vector_store %arg7[%c1_11, %c0_12, %c0_13], %4 {strides = array<i32>} : memref<4x8x192xbf16, #tpu.memory_space<vmem>>, vector<3x8x32xbf16>,
    %c0_14 = arith.constant 0 : index
    %c0_15 = arith.constant 0 : index
    %c0_16 = arith.constant 0 : index
    %c1_17 = arith.constant 1 : index
    %c0_18 = arith.constant 0 : index
    %6 = vector.load %arg3[%c0_14, %c0_15, %c0_16, %c1_17, %c0_18] : memref<1x1x2x9x32xbf16, #tpu.memory_space<vmem>>, vector<1x1x1x8x32xbf16>
    %7 = vector.shape_cast %6 : vector<1x1x1x8x32xbf16> to vector<1x8x32xbf16>
    %c0_19 = arith.constant 0 : index
    %c0_20 = arith.constant 0 : index
    %c32 = arith.constant 32 : index
    %8 = vector.load %arg7[%c0_19, %c0_20, %c32] : memref<4x8x192xbf16, #tpu.memory_space<vmem>>, vector<1x8x32xbf16>
    tpu.vector_store %arg7[%c0_19, %c0_20, %c32], %7 {strides = array<i32>} : memref<4x8x192xbf16, #tpu.memory_space<vmem>>, vector<1x8x32xbf16>,
    %c0_21 = arith.constant 0 : index
    %c0_22 = arith.constant 0 : index
    %c1_23 = arith.constant 1 : index
    %c1_24 = arith.constant 1 : index
    %c0_25 = arith.constant 0 : index
    %9 = vector.load %arg2[%c0_21, %c0_22, %c1_23, %c1_24, %c0_25] : memref<1x4x2x9x32xbf16, #tpu.memory_space<vmem>>, vector<1x3x1x8x32xbf16>
    %10 = vector.shape_cast %9 : vector<1x3x1x8x32xbf16> to vector<3x8x32xbf16>
    %c1_26 = arith.constant 1 : index
    %c0_27 = arith.constant 0 : index
    %c32_28 = arith.constant 32 : index
    %11 = vector.load %arg7[%c1_26, %c0_27, %c32_28] : memref<4x8x192xbf16, #tpu.memory_space<vmem>>, vector<3x8x32xbf16>
    tpu.vector_store %arg7[%c1_26, %c0_27, %c32_28], %10 {strides = array<i32>} : memref<4x8x192xbf16, #tpu.memory_space<vmem>>, vector<3x8x32xbf16>,
    %c0_29 = arith.constant 0 : index
    %c0_30 = arith.constant 0 : index
    %c0_31 = arith.constant 0 : index
    %c0_32 = arith.constant 0 : index
    %c0_33 = arith.constant 0 : index
    %12 = vector.load %arg2[%c0_29, %c0_30, %c0_31, %c0_32, %c0_33] : memref<1x4x2x9x32xbf16, #tpu.memory_space<vmem>>, vector<1x4x1x8x32xbf16>
    %13 = vector.shape_cast %12 : vector<1x4x1x8x32xbf16> to vector<4x8x32xbf16>
    %c0_34 = arith.constant 0 : index
    %c0_35 = arith.constant 0 : index
    %c64 = arith.constant 64 : index
    %14 = vector.load %arg7[%c0_34, %c0_35, %c64] : memref<4x8x192xbf16, #tpu.memory_space<vmem>>, vector<4x8x32xbf16>
    tpu.vector_store %arg7[%c0_34, %c0_35, %c64], %13 {strides = array<i32>} : memref<4x8x192xbf16, #tpu.memory_space<vmem>>, vector<4x8x32xbf16>,
    %c0_36 = arith.constant 0 : index
    %c0_37 = arith.constant 0 : index
    %c0_38 = arith.constant 0 : index
    %c1_39 = arith.constant 1 : index
    %c0_40 = arith.constant 0 : index
    %15 = vector.load %arg2[%c0_36, %c0_37, %c0_38, %c1_39, %c0_40] : memref<1x4x2x9x32xbf16, #tpu.memory_space<vmem>>, vector<1x4x1x8x32xbf16>
    %16 = vector.shape_cast %15 : vector<1x4x1x8x32xbf16> to vector<4x8x32xbf16>
    %c0_41 = arith.constant 0 : index
    %c0_42 = arith.constant 0 : index
    %c96 = arith.constant 96 : index
    %17 = vector.load %arg7[%c0_41, %c0_42, %c96] : memref<4x8x192xbf16, #tpu.memory_space<vmem>>, vector<4x8x32xbf16>
    tpu.vector_store %arg7[%c0_41, %c0_42, %c96], %16 {strides = array<i32>} : memref<4x8x192xbf16, #tpu.memory_space<vmem>>, vector<4x8x32xbf16>,
    %c0_43 = arith.constant 0 : index
    %c0_44 = arith.constant 0 : index
    %c1_45 = arith.constant 1 : index
    %c0_46 = arith.constant 0 : index
    %c0_47 = arith.constant 0 : index
    %18 = vector.load %arg2[%c0_43, %c0_44, %c1_45, %c0_46, %c0_47] : memref<1x4x2x9x32xbf16, #tpu.memory_space<vmem>>, vector<1x4x1x8x32xbf16>
    %19 = vector.shape_cast %18 : vector<1x4x1x8x32xbf16> to vector<4x8x32xbf16>
    %c0_48 = arith.constant 0 : index
    %c0_49 = arith.constant 0 : index
    %c128 = arith.constant 128 : index
    %20 = vector.load %arg7[%c0_48, %c0_49, %c128] : memref<4x8x192xbf16, #tpu.memory_space<vmem>>, vector<4x8x32xbf16>
    tpu.vector_store %arg7[%c0_48, %c0_49, %c128], %19 {strides = array<i32>} : memref<4x8x192xbf16, #tpu.memory_space<vmem>>, vector<4x8x32xbf16>,
    %c0_50 = arith.constant 0 : index
    %c0_51 = arith.constant 0 : index
    %c1_52 = arith.constant 1 : index
    %c1_53 = arith.constant 1 : index
    %c0_54 = arith.constant 0 : index
    %21 = vector.load %arg2[%c0_50, %c0_51, %c1_52, %c1_53, %c0_54] : memref<1x4x2x9x32xbf16, #tpu.memory_space<vmem>>, vector<1x4x1x8x32xbf16>
    %22 = vector.shape_cast %21 : vector<1x4x1x8x32xbf16> to vector<4x8x32xbf16>
    %c0_55 = arith.constant 0 : index
    %c0_56 = arith.constant 0 : index
    %c160 = arith.constant 160 : index
    %23 = vector.load %arg7[%c0_55, %c0_56, %c160] : memref<4x8x192xbf16, #tpu.memory_space<vmem>>, vector<4x8x32xbf16>
    tpu.vector_store %arg7[%c0_55, %c0_56, %c160], %22 {strides = array<i32>} : memref<4x8x192xbf16, #tpu.memory_space<vmem>>, vector<4x8x32xbf16>,
    %c0_57 = arith.constant 0 : index
    %c0_58 = arith.constant 0 : index
    %c0_59 = arith.constant 0 : index
    %24 = vector.load %arg7[%c0_57, %c0_58, %c0_59] : memref<4x8x192xbf16, #tpu.memory_space<vmem>>, vector<4x8x192xbf16>
    %25 = vector.shape_cast %24 : vector<4x8x192xbf16> to vector<32x192xbf16>
    %c0_60 = arith.constant 0 : index
    %c0_61 = arith.constant 0 : index
    %26 = vector.load %arg4[%c0_60, %c0_61] : memref<192x32xbf16, #tpu.memory_space<vmem>>, vector<192x32xbf16>
    %cst = arith.constant dense<0.000000e+00> : vector<32x32xf32>
    %27 = tpu.matmul %25, %26, %cst {dimension_numbers = #tpu.dot_dimension_numbers<[1], [0], [0], [1], [0, 0, 1, 1], [], []>} : vector<32x192xbf16>, vector<192x32xbf16>, vector<32x32xf32> -> vector<32x32xf32>
    %28 = vector.shape_cast %27 : vector<32x32xf32> to vector<4x8x32xf32>
    %29 = arith.truncf %28 : vector<4x8x32xf32> to vector<4x8x32xbf16>
    %c0_62 = arith.constant 0 : index
    %c0_63 = arith.constant 0 : index
    %c0_64 = arith.constant 0 : index
    %c0_65 = arith.constant 0 : index
    %30 = vector.load %arg5[%c0_62, %c0_63, %c0_64, %c0_65] : memref<1x4x8x32xbf16, #tpu.memory_space<vmem>>, vector<1x4x8x32xbf16>
    %31 = vector.shape_cast %30 : vector<1x4x8x32xbf16> to vector<4x8x32xbf16>
    %32 = vector.shape_cast %29 : vector<4x8x32xbf16> to vector<1x4x8x32xbf16>
    tpu.vector_store %arg5[%c0_62, %c0_63, %c0_64, %c0_65], %32 {strides = array<i32>} : memref<1x4x8x32xbf16, #tpu.memory_space<vmem>>, vector<1x4x8x32xbf16>,
    %cst_66 = arith.constant dense<0.000000e+00> : vector<32xf32>
    %33 = vector.multi_reduction <add>, %27, %cst_66 [0] : vector<32x32xf32> to vector<32xf32>
    %34 = vector.shape_cast %33 : vector<32xf32> to vector<1x32xf32>
    %c0_67 = arith.constant 0 : index
    %c0_68 = arith.constant 0 : index
    %c0_69 = arith.constant 0 : index
    %c0_70 = arith.constant 0 : index
    %35 = vector.load %arg6[%c0_67, %c0_68, %c0_69, %c0_70] : memref<1x1x2x32xf32, #tpu.memory_space<vmem>>, vector<1x1x1x32xf32>
    %36 = vector.shape_cast %35 : vector<1x1x1x32xf32> to vector<1x32xf32>
    %37 = vector.shape_cast %34 : vector<1x32xf32> to vector<1x1x1x32xf32>
    tpu.vector_store %arg6[%c0_67, %c0_68, %c0_69, %c0_70], %37 {strides = array<i32>} : memref<1x1x2x32xf32, #tpu.memory_space<vmem>>, vector<1x1x1x32xf32>,
    %38 = arith.mulf %27, %27 : vector<32x32xf32>
    %cst_71 = arith.constant dense<0.000000e+00> : vector<32xf32>
    %39 = vector.multi_reduction <add>, %38, %cst_71 [0] : vector<32x32xf32> to vector<32xf32>
    %40 = vector.shape_cast %39 : vector<32xf32> to vector<1x32xf32>
    %c0_72 = arith.constant 0 : index
    %c0_73 = arith.constant 0 : index
    %c1_74 = arith.constant 1 : index
    %c0_75 = arith.constant 0 : index
    %41 = vector.load %arg6[%c0_72, %c0_73, %c1_74, %c0_75] : memref<1x1x2x32xf32, #tpu.memory_space<vmem>>, vector<1x1x1x32xf32>
    %42 = vector.shape_cast %41 : vector<1x1x1x32xf32> to vector<1x32xf32>
    %43 = vector.shape_cast %40 : vector<1x32xf32> to vector<1x1x1x32xf32>
    tpu.vector_store %arg6[%c0_72, %c0_73, %c1_74, %c0_75], %43 {strides = array<i32>} : memref<1x1x2x32xf32, #tpu.memory_space<vmem>>, vector<1x1x1x32xf32>,
    return
  }
  func.func @transform_0(%arg0: i32, %arg1: i32) -> (i32, i32, i32, i32, i32) {
    %c0_i32 = arith.constant 0 : i32
    %c0_i32_0 = arith.constant 0 : i32
    %c0_i32_1 = arith.constant 0 : i32
    %c0_i32_2 = arith.constant 0 : i32
    return %arg0, %arg1, %c0_i32, %c0_i32_0, %c0_i32_1 : i32, i32, i32, i32, i32
  }
  func.func @transform_1(%arg0: i32, %arg1: i32) -> (i32, i32, i32, i32, i32) {
    %c0_i32 = arith.constant 0 : i32
    %c0_i32_0 = arith.constant 0 : i32
    %c0_i32_1 = arith.constant 0 : i32
    %c0_i32_2 = arith.constant 0 : i32
    return %arg0, %arg1, %c0_i32, %c0_i32_0, %c0_i32_1 : i32, i32, i32, i32, i32
  }
  func.func @transform_2(%arg0: i32, %arg1: i32) -> (i32, i32) {
    %c0_i32 = arith.constant 0 : i32
    %c0_i32_0 = arith.constant 0 : i32
    %c0_i32_1 = arith.constant 0 : i32
    return %c0_i32, %c0_i32_0 : i32, i32
  }
  func.func @transform_3(%arg0: i32, %arg1: i32) -> (i32, i32, i32, i32) {
    %c0_i32 = arith.constant 0 : i32
    %c0_i32_0 = arith.constant 0 : i32
    %c0_i32_1 = arith.constant 0 : i32
    return %arg0, %arg1, %c0_i32, %c0_i32_0 : i32, i32, i32, i32
  }
  func.func @transform_4(%arg0: i32, %arg1: i32) -> (i32, i32, i32, i32) {
    %c0_i32 = arith.constant 0 : i32
    %c0_i32_0 = arith.constant 0 : i32
    %c0_i32_1 = arith.constant 0 : i32
    return %arg0, %arg1, %c0_i32, %c0_i32_0 : i32, i32, i32, i32
  }
}

module attributes {stable_mosaic.version = 11 : i64} {
  func.func @norm_act_kernel(%arg0: i32, %arg1: i32, %arg2: memref<1x8x256xbf16, #tpu.memory_space<vmem>>, %arg3: memref<1x1x256xf32, #tpu.memory_space<vmem>>, %arg4: memref<1x1x256xf32, #tpu.memory_space<vmem>>, %arg5: memref<1x8x320xbf16, #tpu.memory_space<vmem>>) attributes {dimension_semantics = [#tpu.dimension_semantics<parallel>, #tpu.dimension_semantics<parallel>], iteration_bounds = array<i64: 2, 1>, scalar_prefetch = 0 : i64, scratch_operands = 0 : i64, tpu.core_type = #tpu.core_type<tc>, window_params = [{transform_indices = @transform_0, window_bounds = array<i64: 1, 8, 256>}, {transform_indices = @transform_1, window_bounds = array<i64: 1, 1, 256>}, {transform_indices = @transform_2, window_bounds = array<i64: 1, 1, 256>}, {transform_indices = @transform_3, window_bounds = array<i64: 1, 8, 320>}]} {
    %c0 = arith.constant 0 : index
    %c0_0 = arith.constant 0 : index
    %c0_1 = arith.constant 0 : index
    %0 = vector.load %arg2[%c0, %c0_0, %c0_1] : memref<1x8x256xbf16, #tpu.memory_space<vmem>>, vector<1x8x256xbf16>
    %1 = vector.shape_cast %0 : vector<1x8x256xbf16> to vector<8x256xbf16>
    %2 = arith.extf %1 : vector<8x256xbf16> to vector<8x256xf32>
    %c0_2 = arith.constant 0 : index
    %c0_3 = arith.constant 0 : index
    %c0_4 = arith.constant 0 : index
    %3 = vector.load %arg3[%c0_2, %c0_3, %c0_4] : memref<1x1x256xf32, #tpu.memory_space<vmem>>, vector<1x1x256xf32>
    %4 = vector.shape_cast %3 : vector<1x1x256xf32> to vector<1x256xf32>
    %5 = vector.broadcast %4 : vector<1x256xf32> to vector<8x256xf32>
    %6 = arith.mulf %2, %5 : vector<8x256xf32>
    %c0_5 = arith.constant 0 : index
    %c0_6 = arith.constant 0 : index
    %c0_7 = arith.constant 0 : index
    %7 = vector.load %arg4[%c0_5, %c0_6, %c0_7] : memref<1x1x256xf32, #tpu.memory_space<vmem>>, vector<1x1x256xf32>
    %8 = vector.shape_cast %7 : vector<1x1x256xf32> to vector<1x256xf32>
    %9 = vector.broadcast %8 : vector<1x256xf32> to vector<8x256xf32>
    %10 = arith.addf %6, %9 : vector<8x256xf32>
    %cst = arith.constant 0.000000e+00 : f32
    %11 = vector.broadcast %cst : f32 to vector<8x256xf32>
    %12 = arith.cmpf ogt, %10, %11 : vector<8x256xf32>
    %cst_8 = arith.constant 2.000000e-01 : f32
    %13 = vector.broadcast %cst_8 : f32 to vector<8x256xf32>
    %14 = arith.mulf %13, %10 : vector<8x256xf32>
    %15 = arith.select %12, %10, %14 : vector<8x256xi1>, vector<8x256xf32>
    %16 = arith.truncf %15 : vector<8x256xf32> to vector<8x256xbf16>
    %cst_9 = arith.constant 0.000000e+00 : bf16
    %17 = vector.broadcast %cst_9 : bf16 to vector<8x32xbf16>
    %c0_10 = arith.constant 0 : index
    %c0_11 = arith.constant 0 : index
    %c0_12 = arith.constant 0 : index
    %18 = vector.load %arg5[%c0_10, %c0_11, %c0_12] : memref<1x8x320xbf16, #tpu.memory_space<vmem>>, vector<1x8x32xbf16>
    %19 = vector.shape_cast %18 : vector<1x8x32xbf16> to vector<8x32xbf16>
    %20 = vector.shape_cast %17 : vector<8x32xbf16> to vector<1x8x32xbf16>
    tpu.vector_store %arg5[%c0_10, %c0_11, %c0_12], %20 {strides = array<i32>} : memref<1x8x320xbf16, #tpu.memory_space<vmem>>, vector<1x8x32xbf16>,
    %c0_13 = arith.constant 0 : index
    %c0_14 = arith.constant 0 : index
    %c32 = arith.constant 32 : index
    %21 = vector.load %arg5[%c0_13, %c0_14, %c32] : memref<1x8x320xbf16, #tpu.memory_space<vmem>>, vector<1x8x256xbf16>
    %22 = vector.shape_cast %21 : vector<1x8x256xbf16> to vector<8x256xbf16>
    %23 = vector.shape_cast %16 : vector<8x256xbf16> to vector<1x8x256xbf16>
    tpu.vector_store %arg5[%c0_13, %c0_14, %c32], %23 {strides = array<i32>} : memref<1x8x320xbf16, #tpu.memory_space<vmem>>, vector<1x8x256xbf16>,
    %c0_15 = arith.constant 0 : index
    %c0_16 = arith.constant 0 : index
    %c288 = arith.constant 288 : index
    %24 = vector.load %arg5[%c0_15, %c0_16, %c288] : memref<1x8x320xbf16, #tpu.memory_space<vmem>>, vector<1x8x32xbf16>
    %25 = vector.shape_cast %24 : vector<1x8x32xbf16> to vector<8x32xbf16>
    %26 = vector.shape_cast %17 : vector<8x32xbf16> to vector<1x8x32xbf16>
    tpu.vector_store %arg5[%c0_15, %c0_16, %c288], %26 {strides = array<i32>} : memref<1x8x320xbf16, #tpu.memory_space<vmem>>, vector<1x8x32xbf16>,
    return
  }
  func.func @transform_0(%arg0: i32, %arg1: i32) -> (i32, i32, i32) {
    %c0_i32 = arith.constant 0 : i32
    %c0_i32_0 = arith.constant 0 : i32
    return %arg0, %arg1, %c0_i32 : i32, i32, i32
  }
  func.func @transform_1(%arg0: i32, %arg1: i32) -> (i32, i32, i32) {
    %c0_i32 = arith.constant 0 : i32
    %c0_i32_0 = arith.constant 0 : i32
    %c0_i32_1 = arith.constant 0 : i32
    return %arg0, %c0_i32, %c0_i32_0 : i32, i32, i32
  }
  func.func @transform_2(%arg0: i32, %arg1: i32) -> (i32, i32, i32) {
    %c0_i32 = arith.constant 0 : i32
    %c0_i32_0 = arith.constant 0 : i32
    %c0_i32_1 = arith.constant 0 : i32
    return %arg0, %c0_i32, %c0_i32_0 : i32, i32, i32
  }
  func.func @transform_3(%arg0: i32, %arg1: i32) -> (i32, i32, i32) {
    %c0_i32 = arith.constant 0 : i32
    %c0_i32_0 = arith.constant 0 : i32
    return %arg0, %arg1, %c0_i32 : i32, i32, i32
  }
}

module attributes {stable_mosaic.version = 11 : i64} {
  func.func @conv_stats_kernel(%arg0: i32, %arg1: i32, %arg2: memref<1x4x1x10x32xbf16, #tpu.memory_space<vmem>>, %arg3: memref<1x1x2x10x32xbf16, #tpu.memory_space<vmem>>, %arg4: memref<288x32xbf16, #tpu.memory_space<vmem>>, %arg5: memref<1x4x8x32xbf16, #tpu.memory_space<vmem>>, %arg6: memref<1x1x2x32xf32, #tpu.memory_space<vmem>>, %arg7: memref<4x8x288xbf16, #tpu.memory_space<vmem>>) attributes {dimension_semantics = [#tpu.dimension_semantics<parallel>, #tpu.dimension_semantics<parallel>], iteration_bounds = array<i64: 2, 2>, scalar_prefetch = 0 : i64, scratch_operands = 1 : i64, tpu.core_type = #tpu.core_type<tc>, window_params = [{transform_indices = @transform_0, window_bounds = array<i64: 1, 4, 1, 10, 32>}, {transform_indices = @transform_1, window_bounds = array<i64: 1, 1, 2, 10, 32>}, {pipeline_mode = #tpu.pipeline_mode<synchronous>, transform_indices = @transform_2, window_bounds = array<i64: 288, 32>}, {transform_indices = @transform_3, window_bounds = array<i64: 1, 4, 8, 32>}, {transform_indices = @transform_4, window_bounds = array<i64: 1, 1, 2, 32>}]} {
    %c0 = arith.constant 0 : index
    %c0_0 = arith.constant 0 : index
    %c0_1 = arith.constant 0 : index
    %c0_2 = arith.constant 0 : index
    %c0_3 = arith.constant 0 : index
    %0 = vector.load %arg3[%c0, %c0_0, %c0_1, %c0_2, %c0_3] : memref<1x1x2x10x32xbf16, #tpu.memory_space<vmem>>, vector<1x1x1x8x32xbf16>
    %1 = vector.shape_cast %0 : vector<1x1x1x8x32xbf16> to vector<1x8x32xbf16>
    %c0_4 = arith.constant 0 : index
    %c0_5 = arith.constant 0 : index
    %c0_6 = arith.constant 0 : index
    %2 = vector.load %arg7[%c0_4, %c0_5, %c0_6] : memref<4x8x288xbf16, #tpu.memory_space<vmem>>, vector<1x8x32xbf16>
    tpu.vector_store %arg7[%c0_4, %c0_5, %c0_6], %1 {strides = array<i32>} : memref<4x8x288xbf16, #tpu.memory_space<vmem>>, vector<1x8x32xbf16>,
    %c0_7 = arith.constant 0 : index
    %c0_8 = arith.constant 0 : index
    %c0_9 = arith.constant 0 : index
    %c0_10 = arith.constant 0 : index
    %c0_11 = arith.constant 0 : index
    %3 = vector.load %arg2[%c0_7, %c0_8, %c0_9, %c0_10, %c0_11] : memref<1x4x1x10x32xbf16, #tpu.memory_space<vmem>>, vector<1x3x1x8x32xbf16>
    %4 = vector.shape_cast %3 : vector<1x3x1x8x32xbf16> to vector<3x8x32xbf16>
    %c1 = arith.constant 1 : index
    %c0_12 = arith.constant 0 : index
    %c0_13 = arith.constant 0 : index
    %5 = vector.load %arg7[%c1, %c0_12, %c0_13] : memref<4x8x288xbf16, #tpu.memory_space<vmem>>, vector<3x8x32xbf16>
    tpu.vector_store %arg7[%c1, %c0_12, %c0_13], %4 {strides = array<i32>} : memref<4x8x288xbf16, #tpu.memory_space<vmem>>, vector<3x8x32xbf16>,
    %c0_14 = arith.constant 0 : index
    %c0_15 = arith.constant 0 : index
    %c0_16 = arith.constant 0 : index
    %c1_17 = arith.constant 1 : index
    %c0_18 = arith.constant 0 : index
    %6 = vector.load %arg3[%c0_14, %c0_15, %c0_16, %c1_17, %c0_18] : memref<1x1x2x10x32xbf16, #tpu.memory_space<vmem>>, vector<1x1x1x8x32xbf16>
    %7 = vector.shape_cast %6 : vector<1x1x1x8x32xbf16> to vector<1x8x32xbf16>
    %c0_19 = arith.constant 0 : index
    %c0_20 = arith.constant 0 : index
    %c32 = arith.constant 32 : index
    %8 = vector.load %arg7[%c0_19, %c0_20, %c32] : memref<4x8x288xbf16, #tpu.memory_space<vmem>>, vector<1x8x32xbf16>
    tpu.vector_store %arg7[%c0_19, %c0_20, %c32], %7 {strides = array<i32>} : memref<4x8x288xbf16, #tpu.memory_space<vmem>>, vector<1x8x32xbf16>,
    %c0_21 = arith.constant 0 : index
    %c0_22 = arith.constant 0 : index
    %c0_23 = arith.constant 0 : index
    %c1_24 = arith.constant 1 : index
    %c0_25 = arith.constant 0 : index
    %9 = vector.load %arg2[%c0_21, %c0_22, %c0_23, %c1_24, %c0_25] : memref<1x4x1x10x32xbf16, #tpu.memory_space<vmem>>, vector<1x3x1x8x32xbf16>
    %10 = vector.shape_cast %9 : vector<1x3x1x8x32xbf16> to vector<3x8x32xbf16>
    %c1_26 = arith.constant 1 : index
    %c0_27 = arith.constant 0 : index
    %c32_28 = arith.constant 32 : index
    %11 = vector.load %arg7[%c1_26, %c0_27, %c32_28] : memref<4x8x288xbf16, #tpu.memory_space<vmem>>, vector<3x8x32xbf16>
    tpu.vector_store %arg7[%c1_26, %c0_27, %c32_28], %10 {strides = array<i32>} : memref<4x8x288xbf16, #tpu.memory_space<vmem>>, vector<3x8x32xbf16>,
    %c0_29 = arith.constant 0 : index
    %c0_30 = arith.constant 0 : index
    %c0_31 = arith.constant 0 : index
    %c2 = arith.constant 2 : index
    %c0_32 = arith.constant 0 : index
    %12 = vector.load %arg3[%c0_29, %c0_30, %c0_31, %c2, %c0_32] : memref<1x1x2x10x32xbf16, #tpu.memory_space<vmem>>, vector<1x1x1x8x32xbf16>
    %13 = vector.shape_cast %12 : vector<1x1x1x8x32xbf16> to vector<1x8x32xbf16>
    %c0_33 = arith.constant 0 : index
    %c0_34 = arith.constant 0 : index
    %c64 = arith.constant 64 : index
    %14 = vector.load %arg7[%c0_33, %c0_34, %c64] : memref<4x8x288xbf16, #tpu.memory_space<vmem>>, vector<1x8x32xbf16>
    tpu.vector_store %arg7[%c0_33, %c0_34, %c64], %13 {strides = array<i32>} : memref<4x8x288xbf16, #tpu.memory_space<vmem>>, vector<1x8x32xbf16>,
    %c0_35 = arith.constant 0 : index
    %c0_36 = arith.constant 0 : index
    %c0_37 = arith.constant 0 : index
    %c2_38 = arith.constant 2 : index
    %c0_39 = arith.constant 0 : index
    %15 = vector.load %arg2[%c0_35, %c0_36, %c0_37, %c2_38, %c0_39] : memref<1x4x1x10x32xbf16, #tpu.memory_space<vmem>>, vector<1x3x1x8x32xbf16>
    %16 = vector.shape_cast %15 : vector<1x3x1x8x32xbf16> to vector<3x8x32xbf16>
    %c1_40 = arith.constant 1 : index
    %c0_41 = arith.constant 0 : index
    %c64_42 = arith.constant 64 : index
    %17 = vector.load %arg7[%c1_40, %c0_41, %c64_42] : memref<4x8x288xbf16, #tpu.memory_space<vmem>>, vector<3x8x32xbf16>
    tpu.vector_store %arg7[%c1_40, %c0_41, %c64_42], %16 {strides = array<i32>} : memref<4x8x288xbf16, #tpu.memory_space<vmem>>, vector<3x8x32xbf16>,
    %c0_43 = arith.constant 0 : index
    %c0_44 = arith.constant 0 : index
    %c0_45 = arith.constant 0 : index
    %c0_46 = arith.constant 0 : index
    %c0_47 = arith.constant 0 : index
    %18 = vector.load %arg2[%c0_43, %c0_44, %c0_45, %c0_46, %c0_47] : memref<1x4x1x10x32xbf16, #tpu.memory_space<vmem>>, vector<1x4x1x8x32xbf16>
    %19 = vector.shape_cast %18 : vector<1x4x1x8x32xbf16> to vector<4x8x32xbf16>
    %c0_48 = arith.constant 0 : index
    %c0_49 = arith.constant 0 : index
    %c96 = arith.constant 96 : index
    %20 = vector.load %arg7[%c0_48, %c0_49, %c96] : memref<4x8x288xbf16, #tpu.memory_space<vmem>>, vector<4x8x32xbf16>
    tpu.vector_store %arg7[%c0_48, %c0_49, %c96], %19 {strides = array<i32>} : memref<4x8x288xbf16, #tpu.memory_space<vmem>>, vector<4x8x32xbf16>,
    %c0_50 = arith.constant 0 : index
    %c0_51 = arith.constant 0 : index
    %c0_52 = arith.constant 0 : index
    %c1_53 = arith.constant 1 : index
    %c0_54 = arith.constant 0 : index
    %21 = vector.load %arg2[%c0_50, %c0_51, %c0_52, %c1_53, %c0_54] : memref<1x4x1x10x32xbf16, #tpu.memory_space<vmem>>, vector<1x4x1x8x32xbf16>
    %22 = vector.shape_cast %21 : vector<1x4x1x8x32xbf16> to vector<4x8x32xbf16>
    %c0_55 = arith.constant 0 : index
    %c0_56 = arith.constant 0 : index
    %c128 = arith.constant 128 : index
    %23 = vector.load %arg7[%c0_55, %c0_56, %c128] : memref<4x8x288xbf16, #tpu.memory_space<vmem>>, vector<4x8x32xbf16>
    tpu.vector_store %arg7[%c0_55, %c0_56, %c128], %22 {strides = array<i32>} : memref<4x8x288xbf16, #tpu.memory_space<vmem>>, vector<4x8x32xbf16>,
    %c0_57 = arith.constant 0 : index
    %c0_58 = arith.constant 0 : index
    %c0_59 = arith.constant 0 : index
    %c2_60 = arith.constant 2 : index
    %c0_61 = arith.constant 0 : index
    %24 = vector.load %arg2[%c0_57, %c0_58, %c0_59, %c2_60, %c0_61] : memref<1x4x1x10x32xbf16, #tpu.memory_space<vmem>>, vector<1x4x1x8x32xbf16>
    %25 = vector.shape_cast %24 : vector<1x4x1x8x32xbf16> to vector<4x8x32xbf16>
    %c0_62 = arith.constant 0 : index
    %c0_63 = arith.constant 0 : index
    %c160 = arith.constant 160 : index
    %26 = vector.load %arg7[%c0_62, %c0_63, %c160] : memref<4x8x288xbf16, #tpu.memory_space<vmem>>, vector<4x8x32xbf16>
    tpu.vector_store %arg7[%c0_62, %c0_63, %c160], %25 {strides = array<i32>} : memref<4x8x288xbf16, #tpu.memory_space<vmem>>, vector<4x8x32xbf16>,
    %c0_64 = arith.constant 0 : index
    %c1_65 = arith.constant 1 : index
    %c0_66 = arith.constant 0 : index
    %c0_67 = arith.constant 0 : index
    %c0_68 = arith.constant 0 : index
    %27 = vector.load %arg2[%c0_64, %c1_65, %c0_66, %c0_67, %c0_68] : memref<1x4x1x10x32xbf16, #tpu.memory_space<vmem>>, vector<1x3x1x8x32xbf16>
    %28 = vector.shape_cast %27 : vector<1x3x1x8x32xbf16> to vector<3x8x32xbf16>
    %c0_69 = arith.constant 0 : index
    %c0_70 = arith.constant 0 : index
    %c192 = arith.constant 192 : index
    %29 = vector.load %arg7[%c0_69, %c0_70, %c192] : memref<4x8x288xbf16, #tpu.memory_space<vmem>>, vector<3x8x32xbf16>
    tpu.vector_store %arg7[%c0_69, %c0_70, %c192], %28 {strides = array<i32>} : memref<4x8x288xbf16, #tpu.memory_space<vmem>>, vector<3x8x32xbf16>,
    %c0_71 = arith.constant 0 : index
    %c0_72 = arith.constant 0 : index
    %c1_73 = arith.constant 1 : index
    %c0_74 = arith.constant 0 : index
    %c0_75 = arith.constant 0 : index
    %30 = vector.load %arg3[%c0_71, %c0_72, %c1_73, %c0_74, %c0_75] : memref<1x1x2x10x32xbf16, #tpu.memory_space<vmem>>, vector<1x1x1x8x32xbf16>
    %31 = vector.shape_cast %30 : vector<1x1x1x8x32xbf16> to vector<1x8x32xbf16>
    %c3 = arith.constant 3 : index
    %c0_76 = arith.constant 0 : index
    %c192_77 = arith.constant 192 : index
    %32 = vector.load %arg7[%c3, %c0_76, %c192_77] : memref<4x8x288xbf16, #tpu.memory_space<vmem>>, vector<1x8x32xbf16>
    tpu.vector_store %arg7[%c3, %c0_76, %c192_77], %31 {strides = array<i32>} : memref<4x8x288xbf16, #tpu.memory_space<vmem>>, vector<1x8x32xbf16>,
    %c0_78 = arith.constant 0 : index
    %c1_79 = arith.constant 1 : index
    %c0_80 = arith.constant 0 : index
    %c1_81 = arith.constant 1 : index
    %c0_82 = arith.constant 0 : index
    %33 = vector.load %arg2[%c0_78, %c1_79, %c0_80, %c1_81, %c0_82] : memref<1x4x1x10x32xbf16, #tpu.memory_space<vmem>>, vector<1x3x1x8x32xbf16>
    %34 = vector.shape_cast %33 : vector<1x3x1x8x32xbf16> to vector<3x8x32xbf16>
    %c0_83 = arith.constant 0 : index
    %c0_84 = arith.constant 0 : index
    %c224 = arith.constant 224 : index
    %35 = vector.load %arg7[%c0_83, %c0_84, %c224] : memref<4x8x288xbf16, #tpu.memory_space<vmem>>, vector<3x8x32xbf16>
    tpu.vector_store %arg7[%c0_83, %c0_84, %c224], %34 {strides = array<i32>} : memref<4x8x288xbf16, #tpu.memory_space<vmem>>, vector<3x8x32xbf16>,
    %c0_85 = arith.constant 0 : index
    %c0_86 = arith.constant 0 : index
    %c1_87 = arith.constant 1 : index
    %c1_88 = arith.constant 1 : index
    %c0_89 = arith.constant 0 : index
    %36 = vector.load %arg3[%c0_85, %c0_86, %c1_87, %c1_88, %c0_89] : memref<1x1x2x10x32xbf16, #tpu.memory_space<vmem>>, vector<1x1x1x8x32xbf16>
    %37 = vector.shape_cast %36 : vector<1x1x1x8x32xbf16> to vector<1x8x32xbf16>
    %c3_90 = arith.constant 3 : index
    %c0_91 = arith.constant 0 : index
    %c224_92 = arith.constant 224 : index
    %38 = vector.load %arg7[%c3_90, %c0_91, %c224_92] : memref<4x8x288xbf16, #tpu.memory_space<vmem>>, vector<1x8x32xbf16>
    tpu.vector_store %arg7[%c3_90, %c0_91, %c224_92], %37 {strides = array<i32>} : memref<4x8x288xbf16, #tpu.memory_space<vmem>>, vector<1x8x32xbf16>,
    %c0_93 = arith.constant 0 : index
    %c1_94 = arith.constant 1 : index
    %c0_95 = arith.constant 0 : index
    %c2_96 = arith.constant 2 : index
    %c0_97 = arith.constant 0 : index
    %39 = vector.load %arg2[%c0_93, %c1_94, %c0_95, %c2_96, %c0_97] : memref<1x4x1x10x32xbf16, #tpu.memory_space<vmem>>, vector<1x3x1x8x32xbf16>
    %40 = vector.shape_cast %39 : vector<1x3x1x8x32xbf16> to vector<3x8x32xbf16>
    %c0_98 = arith.constant 0 : index
    %c0_99 = arith.constant 0 : index
    %c256 = arith.constant 256 : index
    %41 = vector.load %arg7[%c0_98, %c0_99, %c256] : memref<4x8x288xbf16, #tpu.memory_space<vmem>>, vector<3x8x32xbf16>
    tpu.vector_store %arg7[%c0_98, %c0_99, %c256], %40 {strides = array<i32>} : memref<4x8x288xbf16, #tpu.memory_space<vmem>>, vector<3x8x32xbf16>,
    %c0_100 = arith.constant 0 : index
    %c0_101 = arith.constant 0 : index
    %c1_102 = arith.constant 1 : index
    %c2_103 = arith.constant 2 : index
    %c0_104 = arith.constant 0 : index
    %42 = vector.load %arg3[%c0_100, %c0_101, %c1_102, %c2_103, %c0_104] : memref<1x1x2x10x32xbf16, #tpu.memory_space<vmem>>, vector<1x1x1x8x32xbf16>
    %43 = vector.shape_cast %42 : vector<1x1x1x8x32xbf16> to vector<1x8x32xbf16>
    %c3_105 = arith.constant 3 : index
    %c0_106 = arith.constant 0 : index
    %c256_107 = arith.constant 256 : index
    %44 = vector.load %arg7[%c3_105, %c0_106, %c256_107] : memref<4x8x288xbf16, #tpu.memory_space<vmem>>, vector<1x8x32xbf16>
    tpu.vector_store %arg7[%c3_105, %c0_106, %c256_107], %43 {strides = array<i32>} : memref<4x8x288xbf16, #tpu.memory_space<vmem>>, vector<1x8x32xbf16>,
    %c0_108 = arith.constant 0 : index
    %c0_109 = arith.constant 0 : index
    %c0_110 = arith.constant 0 : index
    %45 = vector.load %arg7[%c0_108, %c0_109, %c0_110] : memref<4x8x288xbf16, #tpu.memory_space<vmem>>, vector<4x8x288xbf16>
    %46 = vector.shape_cast %45 : vector<4x8x288xbf16> to vector<32x288xbf16>
    %c0_111 = arith.constant 0 : index
    %c0_112 = arith.constant 0 : index
    %47 = vector.load %arg4[%c0_111, %c0_112] : memref<288x32xbf16, #tpu.memory_space<vmem>>, vector<288x32xbf16>
    %cst = arith.constant dense<0.000000e+00> : vector<32x32xf32>
    %48 = tpu.matmul %46, %47, %cst {dimension_numbers = #tpu.dot_dimension_numbers<[1], [0], [0], [1], [0, 0, 1, 1], [], []>} : vector<32x288xbf16>, vector<288x32xbf16>, vector<32x32xf32> -> vector<32x32xf32>
    %49 = vector.shape_cast %48 : vector<32x32xf32> to vector<4x8x32xf32>
    %50 = arith.truncf %49 : vector<4x8x32xf32> to vector<4x8x32xbf16>
    %c0_113 = arith.constant 0 : index
    %c0_114 = arith.constant 0 : index
    %c0_115 = arith.constant 0 : index
    %c0_116 = arith.constant 0 : index
    %51 = vector.load %arg5[%c0_113, %c0_114, %c0_115, %c0_116] : memref<1x4x8x32xbf16, #tpu.memory_space<vmem>>, vector<1x4x8x32xbf16>
    %52 = vector.shape_cast %51 : vector<1x4x8x32xbf16> to vector<4x8x32xbf16>
    %53 = vector.shape_cast %50 : vector<4x8x32xbf16> to vector<1x4x8x32xbf16>
    tpu.vector_store %arg5[%c0_113, %c0_114, %c0_115, %c0_116], %53 {strides = array<i32>} : memref<1x4x8x32xbf16, #tpu.memory_space<vmem>>, vector<1x4x8x32xbf16>,
    %cst_117 = arith.constant dense<0.000000e+00> : vector<32xf32>
    %54 = vector.multi_reduction <add>, %48, %cst_117 [0] : vector<32x32xf32> to vector<32xf32>
    %55 = vector.shape_cast %54 : vector<32xf32> to vector<1x32xf32>
    %c0_118 = arith.constant 0 : index
    %c0_119 = arith.constant 0 : index
    %c0_120 = arith.constant 0 : index
    %c0_121 = arith.constant 0 : index
    %56 = vector.load %arg6[%c0_118, %c0_119, %c0_120, %c0_121] : memref<1x1x2x32xf32, #tpu.memory_space<vmem>>, vector<1x1x1x32xf32>
    %57 = vector.shape_cast %56 : vector<1x1x1x32xf32> to vector<1x32xf32>
    %58 = vector.shape_cast %55 : vector<1x32xf32> to vector<1x1x1x32xf32>
    tpu.vector_store %arg6[%c0_118, %c0_119, %c0_120, %c0_121], %58 {strides = array<i32>} : memref<1x1x2x32xf32, #tpu.memory_space<vmem>>, vector<1x1x1x32xf32>,
    %59 = arith.mulf %48, %48 : vector<32x32xf32>
    %cst_122 = arith.constant dense<0.000000e+00> : vector<32xf32>
    %60 = vector.multi_reduction <add>, %59, %cst_122 [0] : vector<32x32xf32> to vector<32xf32>
    %61 = vector.shape_cast %60 : vector<32xf32> to vector<1x32xf32>
    %c0_123 = arith.constant 0 : index
    %c0_124 = arith.constant 0 : index
    %c1_125 = arith.constant 1 : index
    %c0_126 = arith.constant 0 : index
    %62 = vector.load %arg6[%c0_123, %c0_124, %c1_125, %c0_126] : memref<1x1x2x32xf32, #tpu.memory_space<vmem>>, vector<1x1x1x32xf32>
    %63 = vector.shape_cast %62 : vector<1x1x1x32xf32> to vector<1x32xf32>
    %64 = vector.shape_cast %61 : vector<1x32xf32> to vector<1x1x1x32xf32>
    tpu.vector_store %arg6[%c0_123, %c0_124, %c1_125, %c0_126], %64 {strides = array<i32>} : memref<1x1x2x32xf32, #tpu.memory_space<vmem>>, vector<1x1x1x32xf32>,
    return
  }
  func.func @transform_0(%arg0: i32, %arg1: i32) -> (i32, i32, i32, i32, i32) {
    %c0_i32 = arith.constant 0 : i32
    %c0_i32_0 = arith.constant 0 : i32
    %c0_i32_1 = arith.constant 0 : i32
    %c0_i32_2 = arith.constant 0 : i32
    return %arg0, %arg1, %c0_i32, %c0_i32_0, %c0_i32_1 : i32, i32, i32, i32, i32
  }
  func.func @transform_1(%arg0: i32, %arg1: i32) -> (i32, i32, i32, i32, i32) {
    %c0_i32 = arith.constant 0 : i32
    %c0_i32_0 = arith.constant 0 : i32
    %c0_i32_1 = arith.constant 0 : i32
    %c0_i32_2 = arith.constant 0 : i32
    return %arg0, %arg1, %c0_i32, %c0_i32_0, %c0_i32_1 : i32, i32, i32, i32, i32
  }
  func.func @transform_2(%arg0: i32, %arg1: i32) -> (i32, i32) {
    %c0_i32 = arith.constant 0 : i32
    %c0_i32_0 = arith.constant 0 : i32
    %c0_i32_1 = arith.constant 0 : i32
    return %c0_i32, %c0_i32_0 : i32, i32
  }
  func.func @transform_3(%arg0: i32, %arg1: i32) -> (i32, i32, i32, i32) {
    %c0_i32 = arith.constant 0 : i32
    %c0_i32_0 = arith.constant 0 : i32
    %c0_i32_1 = arith.constant 0 : i32
    return %arg0, %arg1, %c0_i32, %c0_i32_0 : i32, i32, i32, i32
  }
  func.func @transform_4(%arg0: i32, %arg1: i32) -> (i32, i32, i32, i32) {
    %c0_i32 = arith.constant 0 : i32
    %c0_i32_0 = arith.constant 0 : i32
    %c0_i32_1 = arith.constant 0 : i32
    return %arg0, %arg1, %c0_i32, %c0_i32_0 : i32, i32, i32, i32
  }
}

module attributes {stable_mosaic.version = 11 : i64} {
  func.func @conv_stats_kernel(%arg0: i32, %arg1: i32, %arg2: memref<1x4x2x5x64xbf16, #tpu.memory_space<vmem>>, %arg3: memref<1x1x2x5x64xbf16, #tpu.memory_space<vmem>>, %arg4: memref<384x64xbf16, #tpu.memory_space<vmem>>, %arg5: memref<1x4x4x64xbf16, #tpu.memory_space<vmem>>, %arg6: memref<1x1x2x64xf32, #tpu.memory_space<vmem>>, %arg7: memref<4x4x384xbf16, #tpu.memory_space<vmem>>) attributes {dimension_semantics = [#tpu.dimension_semantics<parallel>, #tpu.dimension_semantics<parallel>], iteration_bounds = array<i64: 2, 1>, scalar_prefetch = 0 : i64, scratch_operands = 1 : i64, tpu.core_type = #tpu.core_type<tc>, window_params = [{transform_indices = @transform_0, window_bounds = array<i64: 1, 4, 2, 5, 64>}, {transform_indices = @transform_1, window_bounds = array<i64: 1, 1, 2, 5, 64>}, {pipeline_mode = #tpu.pipeline_mode<synchronous>, transform_indices = @transform_2, window_bounds = array<i64: 384, 64>}, {transform_indices = @transform_3, window_bounds = array<i64: 1, 4, 4, 64>}, {transform_indices = @transform_4, window_bounds = array<i64: 1, 1, 2, 64>}]} {
    %c0 = arith.constant 0 : index
    %c0_0 = arith.constant 0 : index
    %c0_1 = arith.constant 0 : index
    %c0_2 = arith.constant 0 : index
    %c0_3 = arith.constant 0 : index
    %0 = vector.load %arg3[%c0, %c0_0, %c0_1, %c0_2, %c0_3] : memref<1x1x2x5x64xbf16, #tpu.memory_space<vmem>>, vector<1x1x1x4x64xbf16>
    %1 = vector.shape_cast %0 : vector<1x1x1x4x64xbf16> to vector<1x4x64xbf16>
    %c0_4 = arith.constant 0 : index
    %c0_5 = arith.constant 0 : index
    %c0_6 = arith.constant 0 : index
    %2 = vector.load %arg7[%c0_4, %c0_5, %c0_6] : memref<4x4x384xbf16, #tpu.memory_space<vmem>>, vector<1x4x64xbf16>
    tpu.vector_store %arg7[%c0_4, %c0_5, %c0_6], %1 {strides = array<i32>} : memref<4x4x384xbf16, #tpu.memory_space<vmem>>, vector<1x4x64xbf16>,
    %c0_7 = arith.constant 0 : index
    %c0_8 = arith.constant 0 : index
    %c1 = arith.constant 1 : index
    %c0_9 = arith.constant 0 : index
    %c0_10 = arith.constant 0 : index
    %3 = vector.load %arg2[%c0_7, %c0_8, %c1, %c0_9, %c0_10] : memref<1x4x2x5x64xbf16, #tpu.memory_space<vmem>>, vector<1x3x1x4x64xbf16>
    %4 = vector.shape_cast %3 : vector<1x3x1x4x64xbf16> to vector<3x4x64xbf16>
    %c1_11 = arith.constant 1 : index
    %c0_12 = arith.constant 0 : index
    %c0_13 = arith.constant 0 : index
    %5 = vector.load %arg7[%c1_11, %c0_12, %c0_13] : memref<4x4x384xbf16, #tpu.memory_space<vmem>>, vector<3x4x64xbf16>
    tpu.vector_store %arg7[%c1_11, %c0_12, %c0_13], %4 {strides = array<i32>} : memref<4x4x384xbf16, #tpu.memory_space<vmem>>, vector<3x4x64xbf16>,
    %c0_14 = arith.constant 0 : index
    %c0_15 = arith.constant 0 : index
    %c0_16 = arith.constant 0 : index
    %c1_17 = arith.constant 1 : index
    %c0_18 = arith.constant 0 : index
    %6 = vector.load %arg3[%c0_14, %c0_15, %c0_16, %c1_17, %c0_18] : memref<1x1x2x5x64xbf16, #tpu.memory_space<vmem>>, vector<1x1x1x4x64xbf16>
    %7 = vector.shape_cast %6 : vector<1x1x1x4x64xbf16> to vector<1x4x64xbf16>
    %c0_19 = arith.constant 0 : index
    %c0_20 = arith.constant 0 : index
    %c64 = arith.constant 64 : index
    %8 = vector.load %arg7[%c0_19, %c0_20, %c64] : memref<4x4x384xbf16, #tpu.memory_space<vmem>>, vector<1x4x64xbf16>
    tpu.vector_store %arg7[%c0_19, %c0_20, %c64], %7 {strides = array<i32>} : memref<4x4x384xbf16, #tpu.memory_space<vmem>>, vector<1x4x64xbf16>,
    %c0_21 = arith.constant 0 : index
    %c0_22 = arith.constant 0 : index
    %c1_23 = arith.constant 1 : index
    %c1_24 = arith.constant 1 : index
    %c0_25 = arith.constant 0 : index
    %9 = vector.load %arg2[%c0_21, %c0_22, %c1_23, %c1_24, %c0_25] : memref<1x4x2x5x64xbf16, #tpu.memory_space<vmem>>, vector<1x3x1x4x64xbf16>
    %10 = vector.shape_cast %9 : vector<1x3x1x4x64xbf16> to vector<3x4x64xbf16>
    %c1_26 = arith.constant 1 : index
    %c0_27 = arith.constant 0 : index
    %c64_28 = arith.constant 64 : index
    %11 = vector.load %arg7[%c1_26, %c0_27, %c64_28] : memref<4x4x384xbf16, #tpu.memory_space<vmem>>, vector<3x4x64xbf16>
    tpu.vector_store %arg7[%c1_26, %c0_27, %c64_28], %10 {strides = array<i32>} : memref<4x4x384xbf16, #tpu.memory_space<vmem>>, vector<3x4x64xbf16>,
    %c0_29 = arith.constant 0 : index
    %c0_30 = arith.constant 0 : index
    %c0_31 = arith.constant 0 : index
    %c0_32 = arith.constant 0 : index
    %c0_33 = arith.constant 0 : index
    %12 = vector.load %arg2[%c0_29, %c0_30, %c0_31, %c0_32, %c0_33] : memref<1x4x2x5x64xbf16, #tpu.memory_space<vmem>>, vector<1x4x1x4x64xbf16>
    %13 = vector.shape_cast %12 : vector<1x4x1x4x64xbf16> to vector<4x4x64xbf16>
    %c0_34 = arith.constant 0 : index
    %c0_35 = arith.constant 0 : index
    %c128 = arith.constant 128 : index
    %14 = vector.load %arg7[%c0_34, %c0_35, %c128] : memref<4x4x384xbf16, #tpu.memory_space<vmem>>, vector<4x4x64xbf16>
    tpu.vector_store %arg7[%c0_34, %c0_35, %c128], %13 {strides = array<i32>} : memref<4x4x384xbf16, #tpu.memory_space<vmem>>, vector<4x4x64xbf16>,
    %c0_36 = arith.constant 0 : index
    %c0_37 = arith.constant 0 : index
    %c0_38 = arith.constant 0 : index
    %c1_39 = arith.constant 1 : index
    %c0_40 = arith.constant 0 : index
    %15 = vector.load %arg2[%c0_36, %c0_37, %c0_38, %c1_39, %c0_40] : memref<1x4x2x5x64xbf16, #tpu.memory_space<vmem>>, vector<1x4x1x4x64xbf16>
    %16 = vector.shape_cast %15 : vector<1x4x1x4x64xbf16> to vector<4x4x64xbf16>
    %c0_41 = arith.constant 0 : index
    %c0_42 = arith.constant 0 : index
    %c192 = arith.constant 192 : index
    %17 = vector.load %arg7[%c0_41, %c0_42, %c192] : memref<4x4x384xbf16, #tpu.memory_space<vmem>>, vector<4x4x64xbf16>
    tpu.vector_store %arg7[%c0_41, %c0_42, %c192], %16 {strides = array<i32>} : memref<4x4x384xbf16, #tpu.memory_space<vmem>>, vector<4x4x64xbf16>,
    %c0_43 = arith.constant 0 : index
    %c0_44 = arith.constant 0 : index
    %c1_45 = arith.constant 1 : index
    %c0_46 = arith.constant 0 : index
    %c0_47 = arith.constant 0 : index
    %18 = vector.load %arg2[%c0_43, %c0_44, %c1_45, %c0_46, %c0_47] : memref<1x4x2x5x64xbf16, #tpu.memory_space<vmem>>, vector<1x4x1x4x64xbf16>
    %19 = vector.shape_cast %18 : vector<1x4x1x4x64xbf16> to vector<4x4x64xbf16>
    %c0_48 = arith.constant 0 : index
    %c0_49 = arith.constant 0 : index
    %c256 = arith.constant 256 : index
    %20 = vector.load %arg7[%c0_48, %c0_49, %c256] : memref<4x4x384xbf16, #tpu.memory_space<vmem>>, vector<4x4x64xbf16>
    tpu.vector_store %arg7[%c0_48, %c0_49, %c256], %19 {strides = array<i32>} : memref<4x4x384xbf16, #tpu.memory_space<vmem>>, vector<4x4x64xbf16>,
    %c0_50 = arith.constant 0 : index
    %c0_51 = arith.constant 0 : index
    %c1_52 = arith.constant 1 : index
    %c1_53 = arith.constant 1 : index
    %c0_54 = arith.constant 0 : index
    %21 = vector.load %arg2[%c0_50, %c0_51, %c1_52, %c1_53, %c0_54] : memref<1x4x2x5x64xbf16, #tpu.memory_space<vmem>>, vector<1x4x1x4x64xbf16>
    %22 = vector.shape_cast %21 : vector<1x4x1x4x64xbf16> to vector<4x4x64xbf16>
    %c0_55 = arith.constant 0 : index
    %c0_56 = arith.constant 0 : index
    %c320 = arith.constant 320 : index
    %23 = vector.load %arg7[%c0_55, %c0_56, %c320] : memref<4x4x384xbf16, #tpu.memory_space<vmem>>, vector<4x4x64xbf16>
    tpu.vector_store %arg7[%c0_55, %c0_56, %c320], %22 {strides = array<i32>} : memref<4x4x384xbf16, #tpu.memory_space<vmem>>, vector<4x4x64xbf16>,
    %c0_57 = arith.constant 0 : index
    %c0_58 = arith.constant 0 : index
    %c0_59 = arith.constant 0 : index
    %24 = vector.load %arg7[%c0_57, %c0_58, %c0_59] : memref<4x4x384xbf16, #tpu.memory_space<vmem>>, vector<4x4x384xbf16>
    %25 = vector.shape_cast %24 : vector<4x4x384xbf16> to vector<16x384xbf16>
    %c0_60 = arith.constant 0 : index
    %c0_61 = arith.constant 0 : index
    %26 = vector.load %arg4[%c0_60, %c0_61] : memref<384x64xbf16, #tpu.memory_space<vmem>>, vector<384x64xbf16>
    %cst = arith.constant dense<0.000000e+00> : vector<16x64xf32>
    %27 = tpu.matmul %25, %26, %cst {dimension_numbers = #tpu.dot_dimension_numbers<[1], [0], [0], [1], [0, 0, 1, 1], [], []>} : vector<16x384xbf16>, vector<384x64xbf16>, vector<16x64xf32> -> vector<16x64xf32>
    %28 = vector.shape_cast %27 : vector<16x64xf32> to vector<4x4x64xf32>
    %29 = arith.truncf %28 : vector<4x4x64xf32> to vector<4x4x64xbf16>
    %c0_62 = arith.constant 0 : index
    %c0_63 = arith.constant 0 : index
    %c0_64 = arith.constant 0 : index
    %c0_65 = arith.constant 0 : index
    %30 = vector.load %arg5[%c0_62, %c0_63, %c0_64, %c0_65] : memref<1x4x4x64xbf16, #tpu.memory_space<vmem>>, vector<1x4x4x64xbf16>
    %31 = vector.shape_cast %30 : vector<1x4x4x64xbf16> to vector<4x4x64xbf16>
    %32 = vector.shape_cast %29 : vector<4x4x64xbf16> to vector<1x4x4x64xbf16>
    tpu.vector_store %arg5[%c0_62, %c0_63, %c0_64, %c0_65], %32 {strides = array<i32>} : memref<1x4x4x64xbf16, #tpu.memory_space<vmem>>, vector<1x4x4x64xbf16>,
    %cst_66 = arith.constant dense<0.000000e+00> : vector<64xf32>
    %33 = vector.multi_reduction <add>, %27, %cst_66 [0] : vector<16x64xf32> to vector<64xf32>
    %34 = vector.shape_cast %33 : vector<64xf32> to vector<1x64xf32>
    %c0_67 = arith.constant 0 : index
    %c0_68 = arith.constant 0 : index
    %c0_69 = arith.constant 0 : index
    %c0_70 = arith.constant 0 : index
    %35 = vector.load %arg6[%c0_67, %c0_68, %c0_69, %c0_70] : memref<1x1x2x64xf32, #tpu.memory_space<vmem>>, vector<1x1x1x64xf32>
    %36 = vector.shape_cast %35 : vector<1x1x1x64xf32> to vector<1x64xf32>
    %37 = vector.shape_cast %34 : vector<1x64xf32> to vector<1x1x1x64xf32>
    tpu.vector_store %arg6[%c0_67, %c0_68, %c0_69, %c0_70], %37 {strides = array<i32>} : memref<1x1x2x64xf32, #tpu.memory_space<vmem>>, vector<1x1x1x64xf32>,
    %38 = arith.mulf %27, %27 : vector<16x64xf32>
    %cst_71 = arith.constant dense<0.000000e+00> : vector<64xf32>
    %39 = vector.multi_reduction <add>, %38, %cst_71 [0] : vector<16x64xf32> to vector<64xf32>
    %40 = vector.shape_cast %39 : vector<64xf32> to vector<1x64xf32>
    %c0_72 = arith.constant 0 : index
    %c0_73 = arith.constant 0 : index
    %c1_74 = arith.constant 1 : index
    %c0_75 = arith.constant 0 : index
    %41 = vector.load %arg6[%c0_72, %c0_73, %c1_74, %c0_75] : memref<1x1x2x64xf32, #tpu.memory_space<vmem>>, vector<1x1x1x64xf32>
    %42 = vector.shape_cast %41 : vector<1x1x1x64xf32> to vector<1x64xf32>
    %43 = vector.shape_cast %40 : vector<1x64xf32> to vector<1x1x1x64xf32>
    tpu.vector_store %arg6[%c0_72, %c0_73, %c1_74, %c0_75], %43 {strides = array<i32>} : memref<1x1x2x64xf32, #tpu.memory_space<vmem>>, vector<1x1x1x64xf32>,
    return
  }
  func.func @transform_0(%arg0: i32, %arg1: i32) -> (i32, i32, i32, i32, i32) {
    %c0_i32 = arith.constant 0 : i32
    %c0_i32_0 = arith.constant 0 : i32
    %c0_i32_1 = arith.constant 0 : i32
    %c0_i32_2 = arith.constant 0 : i32
    return %arg0, %arg1, %c0_i32, %c0_i32_0, %c0_i32_1 : i32, i32, i32, i32, i32
  }
  func.func @transform_1(%arg0: i32, %arg1: i32) -> (i32, i32, i32, i32, i32) {
    %c0_i32 = arith.constant 0 : i32
    %c0_i32_0 = arith.constant 0 : i32
    %c0_i32_1 = arith.constant 0 : i32
    %c0_i32_2 = arith.constant 0 : i32
    return %arg0, %arg1, %c0_i32, %c0_i32_0, %c0_i32_1 : i32, i32, i32, i32, i32
  }
  func.func @transform_2(%arg0: i32, %arg1: i32) -> (i32, i32) {
    %c0_i32 = arith.constant 0 : i32
    %c0_i32_0 = arith.constant 0 : i32
    %c0_i32_1 = arith.constant 0 : i32
    return %c0_i32, %c0_i32_0 : i32, i32
  }
  func.func @transform_3(%arg0: i32, %arg1: i32) -> (i32, i32, i32, i32) {
    %c0_i32 = arith.constant 0 : i32
    %c0_i32_0 = arith.constant 0 : i32
    %c0_i32_1 = arith.constant 0 : i32
    return %arg0, %arg1, %c0_i32, %c0_i32_0 : i32, i32, i32, i32
  }
  func.func @transform_4(%arg0: i32, %arg1: i32) -> (i32, i32, i32, i32) {
    %c0_i32 = arith.constant 0 : i32
    %c0_i32_0 = arith.constant 0 : i32
    %c0_i32_1 = arith.constant 0 : i32
    return %arg0, %arg1, %c0_i32, %c0_i32_0 : i32, i32, i32, i32
  }
}

module attributes {stable_mosaic.version = 11 : i64} {
  func.func @norm_act_kernel(%arg0: i32, %arg1: i32, %arg2: memref<1x4x256xbf16, #tpu.memory_space<vmem>>, %arg3: memref<1x1x256xf32, #tpu.memory_space<vmem>>, %arg4: memref<1x1x256xf32, #tpu.memory_space<vmem>>, %arg5: memref<1x4x384xbf16, #tpu.memory_space<vmem>>) attributes {dimension_semantics = [#tpu.dimension_semantics<parallel>, #tpu.dimension_semantics<parallel>], iteration_bounds = array<i64: 2, 1>, scalar_prefetch = 0 : i64, scratch_operands = 0 : i64, tpu.core_type = #tpu.core_type<tc>, window_params = [{transform_indices = @transform_0, window_bounds = array<i64: 1, 4, 256>}, {transform_indices = @transform_1, window_bounds = array<i64: 1, 1, 256>}, {transform_indices = @transform_2, window_bounds = array<i64: 1, 1, 256>}, {transform_indices = @transform_3, window_bounds = array<i64: 1, 4, 384>}]} {
    %c0 = arith.constant 0 : index
    %c0_0 = arith.constant 0 : index
    %c0_1 = arith.constant 0 : index
    %0 = vector.load %arg2[%c0, %c0_0, %c0_1] : memref<1x4x256xbf16, #tpu.memory_space<vmem>>, vector<1x4x256xbf16>
    %1 = vector.shape_cast %0 : vector<1x4x256xbf16> to vector<4x256xbf16>
    %2 = arith.extf %1 : vector<4x256xbf16> to vector<4x256xf32>
    %c0_2 = arith.constant 0 : index
    %c0_3 = arith.constant 0 : index
    %c0_4 = arith.constant 0 : index
    %3 = vector.load %arg3[%c0_2, %c0_3, %c0_4] : memref<1x1x256xf32, #tpu.memory_space<vmem>>, vector<1x1x256xf32>
    %4 = vector.shape_cast %3 : vector<1x1x256xf32> to vector<1x256xf32>
    %5 = vector.broadcast %4 : vector<1x256xf32> to vector<4x256xf32>
    %6 = arith.mulf %2, %5 : vector<4x256xf32>
    %c0_5 = arith.constant 0 : index
    %c0_6 = arith.constant 0 : index
    %c0_7 = arith.constant 0 : index
    %7 = vector.load %arg4[%c0_5, %c0_6, %c0_7] : memref<1x1x256xf32, #tpu.memory_space<vmem>>, vector<1x1x256xf32>
    %8 = vector.shape_cast %7 : vector<1x1x256xf32> to vector<1x256xf32>
    %9 = vector.broadcast %8 : vector<1x256xf32> to vector<4x256xf32>
    %10 = arith.addf %6, %9 : vector<4x256xf32>
    %cst = arith.constant 0.000000e+00 : f32
    %11 = vector.broadcast %cst : f32 to vector<4x256xf32>
    %12 = arith.cmpf ogt, %10, %11 : vector<4x256xf32>
    %cst_8 = arith.constant 2.000000e-01 : f32
    %13 = vector.broadcast %cst_8 : f32 to vector<4x256xf32>
    %14 = arith.mulf %13, %10 : vector<4x256xf32>
    %15 = arith.select %12, %10, %14 : vector<4x256xi1>, vector<4x256xf32>
    %16 = arith.truncf %15 : vector<4x256xf32> to vector<4x256xbf16>
    %cst_9 = arith.constant 0.000000e+00 : bf16
    %17 = vector.broadcast %cst_9 : bf16 to vector<4x64xbf16>
    %c0_10 = arith.constant 0 : index
    %c0_11 = arith.constant 0 : index
    %c0_12 = arith.constant 0 : index
    %18 = vector.load %arg5[%c0_10, %c0_11, %c0_12] : memref<1x4x384xbf16, #tpu.memory_space<vmem>>, vector<1x4x64xbf16>
    %19 = vector.shape_cast %18 : vector<1x4x64xbf16> to vector<4x64xbf16>
    %20 = vector.shape_cast %17 : vector<4x64xbf16> to vector<1x4x64xbf16>
    tpu.vector_store %arg5[%c0_10, %c0_11, %c0_12], %20 {strides = array<i32>} : memref<1x4x384xbf16, #tpu.memory_space<vmem>>, vector<1x4x64xbf16>,
    %c0_13 = arith.constant 0 : index
    %c0_14 = arith.constant 0 : index
    %c64 = arith.constant 64 : index
    %21 = vector.load %arg5[%c0_13, %c0_14, %c64] : memref<1x4x384xbf16, #tpu.memory_space<vmem>>, vector<1x4x256xbf16>
    %22 = vector.shape_cast %21 : vector<1x4x256xbf16> to vector<4x256xbf16>
    %23 = vector.shape_cast %16 : vector<4x256xbf16> to vector<1x4x256xbf16>
    tpu.vector_store %arg5[%c0_13, %c0_14, %c64], %23 {strides = array<i32>} : memref<1x4x384xbf16, #tpu.memory_space<vmem>>, vector<1x4x256xbf16>,
    %c0_15 = arith.constant 0 : index
    %c0_16 = arith.constant 0 : index
    %c320 = arith.constant 320 : index
    %24 = vector.load %arg5[%c0_15, %c0_16, %c320] : memref<1x4x384xbf16, #tpu.memory_space<vmem>>, vector<1x4x64xbf16>
    %25 = vector.shape_cast %24 : vector<1x4x64xbf16> to vector<4x64xbf16>
    %26 = vector.shape_cast %17 : vector<4x64xbf16> to vector<1x4x64xbf16>
    tpu.vector_store %arg5[%c0_15, %c0_16, %c320], %26 {strides = array<i32>} : memref<1x4x384xbf16, #tpu.memory_space<vmem>>, vector<1x4x64xbf16>,
    return
  }
  func.func @transform_0(%arg0: i32, %arg1: i32) -> (i32, i32, i32) {
    %c0_i32 = arith.constant 0 : i32
    %c0_i32_0 = arith.constant 0 : i32
    return %arg0, %arg1, %c0_i32 : i32, i32, i32
  }
  func.func @transform_1(%arg0: i32, %arg1: i32) -> (i32, i32, i32) {
    %c0_i32 = arith.constant 0 : i32
    %c0_i32_0 = arith.constant 0 : i32
    %c0_i32_1 = arith.constant 0 : i32
    return %arg0, %c0_i32, %c0_i32_0 : i32, i32, i32
  }
  func.func @transform_2(%arg0: i32, %arg1: i32) -> (i32, i32, i32) {
    %c0_i32 = arith.constant 0 : i32
    %c0_i32_0 = arith.constant 0 : i32
    %c0_i32_1 = arith.constant 0 : i32
    return %arg0, %c0_i32, %c0_i32_0 : i32, i32, i32
  }
  func.func @transform_3(%arg0: i32, %arg1: i32) -> (i32, i32, i32) {
    %c0_i32 = arith.constant 0 : i32
    %c0_i32_0 = arith.constant 0 : i32
    return %arg0, %arg1, %c0_i32 : i32, i32, i32
  }
}

module attributes {stable_mosaic.version = 11 : i64} {
  func.func @conv_stats_kernel(%arg0: i32, %arg1: i32, %arg2: memref<1x4x1x6x64xbf16, #tpu.memory_space<vmem>>, %arg3: memref<1x1x2x6x64xbf16, #tpu.memory_space<vmem>>, %arg4: memref<576x64xbf16, #tpu.memory_space<vmem>>, %arg5: memref<1x4x4x64xbf16, #tpu.memory_space<vmem>>, %arg6: memref<1x1x2x64xf32, #tpu.memory_space<vmem>>, %arg7: memref<4x4x576xbf16, #tpu.memory_space<vmem>>) attributes {dimension_semantics = [#tpu.dimension_semantics<parallel>, #tpu.dimension_semantics<parallel>], iteration_bounds = array<i64: 2, 1>, scalar_prefetch = 0 : i64, scratch_operands = 1 : i64, tpu.core_type = #tpu.core_type<tc>, window_params = [{transform_indices = @transform_0, window_bounds = array<i64: 1, 4, 1, 6, 64>}, {transform_indices = @transform_1, window_bounds = array<i64: 1, 1, 2, 6, 64>}, {pipeline_mode = #tpu.pipeline_mode<synchronous>, transform_indices = @transform_2, window_bounds = array<i64: 576, 64>}, {transform_indices = @transform_3, window_bounds = array<i64: 1, 4, 4, 64>}, {transform_indices = @transform_4, window_bounds = array<i64: 1, 1, 2, 64>}]} {
    %c0 = arith.constant 0 : index
    %c0_0 = arith.constant 0 : index
    %c0_1 = arith.constant 0 : index
    %c0_2 = arith.constant 0 : index
    %c0_3 = arith.constant 0 : index
    %0 = vector.load %arg3[%c0, %c0_0, %c0_1, %c0_2, %c0_3] : memref<1x1x2x6x64xbf16, #tpu.memory_space<vmem>>, vector<1x1x1x4x64xbf16>
    %1 = vector.shape_cast %0 : vector<1x1x1x4x64xbf16> to vector<1x4x64xbf16>
    %c0_4 = arith.constant 0 : index
    %c0_5 = arith.constant 0 : index
    %c0_6 = arith.constant 0 : index
    %2 = vector.load %arg7[%c0_4, %c0_5, %c0_6] : memref<4x4x576xbf16, #tpu.memory_space<vmem>>, vector<1x4x64xbf16>
    tpu.vector_store %arg7[%c0_4, %c0_5, %c0_6], %1 {strides = array<i32>} : memref<4x4x576xbf16, #tpu.memory_space<vmem>>, vector<1x4x64xbf16>,
    %c0_7 = arith.constant 0 : index
    %c0_8 = arith.constant 0 : index
    %c0_9 = arith.constant 0 : index
    %c0_10 = arith.constant 0 : index
    %c0_11 = arith.constant 0 : index
    %3 = vector.load %arg2[%c0_7, %c0_8, %c0_9, %c0_10, %c0_11] : memref<1x4x1x6x64xbf16, #tpu.memory_space<vmem>>, vector<1x3x1x4x64xbf16>
    %4 = vector.shape_cast %3 : vector<1x3x1x4x64xbf16> to vector<3x4x64xbf16>
    %c1 = arith.constant 1 : index
    %c0_12 = arith.constant 0 : index
    %c0_13 = arith.constant 0 : index
    %5 = vector.load %arg7[%c1, %c0_12, %c0_13] : memref<4x4x576xbf16, #tpu.memory_space<vmem>>, vector<3x4x64xbf16>
    tpu.vector_store %arg7[%c1, %c0_12, %c0_13], %4 {strides = array<i32>} : memref<4x4x576xbf16, #tpu.memory_space<vmem>>, vector<3x4x64xbf16>,
    %c0_14 = arith.constant 0 : index
    %c0_15 = arith.constant 0 : index
    %c0_16 = arith.constant 0 : index
    %c1_17 = arith.constant 1 : index
    %c0_18 = arith.constant 0 : index
    %6 = vector.load %arg3[%c0_14, %c0_15, %c0_16, %c1_17, %c0_18] : memref<1x1x2x6x64xbf16, #tpu.memory_space<vmem>>, vector<1x1x1x4x64xbf16>
    %7 = vector.shape_cast %6 : vector<1x1x1x4x64xbf16> to vector<1x4x64xbf16>
    %c0_19 = arith.constant 0 : index
    %c0_20 = arith.constant 0 : index
    %c64 = arith.constant 64 : index
    %8 = vector.load %arg7[%c0_19, %c0_20, %c64] : memref<4x4x576xbf16, #tpu.memory_space<vmem>>, vector<1x4x64xbf16>
    tpu.vector_store %arg7[%c0_19, %c0_20, %c64], %7 {strides = array<i32>} : memref<4x4x576xbf16, #tpu.memory_space<vmem>>, vector<1x4x64xbf16>,
    %c0_21 = arith.constant 0 : index
    %c0_22 = arith.constant 0 : index
    %c0_23 = arith.constant 0 : index
    %c1_24 = arith.constant 1 : index
    %c0_25 = arith.constant 0 : index
    %9 = vector.load %arg2[%c0_21, %c0_22, %c0_23, %c1_24, %c0_25] : memref<1x4x1x6x64xbf16, #tpu.memory_space<vmem>>, vector<1x3x1x4x64xbf16>
    %10 = vector.shape_cast %9 : vector<1x3x1x4x64xbf16> to vector<3x4x64xbf16>
    %c1_26 = arith.constant 1 : index
    %c0_27 = arith.constant 0 : index
    %c64_28 = arith.constant 64 : index
    %11 = vector.load %arg7[%c1_26, %c0_27, %c64_28] : memref<4x4x576xbf16, #tpu.memory_space<vmem>>, vector<3x4x64xbf16>
    tpu.vector_store %arg7[%c1_26, %c0_27, %c64_28], %10 {strides = array<i32>} : memref<4x4x576xbf16, #tpu.memory_space<vmem>>, vector<3x4x64xbf16>,
    %c0_29 = arith.constant 0 : index
    %c0_30 = arith.constant 0 : index
    %c0_31 = arith.constant 0 : index
    %c2 = arith.constant 2 : index
    %c0_32 = arith.constant 0 : index
    %12 = vector.load %arg3[%c0_29, %c0_30, %c0_31, %c2, %c0_32] : memref<1x1x2x6x64xbf16, #tpu.memory_space<vmem>>, vector<1x1x1x4x64xbf16>
    %13 = vector.shape_cast %12 : vector<1x1x1x4x64xbf16> to vector<1x4x64xbf16>
    %c0_33 = arith.constant 0 : index
    %c0_34 = arith.constant 0 : index
    %c128 = arith.constant 128 : index
    %14 = vector.load %arg7[%c0_33, %c0_34, %c128] : memref<4x4x576xbf16, #tpu.memory_space<vmem>>, vector<1x4x64xbf16>
    tpu.vector_store %arg7[%c0_33, %c0_34, %c128], %13 {strides = array<i32>} : memref<4x4x576xbf16, #tpu.memory_space<vmem>>, vector<1x4x64xbf16>,
    %c0_35 = arith.constant 0 : index
    %c0_36 = arith.constant 0 : index
    %c0_37 = arith.constant 0 : index
    %c2_38 = arith.constant 2 : index
    %c0_39 = arith.constant 0 : index
    %15 = vector.load %arg2[%c0_35, %c0_36, %c0_37, %c2_38, %c0_39] : memref<1x4x1x6x64xbf16, #tpu.memory_space<vmem>>, vector<1x3x1x4x64xbf16>
    %16 = vector.shape_cast %15 : vector<1x3x1x4x64xbf16> to vector<3x4x64xbf16>
    %c1_40 = arith.constant 1 : index
    %c0_41 = arith.constant 0 : index
    %c128_42 = arith.constant 128 : index
    %17 = vector.load %arg7[%c1_40, %c0_41, %c128_42] : memref<4x4x576xbf16, #tpu.memory_space<vmem>>, vector<3x4x64xbf16>
    tpu.vector_store %arg7[%c1_40, %c0_41, %c128_42], %16 {strides = array<i32>} : memref<4x4x576xbf16, #tpu.memory_space<vmem>>, vector<3x4x64xbf16>,
    %c0_43 = arith.constant 0 : index
    %c0_44 = arith.constant 0 : index
    %c0_45 = arith.constant 0 : index
    %c0_46 = arith.constant 0 : index
    %c0_47 = arith.constant 0 : index
    %18 = vector.load %arg2[%c0_43, %c0_44, %c0_45, %c0_46, %c0_47] : memref<1x4x1x6x64xbf16, #tpu.memory_space<vmem>>, vector<1x4x1x4x64xbf16>
    %19 = vector.shape_cast %18 : vector<1x4x1x4x64xbf16> to vector<4x4x64xbf16>
    %c0_48 = arith.constant 0 : index
    %c0_49 = arith.constant 0 : index
    %c192 = arith.constant 192 : index
    %20 = vector.load %arg7[%c0_48, %c0_49, %c192] : memref<4x4x576xbf16, #tpu.memory_space<vmem>>, vector<4x4x64xbf16>
    tpu.vector_store %arg7[%c0_48, %c0_49, %c192], %19 {strides = array<i32>} : memref<4x4x576xbf16, #tpu.memory_space<vmem>>, vector<4x4x64xbf16>,
    %c0_50 = arith.constant 0 : index
    %c0_51 = arith.constant 0 : index
    %c0_52 = arith.constant 0 : index
    %c1_53 = arith.constant 1 : index
    %c0_54 = arith.constant 0 : index
    %21 = vector.load %arg2[%c0_50, %c0_51, %c0_52, %c1_53, %c0_54] : memref<1x4x1x6x64xbf16, #tpu.memory_space<vmem>>, vector<1x4x1x4x64xbf16>
    %22 = vector.shape_cast %21 : vector<1x4x1x4x64xbf16> to vector<4x4x64xbf16>
    %c0_55 = arith.constant 0 : index
    %c0_56 = arith.constant 0 : index
    %c256 = arith.constant 256 : index
    %23 = vector.load %arg7[%c0_55, %c0_56, %c256] : memref<4x4x576xbf16, #tpu.memory_space<vmem>>, vector<4x4x64xbf16>
    tpu.vector_store %arg7[%c0_55, %c0_56, %c256], %22 {strides = array<i32>} : memref<4x4x576xbf16, #tpu.memory_space<vmem>>, vector<4x4x64xbf16>,
    %c0_57 = arith.constant 0 : index
    %c0_58 = arith.constant 0 : index
    %c0_59 = arith.constant 0 : index
    %c2_60 = arith.constant 2 : index
    %c0_61 = arith.constant 0 : index
    %24 = vector.load %arg2[%c0_57, %c0_58, %c0_59, %c2_60, %c0_61] : memref<1x4x1x6x64xbf16, #tpu.memory_space<vmem>>, vector<1x4x1x4x64xbf16>
    %25 = vector.shape_cast %24 : vector<1x4x1x4x64xbf16> to vector<4x4x64xbf16>
    %c0_62 = arith.constant 0 : index
    %c0_63 = arith.constant 0 : index
    %c320 = arith.constant 320 : index
    %26 = vector.load %arg7[%c0_62, %c0_63, %c320] : memref<4x4x576xbf16, #tpu.memory_space<vmem>>, vector<4x4x64xbf16>
    tpu.vector_store %arg7[%c0_62, %c0_63, %c320], %25 {strides = array<i32>} : memref<4x4x576xbf16, #tpu.memory_space<vmem>>, vector<4x4x64xbf16>,
    %c0_64 = arith.constant 0 : index
    %c1_65 = arith.constant 1 : index
    %c0_66 = arith.constant 0 : index
    %c0_67 = arith.constant 0 : index
    %c0_68 = arith.constant 0 : index
    %27 = vector.load %arg2[%c0_64, %c1_65, %c0_66, %c0_67, %c0_68] : memref<1x4x1x6x64xbf16, #tpu.memory_space<vmem>>, vector<1x3x1x4x64xbf16>
    %28 = vector.shape_cast %27 : vector<1x3x1x4x64xbf16> to vector<3x4x64xbf16>
    %c0_69 = arith.constant 0 : index
    %c0_70 = arith.constant 0 : index
    %c384 = arith.constant 384 : index
    %29 = vector.load %arg7[%c0_69, %c0_70, %c384] : memref<4x4x576xbf16, #tpu.memory_space<vmem>>, vector<3x4x64xbf16>
    tpu.vector_store %arg7[%c0_69, %c0_70, %c384], %28 {strides = array<i32>} : memref<4x4x576xbf16, #tpu.memory_space<vmem>>, vector<3x4x64xbf16>,
    %c0_71 = arith.constant 0 : index
    %c0_72 = arith.constant 0 : index
    %c1_73 = arith.constant 1 : index
    %c0_74 = arith.constant 0 : index
    %c0_75 = arith.constant 0 : index
    %30 = vector.load %arg3[%c0_71, %c0_72, %c1_73, %c0_74, %c0_75] : memref<1x1x2x6x64xbf16, #tpu.memory_space<vmem>>, vector<1x1x1x4x64xbf16>
    %31 = vector.shape_cast %30 : vector<1x1x1x4x64xbf16> to vector<1x4x64xbf16>
    %c3 = arith.constant 3 : index
    %c0_76 = arith.constant 0 : index
    %c384_77 = arith.constant 384 : index
    %32 = vector.load %arg7[%c3, %c0_76, %c384_77] : memref<4x4x576xbf16, #tpu.memory_space<vmem>>, vector<1x4x64xbf16>
    tpu.vector_store %arg7[%c3, %c0_76, %c384_77], %31 {strides = array<i32>} : memref<4x4x576xbf16, #tpu.memory_space<vmem>>, vector<1x4x64xbf16>,
    %c0_78 = arith.constant 0 : index
    %c1_79 = arith.constant 1 : index
    %c0_80 = arith.constant 0 : index
    %c1_81 = arith.constant 1 : index
    %c0_82 = arith.constant 0 : index
    %33 = vector.load %arg2[%c0_78, %c1_79, %c0_80, %c1_81, %c0_82] : memref<1x4x1x6x64xbf16, #tpu.memory_space<vmem>>, vector<1x3x1x4x64xbf16>
    %34 = vector.shape_cast %33 : vector<1x3x1x4x64xbf16> to vector<3x4x64xbf16>
    %c0_83 = arith.constant 0 : index
    %c0_84 = arith.constant 0 : index
    %c448 = arith.constant 448 : index
    %35 = vector.load %arg7[%c0_83, %c0_84, %c448] : memref<4x4x576xbf16, #tpu.memory_space<vmem>>, vector<3x4x64xbf16>
    tpu.vector_store %arg7[%c0_83, %c0_84, %c448], %34 {strides = array<i32>} : memref<4x4x576xbf16, #tpu.memory_space<vmem>>, vector<3x4x64xbf16>,
    %c0_85 = arith.constant 0 : index
    %c0_86 = arith.constant 0 : index
    %c1_87 = arith.constant 1 : index
    %c1_88 = arith.constant 1 : index
    %c0_89 = arith.constant 0 : index
    %36 = vector.load %arg3[%c0_85, %c0_86, %c1_87, %c1_88, %c0_89] : memref<1x1x2x6x64xbf16, #tpu.memory_space<vmem>>, vector<1x1x1x4x64xbf16>
    %37 = vector.shape_cast %36 : vector<1x1x1x4x64xbf16> to vector<1x4x64xbf16>
    %c3_90 = arith.constant 3 : index
    %c0_91 = arith.constant 0 : index
    %c448_92 = arith.constant 448 : index
    %38 = vector.load %arg7[%c3_90, %c0_91, %c448_92] : memref<4x4x576xbf16, #tpu.memory_space<vmem>>, vector<1x4x64xbf16>
    tpu.vector_store %arg7[%c3_90, %c0_91, %c448_92], %37 {strides = array<i32>} : memref<4x4x576xbf16, #tpu.memory_space<vmem>>, vector<1x4x64xbf16>,
    %c0_93 = arith.constant 0 : index
    %c1_94 = arith.constant 1 : index
    %c0_95 = arith.constant 0 : index
    %c2_96 = arith.constant 2 : index
    %c0_97 = arith.constant 0 : index
    %39 = vector.load %arg2[%c0_93, %c1_94, %c0_95, %c2_96, %c0_97] : memref<1x4x1x6x64xbf16, #tpu.memory_space<vmem>>, vector<1x3x1x4x64xbf16>
    %40 = vector.shape_cast %39 : vector<1x3x1x4x64xbf16> to vector<3x4x64xbf16>
    %c0_98 = arith.constant 0 : index
    %c0_99 = arith.constant 0 : index
    %c512 = arith.constant 512 : index
    %41 = vector.load %arg7[%c0_98, %c0_99, %c512] : memref<4x4x576xbf16, #tpu.memory_space<vmem>>, vector<3x4x64xbf16>
    tpu.vector_store %arg7[%c0_98, %c0_99, %c512], %40 {strides = array<i32>} : memref<4x4x576xbf16, #tpu.memory_space<vmem>>, vector<3x4x64xbf16>,
    %c0_100 = arith.constant 0 : index
    %c0_101 = arith.constant 0 : index
    %c1_102 = arith.constant 1 : index
    %c2_103 = arith.constant 2 : index
    %c0_104 = arith.constant 0 : index
    %42 = vector.load %arg3[%c0_100, %c0_101, %c1_102, %c2_103, %c0_104] : memref<1x1x2x6x64xbf16, #tpu.memory_space<vmem>>, vector<1x1x1x4x64xbf16>
    %43 = vector.shape_cast %42 : vector<1x1x1x4x64xbf16> to vector<1x4x64xbf16>
    %c3_105 = arith.constant 3 : index
    %c0_106 = arith.constant 0 : index
    %c512_107 = arith.constant 512 : index
    %44 = vector.load %arg7[%c3_105, %c0_106, %c512_107] : memref<4x4x576xbf16, #tpu.memory_space<vmem>>, vector<1x4x64xbf16>
    tpu.vector_store %arg7[%c3_105, %c0_106, %c512_107], %43 {strides = array<i32>} : memref<4x4x576xbf16, #tpu.memory_space<vmem>>, vector<1x4x64xbf16>,
    %c0_108 = arith.constant 0 : index
    %c0_109 = arith.constant 0 : index
    %c0_110 = arith.constant 0 : index
    %45 = vector.load %arg7[%c0_108, %c0_109, %c0_110] : memref<4x4x576xbf16, #tpu.memory_space<vmem>>, vector<4x4x576xbf16>
    %46 = vector.shape_cast %45 : vector<4x4x576xbf16> to vector<16x576xbf16>
    %c0_111 = arith.constant 0 : index
    %c0_112 = arith.constant 0 : index
    %47 = vector.load %arg4[%c0_111, %c0_112] : memref<576x64xbf16, #tpu.memory_space<vmem>>, vector<576x64xbf16>
    %cst = arith.constant dense<0.000000e+00> : vector<16x64xf32>
    %48 = tpu.matmul %46, %47, %cst {dimension_numbers = #tpu.dot_dimension_numbers<[1], [0], [0], [1], [0, 0, 1, 1], [], []>} : vector<16x576xbf16>, vector<576x64xbf16>, vector<16x64xf32> -> vector<16x64xf32>
    %49 = vector.shape_cast %48 : vector<16x64xf32> to vector<4x4x64xf32>
    %50 = arith.truncf %49 : vector<4x4x64xf32> to vector<4x4x64xbf16>
    %c0_113 = arith.constant 0 : index
    %c0_114 = arith.constant 0 : index
    %c0_115 = arith.constant 0 : index
    %c0_116 = arith.constant 0 : index
    %51 = vector.load %arg5[%c0_113, %c0_114, %c0_115, %c0_116] : memref<1x4x4x64xbf16, #tpu.memory_space<vmem>>, vector<1x4x4x64xbf16>
    %52 = vector.shape_cast %51 : vector<1x4x4x64xbf16> to vector<4x4x64xbf16>
    %53 = vector.shape_cast %50 : vector<4x4x64xbf16> to vector<1x4x4x64xbf16>
    tpu.vector_store %arg5[%c0_113, %c0_114, %c0_115, %c0_116], %53 {strides = array<i32>} : memref<1x4x4x64xbf16, #tpu.memory_space<vmem>>, vector<1x4x4x64xbf16>,
    %cst_117 = arith.constant dense<0.000000e+00> : vector<64xf32>
    %54 = vector.multi_reduction <add>, %48, %cst_117 [0] : vector<16x64xf32> to vector<64xf32>
    %55 = vector.shape_cast %54 : vector<64xf32> to vector<1x64xf32>
    %c0_118 = arith.constant 0 : index
    %c0_119 = arith.constant 0 : index
    %c0_120 = arith.constant 0 : index
    %c0_121 = arith.constant 0 : index
    %56 = vector.load %arg6[%c0_118, %c0_119, %c0_120, %c0_121] : memref<1x1x2x64xf32, #tpu.memory_space<vmem>>, vector<1x1x1x64xf32>
    %57 = vector.shape_cast %56 : vector<1x1x1x64xf32> to vector<1x64xf32>
    %58 = vector.shape_cast %55 : vector<1x64xf32> to vector<1x1x1x64xf32>
    tpu.vector_store %arg6[%c0_118, %c0_119, %c0_120, %c0_121], %58 {strides = array<i32>} : memref<1x1x2x64xf32, #tpu.memory_space<vmem>>, vector<1x1x1x64xf32>,
    %59 = arith.mulf %48, %48 : vector<16x64xf32>
    %cst_122 = arith.constant dense<0.000000e+00> : vector<64xf32>
    %60 = vector.multi_reduction <add>, %59, %cst_122 [0] : vector<16x64xf32> to vector<64xf32>
    %61 = vector.shape_cast %60 : vector<64xf32> to vector<1x64xf32>
    %c0_123 = arith.constant 0 : index
    %c0_124 = arith.constant 0 : index
    %c1_125 = arith.constant 1 : index
    %c0_126 = arith.constant 0 : index
    %62 = vector.load %arg6[%c0_123, %c0_124, %c1_125, %c0_126] : memref<1x1x2x64xf32, #tpu.memory_space<vmem>>, vector<1x1x1x64xf32>
    %63 = vector.shape_cast %62 : vector<1x1x1x64xf32> to vector<1x64xf32>
    %64 = vector.shape_cast %61 : vector<1x64xf32> to vector<1x1x1x64xf32>
    tpu.vector_store %arg6[%c0_123, %c0_124, %c1_125, %c0_126], %64 {strides = array<i32>} : memref<1x1x2x64xf32, #tpu.memory_space<vmem>>, vector<1x1x1x64xf32>,
    return
  }
  func.func @transform_0(%arg0: i32, %arg1: i32) -> (i32, i32, i32, i32, i32) {
    %c0_i32 = arith.constant 0 : i32
    %c0_i32_0 = arith.constant 0 : i32
    %c0_i32_1 = arith.constant 0 : i32
    %c0_i32_2 = arith.constant 0 : i32
    return %arg0, %arg1, %c0_i32, %c0_i32_0, %c0_i32_1 : i32, i32, i32, i32, i32
  }
  func.func @transform_1(%arg0: i32, %arg1: i32) -> (i32, i32, i32, i32, i32) {
    %c0_i32 = arith.constant 0 : i32
    %c0_i32_0 = arith.constant 0 : i32
    %c0_i32_1 = arith.constant 0 : i32
    %c0_i32_2 = arith.constant 0 : i32
    return %arg0, %arg1, %c0_i32, %c0_i32_0, %c0_i32_1 : i32, i32, i32, i32, i32
  }
  func.func @transform_2(%arg0: i32, %arg1: i32) -> (i32, i32) {
    %c0_i32 = arith.constant 0 : i32
    %c0_i32_0 = arith.constant 0 : i32
    %c0_i32_1 = arith.constant 0 : i32
    return %c0_i32, %c0_i32_0 : i32, i32
  }
  func.func @transform_3(%arg0: i32, %arg1: i32) -> (i32, i32, i32, i32) {
    %c0_i32 = arith.constant 0 : i32
    %c0_i32_0 = arith.constant 0 : i32
    %c0_i32_1 = arith.constant 0 : i32
    return %arg0, %arg1, %c0_i32, %c0_i32_0 : i32, i32, i32, i32
  }
  func.func @transform_4(%arg0: i32, %arg1: i32) -> (i32, i32, i32, i32) {
    %c0_i32 = arith.constant 0 : i32
    %c0_i32_0 = arith.constant 0 : i32
    %c0_i32_1 = arith.constant 0 : i32
    return %arg0, %arg1, %c0_i32, %c0_i32_0 : i32, i32, i32, i32
  }
}

</mosaic_0001>

<llo_original>
// kernel: encoder_forward.13
$region0: #{encoder_forward.13}
  #allocation0 [shape = 'u32[]', space=smem, size = 0x4, offset = 0x4, fixed_abs, tag = 'smem constant byte address 0x4 - core index']
  #allocation1 [shape = 'u32[72,128]{1,0:T(1,128)}', space=vmem, size = 0x9000, scoped, tag = 'internal scratch']
  %s0 = inlined_call_operand.vmem [shape: bf16[2,16,128], index: 0, kind: input, shape index: {}]
  %s1 = inlined_call_operand.vmem [shape: f32[2,1,128], index: 1, kind: input, shape index: {}]
  %s2 = inlined_call_operand.vmem [shape: f32[2,1,128], index: 2, kind: input, shape index: {}]
  %s3 = inlined_call_operand.vmem [shape: bf16[2,16,144], index: 3, kind: output, shape index: {}]
  %s4 = sld [smem:[#allocation0]]
  $region45: #{encoder_forward.13} parent=0
    _
  %s6 = ssub.s32 1, %s4
  %s7 = scalar_select 0, %s6, %s4
  loop: start=0, step=1, limit=4
  $region2: #{encoder_forward.13} parent=0 // loop_pre_header
    _
  $region3: #{encoder_forward.13} parent=0 // loop_header
    %s9 = sphi 0, %s13
    %p10 = scmp.ge.s32.totalorder %s9, 4
    %s16 = sphi 0, %s28
    %s17 = sphi 0, %s24
    %s18 = sphi 0, %s16
    %s19 = sphi 0, %s17
    %s20 = sphi 0, %s18
    %s21 = sphi 0, %s19
    %s33 = sphi 0, %s35
    %s36 = sphi 0, %s33
    %s37 = sphi 0, %s36
    %s53 = sphi 0, %s37
    %s59 = sphi 0, %s61
    %s62 = sphi 0, %s59
    %s63 = sphi 0, %s62
    %s79 = sphi 0, %s63
    %s85 = sphi 0, %s87
    %s88 = sphi 0, %s85
    %s89 = sphi 0, %s88
    %s105 = sphi 0, %s89
    %s113 = sphi 0, %s115
    %s116 = sphi 0, %s113
    %s117 = sphi 0, %s116
    %s133 = sphi 0, %s117
  $region4: #{encoder_forward.13} parent=0 // loop_header_branch
    %12 = sbr.rel (%p10) target = $region8
  $region5: #{encoder_forward.13} parent=0 // loop_body
    %s14 = ssub.s32 %s9, 1
    %s15 = ssub.s32 %s9, 2
    %s22 = sadd.s32 1, %s17
    %p23 = scmp.ge.s32.totalorder %s22, 1
    %s24 = scalar_select %p23, 0, %s22
    %s25 = sadd.s32 1, %s16
    %s26 = scalar_select %p23, %s25, %s16
    %p27 = scmp.ge.s32.totalorder %s26, 2
    %s28 = scalar_select %p27, 0, %s26
    %s29 = ssub.s32 %s16, %s28
    %s30 = ssub.s32 %s17, %s24
    %s31 = sor.u32 %s29, %s30
    %p32 = scmp.eq.s32.totalorder %s31, 0
    %s34 = sadd.s32 %s33, 1
    %s35 = scalar_select %p32, %s33, %s34
    %p38 = pneg %p32
    %p39 = scmp.eq.s32.totalorder %s9, 1
    %p40 = por %p38, %p39
    %p41 = scmp.ne.s32.totalorder %s33, %s36
    %p42 = scmp.eq.s32.totalorder %s9, 0
    %p43 = por %p41, %p42
    %p44 = scmp.ne.s32.totalorder %s33, %s36
    %p45 = scmp.eq.s32.totalorder %s14, 1
    %p46 = por %p44, %p45
    %p47 = scmp.ne.s32.totalorder %s36, %s37
    %p48 = scmp.eq.s32.totalorder %s14, 0
    %p49 = por %p47, %p48
    %p50 = scmp.ne.s32.totalorder %s36, %s37
    %p51 = scmp.eq.s32.totalorder %s15, 1
    %p52 = por %p50, %p51
    %p54 = scmp.ne.s32.totalorder %s37, %s53
    %p55 = scmp.eq.s32.totalorder %s15, 0
    %p56 = por %p54, %p55
    %s57 = ssub.s32 %s16, %s28
    %p58 = scmp.eq.s32.totalorder %s57, 0
    %s60 = sadd.s32 %s59, 1
    %s61 = scalar_select %p58, %s59, %s60
    %p64 = pneg %p58
    %p65 = scmp.eq.s32.totalorder %s9, 1
    %p66 = por %p64, %p65
    %p67 = scmp.ne.s32.totalorder %s59, %s62
    %p68 = scmp.eq.s32.totalorder %s9, 0
    %p69 = por %p67, %p68
    %p70 = scmp.ne.s32.totalorder %s59, %s62
    %p71 = scmp.eq.s32.totalorder %s14, 1
    %p72 = por %p70, %p71
    %p73 = scmp.ne.s32.totalorder %s62, %s63
    %p74 = scmp.eq.s32.totalorder %s14, 0
    %p75 = por %p73, %p74
    %p76 = scmp.ne.s32.totalorder %s62, %s63
    %p77 = scmp.eq.s32.totalorder %s15, 1
    %p78 = por %p76, %p77
    %p80 = scmp.ne.s32.totalorder %s63, %s79
    %p81 = scmp.eq.s32.totalorder %s15, 0
    %p82 = por %p80, %p81
    %s83 = ssub.s32 %s16, %s28
    %p84 = scmp.eq.s32.totalorder %s83, 0
    %s86 = sadd.s32 %s85, 1
    %s87 = scalar_select %p84, %s85, %s86
    %p90 = pneg %p84
    %p91 = scmp.eq.s32.totalorder %s9, 1
    %p92 = por %p90, %p91
    %p93 = scmp.ne.s32.totalorder %s85, %s88
    %p94 = scmp.eq.s32.totalorder %s9, 0
    %p95 = por %p93, %p94
    %p96 = scmp.ne.s32.totalorder %s85, %s88
    %p97 = scmp.eq.s32.totalorder %s14, 1
    %p98 = por %p96, %p97
    %p99 = scmp.ne.s32.totalorder %s88, %s89
    %p100 = scmp.eq.s32.totalorder %s14, 0
    %p101 = por %p99, %p100
    %p102 = scmp.ne.s32.totalorder %s88, %s89
    %p103 = scmp.eq.s32.totalorder %s15, 1
    %p104 = por %p102, %p103
    %p106 = scmp.ne.s32.totalorder %s89, %s105
    %p107 = scmp.eq.s32.totalorder %s15, 0
    %p108 = por %p106, %p107
    %s109 = ssub.s32 %s16, %s28
    %s110 = ssub.s32 %s17, %s24
    %s111 = sor.u32 %s109, %s110
    %p112 = scmp.eq.s32.totalorder %s111, 0
    %s114 = sadd.s32 %s113, 1
    %s115 = scalar_select %p112, %s113, %s114
    %p118 = pneg %p112
    %p119 = scmp.eq.s32.totalorder %s9, 1
    %p120 = por %p118, %p119
    %p121 = scmp.ne.s32.totalorder %s113, %s116
    %p122 = scmp.eq.s32.totalorder %s9, 0
    %p123 = por %p121, %p122
    %p124 = scmp.ne.s32.totalorder %s113, %s116
    %p125 = scmp.eq.s32.totalorder %s14, 1
    %p126 = por %p124, %p125
    %p127 = scmp.ne.s32.totalorder %s116, %s117
    %p128 = scmp.eq.s32.totalorder %s14, 0
    %p129 = por %p127, %p128
    %p130 = scmp.ne.s32.totalorder %s116, %s117
    %p131 = scmp.eq.s32.totalorder %s15, 1
    %p132 = por %p130, %p131
    %p134 = scmp.ne.s32.totalorder %s117, %s133
    %p135 = scmp.eq.s32.totalorder %s15, 0
    %p136 = por %p134, %p135
    %p137 = scmp.le.s32.totalorder 1, %s9
    %p138 = scmp.lt.s32.totalorder %s9, 3
    %p139 = pnand %p137, %p138
    %p140 = pneg %p139
    // Predicated region
    $region9: #{encoder_forward.13} parent=5 // pred_check
      _
    $region10: #{encoder_forward.13} parent=5 // pred_check_branch
      %142 = sbr.rel (%p139) target = $region12
    $region11: #{encoder_forward.13} parent=5 // pred_region
      %s143 = ssub.s32 %s9, 1
    $region12: #{encoder_forward.13} parent=5 // pred_fallthru
      _
    %p144 = scmp.lt.s32.totalorder %s9, 2
    // Predicated region
    $region13: #{encoder_forward.13} parent=5 // pred_check
      %p145 = pneg %p144
    $region14: #{encoder_forward.13} parent=5 // pred_check_branch
      %147 = sbr.rel (%p145) target = $region16
    $region15: #{encoder_forward.13} parent=5 // pred_region
      // Predicated region
      $region17: #{encoder_forward.13} parent=15 // pred_check
        %p148 = pneg %p43
      $region18: #{encoder_forward.13} parent=15 // pred_check_branch
        %150 = sbr.rel (%p148) target = $region20
      $region19: #{encoder_forward.13} parent=15 // pred_region
        %s151 = smul.u32 2, %s17
        %p152 = scmp.lt.s32.totalorder %s16, 1
        %s153 = scalar_select %p152, %s16, 1
        %p154 = scmp.lt.s32.totalorder %s151, 1
        %s155 = scalar_select %p154, %s151, 1
        %s156 = smul.addr %s153, 2
        %s157 = sadd.s32 %s155, %s156
        %s158 = smul.addr %s157, 4
        %s159 = scalar_lea.vmem %s0, %s158
        %s160 = smul.u32 2, %s17
      $region20: #{encoder_forward.13} parent=15 // pred_fallthru
        _
      // Predicated region
      $region21: #{encoder_forward.13} parent=15 // pred_check
        %p161 = pneg %p69
      $region22: #{encoder_forward.13} parent=15 // pred_check_branch
        %163 = sbr.rel (%p161) target = $region24
      $region23: #{encoder_forward.13} parent=15 // pred_region
        %p164 = scmp.lt.s32.totalorder %s16, 1
        %s165 = scalar_select %p164, %s16, 1
        %s166 = scalar_lea.vmem %s1, %s165
      $region24: #{encoder_forward.13} parent=15 // pred_fallthru
        _
      // Predicated region
      $region25: #{encoder_forward.13} parent=15 // pred_check
        %p167 = pneg %p95
      $region26: #{encoder_forward.13} parent=15 // pred_check_branch
        %169 = sbr.rel (%p167) target = $region28
      $region27: #{encoder_forward.13} parent=15 // pred_region
        %p170 = scmp.lt.s32.totalorder %s16, 1
        %s171 = scalar_select %p170, %s16, 1
        %s172 = scalar_lea.vmem %s2, %s171
      $region28: #{encoder_forward.13} parent=15 // pred_fallthru
        _
    $region16: #{encoder_forward.13} parent=5 // pred_fallthru
      _
    %p173 = scmp.le.s32.totalorder 1, %s9
    %p174 = scmp.lt.s32.totalorder %s9, 3
    %p175 = pnand %p173, %p174
    %p176 = pneg %p175
    // Predicated region
    $region29: #{encoder_forward.13} parent=5 // pred_check
      _
    $region30: #{encoder_forward.13} parent=5 // pred_check_branch
      %178 = sbr.rel (%p175) target = $region32
    $region31: #{encoder_forward.13} parent=5 // pred_region
      %s179 = ssub.s32 %s9, 1
      %s180 = smul.u32 2, %s19
      %p181 = scmp.lt.s32.totalorder %s18, 1
      %s182 = scalar_select %p181, %s18, 1
      %p183 = scmp.lt.s32.totalorder %s180, 1
      %s184 = scalar_select %p183, %s180, 1
      %s185 = smul.addr %s182, 2
      %s186 = sadd.s32 %s184, %s185
      %s187 = smul.addr %s186, 4
      %s188 = scalar_lea.vmem %s0, %s187
      %p189 = pneg %p49
      %p190 = pneg %p46
      %p191 = scmp.lt.s32.totalorder %s18, 1
      %s192 = scalar_select %p191, %s18, 1
      %s193 = scalar_lea.vmem %s1, %s192
      %p194 = pneg %p75
      %p195 = pneg %p72
      %p196 = scmp.lt.s32.totalorder %s18, 1
      %s197 = scalar_select %p196, %s18, 1
      %s198 = scalar_lea.vmem %s2, %s197
      %p199 = pneg %p101
      %p200 = pneg %p98
      %p201 = pneg %p129
      %p202 = pneg %p126
      %s203 = smul.u32 2, %s19
      %p204 = scmp.lt.s32.totalorder %s18, 1
      %s205 = scalar_select %p204, %s18, 1
      %p206 = scmp.lt.s32.totalorder %s203, 1
      %s207 = scalar_select %p206, %s203, 1
      %s208 = smul.addr %s207, 2
      %s209 = smul.addr %s205, 4
      %s210 = sadd.s32 %s208, %s209
      %s211 = smul.addr %s210, 4
      %s212 = scalar_lea.vmem %s3, %s211
      %s213 = smul.u32 2, %s19
      %p214 = scmp.lt.s32.totalorder %s18, 1
      %s215 = scalar_select %p214, %s18, 1
      %p216 = scmp.lt.s32.totalorder %s213, 1
      %s217 = scalar_select %p216, %s213, 1
      %s218 = smul.addr %s215, 2
      %s219 = sadd.s32 %s217, %s218
      %s220 = smul.addr %s219, 4
      %s221 = scalar_lea.vmem %s0, %s220
      %s222 = smul.u32 2, %s19
      %p223 = scmp.lt.s32.totalorder %s18, 1
      %s224 = scalar_select %p223, %s18, 1
      %s225 = scalar_lea.vmem %s1, %s224
      %p226 = scmp.lt.s32.totalorder %s18, 1
      %s227 = scalar_select %p226, %s18, 1
      %s228 = scalar_lea.vmem %s2, %s227
      %s229 = smul.u32 2, %s19
      %p230 = scmp.lt.s32.totalorder %s18, 1
      %s231 = scalar_select %p230, %s18, 1
      %p232 = scmp.lt.s32.totalorder %s229, 1
      %s233 = scalar_select %p232, %s229, 1
      %s234 = smul.addr %s233, 2
      %s235 = smul.addr %s231, 4
      %s236 = sadd.s32 %s234, %s235
      %s237 = smul.addr %s236, 4
      %s238 = scalar_lea.vmem %s3, %s237
      %s239 = smul.u32 2, %s19
      %v241 = vld [vmem:[%s221] sm:$0xf]
      %v242 = vld [vmem:[%s221 + $0x4] sm:$0xf]
      %v243 = vunpack.c.l.bf16 %v241
      %v244 = vunpack.c.l.bf16 %v242
      %v245 = vld [vmem:[%s225] sm:$0x1]
      %v247 = vperm.slane %v245, 0
      %v249 = vmul.f32 %v243, %v247
      %v250 = vmul.f32 %v244, %v247
      %v251 = vld [vmem:[%s228] sm:$0x1]
      %v253 = vperm.slane %v251, 0
      %v255 = vadd.f32 %v249, %v253
      %v256 = vadd.f32 %v250, %v253
      %vm257 = vcmp.gt.f32.partialorder %v255, 0.0
      %vm258 = vcmp.gt.f32.partialorder %v256, 0.0
      %v259 = vmul.f32 %v255, 0.2
      %v260 = vmul.f32 %v256, 0.2
      %v261 = vsel %vm257, %v255, %v259
      %v262 = vsel %vm258, %v256, %v260
      %v263 = vpack.c.bf16 %v261, %v261
      %v264 = vpack.c.bf16 %v262, %v262
      %vm265 = vcmask 60416
      %266 = vst.msk [vmem:[%s238] sm:$0xf] %vm265, 0
      %267 = vst.msk [vmem:[%s238 + $0x8] sm:$0xf] %vm265, 0
      %270 = vrot.lane.b32.xlu0 %v263, 8
      %v271 = vpop.permute.xlu0 %270
      %272 = vrot.lane.b32.xlu0 %v264, 8
      %v273 = vpop.permute.xlu0 %272
      %v274 = vrot.slane %v271, 4
      %v275 = vrot.slane %v273, 4
      %vm276 = vcmask 64512
      %v277 = vsel %vm276, %v274, %v271
      %v278 = vsel %vm276, %v275, %v273
      %vm281 = vcmask 1043520
      %vm282 = vcmask 64516
      %vm283 = vmor %vm282, %vm281
      %284 = vst.msk [vmem:[%s238] sm:$0xff] %vm283, %v277
      %285 = vst.msk [vmem:[%s238 + $0x8] sm:$0xff] %vm283, %v278
      %vm286 = vcmask 126016
      %287 = vst.msk [vmem:[%s238 + $0x4] sm:$0xf] %vm286, 0
      %288 = vst.msk [vmem:[%s238 + $0xc] sm:$0xf] %vm286, 0
      %s289 = smul.u32 2, %s19
      %p290 = scmp.lt.s32.totalorder %s18, 1
      %s291 = scalar_select %p290, %s18, 1
      %p292 = scmp.lt.s32.totalorder %s289, 1
      %s293 = scalar_select %p292, %s289, 1
      %s294 = smul.addr %s293, 2
      %s295 = smul.addr %s291, 4
      %s296 = sadd.s32 %s294, %s295
      %s297 = smul.addr %s296, 4
      %s298 = scalar_lea.vmem %s3, %s297
      // Predicated region
      $region33: #{encoder_forward.13} parent=31 // pred_check
        %p299 = pneg %p126
      $region34: #{encoder_forward.13} parent=31 // pred_check_branch
        %301 = sbr.rel (%p299) target = $region36
      $region35: #{encoder_forward.13} parent=31 // pred_region
        %s302 = smul.u32 2, %s19
      $region36: #{encoder_forward.13} parent=31 // pred_fallthru
        _
    $region32: #{encoder_forward.13} parent=5 // pred_fallthru
      _
    %p303 = scmp.le.s32.totalorder 2, %s9
    // Predicated region
    $region37: #{encoder_forward.13} parent=5 // pred_check
      %p304 = pneg %p303
    $region38: #{encoder_forward.13} parent=5 // pred_check_branch
      %306 = sbr.rel (%p304) target = $region40
    $region39: #{encoder_forward.13} parent=5 // pred_region
      %s307 = ssub.s32 %s9, 2
      // Predicated region
      $region41: #{encoder_forward.13} parent=39 // pred_check
        %p308 = pneg %p132
      $region42: #{encoder_forward.13} parent=39 // pred_check_branch
        %310 = sbr.rel (%p308) target = $region44
      $region43: #{encoder_forward.13} parent=39 // pred_region
        %s311 = smul.u32 2, %s21
        %p312 = scmp.lt.s32.totalorder %s20, 1
        %s313 = scalar_select %p312, %s20, 1
        %p314 = scmp.lt.s32.totalorder %s311, 1
        %s315 = scalar_select %p314, %s311, 1
        %s316 = smul.addr %s315, 2
        %s317 = smul.addr %s313, 4
        %s318 = sadd.s32 %s316, %s317
        %s319 = smul.addr %s318, 4
        %s320 = scalar_lea.vmem %s3, %s319
      $region44: #{encoder_forward.13} parent=39 // pred_fallthru
        _
    $region40: #{encoder_forward.13} parent=5 // pred_fallthru
      _
  $region6: #{encoder_forward.13} parent=0 // loop_footer
    %s13 = sadd.s32 1, %s9
  $region7: #{encoder_forward.13} parent=0 // loop_footer_branch
    %8 = sbr.rel target = $region3
  $region8: #{encoder_forward.13} parent=0 // loop_exit
    _

// kernel: encoder_forward.12
$region0: #{encoder_forward.12}
  #allocation0 [shape = 'u32[]', space=smem, size = 0x4, offset = 0x4, fixed_abs, tag = 'smem constant byte address 0x4 - core index']
  #allocation1 [shape = 'u32[72,128]{1,0:T(1,128)}', space=vmem, size = 0x9000, scoped, tag = 'internal scratch']
  #allocation2 [shape = 'bf16[4,16,36]{2,1,0:T(8,128)(2,1)}', space=vmem, size = 0x4000, scoped, tag = 'scratch operand']
  %s0 = inlined_call_operand.vmem [shape: bf16[2,16,1,18,4], index: 0, kind: input, shape index: {}]
  %s1 = inlined_call_operand.vmem [shape: bf16[2,4,2,18,4], index: 1, kind: input, shape index: {}]
  %s2 = inlined_call_operand.vmem [shape: bf16[36,8], index: 2, kind: input, shape index: {}]
  %s3 = inlined_call_operand.vmem [shape: bf16[2,16,16,8], index: 3, kind: output, shape index: {0}]
  %s4 = inlined_call_operand.vmem [shape: f32[2,4,2,8], index: 4, kind: output, shape index: {1}]
  %5 = xla_tuple %s3, %s4
  %s6 = sld [smem:[#allocation0]]
  $region53: #{encoder_forward.12} parent=0
    _
  %s8 = ssub.s32 1, %s6
  %s9 = scalar_select 0, %s8, %s6
  loop: start=0, step=1, limit=10
  $region2: #{encoder_forward.12} parent=0 // loop_pre_header
    _
  $region3: #{encoder_forward.12} parent=0 // loop_header
    %s11 = sphi 0, %s15
    %p12 = scmp.ge.s32.totalorder %s11, 10
    %s18 = sphi 0, %s30
    %s19 = sphi 0, %s26
    %s20 = sphi 0, %s18
    %s21 = sphi 0, %s19
    %s22 = sphi 0, %s20
    %s23 = sphi 0, %s21
    %s35 = sphi 0, %s37
    %s38 = sphi 0, %s35
    %s39 = sphi 0, %s38
    %s55 = sphi 0, %s39
    %s63 = sphi 0, %s65
    %s66 = sphi 0, %s63
    %s67 = sphi 0, %s66
    %s83 = sphi 0, %s67
    %s87 = sphi 0, %s87
    %s89 = sphi 0, %s87
    %s90 = sphi 0, %s89
    %s104 = sphi 0, %s90
    %s112 = sphi 0, %s114
    %s115 = sphi 0, %s112
    %s116 = sphi 0, %s115
    %s132 = sphi 0, %s116
    %s140 = sphi 0, %s142
    %s143 = sphi 0, %s140
    %s144 = sphi 0, %s143
    %s160 = sphi 0, %s144
  $region4: #{encoder_forward.12} parent=0 // loop_header_branch
    %14 = sbr.rel (%p12) target = $region8
  $region5: #{encoder_forward.12} parent=0 // loop_body
    %s16 = ssub.s32 %s11, 1
    %s17 = ssub.s32 %s11, 2
    %s24 = sadd.s32 1, %s19
    %p25 = scmp.ge.s32.totalorder %s24, 4
    %s26 = scalar_select %p25, 0, %s24
    %s27 = sadd.s32 1, %s18
    %s28 = scalar_select %p25, %s27, %s18
    %p29 = scmp.ge.s32.totalorder %s28, 2
    %s30 = scalar_select %p29, 0, %s28
    %s31 = ssub.s32 %s18, %s30
    %s32 = ssub.s32 %s19, %s26
    %s33 = sor.u32 %s31, %s32
    %p34 = scmp.eq.s32.totalorder %s33, 0
    %s36 = sadd.s32 %s35, 1
    %s37 = scalar_select %p34, %s35, %s36
    %p40 = pneg %p34
    %p41 = scmp.eq.s32.totalorder %s11, 7
    %p42 = por %p40, %p41
    %p43 = scmp.ne.s32.totalorder %s35, %s38
    %p44 = scmp.eq.s32.totalorder %s11, 0
    %p45 = por %p43, %p44
    %p46 = scmp.ne.s32.totalorder %s35, %s38
    %p47 = scmp.eq.s32.totalorder %s16, 7
    %p48 = por %p46, %p47
    %p49 = scmp.ne.s32.totalorder %s38, %s39
    %p50 = scmp.eq.s32.totalorder %s16, 0
    %p51 = por %p49, %p50
    %p52 = scmp.ne.s32.totalorder %s38, %s39
    %p53 = scmp.eq.s32.totalorder %s17, 7
    %p54 = por %p52, %p53
    %p56 = scmp.ne.s32.totalorder %s39, %s55
    %p57 = scmp.eq.s32.totalorder %s17, 0
    %p58 = por %p56, %p57
    %s59 = ssub.s32 %s18, %s30
    %s60 = ssub.s32 %s19, %s26
    %s61 = sor.u32 %s59, %s60
    %p62 = scmp.eq.s32.totalorder %s61, 0
    %s64 = sadd.s32 %s63, 1
    %s65 = scalar_select %p62, %s63, %s64
    %p68 = pneg %p62
    %p69 = scmp.eq.s32.totalorder %s11, 7
    %p70 = por %p68, %p69
    %p71 = scmp.ne.s32.totalorder %s63, %s66
    %p72 = scmp.eq.s32.totalorder %s11, 0
    %p73 = por %p71, %p72
    %p74 = scmp.ne.s32.totalorder %s63, %s66
    %p75 = scmp.eq.s32.totalorder %s16, 7
    %p76 = por %p74, %p75
    %p77 = scmp.ne.s32.totalorder %s66, %s67
    %p78 = scmp.eq.s32.totalorder %s16, 0
    %p79 = por %p77, %p78
    %p80 = scmp.ne.s32.totalorder %s66, %s67
    %p81 = scmp.eq.s32.totalorder %s17, 7
    %p82 = por %p80, %p81
    %p84 = scmp.ne.s32.totalorder %s67, %s83
    %p85 = scmp.eq.s32.totalorder %s17, 0
    %p86 = por %p84, %p85
    %s88 = sadd.s32 %s87, 1
    %p91 = scmp.eq.s32.totalorder %s11, 7
    %p92 = scmp.ne.s32.totalorder %s87, %s89
    %p93 = scmp.eq.s32.totalorder %s11, 0
    %p94 = por %p92, %p93
    %p95 = scmp.ne.s32.totalorder %s87, %s89
    %p96 = scmp.eq.s32.totalorder %s16, 7
    %p97 = por %p95, %p96
    %p98 = scmp.ne.s32.totalorder %s89, %s90
    %p99 = scmp.eq.s32.totalorder %s16, 0
    %p100 = por %p98, %p99
    %p101 = scmp.ne.s32.totalorder %s89, %s90
    %p102 = scmp.eq.s32.totalorder %s17, 7
    %p103 = por %p101, %p102
    %p105 = scmp.ne.s32.totalorder %s90, %s104
    %p106 = scmp.eq.s32.totalorder %s17, 0
    %p107 = por %p105, %p106
    %s108 = ssub.s32 %s18, %s30
    %s109 = ssub.s32 %s19, %s26
    %s110 = sor.u32 %s108, %s109
    %p111 = scmp.eq.s32.totalorder %s110, 0
    %s113 = sadd.s32 %s112, 1
    %s114 = scalar_select %p111, %s112, %s113
    %p117 = pneg %p111
    %p118 = scmp.eq.s32.totalorder %s11, 7
    %p119 = por %p117, %p118
    %p120 = scmp.ne.s32.totalorder %s112, %s115
    %p121 = scmp.eq.s32.totalorder %s11, 0
    %p122 = por %p120, %p121
    %p123 = scmp.ne.s32.totalorder %s112, %s115
    %p124 = scmp.eq.s32.totalorder %s16, 7
    %p125 = por %p123, %p124
    %p126 = scmp.ne.s32.totalorder %s115, %s116
    %p127 = scmp.eq.s32.totalorder %s16, 0
    %p128 = por %p126, %p127
    %p129 = scmp.ne.s32.totalorder %s115, %s116
    %p130 = scmp.eq.s32.totalorder %s17, 7
    %p131 = por %p129, %p130
    %p133 = scmp.ne.s32.totalorder %s116, %s132
    %p134 = scmp.eq.s32.totalorder %s17, 0
    %p135 = por %p133, %p134
    %s136 = ssub.s32 %s18, %s30
    %s137 = ssub.s32 %s19, %s26
    %s138 = sor.u32 %s136, %s137
    %p139 = scmp.eq.s32.totalorder %s138, 0
    %s141 = sadd.s32 %s140, 1
    %s142 = scalar_select %p139, %s140, %s141
    %p145 = pneg %p139
    %p146 = scmp.eq.s32.totalorder %s11, 7
    %p147 = por %p145, %p146
    %p148 = scmp.ne.s32.totalorder %s140, %s143
    %p149 = scmp.eq.s32.totalorder %s11, 0
    %p150 = por %p148, %p149
    %p151 = scmp.ne.s32.totalorder %s140, %s143
    %p152 = scmp.eq.s32.totalorder %s16, 7
    %p153 = por %p151, %p152
    %p154 = scmp.ne.s32.totalorder %s143, %s144
    %p155 = scmp.eq.s32.totalorder %s16, 0
    %p156 = por %p154, %p155
    %p157 = scmp.ne.s32.totalorder %s143, %s144
    %p158 = scmp.eq.s32.totalorder %s17, 7
    %p159 = por %p157, %p158
    %p161 = scmp.ne.s32.totalorder %s144, %s160
    %p162 = scmp.eq.s32.totalorder %s17, 0
    %p163 = por %p161, %p162
    %p164 = scmp.le.s32.totalorder 1, %s11
    %p165 = scmp.lt.s32.totalorder %s11, 9
    %p166 = pnand %p164, %p165
    %p167 = pneg %p166
    // Predicated region
    $region9: #{encoder_forward.12} parent=5 // pred_check
      _
    $region10: #{encoder_forward.12} parent=5 // pred_check_branch
      %169 = sbr.rel (%p166) target = $region12
    $region11: #{encoder_forward.12} parent=5 // pred_region
      %s170 = ssub.s32 %s11, 1
      // Predicated region
      $region13: #{encoder_forward.12} parent=11 // pred_check
        %p171 = pneg %p100
      $region14: #{encoder_forward.12} parent=11 // pred_check_branch
        %173 = sbr.rel (%p171) target = $region16
      $region15: #{encoder_forward.12} parent=11 // pred_region
        _
      $region16: #{encoder_forward.12} parent=11 // pred_fallthru
        _
    $region12: #{encoder_forward.12} parent=5 // pred_fallthru
      _
    %p174 = scmp.lt.s32.totalorder %s11, 8
    // Predicated region
    $region17: #{encoder_forward.12} parent=5 // pred_check
      %p175 = pneg %p174
    $region18: #{encoder_forward.12} parent=5 // pred_check_branch
      %177 = sbr.rel (%p175) target = $region20
    $region19: #{encoder_forward.12} parent=5 // pred_region
      // Predicated region
      $region21: #{encoder_forward.12} parent=19 // pred_check
        %p178 = pneg %p45
      $region22: #{encoder_forward.12} parent=19 // pred_check_branch
        %180 = sbr.rel (%p178) target = $region24
      $region23: #{encoder_forward.12} parent=19 // pred_region
        %s181 = smul.u32 4, %s19
        %p182 = scmp.lt.s32.totalorder %s18, 1
        %s183 = scalar_select %p182, %s18, 1
        %p184 = scmp.lt.s32.totalorder %s181, 15
        %s185 = scalar_select %p184, %s181, 15
        %s186 = smul.addr %s185, 3
        %s187 = smul.addr %s183, 48
        %s188 = sadd.s32 %s186, %s187
        %s189 = smul.addr %s188, 4
        %s190 = scalar_lea.vmem %s0, %s189
        %s191 = smul.u32 4, %s19
      $region24: #{encoder_forward.12} parent=19 // pred_fallthru
        _
      // Predicated region
      $region25: #{encoder_forward.12} parent=19 // pred_check
        %p192 = pneg %p73
      $region26: #{encoder_forward.12} parent=19 // pred_check_branch
        %194 = sbr.rel (%p192) target = $region28
      $region27: #{encoder_forward.12} parent=19 // pred_region
        %p195 = scmp.lt.s32.totalorder %s18, 1
        %s196 = scalar_select %p195, %s18, 1
        %p197 = scmp.lt.s32.totalorder %s19, 3
        %s198 = scalar_select %p197, %s19, 3
        %s199 = smul.addr %s198, 6
        %s200 = smul.addr %s196, 24
        %s201 = sadd.s32 %s199, %s200
        %s202 = smul.addr %s201, 4
        %s203 = scalar_lea.vmem %s1, %s202
      $region28: #{encoder_forward.12} parent=19 // pred_fallthru
        _
    $region20: #{encoder_forward.12} parent=5 // pred_fallthru
      _
    %p204 = scmp.le.s32.totalorder 1, %s11
    %p205 = scmp.lt.s32.totalorder %s11, 9
    %p206 = pnand %p204, %p205
    %p207 = pneg %p206
    // Predicated region
    $region29: #{encoder_forward.12} parent=5 // pred_check
      _
    $region30: #{encoder_forward.12} parent=5 // pred_check_branch
      %209 = sbr.rel (%p206) target = $region32
    $region31: #{encoder_forward.12} parent=5 // pred_region
      %s210 = ssub.s32 %s11, 1
      %s211 = smul.u32 4, %s21
      %p212 = scmp.lt.s32.totalorder %s20, 1
      %s213 = scalar_select %p212, %s20, 1
      %p214 = scmp.lt.s32.totalorder %s211, 15
      %s215 = scalar_select %p214, %s211, 15
      %s216 = smul.addr %s215, 3
      %s217 = smul.addr %s213, 48
      %s218 = sadd.s32 %s216, %s217
      %s219 = smul.addr %s218, 4
      %s220 = scalar_lea.vmem %s0, %s219
      %p221 = pneg %p51
      %p222 = pneg %p48
      %p223 = scmp.lt.s32.totalorder %s20, 1
      %s224 = scalar_select %p223, %s20, 1
      %p225 = scmp.lt.s32.totalorder %s21, 3
      %s226 = scalar_select %p225, %s21, 3
      %s227 = smul.addr %s226, 6
      %s228 = smul.addr %s224, 24
      %s229 = sadd.s32 %s227, %s228
      %s230 = smul.addr %s229, 4
      %s231 = scalar_lea.vmem %s1, %s230
      %p232 = pneg %p79
      %p233 = pneg %p76
      %p234 = pneg %p100
      %p235 = pneg %p97
      %p236 = pneg %p128
      %p237 = pneg %p125
      %s238 = smul.u32 4, %s21
      %p239 = scmp.lt.s32.totalorder %s20, 1
      %s240 = scalar_select %p239, %s20, 1
      %p241 = scmp.lt.s32.totalorder %s238, 15
      %s242 = scalar_select %p241, %s238, 15
      %s243 = smul.addr %s242, 2
      %s244 = smul.addr %s240, 32
      %s245 = sadd.s32 %s243, %s244
      %s246 = smul.addr %s245, 4
      %s247 = scalar_lea.vmem %s3, %s246
      %p248 = pneg %p156
      %p249 = pneg %p153
      %p250 = scmp.lt.s32.totalorder %s20, 1
      %s251 = scalar_select %p250, %s20, 1
      %p252 = scmp.lt.s32.totalorder %s21, 3
      %s253 = scalar_select %p252, %s21, 3
      %s254 = smul.addr %s251, 4
      %s255 = sadd.s32 %s253, %s254
      %s256 = smul.addr %s255, 2
      %s257 = scalar_lea.vmem %s4, %s256
      %s258 = smul.u32 4, %s21
      %p259 = scmp.lt.s32.totalorder %s20, 1
      %s260 = scalar_select %p259, %s20, 1
      %p261 = scmp.lt.s32.totalorder %s258, 15
      %s262 = scalar_select %p261, %s258, 15
      %s263 = smul.addr %s262, 3
      %s264 = smul.addr %s260, 48
      %s265 = sadd.s32 %s263, %s264
      %s266 = smul.addr %s265, 4
      %s267 = scalar_lea.vmem %s0, %s266
      %s268 = smul.u32 4, %s21
      %p269 = scmp.lt.s32.totalorder %s20, 1
      %s270 = scalar_select %p269, %s20, 1
      %p271 = scmp.lt.s32.totalorder %s21, 3
      %s272 = scalar_select %p271, %s21, 3
      %s273 = smul.addr %s272, 6
      %s274 = smul.addr %s270, 24
      %s275 = sadd.s32 %s273, %s274
      %s276 = smul.addr %s275, 4
      %s277 = scalar_lea.vmem %s1, %s276
      %s278 = smul.u32 4, %s21
      %p279 = scmp.lt.s32.totalorder %s20, 1
      %s280 = scalar_select %p279, %s20, 1
      %p281 = scmp.lt.s32.totalorder %s278, 15
      %s282 = scalar_select %p281, %s278, 15
      %s283 = smul.addr %s282, 2
      %s284 = smul.addr %s280, 32
      %s285 = sadd.s32 %s283, %s284
      %s286 = smul.addr %s285, 4
      %s287 = scalar_lea.vmem %s3, %s286
      %s288 = smul.u32 4, %s21
      %p289 = scmp.lt.s32.totalorder %s20, 1
      %s290 = scalar_select %p289, %s20, 1
      %p291 = scmp.lt.s32.totalorder %s21, 3
      %s292 = scalar_select %p291, %s21, 3
      %s293 = smul.addr %s290, 4
      %s294 = sadd.s32 %s292, %s293
      %s295 = smul.addr %s294, 2
      %s296 = scalar_lea.vmem %s4, %s295
      %v298 = vld [vmem:[%s277] sm:$0xf]
      %v299 = vld [vmem:[%s277 + $0x4] sm:$0xf]
      %vm300 = vcmask 27648
      %301 = vst.msk [vmem:[#allocation2] sm:$0xf] %vm300, %v298
      %302 = vst.msk [vmem:[#allocation2 + $0x4] sm:$0xf] %vm300, %v299
      %v303 = vld [vmem:[%s267] sm:$0xf]
      %v304 = vld [vmem:[%s267 + $0x4] sm:$0xf]
      %v305 = vld [vmem:[%s267 + $0xc] sm:$0xf]
      %v306 = vld [vmem:[%s267 + $0x10] sm:$0xf]
      %v307 = vld [vmem:[%s267 + $0x18] sm:$0xf]
      %v308 = vld [vmem:[%s267 + $0x1c] sm:$0xf]
      %s309 = scalar_lea.vmem [#allocation2], 8
      %310 = vst.msk [vmem:[%s309] sm:$0xf] %vm300, %v303
      %311 = vst.msk [vmem:[%s309 + $0x4] sm:$0xf] %vm300, %v304
      %312 = vst.msk [vmem:[%s309 + $0x8] sm:$0xf] %vm300, %v305
      %313 = vst.msk [vmem:[%s309 + $0xc] sm:$0xf] %vm300, %v306
      %314 = vst.msk [vmem:[%s309 + $0x10] sm:$0xf] %vm300, %v307
      %315 = vst.msk [vmem:[%s309 + $0x14] sm:$0xf] %vm300, %v308
      %v316 = vld [vmem:[%s277] sm:$0xf]
      %v317 = vld [vmem:[%s277 + $0x4] sm:$0xf]
      %v318 = vld [vmem:[%s277 + $0x8] sm:$0x1]
      %vm319 = vsmask.f32 3328
      %vm320 = vsmask.f32 7440
      %vm321 = vmor %vm319, %vm320
      %v323 = vshrl.u32 %v316, 16
      %v325 = vrot.slane %v323, 4
      %v326 = vshll.u32 %v316, 16
      %v328 = vrot.slane %v326, 5
      %v329 = vor.u32 %v325, %v328
      %v330 = vrot.slane %v329, 4
      %v332 = vshll.u32 %v317, 16
      %v334 = vrot.slane %v332, 5
      %v335 = vsel %vm321, %v330, %v334
      %v336 = vshrl.u32 %v317, 16
      %v338 = vrot.slane %v336, 4
      %v339 = vor.u32 %v338, %v334
      %v340 = vrot.slane %v339, 4
      %v342 = vshll.u32 %v318, 16
      %v344 = vrot.slane %v342, 5
      %v345 = vsel %vm321, %v340, %v344
      %346 = vrot.lane.b32.xlu0 %v335, 4
      %v347 = vpop.permute.xlu0 %346
      %348 = vrot.lane.b32.xlu0 %v345, 4
      %v349 = vpop.permute.xlu0 %348
      %vm352 = vcmask 60448
      %353 = vst.msk [vmem:[#allocation2] sm:$0xf] %vm352, %v347
      %354 = vst.msk [vmem:[#allocation2 + $0x4] sm:$0xf] %vm352, %v349
      %v355 = vld [vmem:[%s267] sm:$0xf]
      %v356 = vld [vmem:[%s267 + $0x4] sm:$0xf]
      %v357 = vld [vmem:[%s267 + $0x8] sm:$0x1]
      %v358 = vld [vmem:[%s267 + $0xc] sm:$0xf]
      %v359 = vld [vmem:[%s267 + $0x10] sm:$0xf]
      %v360 = vld [vmem:[%s267 + $0x14] sm:$0x1]
      %v361 = vld [vmem:[%s267 + $0x18] sm:$0xf]
      %v362 = vld [vmem:[%s267 + $0x1c] sm:$0xf]
      %v363 = vld [vmem:[%s267 + $0x20] sm:$0x1]
      %v365 = vshrl.u32 %v355, 16
      %v367 = vrot.slane %v365, 4
      %v368 = vshll.u32 %v355, 16
      %v370 = vrot.slane %v368, 5
      %v371 = vor.u32 %v367, %v370
      %v372 = vrot.slane %v371, 4
      %v374 = vshll.u32 %v356, 16
      %v376 = vrot.slane %v374, 5
      %v377 = vsel %vm321, %v372, %v376
      %v378 = vshrl.u32 %v356, 16
      %v380 = vrot.slane %v378, 4
      %v381 = vor.u32 %v380, %v376
      %v382 = vrot.slane %v381, 4
      %v384 = vshll.u32 %v357, 16
      %v386 = vrot.slane %v384, 5
      %v387 = vsel %vm321, %v382, %v386
      %v389 = vshrl.u32 %v358, 16
      %v391 = vrot.slane %v389, 4
      %v392 = vshll.u32 %v358, 16
      %v394 = vrot.slane %v392, 5
      %v395 = vor.u32 %v391, %v394
      %v396 = vrot.slane %v395, 4
      %v398 = vshll.u32 %v359, 16
      %v400 = vrot.slane %v398, 5
      %v401 = vsel %vm321, %v396, %v400
      %v402 = vshrl.u32 %v359, 16
      %v404 = vrot.slane %v402, 4
      %v405 = vor.u32 %v404, %v400
      %v406 = vrot.slane %v405, 4
      %v408 = vshll.u32 %v360, 16
      %v410 = vrot.slane %v408, 5
      %v411 = vsel %vm321, %v406, %v410
      %v413 = vshrl.u32 %v361, 16
      %v415 = vrot.slane %v413, 4
      %v416 = vshll.u32 %v361, 16
      %v418 = vrot.slane %v416, 5
      %v419 = vor.u32 %v415, %v418
      %v420 = vrot.slane %v419, 4
      %v422 = vshll.u32 %v362, 16
      %v424 = vrot.slane %v422, 5
      %v425 = vsel %vm321, %v420, %v424
      %v426 = vshrl.u32 %v362, 16
      %v428 = vrot.slane %v426, 4
      %v429 = vor.u32 %v428, %v424
      %v430 = vrot.slane %v429, 4
      %v432 = vshll.u32 %v363, 16
      %v434 = vrot.slane %v432, 5
      %v435 = vsel %vm321, %v430, %v434
      %436 = vrot.lane.b32.xlu0 %v377, 4
      %v437 = vpop.permute.xlu0 %436
      %438 = vrot.lane.b32.xlu0 %v387, 4
      %v439 = vpop.permute.xlu0 %438
      %440 = vrot.lane.b32.xlu0 %v401, 4
      %v441 = vpop.permute.xlu0 %440
      %442 = vrot.lane.b32.xlu0 %v411, 4
      %v443 = vpop.permute.xlu0 %442
      %444 = vrot.lane.b32.xlu0 %v425, 4
      %v445 = vpop.permute.xlu0 %444
      %446 = vrot.lane.b32.xlu0 %v435, 4
      %v447 = vpop.permute.xlu0 %446
      %454 = vst.msk [vmem:[%s309] sm:$0xf] %vm352, %v437
      %455 = vst.msk [vmem:[%s309 + $0x4] sm:$0xf] %vm352, %v439
      %456 = vst.msk [vmem:[%s309 + $0x8] sm:$0xf] %vm352, %v441
      %457 = vst.msk [vmem:[%s309 + $0xc] sm:$0xf] %vm352, %v443
      %458 = vst.msk [vmem:[%s309 + $0x10] sm:$0xf] %vm352, %v445
      %459 = vst.msk [vmem:[%s309 + $0x14] sm:$0xf] %vm352, %v447
      %v460 = vld [vmem:[%s277] sm:$0xe]
      %v461 = vld [vmem:[%s277 + $0x4] sm:$0xf]
      %v462 = vld [vmem:[%s277 + $0x8] sm:$0x1]
      %vm466 = vcmask 1042432
      %vm467 = vcmask 1046532
      %vm468 = vmor %vm466, %vm467
      %v469 = vrot.slane %v460, 5
      %v470 = vrot.slane %v469, 4
      %v471 = vrot.slane %v461, 5
      %v472 = vsel %vm468, %v470, %v471
      %v473 = vrot.slane %v471, 4
      %v474 = vrot.slane %v462, 5
      %v475 = vsel %vm468, %v473, %v474
      %476 = vrot.lane.b32.xlu0 %v472, 8
      %v477 = vpop.permute.xlu0 %476
      %478 = vrot.lane.b32.xlu0 %v475, 8
      %v479 = vpop.permute.xlu0 %478
      %vm482 = vcmask 93248
      %483 = vst.msk [vmem:[#allocation2] sm:$0xf] %vm482, %v477
      %484 = vst.msk [vmem:[#allocation2 + $0x4] sm:$0xf] %vm482, %v479
      %v485 = vld [vmem:[%s267] sm:$0xe]
      %v486 = vld [vmem:[%s267 + $0x4] sm:$0xf]
      %v487 = vld [vmem:[%s267 + $0x8] sm:$0x1]
      %v488 = vld [vmem:[%s267 + $0xc] sm:$0xe]
      %v489 = vld [vmem:[%s267 + $0x10] sm:$0xf]
      %v490 = vld [vmem:[%s267 + $0x14] sm:$0x1]
      %v491 = vld [vmem:[%s267 + $0x18] sm:$0xe]
      %v492 = vld [vmem:[%s267 + $0x1c] sm:$0xf]
      %v493 = vld [vmem:[%s267 + $0x20] sm:$0x1]
      %v503 = vrot.slane %v485, 5
      %v504 = vrot.slane %v503, 4
      %v505 = vrot.slane %v486, 5
      %v506 = vsel %vm468, %v504, %v505
      %v507 = vrot.slane %v505, 4
      %v508 = vrot.slane %v487, 5
      %v509 = vsel %vm468, %v507, %v508
      %v510 = vrot.slane %v488, 5
      %v511 = vrot.slane %v510, 4
      %v512 = vrot.slane %v489, 5
      %v513 = vsel %vm468, %v511, %v512
      %v514 = vrot.slane %v512, 4
      %v515 = vrot.slane %v490, 5
      %v516 = vsel %vm468, %v514, %v515
      %v517 = vrot.slane %v491, 5
      %v518 = vrot.slane %v517, 4
      %v519 = vrot.slane %v492, 5
      %v520 = vsel %vm468, %v518, %v519
      %v521 = vrot.slane %v519, 4
      %v522 = vrot.slane %v493, 5
      %v523 = vsel %vm468, %v521, %v522
      %524 = vrot.lane.b32.xlu0 %v506, 8
      %v525 = vpop.permute.xlu0 %524
      %526 = vrot.lane.b32.xlu0 %v509, 8
      %v527 = vpop.permute.xlu0 %526
      %528 = vrot.lane.b32.xlu0 %v513, 8
      %v529 = vpop.permute.xlu0 %528
      %530 = vrot.lane.b32.xlu0 %v516, 8
      %v531 = vpop.permute.xlu0 %530
      %532 = vrot.lane.b32.xlu0 %v520, 8
      %v533 = vpop.permute.xlu0 %532
      %534 = vrot.lane.b32.xlu0 %v523, 8
      %v535 = vpop.permute.xlu0 %534
      %542 = vst.msk [vmem:[%s309] sm:$0xf] %vm482, %v525
      %543 = vst.msk [vmem:[%s309 + $0x4] sm:$0xf] %vm482, %v527
      %544 = vst.msk [vmem:[%s309 + $0x8] sm:$0xf] %vm482, %v529
      %545 = vst.msk [vmem:[%s309 + $0xc] sm:$0xf] %vm482, %v531
      %546 = vst.msk [vmem:[%s309 + $0x10] sm:$0xf] %vm482, %v533
      %547 = vst.msk [vmem:[%s309 + $0x14] sm:$0xf] %vm482, %v535
      %v548 = vld [vmem:[%s267] sm:$0xf]
      %v549 = vld [vmem:[%s267 + $0x4] sm:$0xf]
      %v550 = vld [vmem:[%s267 + $0xc] sm:$0xf]
      %v551 = vld [vmem:[%s267 + $0x10] sm:$0xf]
      %v552 = vld [vmem:[%s267 + $0x18] sm:$0xf]
      %v553 = vld [vmem:[%s267 + $0x1c] sm:$0xf]
      %v554 = vld [vmem:[%s267 + $0x24] sm:$0xf]
      %v555 = vld [vmem:[%s267 + $0x28] sm:$0xf]
      %564 = vrot.lane.b32.xlu0 %v548, 12
      %v565 = vpop.permute.xlu0 %564
      %566 = vrot.lane.b32.xlu0 %v549, 12
      %v567 = vpop.permute.xlu0 %566
      %568 = vrot.lane.b32.xlu0 %v550, 12
      %v569 = vpop.permute.xlu0 %568
      %570 = vrot.lane.b32.xlu0 %v551, 12
      %v571 = vpop.permute.xlu0 %570
      %572 = vrot.lane.b32.xlu0 %v552, 12
      %v573 = vpop.permute.xlu0 %572
      %574 = vrot.lane.b32.xlu0 %v553, 12
      %v575 = vpop.permute.xlu0 %574
      %576 = vrot.lane.b32.xlu0 %v554, 12
      %v577 = vpop.permute.xlu0 %576
      %578 = vrot.lane.b32.xlu0 %v555, 12
      %v579 = vpop.permute.xlu0 %578
      %vm588 = vcmask 126048
      %589 = vst.msk [vmem:[#allocation2] sm:$0xf] %vm588, %v565
      %590 = vst.msk [vmem:[#allocation2 + $0x4] sm:$0xf] %vm588, %v567
      %591 = vst.msk [vmem:[#allocation2 + $0x8] sm:$0xf] %vm588, %v569
      %592 = vst.msk [vmem:[#allocation2 + $0xc] sm:$0xf] %vm588, %v571
      %593 = vst.msk [vmem:[#allocation2 + $0x10] sm:$0xf] %vm588, %v573
      %594 = vst.msk [vmem:[#allocation2 + $0x14] sm:$0xf] %vm588, %v575
      %595 = vst.msk [vmem:[#allocation2 + $0x18] sm:$0xf] %vm588, %v577
      %596 = vst.msk [vmem:[#allocation2 + $0x1c] sm:$0xf] %vm588, %v579
      %v597 = vld [vmem:[%s267] sm:$0xf]
      %v598 = vld [vmem:[%s267 + $0x4] sm:$0xf]
      %v599 = vld [vmem:[%s267 + $0x8] sm:$0x1]
      %v600 = vld [vmem:[%s267 + $0xc] sm:$0xf]
      %v601 = vld [vmem:[%s267 + $0x10] sm:$0xf]
      %v602 = vld [vmem:[%s267 + $0x14] sm:$0x1]
      %v603 = vld [vmem:[%s267 + $0x18] sm:$0xf]
      %v604 = vld [vmem:[%s267 + $0x1c] sm:$0xf]
      %v605 = vld [vmem:[%s267 + $0x20] sm:$0x1]
      %v606 = vld [vmem:[%s267 + $0x24] sm:$0xf]
      %v607 = vld [vmem:[%s267 + $0x28] sm:$0xf]
      %v608 = vld [vmem:[%s267 + $0x2c] sm:$0x1]
      %v610 = vshrl.u32 %v597, 16
      %v612 = vrot.slane %v610, 4
      %v613 = vshll.u32 %v597, 16
      %v615 = vrot.slane %v613, 5
      %v616 = vor.u32 %v612, %v615
      %v617 = vrot.slane %v616, 4
      %v619 = vshll.u32 %v598, 16
      %v621 = vrot.slane %v619, 5
      %v622 = vsel %vm321, %v617, %v621
      %v623 = vshrl.u32 %v598, 16
      %v625 = vrot.slane %v623, 4
      %v626 = vor.u32 %v625, %v621
      %v627 = vrot.slane %v626, 4
      %v629 = vshll.u32 %v599, 16
      %v631 = vrot.slane %v629, 5
      %v632 = vsel %vm321, %v627, %v631
      %v634 = vshrl.u32 %v600, 16
      %v636 = vrot.slane %v634, 4
      %v637 = vshll.u32 %v600, 16
      %v639 = vrot.slane %v637, 5
      %v640 = vor.u32 %v636, %v639
      %v641 = vrot.slane %v640, 4
      %v643 = vshll.u32 %v601, 16
      %v645 = vrot.slane %v643, 5
      %v646 = vsel %vm321, %v641, %v645
      %v647 = vshrl.u32 %v601, 16
      %v649 = vrot.slane %v647, 4
      %v650 = vor.u32 %v649, %v645
      %v651 = vrot.slane %v650, 4
      %v653 = vshll.u32 %v602, 16
      %v655 = vrot.slane %v653, 5
      %v656 = vsel %vm321, %v651, %v655
      %v658 = vshrl.u32 %v603, 16
      %v660 = vrot.slane %v658, 4
      %v661 = vshll.u32 %v603, 16
      %v663 = vrot.slane %v661, 5
      %v664 = vor.u32 %v660, %v663
      %v665 = vrot.slane %v664, 4
      %v667 = vshll.u32 %v604, 16
      %v669 = vrot.slane %v667, 5
      %v670 = vsel %vm321, %v665, %v669
      %v671 = vshrl.u32 %v604, 16
      %v673 = vrot.slane %v671, 4
      %v674 = vor.u32 %v673, %v669
      %v675 = vrot.slane %v674, 4
      %v677 = vshll.u32 %v605, 16
      %v679 = vrot.slane %v677, 5
      %v680 = vsel %vm321, %v675, %v679
      %v682 = vshrl.u32 %v606, 16
      %v684 = vrot.slane %v682, 4
      %v685 = vshll.u32 %v606, 16
      %v687 = vrot.slane %v685, 5
      %v688 = vor.u32 %v684, %v687
      %v689 = vrot.slane %v688, 4
      %v691 = vshll.u32 %v607, 16
      %v693 = vrot.slane %v691, 5
      %v694 = vsel %vm321, %v689, %v693
      %v695 = vshrl.u32 %v607, 16
      %v697 = vrot.slane %v695, 4
      %v698 = vor.u32 %v697, %v693
      %v699 = vrot.slane %v698, 4
      %v701 = vshll.u32 %v608, 16
      %v703 = vrot.slane %v701, 5
      %v704 = vsel %vm321, %v699, %v703
      %705 = vrot.lane.b32.xlu0 %v622, 16
      %v706 = vpop.permute.xlu0 %705
      %707 = vrot.lane.b32.xlu0 %v632, 16
      %v708 = vpop.permute.xlu0 %707
      %709 = vrot.lane.b32.xlu0 %v646, 16
      %v710 = vpop.permute.xlu0 %709
      %711 = vrot.lane.b32.xlu0 %v656, 16
      %v712 = vpop.permute.xlu0 %711
      %713 = vrot.lane.b32.xlu0 %v670, 16
      %v714 = vpop.permute.xlu0 %713
      %715 = vrot.lane.b32.xlu0 %v680, 16
      %v716 = vpop.permute.xlu0 %715
      %717 = vrot.lane.b32.xlu0 %v694, 16
      %v718 = vpop.permute.xlu0 %717
      %719 = vrot.lane.b32.xlu0 %v704, 16
      %v720 = vpop.permute.xlu0 %719
      %vm729 = vcmask 158848
      %730 = vst.msk [vmem:[#allocation2] sm:$0xf] %vm729, %v706
      %731 = vst.msk [vmem:[#allocation2 + $0x4] sm:$0xf] %vm729, %v708
      %732 = vst.msk [vmem:[#allocation2 + $0x8] sm:$0xf] %vm729, %v710
      %733 = vst.msk [vmem:[#allocation2 + $0xc] sm:$0xf] %vm729, %v712
      %734 = vst.msk [vmem:[#allocation2 + $0x10] sm:$0xf] %vm729, %v714
      %735 = vst.msk [vmem:[#allocation2 + $0x14] sm:$0xf] %vm729, %v716
      %736 = vst.msk [vmem:[#allocation2 + $0x18] sm:$0xf] %vm729, %v718
      %737 = vst.msk [vmem:[#allocation2 + $0x1c] sm:$0xf] %vm729, %v720
      %v738 = vld [vmem:[%s267] sm:$0xe]
      %v739 = vld [vmem:[%s267 + $0x4] sm:$0xf]
      %v740 = vld [vmem:[%s267 + $0x8] sm:$0x1]
      %v741 = vld [vmem:[%s267 + $0xc] sm:$0xe]
      %v742 = vld [vmem:[%s267 + $0x10] sm:$0xf]
      %v743 = vld [vmem:[%s267 + $0x14] sm:$0x1]
      %v744 = vld [vmem:[%s267 + $0x18] sm:$0xe]
      %v745 = vld [vmem:[%s267 + $0x1c] sm:$0xf]
      %v746 = vld [vmem:[%s267 + $0x20] sm:$0x1]
      %v747 = vld [vmem:[%s267 + $0x24] sm:$0xe]
      %v748 = vld [vmem:[%s267 + $0x28] sm:$0xf]
      %v749 = vld [vmem:[%s267 + $0x2c] sm:$0x1]
      %v762 = vrot.slane %v738, 5
      %v763 = vrot.slane %v762, 4
      %v764 = vrot.slane %v739, 5
      %v765 = vsel %vm468, %v763, %v764
      %v766 = vrot.slane %v764, 4
      %v767 = vrot.slane %v740, 5
      %v768 = vsel %vm468, %v766, %v767
      %v769 = vrot.slane %v741, 5
      %v770 = vrot.slane %v769, 4
      %v771 = vrot.slane %v742, 5
      %v772 = vsel %vm468, %v770, %v771
      %v773 = vrot.slane %v771, 4
      %v774 = vrot.slane %v743, 5
      %v775 = vsel %vm468, %v773, %v774
      %v776 = vrot.slane %v744, 5
      %v777 = vrot.slane %v776, 4
      %v778 = vrot.slane %v745, 5
      %v779 = vsel %vm468, %v777, %v778
      %v780 = vrot.slane %v778, 4
      %v781 = vrot.slane %v746, 5
      %v782 = vsel %vm468, %v780, %v781
      %v783 = vrot.slane %v747, 5
      %v784 = vrot.slane %v783, 4
      %v785 = vrot.slane %v748, 5
      %v786 = vsel %vm468, %v784, %v785
      %v787 = vrot.slane %v785, 4
      %v788 = vrot.slane %v749, 5
      %v789 = vsel %vm468, %v787, %v788
      %790 = vrot.lane.b32.xlu0 %v765, 20
      %v791 = vpop.permute.xlu0 %790
      %792 = vrot.lane.b32.xlu0 %v768, 20
      %v793 = vpop.permute.xlu0 %792
      %794 = vrot.lane.b32.xlu0 %v772, 20
      %v795 = vpop.permute.xlu0 %794
      %796 = vrot.lane.b32.xlu0 %v775, 20
      %v797 = vpop.permute.xlu0 %796
      %798 = vrot.lane.b32.xlu0 %v779, 20
      %v799 = vpop.permute.xlu0 %798
      %800 = vrot.lane.b32.xlu0 %v782, 20
      %v801 = vpop.permute.xlu0 %800
      %802 = vrot.lane.b32.xlu0 %v786, 20
      %v803 = vpop.permute.xlu0 %802
      %804 = vrot.lane.b32.xlu0 %v789, 20
      %v805 = vpop.permute.xlu0 %804
      %vm814 = vcmask 191648
      %815 = vst.msk [vmem:[#allocation2] sm:$0xf] %vm814, %v791
      %816 = vst.msk [vmem:[#allocation2 + $0x4] sm:$0xf] %vm814, %v793
      %817 = vst.msk [vmem:[#allocation2 + $0x8] sm:$0xf] %vm814, %v795
      %818 = vst.msk [vmem:[#allocation2 + $0xc] sm:$0xf] %vm814, %v797
      %819 = vst.msk [vmem:[#allocation2 + $0x10] sm:$0xf] %vm814, %v799
      %820 = vst.msk [vmem:[#allocation2 + $0x14] sm:$0xf] %vm814, %v801
      %821 = vst.msk [vmem:[#allocation2 + $0x18] sm:$0xf] %vm814, %v803
      %822 = vst.msk [vmem:[#allocation2 + $0x1c] sm:$0xf] %vm814, %v805
      %s823 = scalar_lea.vmem %s267, 12
      %v824 = vld [vmem:[%s823] sm:$0xf]
      %v825 = vld [vmem:[%s823 + $0x4] sm:$0xf]
      %v826 = vld [vmem:[%s823 + $0xc] sm:$0xf]
      %v827 = vld [vmem:[%s823 + $0x10] sm:$0xf]
      %v828 = vld [vmem:[%s823 + $0x18] sm:$0xf]
      %v829 = vld [vmem:[%s823 + $0x1c] sm:$0xf]
      %836 = vrot.lane.b32.xlu0 %v824, 24
      %v837 = vpop.permute.xlu0 %836
      %838 = vrot.lane.b32.xlu0 %v825, 24
      %v839 = vpop.permute.xlu0 %838
      %840 = vrot.lane.b32.xlu0 %v826, 24
      %v841 = vpop.permute.xlu0 %840
      %842 = vrot.lane.b32.xlu0 %v827, 24
      %v843 = vpop.permute.xlu0 %842
      %844 = vrot.lane.b32.xlu0 %v828, 24
      %v845 = vpop.permute.xlu0 %844
      %846 = vrot.lane.b32.xlu0 %v829, 24
      %v847 = vpop.permute.xlu0 %846
      %vm854 = vcmask 224448
      %855 = vst.msk [vmem:[#allocation2] sm:$0xf] %vm854, %v837
      %856 = vst.msk [vmem:[#allocation2 + $0x4] sm:$0xf] %vm854, %v839
      %857 = vst.msk [vmem:[#allocation2 + $0x8] sm:$0xf] %vm854, %v841
      %858 = vst.msk [vmem:[#allocation2 + $0xc] sm:$0xf] %vm854, %v843
      %859 = vst.msk [vmem:[#allocation2 + $0x10] sm:$0xf] %vm854, %v845
      %860 = vst.msk [vmem:[#allocation2 + $0x14] sm:$0xf] %vm854, %v847
      %s861 = scalar_lea.vmem %s277, 12
      %v862 = vld [vmem:[%s861] sm:$0xf]
      %v863 = vld [vmem:[%s861 + $0x4] sm:$0xf]
      %866 = vrot.lane.b32.xlu0 %v862, 24
      %v867 = vpop.permute.xlu0 %866
      %868 = vrot.lane.b32.xlu0 %v863, 24
      %v869 = vpop.permute.xlu0 %868
      %s872 = scalar_lea.vmem [#allocation2], 24
      %873 = vst.msk [vmem:[%s872] sm:$0xf] %vm854, %v867
      %874 = vst.msk [vmem:[%s872 + $0x4] sm:$0xf] %vm854, %v869
      %v875 = vld [vmem:[%s823] sm:$0xf]
      %v876 = vld [vmem:[%s823 + $0x4] sm:$0xf]
      %v877 = vld [vmem:[%s823 + $0x8] sm:$0x1]
      %v878 = vld [vmem:[%s823 + $0xc] sm:$0xf]
      %v879 = vld [vmem:[%s823 + $0x10] sm:$0xf]
      %v880 = vld [vmem:[%s823 + $0x14] sm:$0x1]
      %v881 = vld [vmem:[%s823 + $0x18] sm:$0xf]
      %v882 = vld [vmem:[%s823 + $0x1c] sm:$0xf]
      %v883 = vld [vmem:[%s823 + $0x20] sm:$0x1]
      %v885 = vshrl.u32 %v875, 16
      %v887 = vrot.slane %v885, 4
      %v888 = vshll.u32 %v875, 16
      %v890 = vrot.slane %v888, 5
      %v891 = vor.u32 %v887, %v890
      %v892 = vrot.slane %v891, 4
      %v894 = vshll.u32 %v876, 16
      %v896 = vrot.slane %v894, 5
      %v897 = vsel %vm321, %v892, %v896
      %v898 = vshrl.u32 %v876, 16
      %v900 = vrot.slane %v898, 4
      %v901 = vor.u32 %v900, %v896
      %v902 = vrot.slane %v901, 4
      %v904 = vshll.u32 %v877, 16
      %v906 = vrot.slane %v904, 5
      %v907 = vsel %vm321, %v902, %v906
      %v909 = vshrl.u32 %v878, 16
      %v911 = vrot.slane %v909, 4
      %v912 = vshll.u32 %v878, 16
      %v914 = vrot.slane %v912, 5
      %v915 = vor.u32 %v911, %v914
      %v916 = vrot.slane %v915, 4
      %v918 = vshll.u32 %v879, 16
      %v920 = vrot.slane %v918, 5
      %v921 = vsel %vm321, %v916, %v920
      %v922 = vshrl.u32 %v879, 16
      %v924 = vrot.slane %v922, 4
      %v925 = vor.u32 %v924, %v920
      %v926 = vrot.slane %v925, 4
      %v928 = vshll.u32 %v880, 16
      %v930 = vrot.slane %v928, 5
      %v931 = vsel %vm321, %v926, %v930
      %v933 = vshrl.u32 %v881, 16
      %v935 = vrot.slane %v933, 4
      %v936 = vshll.u32 %v881, 16
      %v938 = vrot.slane %v936, 5
      %v939 = vor.u32 %v935, %v938
      %v940 = vrot.slane %v939, 4
      %v942 = vshll.u32 %v882, 16
      %v944 = vrot.slane %v942, 5
      %v945 = vsel %vm321, %v940, %v944
      %v946 = vshrl.u32 %v882, 16
      %v948 = vrot.slane %v946, 4
      %v949 = vor.u32 %v948, %v944
      %v950 = vrot.slane %v949, 4
      %v952 = vshll.u32 %v883, 16
      %v954 = vrot.slane %v952, 5
      %v955 = vsel %vm321, %v950, %v954
      %956 = vrot.lane.b32.xlu0 %v897, 28
      %v957 = vpop.permute.xlu0 %956
      %958 = vrot.lane.b32.xlu0 %v907, 28
      %v959 = vpop.permute.xlu0 %958
      %960 = vrot.lane.b32.xlu0 %v921, 28
      %v961 = vpop.permute.xlu0 %960
      %962 = vrot.lane.b32.xlu0 %v931, 28
      %v963 = vpop.permute.xlu0 %962
      %964 = vrot.lane.b32.xlu0 %v945, 28
      %v965 = vpop.permute.xlu0 %964
      %966 = vrot.lane.b32.xlu0 %v955, 28
      %v967 = vpop.permute.xlu0 %966
      %vm974 = vcmask 257248
      %975 = vst.msk [vmem:[#allocation2] sm:$0xf] %vm974, %v957
      %976 = vst.msk [vmem:[#allocation2 + $0x4] sm:$0xf] %vm974, %v959
      %977 = vst.msk [vmem:[#allocation2 + $0x8] sm:$0xf] %vm974, %v961
      %978 = vst.msk [vmem:[#allocation2 + $0xc] sm:$0xf] %vm974, %v963
      %979 = vst.msk [vmem:[#allocation2 + $0x10] sm:$0xf] %vm974, %v965
      %980 = vst.msk [vmem:[#allocation2 + $0x14] sm:$0xf] %vm974, %v967
      %v981 = vld [vmem:[%s861] sm:$0xf]
      %v982 = vld [vmem:[%s861 + $0x4] sm:$0xf]
      %v983 = vld [vmem:[%s861 + $0x8] sm:$0x1]
      %v985 = vshrl.u32 %v981, 16
      %v987 = vrot.slane %v985, 4
      %v988 = vshll.u32 %v981, 16
      %v990 = vrot.slane %v988, 5
      %v991 = vor.u32 %v987, %v990
      %v992 = vrot.slane %v991, 4
      %v994 = vshll.u32 %v982, 16
      %v996 = vrot.slane %v994, 5
      %v997 = vsel %vm321, %v992, %v996
      %v998 = vshrl.u32 %v982, 16
      %v1000 = vrot.slane %v998, 4
      %v1001 = vor.u32 %v1000, %v996
      %v1002 = vrot.slane %v1001, 4
      %v1004 = vshll.u32 %v983, 16
      %v1006 = vrot.slane %v1004, 5
      %v1007 = vsel %vm321, %v1002, %v1006
      %1008 = vrot.lane.b32.xlu0 %v997, 28
      %v1009 = vpop.permute.xlu0 %1008
      %1010 = vrot.lane.b32.xlu0 %v1007, 28
      %v1011 = vpop.permute.xlu0 %1010
      %1014 = vst.msk [vmem:[%s872] sm:$0xf] %vm974, %v1009
      %1015 = vst.msk [vmem:[%s872 + $0x4] sm:$0xf] %vm974, %v1011
      %v1016 = vld [vmem:[%s823] sm:$0xe]
      %v1017 = vld [vmem:[%s823 + $0x4] sm:$0xf]
      %v1018 = vld [vmem:[%s823 + $0x8] sm:$0x1]
      %v1019 = vld [vmem:[%s823 + $0xc] sm:$0xe]
      %v1020 = vld [vmem:[%s823 + $0x10] sm:$0xf]
      %v1021 = vld [vmem:[%s823 + $0x14] sm:$0x1]
      %v1022 = vld [vmem:[%s823 + $0x18] sm:$0xe]
      %v1023 = vld [vmem:[%s823 + $0x1c] sm:$0xf]
      %v1024 = vld [vmem:[%s823 + $0x20] sm:$0x1]
      %v1034 = vrot.slane %v1016, 5
      %v1035 = vrot.slane %v1034, 4
      %v1036 = vrot.slane %v1017, 5
      %v1037 = vsel %vm468, %v1035, %v1036
      %v1038 = vrot.slane %v1036, 4
      %v1039 = vrot.slane %v1018, 5
      %v1040 = vsel %vm468, %v1038, %v1039
      %v1041 = vrot.slane %v1019, 5
      %v1042 = vrot.slane %v1041, 4
      %v1043 = vrot.slane %v1020, 5
      %v1044 = vsel %vm468, %v1042, %v1043
      %v1045 = vrot.slane %v1043, 4
      %v1046 = vrot.slane %v1021, 5
      %v1047 = vsel %vm468, %v1045, %v1046
      %v1048 = vrot.slane %v1022, 5
      %v1049 = vrot.slane %v1048, 4
      %v1050 = vrot.slane %v1023, 5
      %v1051 = vsel %vm468, %v1049, %v1050
      %v1052 = vrot.slane %v1050, 4
      %v1053 = vrot.slane %v1024, 5
      %v1054 = vsel %vm468, %v1052, %v1053
      %1055 = vrot.lane.b32.xlu0 %v1037, 32
      %v1056 = vpop.permute.xlu0 %1055
      %1057 = vrot.lane.b32.xlu0 %v1040, 32
      %v1058 = vpop.permute.xlu0 %1057
      %1059 = vrot.lane.b32.xlu0 %v1044, 32
      %v1060 = vpop.permute.xlu0 %1059
      %1061 = vrot.lane.b32.xlu0 %v1047, 32
      %v1062 = vpop.permute.xlu0 %1061
      %1063 = vrot.lane.b32.xlu0 %v1051, 32
      %v1064 = vpop.permute.xlu0 %1063
      %1065 = vrot.lane.b32.xlu0 %v1054, 32
      %v1066 = vpop.permute.xlu0 %1065
      %vm1073 = vcmask 290048
      %1074 = vst.msk [vmem:[#allocation2] sm:$0xf] %vm1073, %v1056
      %1075 = vst.msk [vmem:[#allocation2 + $0x4] sm:$0xf] %vm1073, %v1058
      %1076 = vst.msk [vmem:[#allocation2 + $0x8] sm:$0xf] %vm1073, %v1060
      %1077 = vst.msk [vmem:[#allocation2 + $0xc] sm:$0xf] %vm1073, %v1062
      %1078 = vst.msk [vmem:[#allocation2 + $0x10] sm:$0xf] %vm1073, %v1064
      %1079 = vst.msk [vmem:[#allocation2 + $0x14] sm:$0xf] %vm1073, %v1066
      %v1080 = vld [vmem:[%s861] sm:$0xe]
      %v1081 = vld [vmem:[%s861 + $0x4] sm:$0xf]
      %v1082 = vld [vmem:[%s861 + $0x8] sm:$0x1]
      %v1086 = vrot.slane %v1080, 5
      %v1087 = vrot.slane %v1086, 4
      %v1088 = vrot.slane %v1081, 5
      %v1089 = vsel %vm468, %v1087, %v1088
      %v1090 = vrot.slane %v1088, 4
      %v1091 = vrot.slane %v1082, 5
      %v1092 = vsel %vm468, %v1090, %v1091
      %1093 = vrot.lane.b32.xlu0 %v1089, 32
      %v1094 = vpop.permute.xlu0 %1093
      %1095 = vrot.lane.b32.xlu0 %v1092, 32
      %v1096 = vpop.permute.xlu0 %1095
      %1099 = vst.msk [vmem:[%s872] sm:$0xf] %vm1073, %v1094
      %1100 = vst.msk [vmem:[%s872 + $0x4] sm:$0xf] %vm1073, %v1096
      %v1101 = vld [vmem:[#allocation2] sm:$0xf]
      %v1102 = vld [vmem:[#allocation2 + $0x4] sm:$0xf]
      %v1103 = vld [vmem:[#allocation2 + $0x8] sm:$0xf]
      %v1104 = vld [vmem:[#allocation2 + $0xc] sm:$0xf]
      %v1105 = vld [vmem:[#allocation2 + $0x10] sm:$0xf]
      %v1106 = vld [vmem:[#allocation2 + $0x14] sm:$0xf]
      %v1107 = vld [vmem:[#allocation2 + $0x18] sm:$0xf]
      %v1108 = vld [vmem:[#allocation2 + $0x1c] sm:$0xf]
      %v1109 = vld [vmem:[%s2] sm:$0xf]
      %v1110 = vld [vmem:[%s2 + $0x4] sm:$0xf]
      %v1111 = vld [vmem:[%s2 + $0x8] sm:$0xf]
      %v1112 = vld [vmem:[%s2 + $0xc] sm:$0xf]
      %v1113 = vld [vmem:[%s2 + $0x10] sm:$0x3]
      %v1122 = vunpack.c.l.b16 %v1101
      %v1123 = vunpack.c.l.b16 %v1102
      %v1124 = vunpack.c.l.b16 %v1103
      %v1125 = vunpack.c.l.b16 %v1104
      %v1126 = vunpack.c.l.b16 %v1105
      %v1127 = vunpack.c.l.b16 %v1106
      %v1128 = vunpack.c.l.b16 %v1107
      %v1129 = vunpack.c.l.b16 %v1108
      %v1130 = vpack.c.b16 %v1123, %v1122
      %v1131 = vpack.c.b16 %v1125, %v1124
      %v1132 = vpack.c.b16 %v1127, %v1126
      %v1133 = vpack.c.b16 %v1129, %v1128
      %v1139 = vunpack.c.l.b16 %v1109
      %v1140 = vunpack.c.l.b16 %v1110
      %v1141 = vunpack.c.l.b16 %v1111
      %v1142 = vunpack.c.l.b16 %v1112
      %v1143 = vunpack.c.l.b16 %v1113
      %v1144 = vpack.c.b16 %v1140, %v1139
      %v1145 = vpack.c.b16 %v1142, %v1141
      %v1146 = vpack.c.b16 %v1143, %v1143
      %vm1149 = vcmask 293888
      %v1151 = vsel %vm1149, %v1130, 0
      %v1154 = vsel %vm1149, %v1131, 0
      %v1157 = vsel %vm1149, %v1132, 0
      %v1160 = vsel %vm1149, %v1133, 0
      %vm1162 = vcmask 1041408
      %v1164 = vsel %vm1162, %v1146, 0
      %1166 = vmatpush.bf16.msra.mxu0 0
      %1167 = vmatpush.bf16.msra.mxu0 0
      %1168 = vmatpush.bf16.msra.mxu0 0
      %1169 = vmatpush.bf16.msra.mxu0 0
      %1170 = vmatpush.bf16.msra.mxu0 0
      %1171 = vmatpush.bf16.msra.mxu0 %v1164
      %1172 = vmatpush.bf16.msra.mxu0 %v1145
      %1173 = vmatpush.bf16.msra.mxu0 %v1144
      %1174 = vmatmul.bf16.gmra.mxu0 %v1151
      %v1175 = vpop.f32.mrf.mxu0
      %v1176 = vadd.f32 0.0, %v1175
      %v1177 = vpop.f32.mrf.mxu0
      %v1178 = vadd.f32 0.0, %v1177
      %1179 = vmatmul.bf16.gmra.mxu0 %v1154
      %v1180 = vpop.f32.mrf.mxu0
      %v1181 = vadd.f32 0.0, %v1180
      %v1182 = vpop.f32.mrf.mxu0
      %v1183 = vadd.f32 0.0, %v1182
      %1184 = vmatmul.bf16.gmra.mxu0 %v1157
      %v1185 = vpop.f32.mrf.mxu0
      %v1186 = vadd.f32 0.0, %v1185
      %v1187 = vpop.f32.mrf.mxu0
      %v1188 = vadd.f32 0.0, %v1187
      %1189 = vmatmul.bf16.gmra.mxu0 %v1160
      %v1190 = vpop.f32.mrf.mxu0
      %v1191 = vadd.f32 0.0, %v1190
      %v1192 = vpop.f32.mrf.mxu0
      %v1193 = vadd.f32 0.0, %v1192
      %1194 = vdwg.mxu0
      %v1195 = vpack.c.bf16 %v1176, %v1176
      %v1196 = vpack.c.bf16 %v1178, %v1178
      %v1197 = vpack.c.bf16 %v1181, %v1181
      %v1198 = vpack.c.bf16 %v1183, %v1183
      %v1199 = vpack.c.bf16 %v1186, %v1186
      %v1200 = vpack.c.bf16 %v1188, %v1188
      %v1201 = vpack.c.bf16 %v1191, %v1191
      %v1202 = vpack.c.bf16 %v1193, %v1193
      %vm1203 = vcmask 60416
      %1204 = vst.msk [vmem:[%s287] sm:$0xf] %vm1203, %v1195
      %1205 = vst.msk [vmem:[%s287 + $0x4] sm:$0xf] %vm1203, %v1196
      %1206 = vst.msk [vmem:[%s287 + $0x8] sm:$0xf] %vm1203, %v1197
      %1207 = vst.msk [vmem:[%s287 + $0xc] sm:$0xf] %vm1203, %v1198
      %1208 = vst.msk [vmem:[%s287 + $0x10] sm:$0xf] %vm1203, %v1199
      %1209 = vst.msk [vmem:[%s287 + $0x14] sm:$0xf] %vm1203, %v1200
      %1210 = vst.msk [vmem:[%s287 + $0x18] sm:$0xf] %vm1203, %v1201
      %1211 = vst.msk [vmem:[%s287 + $0x1c] sm:$0xf] %vm1203, %v1202
      %vm1212 = vcmask 64512
      %v1213 = vsel %vm1212, %v1176, 0.0
      %v1214 = vsel %vm1212, %v1178, 0.0
      %v1215 = vadd.f32 %v1213, %v1214
      %v1216 = vsel %vm1212, %v1181, 0.0
      %v1217 = vadd.f32 %v1215, %v1216
      %v1218 = vsel %vm1212, %v1183, 0.0
      %v1219 = vadd.f32 %v1217, %v1218
      %v1220 = vsel %vm1212, %v1186, 0.0
      %v1221 = vadd.f32 %v1219, %v1220
      %v1222 = vsel %vm1212, %v1188, 0.0
      %v1223 = vadd.f32 %v1221, %v1222
      %v1224 = vsel %vm1212, %v1191, 0.0
      %v1225 = vadd.f32 %v1223, %v1224
      %v1226 = vsel %vm1212, %v1193, 0.0
      %v1227 = vadd.f32 %v1225, %v1226
      %v1228 = vrot.slane %v1227, 4
      %v1229 = vadd.f32 %v1227, %v1228
      %v1230 = vrot.slane %v1229, 2
      %v1231 = vadd.f32 %v1229, %v1230
      %v1232 = vrot.slane %v1231, 1
      %v1233 = vadd.f32 %v1231, %v1232
      %vm1234 = vcmask 57344
      %1235 = vst.msk [vmem:[%s296] sm:$0x1] %vm1234, %v1233
      %v1236 = vmul.f32 %v1176, %v1176
      %v1237 = vmul.f32 %v1178, %v1178
      %v1238 = vmul.f32 %v1181, %v1181
      %v1239 = vmul.f32 %v1183, %v1183
      %v1240 = vmul.f32 %v1186, %v1186
      %v1241 = vmul.f32 %v1188, %v1188
      %v1242 = vmul.f32 %v1191, %v1191
      %v1243 = vmul.f32 %v1193, %v1193
      %v1244 = vsel %vm1212, %v1236, 0.0
      %v1245 = vsel %vm1212, %v1237, 0.0
      %v1246 = vadd.f32 %v1244, %v1245
      %v1247 = vsel %vm1212, %v1238, 0.0
      %v1248 = vadd.f32 %v1246, %v1247
      %v1249 = vsel %vm1212, %v1239, 0.0
      %v1250 = vadd.f32 %v1248, %v1249
      %v1251 = vsel %vm1212, %v1240, 0.0
      %v1252 = vadd.f32 %v1250, %v1251
      %v1253 = vsel %vm1212, %v1241, 0.0
      %v1254 = vadd.f32 %v1252, %v1253
      %v1255 = vsel %vm1212, %v1242, 0.0
      %v1256 = vadd.f32 %v1254, %v1255
      %v1257 = vsel %vm1212, %v1243, 0.0
      %v1258 = vadd.f32 %v1256, %v1257
      %v1259 = vrot.slane %v1258, 4
      %v1260 = vadd.f32 %v1258, %v1259
      %v1261 = vrot.slane %v1260, 2
      %v1262 = vadd.f32 %v1260, %v1261
      %v1263 = vrot.slane %v1262, 1
      %v1264 = vadd.f32 %v1262, %v1263
      %1265 = vst.msk [vmem:[%s296 + $0x1] sm:$0x1] %vm1234, %v1264
      %s1266 = smul.u32 4, %s21
      %p1267 = scmp.lt.s32.totalorder %s20, 1
      %s1268 = scalar_select %p1267, %s20, 1
      %p1269 = scmp.lt.s32.totalorder %s1266, 15
      %s1270 = scalar_select %p1269, %s1266, 15
      %s1271 = smul.addr %s1270, 2
      %s1272 = smul.addr %s1268, 32
      %s1273 = sadd.s32 %s1271, %s1272
      %s1274 = smul.addr %s1273, 4
      %s1275 = scalar_lea.vmem %s3, %s1274
      %p1276 = scmp.lt.s32.totalorder %s20, 1
      %s1277 = scalar_select %p1276, %s20, 1
      %p1278 = scmp.lt.s32.totalorder %s21, 3
      %s1279 = scalar_select %p1278, %s21, 3
      %s1280 = smul.addr %s1277, 4
      %s1281 = sadd.s32 %s1279, %s1280
      %s1282 = smul.addr %s1281, 2
      %s1283 = scalar_lea.vmem %s4, %s1282
      // Predicated region
      $region33: #{encoder_forward.12} parent=31 // pred_check
        %p1284 = pneg %p125
      $region34: #{encoder_forward.12} parent=31 // pred_check_branch
        %1286 = sbr.rel (%p1284) target = $region36
      $region35: #{encoder_forward.12} parent=31 // pred_region
        %s1287 = smul.u32 4, %s21
      $region36: #{encoder_forward.12} parent=31 // pred_fallthru
        _
      // Predicated region
      $region37: #{encoder_forward.12} parent=31 // pred_check
        %p1288 = pneg %p153
      $region38: #{encoder_forward.12} parent=31 // pred_check_branch
        %1290 = sbr.rel (%p1288) target = $region40
      $region39: #{encoder_forward.12} parent=31 // pred_region
        _
      $region40: #{encoder_forward.12} parent=31 // pred_fallthru
        _
    $region32: #{encoder_forward.12} parent=5 // pred_fallthru
      _
    %p1291 = scmp.le.s32.totalorder 2, %s11
    // Predicated region
    $region41: #{encoder_forward.12} parent=5 // pred_check
      %p1292 = pneg %p1291
    $region42: #{encoder_forward.12} parent=5 // pred_check_branch
      %1294 = sbr.rel (%p1292) target = $region44
    $region43: #{encoder_forward.12} parent=5 // pred_region
      %s1295 = ssub.s32 %s11, 2
      // Predicated region
      $region45: #{encoder_forward.12} parent=43 // pred_check
        %p1296 = pneg %p131
      $region46: #{encoder_forward.12} parent=43 // pred_check_branch
        %1298 = sbr.rel (%p1296) target = $region48
      $region47: #{encoder_forward.12} parent=43 // pred_region
        %s1299 = smul.u32 4, %s23
        %p1300 = scmp.lt.s32.totalorder %s22, 1
        %s1301 = scalar_select %p1300, %s22, 1
        %p1302 = scmp.lt.s32.totalorder %s1299, 15
        %s1303 = scalar_select %p1302, %s1299, 15
        %s1304 = smul.addr %s1303, 2
        %s1305 = smul.addr %s1301, 32
        %s1306 = sadd.s32 %s1304, %s1305
        %s1307 = smul.addr %s1306, 4
        %s1308 = scalar_lea.vmem %s3, %s1307
      $region48: #{encoder_forward.12} parent=43 // pred_fallthru
        _
      // Predicated region
      $region49: #{encoder_forward.12} parent=43 // pred_check
        %p1309 = pneg %p159
      $region50: #{encoder_forward.12} parent=43 // pred_check_branch
        %1311 = sbr.rel (%p1309) target = $region52
      $region51: #{encoder_forward.12} parent=43 // pred_region
        %p1312 = scmp.lt.s32.totalorder %s22, 1
        %s1313 = scalar_select %p1312, %s22, 1
        %p1314 = scmp.lt.s32.totalorder %s23, 3
        %s1315 = scalar_select %p1314, %s23, 3
        %s1316 = smul.addr %s1313, 4
        %s1317 = sadd.s32 %s1315, %s1316
        %s1318 = smul.addr %s1317, 2
        %s1319 = scalar_lea.vmem %s4, %s1318
      $region52: #{encoder_forward.12} parent=43 // pred_fallthru
        _
    $region44: #{encoder_forward.12} parent=5 // pred_fallthru
      _
  $region6: #{encoder_forward.12} parent=0 // loop_footer
    %s15 = sadd.s32 1, %s11
  $region7: #{encoder_forward.12} parent=0 // loop_footer_branch
    %10 = sbr.rel target = $region3
  $region8: #{encoder_forward.12} parent=0 // loop_exit
    _

// kernel: encoder_forward.15
$region0: #{encoder_forward.15}
  #allocation0 [shape = 'u32[]', space=smem, size = 0x4, offset = 0x4, fixed_abs, tag = 'smem constant byte address 0x4 - core index']
  #allocation1 [shape = 'u32[72,128]{1,0:T(1,128)}', space=vmem, size = 0x9000, scoped, tag = 'internal scratch']
  %s0 = inlined_call_operand.vmem [shape: bf16[2,16,256], index: 0, kind: input, shape index: {}]
  %s1 = inlined_call_operand.vmem [shape: f32[2,1,256], index: 1, kind: input, shape index: {}]
  %s2 = inlined_call_operand.vmem [shape: f32[2,1,256], index: 2, kind: input, shape index: {}]
  %s3 = inlined_call_operand.vmem [shape: bf16[2,16,288], index: 3, kind: output, shape index: {}]
  %s4 = sld [smem:[#allocation0]]
  $region45: #{encoder_forward.15} parent=0
    _
  %s6 = ssub.s32 1, %s4
  %s7 = scalar_select 0, %s6, %s4
  loop: start=0, step=1, limit=4
  $region2: #{encoder_forward.15} parent=0 // loop_pre_header
    _
  $region3: #{encoder_forward.15} parent=0 // loop_header
    %s9 = sphi 0, %s13
    %p10 = scmp.ge.s32.totalorder %s9, 4
    %s16 = sphi 0, %s28
    %s17 = sphi 0, %s24
    %s18 = sphi 0, %s16
    %s19 = sphi 0, %s17
    %s20 = sphi 0, %s18
    %s21 = sphi 0, %s19
    %s33 = sphi 0, %s35
    %s36 = sphi 0, %s33
    %s37 = sphi 0, %s36
    %s53 = sphi 0, %s37
    %s59 = sphi 0, %s61
    %s62 = sphi 0, %s59
    %s63 = sphi 0, %s62
    %s79 = sphi 0, %s63
    %s85 = sphi 0, %s87
    %s88 = sphi 0, %s85
    %s89 = sphi 0, %s88
    %s105 = sphi 0, %s89
    %s113 = sphi 0, %s115
    %s116 = sphi 0, %s113
    %s117 = sphi 0, %s116
    %s133 = sphi 0, %s117
  $region4: #{encoder_forward.15} parent=0 // loop_header_branch
    %12 = sbr.rel (%p10) target = $region8
  $region5: #{encoder_forward.15} parent=0 // loop_body
    %s14 = ssub.s32 %s9, 1
    %s15 = ssub.s32 %s9, 2
    %s22 = sadd.s32 1, %s17
    %p23 = scmp.ge.s32.totalorder %s22, 1
    %s24 = scalar_select %p23, 0, %s22
    %s25 = sadd.s32 1, %s16
    %s26 = scalar_select %p23, %s25, %s16
    %p27 = scmp.ge.s32.totalorder %s26, 2
    %s28 = scalar_select %p27, 0, %s26
    %s29 = ssub.s32 %s16, %s28
    %s30 = ssub.s32 %s17, %s24
    %s31 = sor.u32 %s29, %s30
    %p32 = scmp.eq.s32.totalorder %s31, 0
    %s34 = sadd.s32 %s33, 1
    %s35 = scalar_select %p32, %s33, %s34
    %p38 = pneg %p32
    %p39 = scmp.eq.s32.totalorder %s9, 1
    %p40 = por %p38, %p39
    %p41 = scmp.ne.s32.totalorder %s33, %s36
    %p42 = scmp.eq.s32.totalorder %s9, 0
    %p43 = por %p41, %p42
    %p44 = scmp.ne.s32.totalorder %s33, %s36
    %p45 = scmp.eq.s32.totalorder %s14, 1
    %p46 = por %p44, %p45
    %p47 = scmp.ne.s32.totalorder %s36, %s37
    %p48 = scmp.eq.s32.totalorder %s14, 0
    %p49 = por %p47, %p48
    %p50 = scmp.ne.s32.totalorder %s36, %s37
    %p51 = scmp.eq.s32.totalorder %s15, 1
    %p52 = por %p50, %p51
    %p54 = scmp.ne.s32.totalorder %s37, %s53
    %p55 = scmp.eq.s32.totalorder %s15, 0
    %p56 = por %p54, %p55
    %s57 = ssub.s32 %s16, %s28
    %p58 = scmp.eq.s32.totalorder %s57, 0
    %s60 = sadd.s32 %s59, 1
    %s61 = scalar_select %p58, %s59, %s60
    %p64 = pneg %p58
    %p65 = scmp.eq.s32.totalorder %s9, 1
    %p66 = por %p64, %p65
    %p67 = scmp.ne.s32.totalorder %s59, %s62
    %p68 = scmp.eq.s32.totalorder %s9, 0
    %p69 = por %p67, %p68
    %p70 = scmp.ne.s32.totalorder %s59, %s62
    %p71 = scmp.eq.s32.totalorder %s14, 1
    %p72 = por %p70, %p71
    %p73 = scmp.ne.s32.totalorder %s62, %s63
    %p74 = scmp.eq.s32.totalorder %s14, 0
    %p75 = por %p73, %p74
    %p76 = scmp.ne.s32.totalorder %s62, %s63
    %p77 = scmp.eq.s32.totalorder %s15, 1
    %p78 = por %p76, %p77
    %p80 = scmp.ne.s32.totalorder %s63, %s79
    %p81 = scmp.eq.s32.totalorder %s15, 0
    %p82 = por %p80, %p81
    %s83 = ssub.s32 %s16, %s28
    %p84 = scmp.eq.s32.totalorder %s83, 0
    %s86 = sadd.s32 %s85, 1
    %s87 = scalar_select %p84, %s85, %s86
    %p90 = pneg %p84
    %p91 = scmp.eq.s32.totalorder %s9, 1
    %p92 = por %p90, %p91
    %p93 = scmp.ne.s32.totalorder %s85, %s88
    %p94 = scmp.eq.s32.totalorder %s9, 0
    %p95 = por %p93, %p94
    %p96 = scmp.ne.s32.totalorder %s85, %s88
    %p97 = scmp.eq.s32.totalorder %s14, 1
    %p98 = por %p96, %p97
    %p99 = scmp.ne.s32.totalorder %s88, %s89
    %p100 = scmp.eq.s32.totalorder %s14, 0
    %p101 = por %p99, %p100
    %p102 = scmp.ne.s32.totalorder %s88, %s89
    %p103 = scmp.eq.s32.totalorder %s15, 1
    %p104 = por %p102, %p103
    %p106 = scmp.ne.s32.totalorder %s89, %s105
    %p107 = scmp.eq.s32.totalorder %s15, 0
    %p108 = por %p106, %p107
    %s109 = ssub.s32 %s16, %s28
    %s110 = ssub.s32 %s17, %s24
    %s111 = sor.u32 %s109, %s110
    %p112 = scmp.eq.s32.totalorder %s111, 0
    %s114 = sadd.s32 %s113, 1
    %s115 = scalar_select %p112, %s113, %s114
    %p118 = pneg %p112
    %p119 = scmp.eq.s32.totalorder %s9, 1
    %p120 = por %p118, %p119
    %p121 = scmp.ne.s32.totalorder %s113, %s116
    %p122 = scmp.eq.s32.totalorder %s9, 0
    %p123 = por %p121, %p122
    %p124 = scmp.ne.s32.totalorder %s113, %s116
    %p125 = scmp.eq.s32.totalorder %s14, 1
    %p126 = por %p124, %p125
    %p127 = scmp.ne.s32.totalorder %s116, %s117
    %p128 = scmp.eq.s32.totalorder %s14, 0
    %p129 = por %p127, %p128
    %p130 = scmp.ne.s32.totalorder %s116, %s117
    %p131 = scmp.eq.s32.totalorder %s15, 1
    %p132 = por %p130, %p131
    %p134 = scmp.ne.s32.totalorder %s117, %s133
    %p135 = scmp.eq.s32.totalorder %s15, 0
    %p136 = por %p134, %p135
    %p137 = scmp.le.s32.totalorder 1, %s9
    %p138 = scmp.lt.s32.totalorder %s9, 3
    %p139 = pnand %p137, %p138
    %p140 = pneg %p139
    // Predicated region
    $region9: #{encoder_forward.15} parent=5 // pred_check
      _
    $region10: #{encoder_forward.15} parent=5 // pred_check_branch
      %142 = sbr.rel (%p139) target = $region12
    $region11: #{encoder_forward.15} parent=5 // pred_region
      %s143 = ssub.s32 %s9, 1
    $region12: #{encoder_forward.15} parent=5 // pred_fallthru
      _
    %p144 = scmp.lt.s32.totalorder %s9, 2
    // Predicated region
    $region13: #{encoder_forward.15} parent=5 // pred_check
      %p145 = pneg %p144
    $region14: #{encoder_forward.15} parent=5 // pred_check_branch
      %147 = sbr.rel (%p145) target = $region16
    $region15: #{encoder_forward.15} parent=5 // pred_region
      // Predicated region
      $region17: #{encoder_forward.15} parent=15 // pred_check
        %p148 = pneg %p43
      $region18: #{encoder_forward.15} parent=15 // pred_check_branch
        %150 = sbr.rel (%p148) target = $region20
      $region19: #{encoder_forward.15} parent=15 // pred_region
        %s151 = smul.u32 2, %s17
        %p152 = scmp.lt.s32.totalorder %s16, 1
        %s153 = scalar_select %p152, %s16, 1
        %p154 = scmp.lt.s32.totalorder %s151, 1
        %s155 = scalar_select %p154, %s151, 1
        %s156 = smul.addr %s155, 2
        %s157 = smul.addr %s153, 4
        %s158 = sadd.s32 %s156, %s157
        %s159 = smul.addr %s158, 4
        %s160 = scalar_lea.vmem %s0, %s159
        %s161 = smul.u32 2, %s17
      $region20: #{encoder_forward.15} parent=15 // pred_fallthru
        _
      // Predicated region
      $region21: #{encoder_forward.15} parent=15 // pred_check
        %p162 = pneg %p69
      $region22: #{encoder_forward.15} parent=15 // pred_check_branch
        %164 = sbr.rel (%p162) target = $region24
      $region23: #{encoder_forward.15} parent=15 // pred_region
        %p165 = scmp.lt.s32.totalorder %s16, 1
        %s166 = scalar_select %p165, %s16, 1
        %s167 = smul.addr %s166, 2
        %s168 = scalar_lea.vmem %s1, %s167
      $region24: #{encoder_forward.15} parent=15 // pred_fallthru
        _
      // Predicated region
      $region25: #{encoder_forward.15} parent=15 // pred_check
        %p169 = pneg %p95
      $region26: #{encoder_forward.15} parent=15 // pred_check_branch
        %171 = sbr.rel (%p169) target = $region28
      $region27: #{encoder_forward.15} parent=15 // pred_region
        %p172 = scmp.lt.s32.totalorder %s16, 1
        %s173 = scalar_select %p172, %s16, 1
        %s174 = smul.addr %s173, 2
        %s175 = scalar_lea.vmem %s2, %s174
      $region28: #{encoder_forward.15} parent=15 // pred_fallthru
        _
    $region16: #{encoder_forward.15} parent=5 // pred_fallthru
      _
    %p176 = scmp.le.s32.totalorder 1, %s9
    %p177 = scmp.lt.s32.totalorder %s9, 3
    %p178 = pnand %p176, %p177
    %p179 = pneg %p178
    // Predicated region
    $region29: #{encoder_forward.15} parent=5 // pred_check
      _
    $region30: #{encoder_forward.15} parent=5 // pred_check_branch
      %181 = sbr.rel (%p178) target = $region32
    $region31: #{encoder_forward.15} parent=5 // pred_region
      %s182 = ssub.s32 %s9, 1
      %s183 = smul.u32 2, %s19
      %p184 = scmp.lt.s32.totalorder %s18, 1
      %s185 = scalar_select %p184, %s18, 1
      %p186 = scmp.lt.s32.totalorder %s183, 1
      %s187 = scalar_select %p186, %s183, 1
      %s188 = smul.addr %s187, 2
      %s189 = smul.addr %s185, 4
      %s190 = sadd.s32 %s188, %s189
      %s191 = smul.addr %s190, 4
      %s192 = scalar_lea.vmem %s0, %s191
      %p193 = pneg %p49
      %p194 = pneg %p46
      %p195 = scmp.lt.s32.totalorder %s18, 1
      %s196 = scalar_select %p195, %s18, 1
      %s197 = smul.addr %s196, 2
      %s198 = scalar_lea.vmem %s1, %s197
      %p199 = pneg %p75
      %p200 = pneg %p72
      %p201 = scmp.lt.s32.totalorder %s18, 1
      %s202 = scalar_select %p201, %s18, 1
      %s203 = smul.addr %s202, 2
      %s204 = scalar_lea.vmem %s2, %s203
      %p205 = pneg %p101
      %p206 = pneg %p98
      %p207 = pneg %p129
      %p208 = pneg %p126
      %s209 = smul.u32 2, %s19
      %p210 = scmp.lt.s32.totalorder %s18, 1
      %s211 = scalar_select %p210, %s18, 1
      %p212 = scmp.lt.s32.totalorder %s209, 1
      %s213 = scalar_select %p212, %s209, 1
      %s214 = smul.addr %s213, 3
      %s215 = smul.addr %s211, 6
      %s216 = sadd.s32 %s214, %s215
      %s217 = smul.addr %s216, 4
      %s218 = scalar_lea.vmem %s3, %s217
      %s219 = smul.u32 2, %s19
      %p220 = scmp.lt.s32.totalorder %s18, 1
      %s221 = scalar_select %p220, %s18, 1
      %p222 = scmp.lt.s32.totalorder %s219, 1
      %s223 = scalar_select %p222, %s219, 1
      %s224 = smul.addr %s223, 2
      %s225 = smul.addr %s221, 4
      %s226 = sadd.s32 %s224, %s225
      %s227 = smul.addr %s226, 4
      %s228 = scalar_lea.vmem %s0, %s227
      %s229 = smul.u32 2, %s19
      %p230 = scmp.lt.s32.totalorder %s18, 1
      %s231 = scalar_select %p230, %s18, 1
      %s232 = smul.addr %s231, 2
      %s233 = scalar_lea.vmem %s1, %s232
      %p234 = scmp.lt.s32.totalorder %s18, 1
      %s235 = scalar_select %p234, %s18, 1
      %s236 = smul.addr %s235, 2
      %s237 = scalar_lea.vmem %s2, %s236
      %s238 = smul.u32 2, %s19
      %p239 = scmp.lt.s32.totalorder %s18, 1
      %s240 = scalar_select %p239, %s18, 1
      %p241 = scmp.lt.s32.totalorder %s238, 1
      %s242 = scalar_select %p241, %s238, 1
      %s243 = smul.addr %s242, 3
      %s244 = smul.addr %s240, 6
      %s245 = sadd.s32 %s243, %s244
      %s246 = smul.addr %s245, 4
      %s247 = scalar_lea.vmem %s3, %s246
      %s248 = smul.u32 2, %s19
      %v250 = vld [vmem:[%s228] sm:$0xff]
      %v251 = vld [vmem:[%s228 + $0x8] sm:$0xff]
      %v252 = vunpack.c.l.bf16 %v250
      %v253 = vunpack.c.h.bf16 %v250
      %v254 = vunpack.c.l.bf16 %v251
      %v255 = vunpack.c.h.bf16 %v251
      %v256 = vld [vmem:[%s233] sm:$0x3]
      %v258 = vperm.slane %v256, 0
      %v259 = vperm.slane %v256, 1
      %v262 = vmul.f32 %v252, %v258
      %v263 = vmul.f32 %v253, %v259
      %v264 = vmul.f32 %v254, %v258
      %v265 = vmul.f32 %v255, %v259
      %v266 = vld [vmem:[%s237] sm:$0x3]
      %v268 = vperm.slane %v266, 0
      %v269 = vperm.slane %v266, 1
      %v272 = vadd.f32 %v262, %v268
      %v273 = vadd.f32 %v263, %v269
      %v274 = vadd.f32 %v264, %v268
      %v275 = vadd.f32 %v265, %v269
      %vm276 = vcmp.gt.f32.partialorder %v272, 0.0
      %vm277 = vcmp.gt.f32.partialorder %v273, 0.0
      %vm278 = vcmp.gt.f32.partialorder %v274, 0.0
      %vm279 = vcmp.gt.f32.partialorder %v275, 0.0
      %v280 = vmul.f32 %v272, 0.2
      %v281 = vmul.f32 %v273, 0.2
      %v282 = vmul.f32 %v274, 0.2
      %v283 = vmul.f32 %v275, 0.2
      %v284 = vsel %vm276, %v272, %v280
      %v285 = vsel %vm277, %v273, %v281
      %v286 = vsel %vm278, %v274, %v282
      %v287 = vsel %vm279, %v275, %v283
      %v288 = vpack.c.bf16 %v285, %v284
      %v289 = vpack.c.bf16 %v287, %v286
      %vm290 = vcmask 125952
      %291 = vst.msk [vmem:[%s247] sm:$0xf] %vm290, 0
      %292 = vst.msk [vmem:[%s247 + $0xc] sm:$0xf] %vm290, 0
      %295 = vrot.lane.b32.xlu0 %v288, 16
      %v296 = vpop.permute.xlu0 %295
      %297 = vrot.lane.b32.xlu0 %v289, 16
      %v298 = vpop.permute.xlu0 %297
      %v299 = vrot.slane %v296, 4
      %v300 = vrot.slane %v298, 4
      %vm301 = vcmask 130048
      %v302 = vsel %vm301, %v299, %v296
      %v303 = vsel %vm301, %v300, %v298
      %vm308 = vcmask 1043584
      %vm309 = vcmask 1047556
      %vm310 = vmor %vm309, %vm308
      %311 = vst.msk [vmem:[%s247] sm:$0xff] %vm310, %v302
      %312 = vst.msk [vmem:[%s247 + $0x8] sm:$0xf] %vm290, %v299
      %313 = vst.msk [vmem:[%s247 + $0xc] sm:$0xff] %vm310, %v303
      %314 = vst.msk [vmem:[%s247 + $0x14] sm:$0xf] %vm290, %v300
      %vm315 = vcmask 257152
      %316 = vst.msk [vmem:[%s247 + $0x8] sm:$0xf] %vm315, 0
      %317 = vst.msk [vmem:[%s247 + $0x14] sm:$0xf] %vm315, 0
      %s318 = smul.u32 2, %s19
      %p319 = scmp.lt.s32.totalorder %s18, 1
      %s320 = scalar_select %p319, %s18, 1
      %p321 = scmp.lt.s32.totalorder %s318, 1
      %s322 = scalar_select %p321, %s318, 1
      %s323 = smul.addr %s322, 3
      %s324 = smul.addr %s320, 6
      %s325 = sadd.s32 %s323, %s324
      %s326 = smul.addr %s325, 4
      %s327 = scalar_lea.vmem %s3, %s326
      // Predicated region
      $region33: #{encoder_forward.15} parent=31 // pred_check
        %p328 = pneg %p126
      $region34: #{encoder_forward.15} parent=31 // pred_check_branch
        %330 = sbr.rel (%p328) target = $region36
      $region35: #{encoder_forward.15} parent=31 // pred_region
        %s331 = smul.u32 2, %s19
      $region36: #{encoder_forward.15} parent=31 // pred_fallthru
        _
    $region32: #{encoder_forward.15} parent=5 // pred_fallthru
      _
    %p332 = scmp.le.s32.totalorder 2, %s9
    // Predicated region
    $region37: #{encoder_forward.15} parent=5 // pred_check
      %p333 = pneg %p332
    $region38: #{encoder_forward.15} parent=5 // pred_check_branch
      %335 = sbr.rel (%p333) target = $region40
    $region39: #{encoder_forward.15} parent=5 // pred_region
      %s336 = ssub.s32 %s9, 2
      // Predicated region
      $region41: #{encoder_forward.15} parent=39 // pred_check
        %p337 = pneg %p132
      $region42: #{encoder_forward.15} parent=39 // pred_check_branch
        %339 = sbr.rel (%p337) target = $region44
      $region43: #{encoder_forward.15} parent=39 // pred_region
        %s340 = smul.u32 2, %s21
        %p341 = scmp.lt.s32.totalorder %s20, 1
        %s342 = scalar_select %p341, %s20, 1
        %p343 = scmp.lt.s32.totalorder %s340, 1
        %s344 = scalar_select %p343, %s340, 1
        %s345 = smul.addr %s344, 3
        %s346 = smul.addr %s342, 6
        %s347 = sadd.s32 %s345, %s346
        %s348 = smul.addr %s347, 4
        %s349 = scalar_lea.vmem %s3, %s348
      $region44: #{encoder_forward.15} parent=39 // pred_fallthru
        _
    $region40: #{encoder_forward.15} parent=5 // pred_fallthru
      _
  $region6: #{encoder_forward.15} parent=0 // loop_footer
    %s13 = sadd.s32 1, %s9
  $region7: #{encoder_forward.15} parent=0 // loop_footer_branch
    %8 = sbr.rel target = $region3
  $region8: #{encoder_forward.15} parent=0 // loop_exit
    _

// kernel: encoder_forward.14
$region0: #{encoder_forward.14}
  #allocation0 [shape = 'u32[]', space=smem, size = 0x4, offset = 0x4, fixed_abs, tag = 'smem constant byte address 0x4 - core index']
  #allocation1 [shape = 'u32[72,128]{1,0:T(1,128)}', space=vmem, size = 0x9000, scoped, tag = 'internal scratch']
  #allocation2 [shape = 'bf16[4,16,72]{2,1,0:T(8,128)(2,1)}', space=vmem, size = 0x4000, scoped, tag = 'scratch operand']
  %s0 = inlined_call_operand.vmem [shape: bf16[2,16,1,18,8], index: 0, kind: input, shape index: {}]
  %s1 = inlined_call_operand.vmem [shape: bf16[2,4,2,18,8], index: 1, kind: input, shape index: {}]
  %s2 = inlined_call_operand.vmem [shape: bf16[72,16], index: 2, kind: input, shape index: {}]
  %s3 = inlined_call_operand.vmem [shape: bf16[2,16,16,16], index: 3, kind: output, shape index: {0}]
  %s4 = inlined_call_operand.vmem [shape: f32[2,4,2,16], index: 4, kind: output, shape index: {1}]
  %5 = xla_tuple %s3, %s4
  %s6 = sld [smem:[#allocation0]]
  $region53: #{encoder_forward.14} parent=0
    _
  %s8 = ssub.s32 1, %s6
  %s9 = scalar_select 0, %s8, %s6
  loop: start=0, step=1, limit=10
  $region2: #{encoder_forward.14} parent=0 // loop_pre_header
    _
  $region3: #{encoder_forward.14} parent=0 // loop_header
    %s11 = sphi 0, %s15
    %p12 = scmp.ge.s32.totalorder %s11, 10
    %s18 = sphi 0, %s30
    %s19 = sphi 0, %s26
    %s20 = sphi 0, %s18
    %s21 = sphi 0, %s19
    %s22 = sphi 0, %s20
    %s23 = sphi 0, %s21
    %s35 = sphi 0, %s37
    %s38 = sphi 0, %s35
    %s39 = sphi 0, %s38
    %s55 = sphi 0, %s39
    %s63 = sphi 0, %s65
    %s66 = sphi 0, %s63
    %s67 = sphi 0, %s66
    %s83 = sphi 0, %s67
    %s87 = sphi 0, %s87
    %s89 = sphi 0, %s87
    %s90 = sphi 0, %s89
    %s104 = sphi 0, %s90
    %s112 = sphi 0, %s114
    %s115 = sphi 0, %s112
    %s116 = sphi 0, %s115
    %s132 = sphi 0, %s116
    %s140 = sphi 0, %s142
    %s143 = sphi 0, %s140
    %s144 = sphi 0, %s143
    %s160 = sphi 0, %s144
  $region4: #{encoder_forward.14} parent=0 // loop_header_branch
    %14 = sbr.rel (%p12) target = $region8
  $region5: #{encoder_forward.14} parent=0 // loop_body
    %s16 = ssub.s32 %s11, 1
    %s17 = ssub.s32 %s11, 2
    %s24 = sadd.s32 1, %s19
    %p25 = scmp.ge.s32.totalorder %s24, 4
    %s26 = scalar_select %p25, 0, %s24
    %s27 = sadd.s32 1, %s18
    %s28 = scalar_select %p25, %s27, %s18
    %p29 = scmp.ge.s32.totalorder %s28, 2
    %s30 = scalar_select %p29, 0, %s28
    %s31 = ssub.s32 %s18, %s30
    %s32 = ssub.s32 %s19, %s26
    %s33 = sor.u32 %s31, %s32
    %p34 = scmp.eq.s32.totalorder %s33, 0
    %s36 = sadd.s32 %s35, 1
    %s37 = scalar_select %p34, %s35, %s36
    %p40 = pneg %p34
    %p41 = scmp.eq.s32.totalorder %s11, 7
    %p42 = por %p40, %p41
    %p43 = scmp.ne.s32.totalorder %s35, %s38
    %p44 = scmp.eq.s32.totalorder %s11, 0
    %p45 = por %p43, %p44
    %p46 = scmp.ne.s32.totalorder %s35, %s38
    %p47 = scmp.eq.s32.totalorder %s16, 7
    %p48 = por %p46, %p47
    %p49 = scmp.ne.s32.totalorder %s38, %s39
    %p50 = scmp.eq.s32.totalorder %s16, 0
    %p51 = por %p49, %p50
    %p52 = scmp.ne.s32.totalorder %s38, %s39
    %p53 = scmp.eq.s32.totalorder %s17, 7
    %p54 = por %p52, %p53
    %p56 = scmp.ne.s32.totalorder %s39, %s55
    %p57 = scmp.eq.s32.totalorder %s17, 0
    %p58 = por %p56, %p57
    %s59 = ssub.s32 %s18, %s30
    %s60 = ssub.s32 %s19, %s26
    %s61 = sor.u32 %s59, %s60
    %p62 = scmp.eq.s32.totalorder %s61, 0
    %s64 = sadd.s32 %s63, 1
    %s65 = scalar_select %p62, %s63, %s64
    %p68 = pneg %p62
    %p69 = scmp.eq.s32.totalorder %s11, 7
    %p70 = por %p68, %p69
    %p71 = scmp.ne.s32.totalorder %s63, %s66
    %p72 = scmp.eq.s32.totalorder %s11, 0
    %p73 = por %p71, %p72
    %p74 = scmp.ne.s32.totalorder %s63, %s66
    %p75 = scmp.eq.s32.totalorder %s16, 7
    %p76 = por %p74, %p75
    %p77 = scmp.ne.s32.totalorder %s66, %s67
    %p78 = scmp.eq.s32.totalorder %s16, 0
    %p79 = por %p77, %p78
    %p80 = scmp.ne.s32.totalorder %s66, %s67
    %p81 = scmp.eq.s32.totalorder %s17, 7
    %p82 = por %p80, %p81
    %p84 = scmp.ne.s32.totalorder %s67, %s83
    %p85 = scmp.eq.s32.totalorder %s17, 0
    %p86 = por %p84, %p85
    %s88 = sadd.s32 %s87, 1
    %p91 = scmp.eq.s32.totalorder %s11, 7
    %p92 = scmp.ne.s32.totalorder %s87, %s89
    %p93 = scmp.eq.s32.totalorder %s11, 0
    %p94 = por %p92, %p93
    %p95 = scmp.ne.s32.totalorder %s87, %s89
    %p96 = scmp.eq.s32.totalorder %s16, 7
    %p97 = por %p95, %p96
    %p98 = scmp.ne.s32.totalorder %s89, %s90
    %p99 = scmp.eq.s32.totalorder %s16, 0
    %p100 = por %p98, %p99
    %p101 = scmp.ne.s32.totalorder %s89, %s90
    %p102 = scmp.eq.s32.totalorder %s17, 7
    %p103 = por %p101, %p102
    %p105 = scmp.ne.s32.totalorder %s90, %s104
    %p106 = scmp.eq.s32.totalorder %s17, 0
    %p107 = por %p105, %p106
    %s108 = ssub.s32 %s18, %s30
    %s109 = ssub.s32 %s19, %s26
    %s110 = sor.u32 %s108, %s109
    %p111 = scmp.eq.s32.totalorder %s110, 0
    %s113 = sadd.s32 %s112, 1
    %s114 = scalar_select %p111, %s112, %s113
    %p117 = pneg %p111
    %p118 = scmp.eq.s32.totalorder %s11, 7
    %p119 = por %p117, %p118
    %p120 = scmp.ne.s32.totalorder %s112, %s115
    %p121 = scmp.eq.s32.totalorder %s11, 0
    %p122 = por %p120, %p121
    %p123 = scmp.ne.s32.totalorder %s112, %s115
    %p124 = scmp.eq.s32.totalorder %s16, 7
    %p125 = por %p123, %p124
    %p126 = scmp.ne.s32.totalorder %s115, %s116
    %p127 = scmp.eq.s32.totalorder %s16, 0
    %p128 = por %p126, %p127
    %p129 = scmp.ne.s32.totalorder %s115, %s116
    %p130 = scmp.eq.s32.totalorder %s17, 7
    %p131 = por %p129, %p130
    %p133 = scmp.ne.s32.totalorder %s116, %s132
    %p134 = scmp.eq.s32.totalorder %s17, 0
    %p135 = por %p133, %p134
    %s136 = ssub.s32 %s18, %s30
    %s137 = ssub.s32 %s19, %s26
    %s138 = sor.u32 %s136, %s137
    %p139 = scmp.eq.s32.totalorder %s138, 0
    %s141 = sadd.s32 %s140, 1
    %s142 = scalar_select %p139, %s140, %s141
    %p145 = pneg %p139
    %p146 = scmp.eq.s32.totalorder %s11, 7
    %p147 = por %p145, %p146
    %p148 = scmp.ne.s32.totalorder %s140, %s143
    %p149 = scmp.eq.s32.totalorder %s11, 0
    %p150 = por %p148, %p149
    %p151 = scmp.ne.s32.totalorder %s140, %s143
    %p152 = scmp.eq.s32.totalorder %s16, 7
    %p153 = por %p151, %p152
    %p154 = scmp.ne.s32.totalorder %s143, %s144
    %p155 = scmp.eq.s32.totalorder %s16, 0
    %p156 = por %p154, %p155
    %p157 = scmp.ne.s32.totalorder %s143, %s144
    %p158 = scmp.eq.s32.totalorder %s17, 7
    %p159 = por %p157, %p158
    %p161 = scmp.ne.s32.totalorder %s144, %s160
    %p162 = scmp.eq.s32.totalorder %s17, 0
    %p163 = por %p161, %p162
    %p164 = scmp.le.s32.totalorder 1, %s11
    %p165 = scmp.lt.s32.totalorder %s11, 9
    %p166 = pnand %p164, %p165
    %p167 = pneg %p166
    // Predicated region
    $region9: #{encoder_forward.14} parent=5 // pred_check
      _
    $region10: #{encoder_forward.14} parent=5 // pred_check_branch
      %169 = sbr.rel (%p166) target = $region12
    $region11: #{encoder_forward.14} parent=5 // pred_region
      %s170 = ssub.s32 %s11, 1
      // Predicated region
      $region13: #{encoder_forward.14} parent=11 // pred_check
        %p171 = pneg %p100
      $region14: #{encoder_forward.14} parent=11 // pred_check_branch
        %173 = sbr.rel (%p171) target = $region16
      $region15: #{encoder_forward.14} parent=11 // pred_region
        _
      $region16: #{encoder_forward.14} parent=11 // pred_fallthru
        _
    $region12: #{encoder_forward.14} parent=5 // pred_fallthru
      _
    %p174 = scmp.lt.s32.totalorder %s11, 8
    // Predicated region
    $region17: #{encoder_forward.14} parent=5 // pred_check
      %p175 = pneg %p174
    $region18: #{encoder_forward.14} parent=5 // pred_check_branch
      %177 = sbr.rel (%p175) target = $region20
    $region19: #{encoder_forward.14} parent=5 // pred_region
      // Predicated region
      $region21: #{encoder_forward.14} parent=19 // pred_check
        %p178 = pneg %p45
      $region22: #{encoder_forward.14} parent=19 // pred_check_branch
        %180 = sbr.rel (%p178) target = $region24
      $region23: #{encoder_forward.14} parent=19 // pred_region
        %s181 = smul.u32 4, %s19
        %p182 = scmp.lt.s32.totalorder %s18, 1
        %s183 = scalar_select %p182, %s18, 1
        %p184 = scmp.lt.s32.totalorder %s181, 15
        %s185 = scalar_select %p184, %s181, 15
        %s186 = smul.addr %s185, 3
        %s187 = smul.addr %s183, 48
        %s188 = sadd.s32 %s186, %s187
        %s189 = smul.addr %s188, 4
        %s190 = scalar_lea.vmem %s0, %s189
        %s191 = smul.u32 4, %s19
      $region24: #{encoder_forward.14} parent=19 // pred_fallthru
        _
      // Predicated region
      $region25: #{encoder_forward.14} parent=19 // pred_check
        %p192 = pneg %p73
      $region26: #{encoder_forward.14} parent=19 // pred_check_branch
        %194 = sbr.rel (%p192) target = $region28
      $region27: #{encoder_forward.14} parent=19 // pred_region
        %p195 = scmp.lt.s32.totalorder %s18, 1
        %s196 = scalar_select %p195, %s18, 1
        %p197 = scmp.lt.s32.totalorder %s19, 3
        %s198 = scalar_select %p197, %s19, 3
        %s199 = smul.addr %s198, 6
        %s200 = smul.addr %s196, 24
        %s201 = sadd.s32 %s199, %s200
        %s202 = smul.addr %s201, 4
        %s203 = scalar_lea.vmem %s1, %s202
      $region28: #{encoder_forward.14} parent=19 // pred_fallthru
        _
    $region20: #{encoder_forward.14} parent=5 // pred_fallthru
      _
    %p204 = scmp.le.s32.totalorder 1, %s11
    %p205 = scmp.lt.s32.totalorder %s11, 9
    %p206 = pnand %p204, %p205
    %p207 = pneg %p206
    // Predicated region
    $region29: #{encoder_forward.14} parent=5 // pred_check
      _
    $region30: #{encoder_forward.14} parent=5 // pred_check_branch
      %209 = sbr.rel (%p206) target = $region32
    $region31: #{encoder_forward.14} parent=5 // pred_region
      %s210 = ssub.s32 %s11, 1
      %s211 = smul.u32 4, %s21
      %p212 = scmp.lt.s32.totalorder %s20, 1
      %s213 = scalar_select %p212, %s20, 1
      %p214 = scmp.lt.s32.totalorder %s211, 15
      %s215 = scalar_select %p214, %s211, 15
      %s216 = smul.addr %s215, 3
      %s217 = smul.addr %s213, 48
      %s218 = sadd.s32 %s216, %s217
      %s219 = smul.addr %s218, 4
      %s220 = scalar_lea.vmem %s0, %s219
      %p221 = pneg %p51
      %p222 = pneg %p48
      %p223 = scmp.lt.s32.totalorder %s20, 1
      %s224 = scalar_select %p223, %s20, 1
      %p225 = scmp.lt.s32.totalorder %s21, 3
      %s226 = scalar_select %p225, %s21, 3
      %s227 = smul.addr %s226, 6
      %s228 = smul.addr %s224, 24
      %s229 = sadd.s32 %s227, %s228
      %s230 = smul.addr %s229, 4
      %s231 = scalar_lea.vmem %s1, %s230
      %p232 = pneg %p79
      %p233 = pneg %p76
      %p234 = pneg %p100
      %p235 = pneg %p97
      %p236 = pneg %p128
      %p237 = pneg %p125
      %s238 = smul.u32 4, %s21
      %p239 = scmp.lt.s32.totalorder %s20, 1
      %s240 = scalar_select %p239, %s20, 1
      %p241 = scmp.lt.s32.totalorder %s238, 15
      %s242 = scalar_select %p241, %s238, 15
      %s243 = smul.addr %s242, 2
      %s244 = smul.addr %s240, 32
      %s245 = sadd.s32 %s243, %s244
      %s246 = smul.addr %s245, 4
      %s247 = scalar_lea.vmem %s3, %s246
      %p248 = pneg %p156
      %p249 = pneg %p153
      %p250 = scmp.lt.s32.totalorder %s20, 1
      %s251 = scalar_select %p250, %s20, 1
      %p252 = scmp.lt.s32.totalorder %s21, 3
      %s253 = scalar_select %p252, %s21, 3
      %s254 = smul.addr %s251, 4
      %s255 = sadd.s32 %s253, %s254
      %s256 = smul.addr %s255, 2
      %s257 = scalar_lea.vmem %s4, %s256
      %s258 = smul.u32 4, %s21
      %p259 = scmp.lt.s32.totalorder %s20, 1
      %s260 = scalar_select %p259, %s20, 1
      %p261 = scmp.lt.s32.totalorder %s258, 15
      %s262 = scalar_select %p261, %s258, 15
      %s263 = smul.addr %s262, 3
      %s264 = smul.addr %s260, 48
      %s265 = sadd.s32 %s263, %s264
      %s266 = smul.addr %s265, 4
      %s267 = scalar_lea.vmem %s0, %s266
      %s268 = smul.u32 4, %s21
      %p269 = scmp.lt.s32.totalorder %s20, 1
      %s270 = scalar_select %p269, %s20, 1
      %p271 = scmp.lt.s32.totalorder %s21, 3
      %s272 = scalar_select %p271, %s21, 3
      %s273 = smul.addr %s272, 6
      %s274 = smul.addr %s270, 24
      %s275 = sadd.s32 %s273, %s274
      %s276 = smul.addr %s275, 4
      %s277 = scalar_lea.vmem %s1, %s276
      %s278 = smul.u32 4, %s21
      %p279 = scmp.lt.s32.totalorder %s20, 1
      %s280 = scalar_select %p279, %s20, 1
      %p281 = scmp.lt.s32.totalorder %s278, 15
      %s282 = scalar_select %p281, %s278, 15
      %s283 = smul.addr %s282, 2
      %s284 = smul.addr %s280, 32
      %s285 = sadd.s32 %s283, %s284
      %s286 = smul.addr %s285, 4
      %s287 = scalar_lea.vmem %s3, %s286
      %s288 = smul.u32 4, %s21
      %p289 = scmp.lt.s32.totalorder %s20, 1
      %s290 = scalar_select %p289, %s20, 1
      %p291 = scmp.lt.s32.totalorder %s21, 3
      %s292 = scalar_select %p291, %s21, 3
      %s293 = smul.addr %s290, 4
      %s294 = sadd.s32 %s292, %s293
      %s295 = smul.addr %s294, 2
      %s296 = scalar_lea.vmem %s4, %s295
      %v298 = vld [vmem:[%s277] sm:$0xf]
      %v299 = vld [vmem:[%s277 + $0x4] sm:$0xf]
      %vm300 = vcmask 60416
      %301 = vst.msk [vmem:[#allocation2] sm:$0xf] %vm300, %v298
      %302 = vst.msk [vmem:[#allocation2 + $0x4] sm:$0xf] %vm300, %v299
      %v303 = vld [vmem:[%s267] sm:$0xf]
      %v304 = vld [vmem:[%s267 + $0x4] sm:$0xf]
      %v305 = vld [vmem:[%s267 + $0xc] sm:$0xf]
      %v306 = vld [vmem:[%s267 + $0x10] sm:$0xf]
      %v307 = vld [vmem:[%s267 + $0x18] sm:$0xf]
      %v308 = vld [vmem:[%s267 + $0x1c] sm:$0xf]
      %s309 = scalar_lea.vmem [#allocation2], 8
      %310 = vst.msk [vmem:[%s309] sm:$0xf] %vm300, %v303
      %311 = vst.msk [vmem:[%s309 + $0x4] sm:$0xf] %vm300, %v304
      %312 = vst.msk [vmem:[%s309 + $0x8] sm:$0xf] %vm300, %v305
      %313 = vst.msk [vmem:[%s309 + $0xc] sm:$0xf] %vm300, %v306
      %314 = vst.msk [vmem:[%s309 + $0x10] sm:$0xf] %vm300, %v307
      %315 = vst.msk [vmem:[%s309 + $0x14] sm:$0xf] %vm300, %v308
      %v316 = vld [vmem:[%s277] sm:$0xf]
      %v317 = vld [vmem:[%s277 + $0x4] sm:$0xf]
      %v318 = vld [vmem:[%s277 + $0x8] sm:$0x1]
      %vm319 = vsmask.f32 3328
      %vm320 = vsmask.f32 7440
      %vm321 = vmor %vm319, %vm320
      %v323 = vshrl.u32 %v316, 16
      %v325 = vrot.slane %v323, 4
      %v326 = vshll.u32 %v316, 16
      %v328 = vrot.slane %v326, 5
      %v329 = vor.u32 %v325, %v328
      %v330 = vrot.slane %v329, 4
      %v332 = vshll.u32 %v317, 16
      %v334 = vrot.slane %v332, 5
      %v335 = vsel %vm321, %v330, %v334
      %v336 = vshrl.u32 %v317, 16
      %v338 = vrot.slane %v336, 4
      %v339 = vor.u32 %v338, %v334
      %v340 = vrot.slane %v339, 4
      %v342 = vshll.u32 %v318, 16
      %v344 = vrot.slane %v342, 5
      %v345 = vsel %vm321, %v340, %v344
      %346 = vrot.lane.b32.xlu0 %v335, 8
      %v347 = vpop.permute.xlu0 %346
      %348 = vrot.lane.b32.xlu0 %v345, 8
      %v349 = vpop.permute.xlu0 %348
      %vm352 = vcmask 126016
      %353 = vst.msk [vmem:[#allocation2] sm:$0xf] %vm352, %v347
      %354 = vst.msk [vmem:[#allocation2 + $0x4] sm:$0xf] %vm352, %v349
      %v355 = vld [vmem:[%s267] sm:$0xf]
      %v356 = vld [vmem:[%s267 + $0x4] sm:$0xf]
      %v357 = vld [vmem:[%s267 + $0x8] sm:$0x1]
      %v358 = vld [vmem:[%s267 + $0xc] sm:$0xf]
      %v359 = vld [vmem:[%s267 + $0x10] sm:$0xf]
      %v360 = vld [vmem:[%s267 + $0x14] sm:$0x1]
      %v361 = vld [vmem:[%s267 + $0x18] sm:$0xf]
      %v362 = vld [vmem:[%s267 + $0x1c] sm:$0xf]
      %v363 = vld [vmem:[%s267 + $0x20] sm:$0x1]
      %v365 = vshrl.u32 %v355, 16
      %v367 = vrot.slane %v365, 4
      %v368 = vshll.u32 %v355, 16
      %v370 = vrot.slane %v368, 5
      %v371 = vor.u32 %v367, %v370
      %v372 = vrot.slane %v371, 4
      %v374 = vshll.u32 %v356, 16
      %v376 = vrot.slane %v374, 5
      %v377 = vsel %vm321, %v372, %v376
      %v378 = vshrl.u32 %v356, 16
      %v380 = vrot.slane %v378, 4
      %v381 = vor.u32 %v380, %v376
      %v382 = vrot.slane %v381, 4
      %v384 = vshll.u32 %v357, 16
      %v386 = vrot.slane %v384, 5
      %v387 = vsel %vm321, %v382, %v386
      %v389 = vshrl.u32 %v358, 16
      %v391 = vrot.slane %v389, 4
      %v392 = vshll.u32 %v358, 16
      %v394 = vrot.slane %v392, 5
      %v395 = vor.u32 %v391, %v394
      %v396 = vrot.slane %v395, 4
      %v398 = vshll.u32 %v359, 16
      %v400 = vrot.slane %v398, 5
      %v401 = vsel %vm321, %v396, %v400
      %v402 = vshrl.u32 %v359, 16
      %v404 = vrot.slane %v402, 4
      %v405 = vor.u32 %v404, %v400
      %v406 = vrot.slane %v405, 4
      %v408 = vshll.u32 %v360, 16
      %v410 = vrot.slane %v408, 5
      %v411 = vsel %vm321, %v406, %v410
      %v413 = vshrl.u32 %v361, 16
      %v415 = vrot.slane %v413, 4
      %v416 = vshll.u32 %v361, 16
      %v418 = vrot.slane %v416, 5
      %v419 = vor.u32 %v415, %v418
      %v420 = vrot.slane %v419, 4
      %v422 = vshll.u32 %v362, 16
      %v424 = vrot.slane %v422, 5
      %v425 = vsel %vm321, %v420, %v424
      %v426 = vshrl.u32 %v362, 16
      %v428 = vrot.slane %v426, 4
      %v429 = vor.u32 %v428, %v424
      %v430 = vrot.slane %v429, 4
      %v432 = vshll.u32 %v363, 16
      %v434 = vrot.slane %v432, 5
      %v435 = vsel %vm321, %v430, %v434
      %436 = vrot.lane.b32.xlu0 %v377, 8
      %v437 = vpop.permute.xlu0 %436
      %438 = vrot.lane.b32.xlu0 %v387, 8
      %v439 = vpop.permute.xlu0 %438
      %440 = vrot.lane.b32.xlu0 %v401, 8
      %v441 = vpop.permute.xlu0 %440
      %442 = vrot.lane.b32.xlu0 %v411, 8
      %v443 = vpop.permute.xlu0 %442
      %444 = vrot.lane.b32.xlu0 %v425, 8
      %v445 = vpop.permute.xlu0 %444
      %446 = vrot.lane.b32.xlu0 %v435, 8
      %v447 = vpop.permute.xlu0 %446
      %454 = vst.msk [vmem:[%s309] sm:$0xf] %vm352, %v437
      %455 = vst.msk [vmem:[%s309 + $0x4] sm:$0xf] %vm352, %v439
      %456 = vst.msk [vmem:[%s309 + $0x8] sm:$0xf] %vm352, %v441
      %457 = vst.msk [vmem:[%s309 + $0xc] sm:$0xf] %vm352, %v443
      %458 = vst.msk [vmem:[%s309 + $0x10] sm:$0xf] %vm352, %v445
      %459 = vst.msk [vmem:[%s309 + $0x14] sm:$0xf] %vm352, %v447
      %v460 = vld [vmem:[%s277] sm:$0xe]
      %v461 = vld [vmem:[%s277 + $0x4] sm:$0xf]
      %v462 = vld [vmem:[%s277 + $0x8] sm:$0x1]
      %vm466 = vcmask 1042432
      %vm467 = vcmask 1046532
      %vm468 = vmor %vm466, %vm467
      %v469 = vrot.slane %v460, 5
      %v470 = vrot.slane %v469, 4
      %v471 = vrot.slane %v461, 5
      %v472 = vsel %vm468, %v470, %v471
      %v473 = vrot.slane %v471, 4
      %v474 = vrot.slane %v462, 5
      %v475 = vsel %vm468, %v473, %v474
      %476 = vrot.lane.b32.xlu0 %v472, 16
      %v477 = vpop.permute.xlu0 %476
      %478 = vrot.lane.b32.xlu0 %v475, 16
      %v479 = vpop.permute.xlu0 %478
      %vm482 = vcmask 191616
      %483 = vst.msk [vmem:[#allocation2] sm:$0xf] %vm482, %v477
      %484 = vst.msk [vmem:[#allocation2 + $0x4] sm:$0xf] %vm482, %v479
      %v485 = vld [vmem:[%s267] sm:$0xe]
      %v486 = vld [vmem:[%s267 + $0x4] sm:$0xf]
      %v487 = vld [vmem:[%s267 + $0x8] sm:$0x1]
      %v488 = vld [vmem:[%s267 + $0xc] sm:$0xe]
      %v489 = vld [vmem:[%s267 + $0x10] sm:$0xf]
      %v490 = vld [vmem:[%s267 + $0x14] sm:$0x1]
      %v491 = vld [vmem:[%s267 + $0x18] sm:$0xe]
      %v492 = vld [vmem:[%s267 + $0x1c] sm:$0xf]
      %v493 = vld [vmem:[%s267 + $0x20] sm:$0x1]
      %v503 = vrot.slane %v485, 5
      %v504 = vrot.slane %v503, 4
      %v505 = vrot.slane %v486, 5
      %v506 = vsel %vm468, %v504, %v505
      %v507 = vrot.slane %v505, 4
      %v508 = vrot.slane %v487, 5
      %v509 = vsel %vm468, %v507, %v508
      %v510 = vrot.slane %v488, 5
      %v511 = vrot.slane %v510, 4
      %v512 = vrot.slane %v489, 5
      %v513 = vsel %vm468, %v511, %v512
      %v514 = vrot.slane %v512, 4
      %v515 = vrot.slane %v490, 5
      %v516 = vsel %vm468, %v514, %v515
      %v517 = vrot.slane %v491, 5
      %v518 = vrot.slane %v517, 4
      %v519 = vrot.slane %v492, 5
      %v520 = vsel %vm468, %v518, %v519
      %v521 = vrot.slane %v519, 4
      %v522 = vrot.slane %v493, 5
      %v523 = vsel %vm468, %v521, %v522
      %524 = vrot.lane.b32.xlu0 %v506, 16
      %v525 = vpop.permute.xlu0 %524
      %526 = vrot.lane.b32.xlu0 %v509, 16
      %v527 = vpop.permute.xlu0 %526
      %528 = vrot.lane.b32.xlu0 %v513, 16
      %v529 = vpop.permute.xlu0 %528
      %530 = vrot.lane.b32.xlu0 %v516, 16
      %v531 = vpop.permute.xlu0 %530
      %532 = vrot.lane.b32.xlu0 %v520, 16
      %v533 = vpop.permute.xlu0 %532
      %534 = vrot.lane.b32.xlu0 %v523, 16
      %v535 = vpop.permute.xlu0 %534
      %542 = vst.msk [vmem:[%s309] sm:$0xf] %vm482, %v525
      %543 = vst.msk [vmem:[%s309 + $0x4] sm:$0xf] %vm482, %v527
      %544 = vst.msk [vmem:[%s309 + $0x8] sm:$0xf] %vm482, %v529
      %545 = vst.msk [vmem:[%s309 + $0xc] sm:$0xf] %vm482, %v531
      %546 = vst.msk [vmem:[%s309 + $0x10] sm:$0xf] %vm482, %v533
      %547 = vst.msk [vmem:[%s309 + $0x14] sm:$0xf] %vm482, %v535
      %v548 = vld [vmem:[%s267] sm:$0xf]
      %v549 = vld [vmem:[%s267 + $0x4] sm:$0xf]
      %v550 = vld [vmem:[%s267 + $0xc] sm:$0xf]
      %v551 = vld [vmem:[%s267 + $0x10] sm:$0xf]
      %v552 = vld [vmem:[%s267 + $0x18] sm:$0xf]
      %v553 = vld [vmem:[%s267 + $0x1c] sm:$0xf]
      %v554 = vld [vmem:[%s267 + $0x24] sm:$0xf]
      %v555 = vld [vmem:[%s267 + $0x28] sm:$0xf]
      %564 = vrot.lane.b32.xlu0 %v548, 24
      %v565 = vpop.permute.xlu0 %564
      %566 = vrot.lane.b32.xlu0 %v549, 24
      %v567 = vpop.permute.xlu0 %566
      %568 = vrot.lane.b32.xlu0 %v550, 24
      %v569 = vpop.permute.xlu0 %568
      %570 = vrot.lane.b32.xlu0 %v551, 24
      %v571 = vpop.permute.xlu0 %570
      %572 = vrot.lane.b32.xlu0 %v552, 24
      %v573 = vpop.permute.xlu0 %572
      %574 = vrot.lane.b32.xlu0 %v553, 24
      %v575 = vpop.permute.xlu0 %574
      %576 = vrot.lane.b32.xlu0 %v554, 24
      %v577 = vpop.permute.xlu0 %576
      %578 = vrot.lane.b32.xlu0 %v555, 24
      %v579 = vpop.permute.xlu0 %578
      %vm588 = vcmask 257216
      %589 = vst.msk [vmem:[#allocation2] sm:$0xf] %vm588, %v565
      %590 = vst.msk [vmem:[#allocation2 + $0x4] sm:$0xf] %vm588, %v567
      %591 = vst.msk [vmem:[#allocation2 + $0x8] sm:$0xf] %vm588, %v569
      %592 = vst.msk [vmem:[#allocation2 + $0xc] sm:$0xf] %vm588, %v571
      %593 = vst.msk [vmem:[#allocation2 + $0x10] sm:$0xf] %vm588, %v573
      %594 = vst.msk [vmem:[#allocation2 + $0x14] sm:$0xf] %vm588, %v575
      %595 = vst.msk [vmem:[#allocation2 + $0x18] sm:$0xf] %vm588, %v577
      %596 = vst.msk [vmem:[#allocation2 + $0x1c] sm:$0xf] %vm588, %v579
      %v597 = vld [vmem:[%s267] sm:$0xf]
      %v598 = vld [vmem:[%s267 + $0x4] sm:$0xf]
      %v599 = vld [vmem:[%s267 + $0x8] sm:$0x1]
      %v600 = vld [vmem:[%s267 + $0xc] sm:$0xf]
      %v601 = vld [vmem:[%s267 + $0x10] sm:$0xf]
      %v602 = vld [vmem:[%s267 + $0x14] sm:$0x1]
      %v603 = vld [vmem:[%s267 + $0x18] sm:$0xf]
      %v604 = vld [vmem:[%s267 + $0x1c] sm:$0xf]
      %v605 = vld [vmem:[%s267 + $0x20] sm:$0x1]
      %v606 = vld [vmem:[%s267 + $0x24] sm:$0xf]
      %v607 = vld [vmem:[%s267 + $0x28] sm:$0xf]
      %v608 = vld [vmem:[%s267 + $0x2c] sm:$0x1]
      %v610 = vshrl.u32 %v597, 16
      %v612 = vrot.slane %v610, 4
      %v613 = vshll.u32 %v597, 16
      %v615 = vrot.slane %v613, 5
      %v616 = vor.u32 %v612, %v615
      %v617 = vrot.slane %v616, 4
      %v619 = vshll.u32 %v598, 16
      %v621 = vrot.slane %v619, 5
      %v622 = vsel %vm321, %v617, %v621
      %v623 = vshrl.u32 %v598, 16
      %v625 = vrot.slane %v623, 4
      %v626 = vor.u32 %v625, %v621
      %v627 = vrot.slane %v626, 4
      %v629 = vshll.u32 %v599, 16
      %v631 = vrot.slane %v629, 5
      %v632 = vsel %vm321, %v627, %v631
      %v634 = vshrl.u32 %v600, 16
      %v636 = vrot.slane %v634, 4
      %v637 = vshll.u32 %v600, 16
      %v639 = vrot.slane %v637, 5
      %v640 = vor.u32 %v636, %v639
      %v641 = vrot.slane %v640, 4
      %v643 = vshll.u32 %v601, 16
      %v645 = vrot.slane %v643, 5
      %v646 = vsel %vm321, %v641, %v645
      %v647 = vshrl.u32 %v601, 16
      %v649 = vrot.slane %v647, 4
      %v650 = vor.u32 %v649, %v645
      %v651 = vrot.slane %v650, 4
      %v653 = vshll.u32 %v602, 16
      %v655 = vrot.slane %v653, 5
      %v656 = vsel %vm321, %v651, %v655
      %v658 = vshrl.u32 %v603, 16
      %v660 = vrot.slane %v658, 4
      %v661 = vshll.u32 %v603, 16
      %v663 = vrot.slane %v661, 5
      %v664 = vor.u32 %v660, %v663
      %v665 = vrot.slane %v664, 4
      %v667 = vshll.u32 %v604, 16
      %v669 = vrot.slane %v667, 5
      %v670 = vsel %vm321, %v665, %v669
      %v671 = vshrl.u32 %v604, 16
      %v673 = vrot.slane %v671, 4
      %v674 = vor.u32 %v673, %v669
      %v675 = vrot.slane %v674, 4
      %v677 = vshll.u32 %v605, 16
      %v679 = vrot.slane %v677, 5
      %v680 = vsel %vm321, %v675, %v679
      %v682 = vshrl.u32 %v606, 16
      %v684 = vrot.slane %v682, 4
      %v685 = vshll.u32 %v606, 16
      %v687 = vrot.slane %v685, 5
      %v688 = vor.u32 %v684, %v687
      %v689 = vrot.slane %v688, 4
      %v691 = vshll.u32 %v607, 16
      %v693 = vrot.slane %v691, 5
      %v694 = vsel %vm321, %v689, %v693
      %v695 = vshrl.u32 %v607, 16
      %v697 = vrot.slane %v695, 4
      %v698 = vor.u32 %v697, %v693
      %v699 = vrot.slane %v698, 4
      %v701 = vshll.u32 %v608, 16
      %v703 = vrot.slane %v701, 5
      %v704 = vsel %vm321, %v699, %v703
      %705 = vrot.lane.b32.xlu0 %v622, 32
      %v706 = vpop.permute.xlu0 %705
      %707 = vrot.lane.b32.xlu0 %v632, 32
      %v708 = vpop.permute.xlu0 %707
      %709 = vrot.lane.b32.xlu0 %v646, 32
      %v710 = vpop.permute.xlu0 %709
      %711 = vrot.lane.b32.xlu0 %v656, 32
      %v712 = vpop.permute.xlu0 %711
      %713 = vrot.lane.b32.xlu0 %v670, 32
      %v714 = vpop.permute.xlu0 %713
      %715 = vrot.lane.b32.xlu0 %v680, 32
      %v716 = vpop.permute.xlu0 %715
      %717 = vrot.lane.b32.xlu0 %v694, 32
      %v718 = vpop.permute.xlu0 %717
      %719 = vrot.lane.b32.xlu0 %v704, 32
      %v720 = vpop.permute.xlu0 %719
      %vm729 = vcmask 322816
      %730 = vst.msk [vmem:[#allocation2] sm:$0xf] %vm729, %v706
      %731 = vst.msk [vmem:[#allocation2 + $0x4] sm:$0xf] %vm729, %v708
      %732 = vst.msk [vmem:[#allocation2 + $0x8] sm:$0xf] %vm729, %v710
      %733 = vst.msk [vmem:[#allocation2 + $0xc] sm:$0xf] %vm729, %v712
      %734 = vst.msk [vmem:[#allocation2 + $0x10] sm:$0xf] %vm729, %v714
      %735 = vst.msk [vmem:[#allocation2 + $0x14] sm:$0xf] %vm729, %v716
      %736 = vst.msk [vmem:[#allocation2 + $0x18] sm:$0xf] %vm729, %v718
      %737 = vst.msk [vmem:[#allocation2 + $0x1c] sm:$0xf] %vm729, %v720
      %v738 = vld [vmem:[%s267] sm:$0xe]
      %v739 = vld [vmem:[%s267 + $0x4] sm:$0xf]
      %v740 = vld [vmem:[%s267 + $0x8] sm:$0x1]
      %v741 = vld [vmem:[%s267 + $0xc] sm:$0xe]
      %v742 = vld [vmem:[%s267 + $0x10] sm:$0xf]
      %v743 = vld [vmem:[%s267 + $0x14] sm:$0x1]
      %v744 = vld [vmem:[%s267 + $0x18] sm:$0xe]
      %v745 = vld [vmem:[%s267 + $0x1c] sm:$0xf]
      %v746 = vld [vmem:[%s267 + $0x20] sm:$0x1]
      %v747 = vld [vmem:[%s267 + $0x24] sm:$0xe]
      %v748 = vld [vmem:[%s267 + $0x28] sm:$0xf]
      %v749 = vld [vmem:[%s267 + $0x2c] sm:$0x1]
      %v762 = vrot.slane %v738, 5
      %v763 = vrot.slane %v762, 4
      %v764 = vrot.slane %v739, 5
      %v765 = vsel %vm468, %v763, %v764
      %v766 = vrot.slane %v764, 4
      %v767 = vrot.slane %v740, 5
      %v768 = vsel %vm468, %v766, %v767
      %v769 = vrot.slane %v741, 5
      %v770 = vrot.slane %v769, 4
      %v771 = vrot.slane %v742, 5
      %v772 = vsel %vm468, %v770, %v771
      %v773 = vrot.slane %v771, 4
      %v774 = vrot.slane %v743, 5
      %v775 = vsel %vm468, %v773, %v774
      %v776 = vrot.slane %v744, 5
      %v777 = vrot.slane %v776, 4
      %v778 = vrot.slane %v745, 5
      %v779 = vsel %vm468, %v777, %v778
      %v780 = vrot.slane %v778, 4
      %v781 = vrot.slane %v746, 5
      %v782 = vsel %vm468, %v780, %v781
      %v783 = vrot.slane %v747, 5
      %v784 = vrot.slane %v783, 4
      %v785 = vrot.slane %v748, 5
      %v786 = vsel %vm468, %v784, %v785
      %v787 = vrot.slane %v785, 4
      %v788 = vrot.slane %v749, 5
      %v789 = vsel %vm468, %v787, %v788
      %790 = vrot.lane.b32.xlu0 %v765, 40
      %v791 = vpop.permute.xlu0 %790
      %792 = vrot.lane.b32.xlu0 %v768, 40
      %v793 = vpop.permute.xlu0 %792
      %794 = vrot.lane.b32.xlu0 %v772, 40
      %v795 = vpop.permute.xlu0 %794
      %796 = vrot.lane.b32.xlu0 %v775, 40
      %v797 = vpop.permute.xlu0 %796
      %798 = vrot.lane.b32.xlu0 %v779, 40
      %v799 = vpop.permute.xlu0 %798
      %800 = vrot.lane.b32.xlu0 %v782, 40
      %v801 = vpop.permute.xlu0 %800
      %802 = vrot.lane.b32.xlu0 %v786, 40
      %v803 = vpop.permute.xlu0 %802
      %804 = vrot.lane.b32.xlu0 %v789, 40
      %v805 = vpop.permute.xlu0 %804
      %vm814 = vcmask 388416
      %815 = vst.msk [vmem:[#allocation2] sm:$0xf] %vm814, %v791
      %816 = vst.msk [vmem:[#allocation2 + $0x4] sm:$0xf] %vm814, %v793
      %817 = vst.msk [vmem:[#allocation2 + $0x8] sm:$0xf] %vm814, %v795
      %818 = vst.msk [vmem:[#allocation2 + $0xc] sm:$0xf] %vm814, %v797
      %819 = vst.msk [vmem:[#allocation2 + $0x10] sm:$0xf] %vm814, %v799
      %820 = vst.msk [vmem:[#allocation2 + $0x14] sm:$0xf] %vm814, %v801
      %821 = vst.msk [vmem:[#allocation2 + $0x18] sm:$0xf] %vm814, %v803
      %822 = vst.msk [vmem:[#allocation2 + $0x1c] sm:$0xf] %vm814, %v805
      %s823 = scalar_lea.vmem %s267, 12
      %v824 = vld [vmem:[%s823] sm:$0xf]
      %v825 = vld [vmem:[%s823 + $0x4] sm:$0xf]
      %v826 = vld [vmem:[%s823 + $0xc] sm:$0xf]
      %v827 = vld [vmem:[%s823 + $0x10] sm:$0xf]
      %v828 = vld [vmem:[%s823 + $0x18] sm:$0xf]
      %v829 = vld [vmem:[%s823 + $0x1c] sm:$0xf]
      %836 = vrot.lane.b32.xlu0 %v824, 48
      %v837 = vpop.permute.xlu0 %836
      %838 = vrot.lane.b32.xlu0 %v825, 48
      %v839 = vpop.permute.xlu0 %838
      %840 = vrot.lane.b32.xlu0 %v826, 48
      %v841 = vpop.permute.xlu0 %840
      %842 = vrot.lane.b32.xlu0 %v827, 48
      %v843 = vpop.permute.xlu0 %842
      %844 = vrot.lane.b32.xlu0 %v828, 48
      %v845 = vpop.permute.xlu0 %844
      %846 = vrot.lane.b32.xlu0 %v829, 48
      %v847 = vpop.permute.xlu0 %846
      %vm854 = vcmask 454016
      %855 = vst.msk [vmem:[#allocation2] sm:$0xf] %vm854, %v837
      %856 = vst.msk [vmem:[#allocation2 + $0x4] sm:$0xf] %vm854, %v839
      %857 = vst.msk [vmem:[#allocation2 + $0x8] sm:$0xf] %vm854, %v841
      %858 = vst.msk [vmem:[#allocation2 + $0xc] sm:$0xf] %vm854, %v843
      %859 = vst.msk [vmem:[#allocation2 + $0x10] sm:$0xf] %vm854, %v845
      %860 = vst.msk [vmem:[#allocation2 + $0x14] sm:$0xf] %vm854, %v847
      %s861 = scalar_lea.vmem %s277, 12
      %v862 = vld [vmem:[%s861] sm:$0xf]
      %v863 = vld [vmem:[%s861 + $0x4] sm:$0xf]
      %866 = vrot.lane.b32.xlu0 %v862, 48
      %v867 = vpop.permute.xlu0 %866
      %868 = vrot.lane.b32.xlu0 %v863, 48
      %v869 = vpop.permute.xlu0 %868
      %s872 = scalar_lea.vmem [#allocation2], 24
      %873 = vst.msk [vmem:[%s872] sm:$0xf] %vm854, %v867
      %874 = vst.msk [vmem:[%s872 + $0x4] sm:$0xf] %vm854, %v869
      %v875 = vld [vmem:[%s823] sm:$0xf]
      %v876 = vld [vmem:[%s823 + $0x4] sm:$0xf]
      %v877 = vld [vmem:[%s823 + $0x8] sm:$0x1]
      %v878 = vld [vmem:[%s823 + $0xc] sm:$0xf]
      %v879 = vld [vmem:[%s823 + $0x10] sm:$0xf]
      %v880 = vld [vmem:[%s823 + $0x14] sm:$0x1]
      %v881 = vld [vmem:[%s823 + $0x18] sm:$0xf]
      %v882 = vld [vmem:[%s823 + $0x1c] sm:$0xf]
      %v883 = vld [vmem:[%s823 + $0x20] sm:$0x1]
      %v885 = vshrl.u32 %v875, 16
      %v887 = vrot.slane %v885, 4
      %v888 = vshll.u32 %v875, 16
      %v890 = vrot.slane %v888, 5
      %v891 = vor.u32 %v887, %v890
      %v892 = vrot.slane %v891, 4
      %v894 = vshll.u32 %v876, 16
      %v896 = vrot.slane %v894, 5
      %v897 = vsel %vm321, %v892, %v896
      %v898 = vshrl.u32 %v876, 16
      %v900 = vrot.slane %v898, 4
      %v901 = vor.u32 %v900, %v896
      %v902 = vrot.slane %v901, 4
      %v904 = vshll.u32 %v877, 16
      %v906 = vrot.slane %v904, 5
      %v907 = vsel %vm321, %v902, %v906
      %v909 = vshrl.u32 %v878, 16
      %v911 = vrot.slane %v909, 4
      %v912 = vshll.u32 %v878, 16
      %v914 = vrot.slane %v912, 5
      %v915 = vor.u32 %v911, %v914
      %v916 = vrot.slane %v915, 4
      %v918 = vshll.u32 %v879, 16
      %v920 = vrot.slane %v918, 5
      %v921 = vsel %vm321, %v916, %v920
      %v922 = vshrl.u32 %v879, 16
      %v924 = vrot.slane %v922, 4
      %v925 = vor.u32 %v924, %v920
      %v926 = vrot.slane %v925, 4
      %v928 = vshll.u32 %v880, 16
      %v930 = vrot.slane %v928, 5
      %v931 = vsel %vm321, %v926, %v930
      %v933 = vshrl.u32 %v881, 16
      %v935 = vrot.slane %v933, 4
      %v936 = vshll.u32 %v881, 16
      %v938 = vrot.slane %v936, 5
      %v939 = vor.u32 %v935, %v938
      %v940 = vrot.slane %v939, 4
      %v942 = vshll.u32 %v882, 16
      %v944 = vrot.slane %v942, 5
      %v945 = vsel %vm321, %v940, %v944
      %v946 = vshrl.u32 %v882, 16
      %v948 = vrot.slane %v946, 4
      %v949 = vor.u32 %v948, %v944
      %v950 = vrot.slane %v949, 4
      %v952 = vshll.u32 %v883, 16
      %v954 = vrot.slane %v952, 5
      %v955 = vsel %vm321, %v950, %v954
      %956 = vrot.lane.b32.xlu0 %v897, 56
      %v957 = vpop.permute.xlu0 %956
      %958 = vrot.lane.b32.xlu0 %v907, 56
      %v959 = vpop.permute.xlu0 %958
      %960 = vrot.lane.b32.xlu0 %v921, 56
      %v961 = vpop.permute.xlu0 %960
      %962 = vrot.lane.b32.xlu0 %v931, 56
      %v963 = vpop.permute.xlu0 %962
      %964 = vrot.lane.b32.xlu0 %v945, 56
      %v965 = vpop.permute.xlu0 %964
      %966 = vrot.lane.b32.xlu0 %v955, 56
      %v967 = vpop.permute.xlu0 %966
      %vm974 = vcmask 519616
      %975 = vst.msk [vmem:[#allocation2] sm:$0xf] %vm974, %v957
      %976 = vst.msk [vmem:[#allocation2 + $0x4] sm:$0xf] %vm974, %v959
      %977 = vst.msk [vmem:[#allocation2 + $0x8] sm:$0xf] %vm974, %v961
      %978 = vst.msk [vmem:[#allocation2 + $0xc] sm:$0xf] %vm974, %v963
      %979 = vst.msk [vmem:[#allocation2 + $0x10] sm:$0xf] %vm974, %v965
      %980 = vst.msk [vmem:[#allocation2 + $0x14] sm:$0xf] %vm974, %v967
      %v981 = vld [vmem:[%s861] sm:$0xf]
      %v982 = vld [vmem:[%s861 + $0x4] sm:$0xf]
      %v983 = vld [vmem:[%s861 + $0x8] sm:$0x1]
      %v985 = vshrl.u32 %v981, 16
      %v987 = vrot.slane %v985, 4
      %v988 = vshll.u32 %v981, 16
      %v990 = vrot.slane %v988, 5
      %v991 = vor.u32 %v987, %v990
      %v992 = vrot.slane %v991, 4
      %v994 = vshll.u32 %v982, 16
      %v996 = vrot.slane %v994, 5
      %v997 = vsel %vm321, %v992, %v996
      %v998 = vshrl.u32 %v982, 16
      %v1000 = vrot.slane %v998, 4
      %v1001 = vor.u32 %v1000, %v996
      %v1002 = vrot.slane %v1001, 4
      %v1004 = vshll.u32 %v983, 16
      %v1006 = vrot.slane %v1004, 5
      %v1007 = vsel %vm321, %v1002, %v1006
      %1008 = vrot.lane.b32.xlu0 %v997, 56
      %v1009 = vpop.permute.xlu0 %1008
      %1010 = vrot.lane.b32.xlu0 %v1007, 56
      %v1011 = vpop.permute.xlu0 %1010
      %1014 = vst.msk [vmem:[%s872] sm:$0xf] %vm974, %v1009
      %1015 = vst.msk [vmem:[%s872 + $0x4] sm:$0xf] %vm974, %v1011
      %v1016 = vld [vmem:[%s823] sm:$0xe]
      %v1017 = vld [vmem:[%s823 + $0x4] sm:$0xf]
      %v1018 = vld [vmem:[%s823 + $0x8] sm:$0x1]
      %v1019 = vld [vmem:[%s823 + $0xc] sm:$0xe]
      %v1020 = vld [vmem:[%s823 + $0x10] sm:$0xf]
      %v1021 = vld [vmem:[%s823 + $0x14] sm:$0x1]
      %v1022 = vld [vmem:[%s823 + $0x18] sm:$0xe]
      %v1023 = vld [vmem:[%s823 + $0x1c] sm:$0xf]
      %v1024 = vld [vmem:[%s823 + $0x20] sm:$0x1]
      %v1034 = vrot.slane %v1016, 5
      %v1035 = vrot.slane %v1034, 4
      %v1036 = vrot.slane %v1017, 5
      %v1037 = vsel %vm468, %v1035, %v1036
      %v1038 = vrot.slane %v1036, 4
      %v1039 = vrot.slane %v1018, 5
      %v1040 = vsel %vm468, %v1038, %v1039
      %v1041 = vrot.slane %v1019, 5
      %v1042 = vrot.slane %v1041, 4
      %v1043 = vrot.slane %v1020, 5
      %v1044 = vsel %vm468, %v1042, %v1043
      %v1045 = vrot.slane %v1043, 4
      %v1046 = vrot.slane %v1021, 5
      %v1047 = vsel %vm468, %v1045, %v1046
      %v1048 = vrot.slane %v1022, 5
      %v1049 = vrot.slane %v1048, 4
      %v1050 = vrot.slane %v1023, 5
      %v1051 = vsel %vm468, %v1049, %v1050
      %v1052 = vrot.slane %v1050, 4
      %v1053 = vrot.slane %v1024, 5
      %v1054 = vsel %vm468, %v1052, %v1053
      %1055 = vrot.lane.b32.xlu0 %v1037, 64
      %v1056 = vpop.permute.xlu0 %1055
      %1057 = vrot.lane.b32.xlu0 %v1040, 64
      %v1058 = vpop.permute.xlu0 %1057
      %1059 = vrot.lane.b32.xlu0 %v1044, 64
      %v1060 = vpop.permute.xlu0 %1059
      %1061 = vrot.lane.b32.xlu0 %v1047, 64
      %v1062 = vpop.permute.xlu0 %1061
      %1063 = vrot.lane.b32.xlu0 %v1051, 64
      %v1064 = vpop.permute.xlu0 %1063
      %1065 = vrot.lane.b32.xlu0 %v1054, 64
      %v1066 = vpop.permute.xlu0 %1065
      %vm1073 = vcmask 585216
      %1074 = vst.msk [vmem:[#allocation2] sm:$0xf] %vm1073, %v1056
      %1075 = vst.msk [vmem:[#allocation2 + $0x4] sm:$0xf] %vm1073, %v1058
      %1076 = vst.msk [vmem:[#allocation2 + $0x8] sm:$0xf] %vm1073, %v1060
      %1077 = vst.msk [vmem:[#allocation2 + $0xc] sm:$0xf] %vm1073, %v1062
      %1078 = vst.msk [vmem:[#allocation2 + $0x10] sm:$0xf] %vm1073, %v1064
      %1079 = vst.msk [vmem:[#allocation2 + $0x14] sm:$0xf] %vm1073, %v1066
      %v1080 = vld [vmem:[%s861] sm:$0xe]
      %v1081 = vld [vmem:[%s861 + $0x4] sm:$0xf]
      %v1082 = vld [vmem:[%s861 + $0x8] sm:$0x1]
      %v1086 = vrot.slane %v1080, 5
      %v1087 = vrot.slane %v1086, 4
      %v1088 = vrot.slane %v1081, 5
      %v1089 = vsel %vm468, %v1087, %v1088
      %v1090 = vrot.slane %v1088, 4
      %v1091 = vrot.slane %v1082, 5
      %v1092 = vsel %vm468, %v1090, %v1091
      %1093 = vrot.lane.b32.xlu0 %v1089, 64
      %v1094 = vpop.permute.xlu0 %1093
      %1095 = vrot.lane.b32.xlu0 %v1092, 64
      %v1096 = vpop.permute.xlu0 %1095
      %1099 = vst.msk [vmem:[%s872] sm:$0xf] %vm1073, %v1094
      %1100 = vst.msk [vmem:[%s872 + $0x4] sm:$0xf] %vm1073, %v1096
      %v1101 = vld [vmem:[#allocation2] sm:$0xf]
      %v1102 = vld [vmem:[#allocation2 + $0x4] sm:$0xf]
      %v1103 = vld [vmem:[#allocation2 + $0x8] sm:$0xf]
      %v1104 = vld [vmem:[#allocation2 + $0xc] sm:$0xf]
      %v1105 = vld [vmem:[#allocation2 + $0x10] sm:$0xf]
      %v1106 = vld [vmem:[#allocation2 + $0x14] sm:$0xf]
      %v1107 = vld [vmem:[#allocation2 + $0x18] sm:$0xf]
      %v1108 = vld [vmem:[#allocation2 + $0x1c] sm:$0xf]
      %v1109 = vld [vmem:[%s2] sm:$0xf]
      %v1110 = vld [vmem:[%s2 + $0x4] sm:$0xf]
      %v1111 = vld [vmem:[%s2 + $0x8] sm:$0xf]
      %v1112 = vld [vmem:[%s2 + $0xc] sm:$0xf]
      %v1113 = vld [vmem:[%s2 + $0x10] sm:$0xf]
      %v1114 = vld [vmem:[%s2 + $0x14] sm:$0xf]
      %v1115 = vld [vmem:[%s2 + $0x18] sm:$0xf]
      %v1116 = vld [vmem:[%s2 + $0x1c] sm:$0xf]
      %v1117 = vld [vmem:[%s2 + $0x20] sm:$0xf]
      %v1126 = vunpack.c.l.b16 %v1101
      %v1127 = vunpack.c.l.b16 %v1102
      %v1128 = vunpack.c.l.b16 %v1103
      %v1129 = vunpack.c.l.b16 %v1104
      %v1130 = vunpack.c.l.b16 %v1105
      %v1131 = vunpack.c.l.b16 %v1106
      %v1132 = vunpack.c.l.b16 %v1107
      %v1133 = vunpack.c.l.b16 %v1108
      %v1134 = vpack.c.b16 %v1127, %v1126
      %v1135 = vpack.c.b16 %v1129, %v1128
      %v1136 = vpack.c.b16 %v1131, %v1130
      %v1137 = vpack.c.b16 %v1133, %v1132
      %v1147 = vunpack.c.l.b16 %v1109
      %v1148 = vunpack.c.l.b16 %v1110
      %v1149 = vunpack.c.l.b16 %v1111
      %v1150 = vunpack.c.l.b16 %v1112
      %v1151 = vunpack.c.l.b16 %v1113
      %v1152 = vunpack.c.l.b16 %v1114
      %v1153 = vunpack.c.l.b16 %v1115
      %v1154 = vunpack.c.l.b16 %v1116
      %v1155 = vunpack.c.l.b16 %v1117
      %v1156 = vpack.c.b16 %v1148, %v1147
      %v1157 = vpack.c.b16 %v1150, %v1149
      %v1158 = vpack.c.b16 %v1152, %v1151
      %v1159 = vpack.c.b16 %v1154, %v1153
      %v1160 = vpack.c.b16 %v1155, %v1155
      %vm1165 = vcmask 588800
      %v1167 = vsel %vm1165, %v1134, 0
      %v1170 = vsel %vm1165, %v1135, 0
      %v1173 = vsel %vm1165, %v1136, 0
      %v1176 = vsel %vm1165, %v1137, 0
      %vm1178 = vcmask 1043456
      %v1180 = vsel %vm1178, %v1160, 0
      %1182 = vmatpush.bf16.msra.mxu0 0
      %1183 = vmatpush.bf16.msra.mxu0 0
      %1184 = vmatpush.bf16.msra.mxu0 0
      %1185 = vmatpush.bf16.msra.mxu0 %v1180
      %1186 = vmatpush.bf16.msra.mxu0 %v1159
      %1187 = vmatpush.bf16.msra.mxu0 %v1158
      %1188 = vmatpush.bf16.msra.mxu0 %v1157
      %1189 = vmatpush.bf16.msra.mxu0 %v1156
      %1190 = vmatmul.bf16.gmra.mxu0 %v1167
      %v1191 = vpop.f32.mrf.mxu0
      %v1192 = vadd.f32 0.0, %v1191
      %v1193 = vpop.f32.mrf.mxu0
      %v1194 = vadd.f32 0.0, %v1193
      %1195 = vmatmul.bf16.gmra.mxu0 %v1170
      %v1196 = vpop.f32.mrf.mxu0
      %v1197 = vadd.f32 0.0, %v1196
      %v1198 = vpop.f32.mrf.mxu0
      %v1199 = vadd.f32 0.0, %v1198
      %1200 = vmatmul.bf16.gmra.mxu0 %v1173
      %v1201 = vpop.f32.mrf.mxu0
      %v1202 = vadd.f32 0.0, %v1201
      %v1203 = vpop.f32.mrf.mxu0
      %v1204 = vadd.f32 0.0, %v1203
      %1205 = vmatmul.bf16.gmra.mxu0 %v1176
      %v1206 = vpop.f32.mrf.mxu0
      %v1207 = vadd.f32 0.0, %v1206
      %v1208 = vpop.f32.mrf.mxu0
      %v1209 = vadd.f32 0.0, %v1208
      %1210 = vdwg.mxu0
      %v1211 = vpack.c.bf16 %v1192, %v1192
      %v1212 = vpack.c.bf16 %v1194, %v1194
      %v1213 = vpack.c.bf16 %v1197, %v1197
      %v1214 = vpack.c.bf16 %v1199, %v1199
      %v1215 = vpack.c.bf16 %v1202, %v1202
      %v1216 = vpack.c.bf16 %v1204, %v1204
      %v1217 = vpack.c.bf16 %v1207, %v1207
      %v1218 = vpack.c.bf16 %v1209, %v1209
      %vm1219 = vcmask 125952
      %1220 = vst.msk [vmem:[%s287] sm:$0xf] %vm1219, %v1211
      %1221 = vst.msk [vmem:[%s287 + $0x4] sm:$0xf] %vm1219, %v1212
      %1222 = vst.msk [vmem:[%s287 + $0x8] sm:$0xf] %vm1219, %v1213
      %1223 = vst.msk [vmem:[%s287 + $0xc] sm:$0xf] %vm1219, %v1214
      %1224 = vst.msk [vmem:[%s287 + $0x10] sm:$0xf] %vm1219, %v1215
      %1225 = vst.msk [vmem:[%s287 + $0x14] sm:$0xf] %vm1219, %v1216
      %1226 = vst.msk [vmem:[%s287 + $0x18] sm:$0xf] %vm1219, %v1217
      %1227 = vst.msk [vmem:[%s287 + $0x1c] sm:$0xf] %vm1219, %v1218
      %vm1228 = vcmask 130048
      %v1229 = vsel %vm1228, %v1192, 0.0
      %v1230 = vsel %vm1228, %v1194, 0.0
      %v1231 = vadd.f32 %v1229, %v1230
      %v1232 = vsel %vm1228, %v1197, 0.0
      %v1233 = vadd.f32 %v1231, %v1232
      %v1234 = vsel %vm1228, %v1199, 0.0
      %v1235 = vadd.f32 %v1233, %v1234
      %v1236 = vsel %vm1228, %v1202, 0.0
      %v1237 = vadd.f32 %v1235, %v1236
      %v1238 = vsel %vm1228, %v1204, 0.0
      %v1239 = vadd.f32 %v1237, %v1238
      %v1240 = vsel %vm1228, %v1207, 0.0
      %v1241 = vadd.f32 %v1239, %v1240
      %v1242 = vsel %vm1228, %v1209, 0.0
      %v1243 = vadd.f32 %v1241, %v1242
      %v1244 = vrot.slane %v1243, 4
      %v1245 = vadd.f32 %v1243, %v1244
      %v1246 = vrot.slane %v1245, 2
      %v1247 = vadd.f32 %v1245, %v1246
      %v1248 = vrot.slane %v1247, 1
      %v1249 = vadd.f32 %v1247, %v1248
      %vm1250 = vcmask 122880
      %1251 = vst.msk [vmem:[%s296] sm:$0x1] %vm1250, %v1249
      %v1252 = vmul.f32 %v1192, %v1192
      %v1253 = vmul.f32 %v1194, %v1194
      %v1254 = vmul.f32 %v1197, %v1197
      %v1255 = vmul.f32 %v1199, %v1199
      %v1256 = vmul.f32 %v1202, %v1202
      %v1257 = vmul.f32 %v1204, %v1204
      %v1258 = vmul.f32 %v1207, %v1207
      %v1259 = vmul.f32 %v1209, %v1209
      %v1260 = vsel %vm1228, %v1252, 0.0
      %v1261 = vsel %vm1228, %v1253, 0.0
      %v1262 = vadd.f32 %v1260, %v1261
      %v1263 = vsel %vm1228, %v1254, 0.0
      %v1264 = vadd.f32 %v1262, %v1263
      %v1265 = vsel %vm1228, %v1255, 0.0
      %v1266 = vadd.f32 %v1264, %v1265
      %v1267 = vsel %vm1228, %v1256, 0.0
      %v1268 = vadd.f32 %v1266, %v1267
      %v1269 = vsel %vm1228, %v1257, 0.0
      %v1270 = vadd.f32 %v1268, %v1269
      %v1271 = vsel %vm1228, %v1258, 0.0
      %v1272 = vadd.f32 %v1270, %v1271
      %v1273 = vsel %vm1228, %v1259, 0.0
      %v1274 = vadd.f32 %v1272, %v1273
      %v1275 = vrot.slane %v1274, 4
      %v1276 = vadd.f32 %v1274, %v1275
      %v1277 = vrot.slane %v1276, 2
      %v1278 = vadd.f32 %v1276, %v1277
      %v1279 = vrot.slane %v1278, 1
      %v1280 = vadd.f32 %v1278, %v1279
      %1281 = vst.msk [vmem:[%s296 + $0x1] sm:$0x1] %vm1250, %v1280
      %s1282 = smul.u32 4, %s21
      %p1283 = scmp.lt.s32.totalorder %s20, 1
      %s1284 = scalar_select %p1283, %s20, 1
      %p1285 = scmp.lt.s32.totalorder %s1282, 15
      %s1286 = scalar_select %p1285, %s1282, 15
      %s1287 = smul.addr %s1286, 2
      %s1288 = smul.addr %s1284, 32
      %s1289 = sadd.s32 %s1287, %s1288
      %s1290 = smul.addr %s1289, 4
      %s1291 = scalar_lea.vmem %s3, %s1290
      %p1292 = scmp.lt.s32.totalorder %s20, 1
      %s1293 = scalar_select %p1292, %s20, 1
      %p1294 = scmp.lt.s32.totalorder %s21, 3
      %s1295 = scalar_select %p1294, %s21, 3
      %s1296 = smul.addr %s1293, 4
      %s1297 = sadd.s32 %s1295, %s1296
      %s1298 = smul.addr %s1297, 2
      %s1299 = scalar_lea.vmem %s4, %s1298
      // Predicated region
      $region33: #{encoder_forward.14} parent=31 // pred_check
        %p1300 = pneg %p125
      $region34: #{encoder_forward.14} parent=31 // pred_check_branch
        %1302 = sbr.rel (%p1300) target = $region36
      $region35: #{encoder_forward.14} parent=31 // pred_region
        %s1303 = smul.u32 4, %s21
      $region36: #{encoder_forward.14} parent=31 // pred_fallthru
        _
      // Predicated region
      $region37: #{encoder_forward.14} parent=31 // pred_check
        %p1304 = pneg %p153
      $region38: #{encoder_forward.14} parent=31 // pred_check_branch
        %1306 = sbr.rel (%p1304) target = $region40
      $region39: #{encoder_forward.14} parent=31 // pred_region
        _
      $region40: #{encoder_forward.14} parent=31 // pred_fallthru
        _
    $region32: #{encoder_forward.14} parent=5 // pred_fallthru
      _
    %p1307 = scmp.le.s32.totalorder 2, %s11
    // Predicated region
    $region41: #{encoder_forward.14} parent=5 // pred_check
      %p1308 = pneg %p1307
    $region42: #{encoder_forward.14} parent=5 // pred_check_branch
      %1310 = sbr.rel (%p1308) target = $region44
    $region43: #{encoder_forward.14} parent=5 // pred_region
      %s1311 = ssub.s32 %s11, 2
      // Predicated region
      $region45: #{encoder_forward.14} parent=43 // pred_check
        %p1312 = pneg %p131
      $region46: #{encoder_forward.14} parent=43 // pred_check_branch
        %1314 = sbr.rel (%p1312) target = $region48
      $region47: #{encoder_forward.14} parent=43 // pred_region
        %s1315 = smul.u32 4, %s23
        %p1316 = scmp.lt.s32.totalorder %s22, 1
        %s1317 = scalar_select %p1316, %s22, 1
        %p1318 = scmp.lt.s32.totalorder %s1315, 15
        %s1319 = scalar_select %p1318, %s1315, 15
        %s1320 = smul.addr %s1319, 2
        %s1321 = smul.addr %s1317, 32
        %s1322 = sadd.s32 %s1320, %s1321
        %s1323 = smul.addr %s1322, 4
        %s1324 = scalar_lea.vmem %s3, %s1323
      $region48: #{encoder_forward.14} parent=43 // pred_fallthru
        _
      // Predicated region
      $region49: #{encoder_forward.14} parent=43 // pred_check
        %p1325 = pneg %p159
      $region50: #{encoder_forward.14} parent=43 // pred_check_branch
        %1327 = sbr.rel (%p1325) target = $region52
      $region51: #{encoder_forward.14} parent=43 // pred_region
        %p1328 = scmp.lt.s32.totalorder %s22, 1
        %s1329 = scalar_select %p1328, %s22, 1
        %p1330 = scmp.lt.s32.totalorder %s23, 3
        %s1331 = scalar_select %p1330, %s23, 3
        %s1332 = smul.addr %s1329, 4
        %s1333 = sadd.s32 %s1331, %s1332
        %s1334 = smul.addr %s1333, 2
        %s1335 = scalar_lea.vmem %s4, %s1334
      $region52: #{encoder_forward.14} parent=43 // pred_fallthru
        _
    $region44: #{encoder_forward.14} parent=5 // pred_fallthru
      _
  $region6: #{encoder_forward.14} parent=0 // loop_footer
    %s15 = sadd.s32 1, %s11
  $region7: #{encoder_forward.14} parent=0 // loop_footer_branch
    %10 = sbr.rel target = $region3
  $region8: #{encoder_forward.14} parent=0 // loop_exit
    _

// kernel: encoder_forward.16
$region0: #{encoder_forward.16}
  #allocation0 [shape = 'u32[]', space=smem, size = 0x4, offset = 0x4, fixed_abs, tag = 'smem constant byte address 0x4 - core index']
  #allocation1 [shape = 'u32[72,128]{1,0:T(1,128)}', space=vmem, size = 0x9000, scoped, tag = 'internal scratch']
  #allocation2 [shape = 'bf16[4,8,192]{2,1,0:T(8,128)(2,1)}', space=vmem, size = 0x4000, scoped, tag = 'scratch operand']
  %s0 = inlined_call_operand.vmem [shape: bf16[2,8,2,9,32], index: 0, kind: input, shape index: {}]
  %s1 = inlined_call_operand.vmem [shape: bf16[2,2,2,9,32], index: 1, kind: input, shape index: {}]
  %s2 = inlined_call_operand.vmem [shape: bf16[192,32], index: 2, kind: input, shape index: {}]
  %s3 = inlined_call_operand.vmem [shape: bf16[2,8,8,32], index: 3, kind: output, shape index: {0}]
  %s4 = inlined_call_operand.vmem [shape: f32[2,2,2,32], index: 4, kind: output, shape index: {1}]
  %5 = xla_tuple %s3, %s4
  %s6 = sld [smem:[#allocation0]]
  $region53: #{encoder_forward.16} parent=0
    _
  %s8 = ssub.s32 1, %s6
  %s9 = scalar_select 0, %s8, %s6
  loop: start=0, step=1, limit=6
  $region2: #{encoder_forward.16} parent=0 // loop_pre_header
    _
  $region3: #{encoder_forward.16} parent=0 // loop_header
    %s11 = sphi 0, %s15
    %p12 = scmp.ge.s32.totalorder %s11, 6
    %s18 = sphi 0, %s30
    %s19 = sphi 0, %s26
    %s20 = sphi 0, %s18
    %s21 = sphi 0, %s19
    %s22 = sphi 0, %s20
    %s23 = sphi 0, %s21
    %s35 = sphi 0, %s37
    %s38 = sphi 0, %s35
    %s39 = sphi 0, %s38
    %s55 = sphi 0, %s39
    %s63 = sphi 0, %s65
    %s66 = sphi 0, %s63
    %s67 = sphi 0, %s66
    %s83 = sphi 0, %s67
    %s87 = sphi 0, %s87
    %s89 = sphi 0, %s87
    %s90 = sphi 0, %s89
    %s104 = sphi 0, %s90
    %s112 = sphi 0, %s114
    %s115 = sphi 0, %s112
    %s116 = sphi 0, %s115
    %s132 = sphi 0, %s116
    %s140 = sphi 0, %s142
    %s143 = sphi 0, %s140
    %s144 = sphi 0, %s143
    %s160 = sphi 0, %s144
  $region4: #{encoder_forward.16} parent=0 // loop_header_branch
    %14 = sbr.rel (%p12) target = $region8
  $region5: #{encoder_forward.16} parent=0 // loop_body
    %s16 = ssub.s32 %s11, 1
    %s17 = ssub.s32 %s11, 2
    %s24 = sadd.s32 1, %s19
    %p25 = scmp.ge.s32.totalorder %s24, 2
    %s26 = scalar_select %p25, 0, %s24
    %s27 = sadd.s32 1, %s18
    %s28 = scalar_select %p25, %s27, %s18
    %p29 = scmp.ge.s32.totalorder %s28, 2
    %s30 = scalar_select %p29, 0, %s28
    %s31 = ssub.s32 %s18, %s30
    %s32 = ssub.s32 %s19, %s26
    %s33 = sor.u32 %s31, %s32
    %p34 = scmp.eq.s32.totalorder %s33, 0
    %s36 = sadd.s32 %s35, 1
    %s37 = scalar_select %p34, %s35, %s36
    %p40 = pneg %p34
    %p41 = scmp.eq.s32.totalorder %s11, 3
    %p42 = por %p40, %p41
    %p43 = scmp.ne.s32.totalorder %s35, %s38
    %p44 = scmp.eq.s32.totalorder %s11, 0
    %p45 = por %p43, %p44
    %p46 = scmp.ne.s32.totalorder %s35, %s38
    %p47 = scmp.eq.s32.totalorder %s16, 3
    %p48 = por %p46, %p47
    %p49 = scmp.ne.s32.totalorder %s38, %s39
    %p50 = scmp.eq.s32.totalorder %s16, 0
    %p51 = por %p49, %p50
    %p52 = scmp.ne.s32.totalorder %s38, %s39
    %p53 = scmp.eq.s32.totalorder %s17, 3
    %p54 = por %p52, %p53
    %p56 = scmp.ne.s32.totalorder %s39, %s55
    %p57 = scmp.eq.s32.totalorder %s17, 0
    %p58 = por %p56, %p57
    %s59 = ssub.s32 %s18, %s30
    %s60 = ssub.s32 %s19, %s26
    %s61 = sor.u32 %s59, %s60
    %p62 = scmp.eq.s32.totalorder %s61, 0
    %s64 = sadd.s32 %s63, 1
    %s65 = scalar_select %p62, %s63, %s64
    %p68 = pneg %p62
    %p69 = scmp.eq.s32.totalorder %s11, 3
    %p70 = por %p68, %p69
    %p71 = scmp.ne.s32.totalorder %s63, %s66
    %p72 = scmp.eq.s32.totalorder %s11, 0
    %p73 = por %p71, %p72
    %p74 = scmp.ne.s32.totalorder %s63, %s66
    %p75 = scmp.eq.s32.totalorder %s16, 3
    %p76 = por %p74, %p75
    %p77 = scmp.ne.s32.totalorder %s66, %s67
    %p78 = scmp.eq.s32.totalorder %s16, 0
    %p79 = por %p77, %p78
    %p80 = scmp.ne.s32.totalorder %s66, %s67
    %p81 = scmp.eq.s32.totalorder %s17, 3
    %p82 = por %p80, %p81
    %p84 = scmp.ne.s32.totalorder %s67, %s83
    %p85 = scmp.eq.s32.totalorder %s17, 0
    %p86 = por %p84, %p85
    %s88 = sadd.s32 %s87, 1
    %p91 = scmp.eq.s32.totalorder %s11, 3
    %p92 = scmp.ne.s32.totalorder %s87, %s89
    %p93 = scmp.eq.s32.totalorder %s11, 0
    %p94 = por %p92, %p93
    %p95 = scmp.ne.s32.totalorder %s87, %s89
    %p96 = scmp.eq.s32.totalorder %s16, 3
    %p97 = por %p95, %p96
    %p98 = scmp.ne.s32.totalorder %s89, %s90
    %p99 = scmp.eq.s32.totalorder %s16, 0
    %p100 = por %p98, %p99
    %p101 = scmp.ne.s32.totalorder %s89, %s90
    %p102 = scmp.eq.s32.totalorder %s17, 3
    %p103 = por %p101, %p102
    %p105 = scmp.ne.s32.totalorder %s90, %s104
    %p106 = scmp.eq.s32.totalorder %s17, 0
    %p107 = por %p105, %p106
    %s108 = ssub.s32 %s18, %s30
    %s109 = ssub.s32 %s19, %s26
    %s110 = sor.u32 %s108, %s109
    %p111 = scmp.eq.s32.totalorder %s110, 0
    %s113 = sadd.s32 %s112, 1
    %s114 = scalar_select %p111, %s112, %s113
    %p117 = pneg %p111
    %p118 = scmp.eq.s32.totalorder %s11, 3
    %p119 = por %p117, %p118
    %p120 = scmp.ne.s32.totalorder %s112, %s115
    %p121 = scmp.eq.s32.totalorder %s11, 0
    %p122 = por %p120, %p121
    %p123 = scmp.ne.s32.totalorder %s112, %s115
    %p124 = scmp.eq.s32.totalorder %s16, 3
    %p125 = por %p123, %p124
    %p126 = scmp.ne.s32.totalorder %s115, %s116
    %p127 = scmp.eq.s32.totalorder %s16, 0
    %p128 = por %p126, %p127
    %p129 = scmp.ne.s32.totalorder %s115, %s116
    %p130 = scmp.eq.s32.totalorder %s17, 3
    %p131 = por %p129, %p130
    %p133 = scmp.ne.s32.totalorder %s116, %s132
    %p134 = scmp.eq.s32.totalorder %s17, 0
    %p135 = por %p133, %p134
    %s136 = ssub.s32 %s18, %s30
    %s137 = ssub.s32 %s19, %s26
    %s138 = sor.u32 %s136, %s137
    %p139 = scmp.eq.s32.totalorder %s138, 0
    %s141 = sadd.s32 %s140, 1
    %s142 = scalar_select %p139, %s140, %s141
    %p145 = pneg %p139
    %p146 = scmp.eq.s32.totalorder %s11, 3
    %p147 = por %p145, %p146
    %p148 = scmp.ne.s32.totalorder %s140, %s143
    %p149 = scmp.eq.s32.totalorder %s11, 0
    %p150 = por %p148, %p149
    %p151 = scmp.ne.s32.totalorder %s140, %s143
    %p152 = scmp.eq.s32.totalorder %s16, 3
    %p153 = por %p151, %p152
    %p154 = scmp.ne.s32.totalorder %s143, %s144
    %p155 = scmp.eq.s32.totalorder %s16, 0
    %p156 = por %p154, %p155
    %p157 = scmp.ne.s32.totalorder %s143, %s144
    %p158 = scmp.eq.s32.totalorder %s17, 3
    %p159 = por %p157, %p158
    %p161 = scmp.ne.s32.totalorder %s144, %s160
    %p162 = scmp.eq.s32.totalorder %s17, 0
    %p163 = por %p161, %p162
    %p164 = scmp.le.s32.totalorder 1, %s11
    %p165 = scmp.lt.s32.totalorder %s11, 5
    %p166 = pnand %p164, %p165
    %p167 = pneg %p166
    // Predicated region
    $region9: #{encoder_forward.16} parent=5 // pred_check
      _
    $region10: #{encoder_forward.16} parent=5 // pred_check_branch
      %169 = sbr.rel (%p166) target = $region12
    $region11: #{encoder_forward.16} parent=5 // pred_region
      %s170 = ssub.s32 %s11, 1
      // Predicated region
      $region13: #{encoder_forward.16} parent=11 // pred_check
        %p171 = pneg %p100
      $region14: #{encoder_forward.16} parent=11 // pred_check_branch
        %173 = sbr.rel (%p171) target = $region16
      $region15: #{encoder_forward.16} parent=11 // pred_region
        _
      $region16: #{encoder_forward.16} parent=11 // pred_fallthru
        _
    $region12: #{encoder_forward.16} parent=5 // pred_fallthru
      _
    %p174 = scmp.lt.s32.totalorder %s11, 4
    // Predicated region
    $region17: #{encoder_forward.16} parent=5 // pred_check
      %p175 = pneg %p174
    $region18: #{encoder_forward.16} parent=5 // pred_check_branch
      %177 = sbr.rel (%p175) target = $region20
    $region19: #{encoder_forward.16} parent=5 // pred_region
      // Predicated region
      $region21: #{encoder_forward.16} parent=19 // pred_check
        %p178 = pneg %p45
      $region22: #{encoder_forward.16} parent=19 // pred_check_branch
        %180 = sbr.rel (%p178) target = $region24
      $region23: #{encoder_forward.16} parent=19 // pred_region
        %s181 = smul.u32 4, %s19
        %p182 = scmp.lt.s32.totalorder %s18, 1
        %s183 = scalar_select %p182, %s18, 1
        %p184 = scmp.lt.s32.totalorder %s181, 7
        %s185 = scalar_select %p184, %s181, 7
        %s186 = smul.addr %s185, 4
        %s187 = smul.addr %s183, 32
        %s188 = sadd.s32 %s186, %s187
        %s189 = smul.addr %s188, 4
        %s190 = scalar_lea.vmem %s0, %s189
        %s191 = smul.u32 4, %s19
      $region24: #{encoder_forward.16} parent=19 // pred_fallthru
        _
      // Predicated region
      $region25: #{encoder_forward.16} parent=19 // pred_check
        %p192 = pneg %p73
      $region26: #{encoder_forward.16} parent=19 // pred_check_branch
        %194 = sbr.rel (%p192) target = $region28
      $region27: #{encoder_forward.16} parent=19 // pred_region
        %p195 = scmp.lt.s32.totalorder %s18, 1
        %s196 = scalar_select %p195, %s18, 1
        %p197 = scmp.lt.s32.totalorder %s19, 1
        %s198 = scalar_select %p197, %s19, 1
        %s199 = smul.addr %s198, 4
        %s200 = smul.addr %s196, 8
        %s201 = sadd.s32 %s199, %s200
        %s202 = smul.addr %s201, 4
        %s203 = scalar_lea.vmem %s1, %s202
      $region28: #{encoder_forward.16} parent=19 // pred_fallthru
        _
    $region20: #{encoder_forward.16} parent=5 // pred_fallthru
      _
    %p204 = scmp.le.s32.totalorder 1, %s11
    %p205 = scmp.lt.s32.totalorder %s11, 5
    %p206 = pnand %p204, %p205
    %p207 = pneg %p206
    // Predicated region
    $region29: #{encoder_forward.16} parent=5 // pred_check
      _
    $region30: #{encoder_forward.16} parent=5 // pred_check_branch
      %209 = sbr.rel (%p206) target = $region32
    $region31: #{encoder_forward.16} parent=5 // pred_region
      %s210 = ssub.s32 %s11, 1
      %s211 = smul.u32 4, %s21
      %p212 = scmp.lt.s32.totalorder %s20, 1
      %s213 = scalar_select %p212, %s20, 1
      %p214 = scmp.lt.s32.totalorder %s211, 7
      %s215 = scalar_select %p214, %s211, 7
      %s216 = smul.addr %s215, 4
      %s217 = smul.addr %s213, 32
      %s218 = sadd.s32 %s216, %s217
      %s219 = smul.addr %s218, 4
      %s220 = scalar_lea.vmem %s0, %s219
      %p221 = pneg %p51
      %p222 = pneg %p48
      %p223 = scmp.lt.s32.totalorder %s20, 1
      %s224 = scalar_select %p223, %s20, 1
      %p225 = scmp.lt.s32.totalorder %s21, 1
      %s226 = scalar_select %p225, %s21, 1
      %s227 = smul.addr %s226, 4
      %s228 = smul.addr %s224, 8
      %s229 = sadd.s32 %s227, %s228
      %s230 = smul.addr %s229, 4
      %s231 = scalar_lea.vmem %s1, %s230
      %p232 = pneg %p79
      %p233 = pneg %p76
      %p234 = pneg %p100
      %p235 = pneg %p97
      %p236 = pneg %p128
      %p237 = pneg %p125
      %s238 = smul.u32 4, %s21
      %p239 = scmp.lt.s32.totalorder %s20, 1
      %s240 = scalar_select %p239, %s20, 1
      %p241 = scmp.lt.s32.totalorder %s238, 7
      %s242 = scalar_select %p241, %s238, 7
      %s243 = smul.addr %s240, 8
      %s244 = sadd.s32 %s242, %s243
      %s245 = smul.addr %s244, 4
      %s246 = scalar_lea.vmem %s3, %s245
      %p247 = pneg %p156
      %p248 = pneg %p153
      %p249 = scmp.lt.s32.totalorder %s20, 1
      %s250 = scalar_select %p249, %s20, 1
      %p251 = scmp.lt.s32.totalorder %s21, 1
      %s252 = scalar_select %p251, %s21, 1
      %s253 = smul.addr %s250, 2
      %s254 = sadd.s32 %s252, %s253
      %s255 = smul.addr %s254, 2
      %s256 = scalar_lea.vmem %s4, %s255
      %s257 = smul.u32 4, %s21
      %p258 = scmp.lt.s32.totalorder %s20, 1
      %s259 = scalar_select %p258, %s20, 1
      %p260 = scmp.lt.s32.totalorder %s257, 7
      %s261 = scalar_select %p260, %s257, 7
      %s262 = smul.addr %s261, 4
      %s263 = smul.addr %s259, 32
      %s264 = sadd.s32 %s262, %s263
      %s265 = smul.addr %s264, 4
      %s266 = scalar_lea.vmem %s0, %s265
      %s267 = smul.u32 4, %s21
      %p268 = scmp.lt.s32.totalorder %s20, 1
      %s269 = scalar_select %p268, %s20, 1
      %p270 = scmp.lt.s32.totalorder %s21, 1
      %s271 = scalar_select %p270, %s21, 1
      %s272 = smul.addr %s271, 4
      %s273 = smul.addr %s269, 8
      %s274 = sadd.s32 %s272, %s273
      %s275 = smul.addr %s274, 4
      %s276 = scalar_lea.vmem %s1, %s275
      %s277 = smul.u32 4, %s21
      %p278 = scmp.lt.s32.totalorder %s20, 1
      %s279 = scalar_select %p278, %s20, 1
      %p280 = scmp.lt.s32.totalorder %s277, 7
      %s281 = scalar_select %p280, %s277, 7
      %s282 = smul.addr %s279, 8
      %s283 = sadd.s32 %s281, %s282
      %s284 = smul.addr %s283, 4
      %s285 = scalar_lea.vmem %s3, %s284
      %s286 = smul.u32 4, %s21
      %p287 = scmp.lt.s32.totalorder %s20, 1
      %s288 = scalar_select %p287, %s20, 1
      %p289 = scmp.lt.s32.totalorder %s21, 1
      %s290 = scalar_select %p289, %s21, 1
      %s291 = smul.addr %s288, 2
      %s292 = sadd.s32 %s290, %s291
      %s293 = smul.addr %s292, 2
      %s294 = scalar_lea.vmem %s4, %s293
      %v296 = vld [vmem:[%s276] sm:$0xf]
      %vm297 = vcmask 257024
      %298 = vst.msk [vmem:[#allocation2] sm:$0xf] %vm297, %v296
      %s299 = scalar_lea.vmem %s266, 8
      %v300 = vld [vmem:[%s299] sm:$0xf]
      %v301 = vld [vmem:[%s299 + $0x10] sm:$0xf]
      %v302 = vld [vmem:[%s299 + $0x20] sm:$0xf]
      %s303 = scalar_lea.vmem [#allocation2], 8
      %304 = vst.msk [vmem:[%s303] sm:$0xf] %vm297, %v300
      %305 = vst.msk [vmem:[%s303 + $0x8] sm:$0xf] %vm297, %v301
      %306 = vst.msk [vmem:[%s303 + $0x10] sm:$0xf] %vm297, %v302
      %v307 = vld [vmem:[%s276] sm:$0xf]
      %v308 = vld [vmem:[%s276 + $0x4] sm:$0x1]
      %vm309 = vsmask.f32 3328
      %vm310 = vsmask.f32 7440
      %vm311 = vmor %vm309, %vm310
      %v313 = vshrl.u32 %v307, 16
      %v315 = vrot.slane %v313, 4
      %v316 = vshll.u32 %v307, 16
      %v318 = vrot.slane %v316, 5
      %v319 = vor.u32 %v315, %v318
      %v320 = vrot.slane %v319, 4
      %v322 = vshll.u32 %v308, 16
      %v324 = vrot.slane %v322, 5
      %v325 = vsel %vm311, %v320, %v324
      %326 = vrot.lane.b32.xlu0 %v325, 32
      %v327 = vpop.permute.xlu0 %326
      %vm329 = vcmask 519424
      %330 = vst.msk [vmem:[#allocation2] sm:$0xf] %vm329, %v327
      %v331 = vld [vmem:[%s299] sm:$0xf]
      %v332 = vld [vmem:[%s299 + $0x4] sm:$0x1]
      %v333 = vld [vmem:[%s299 + $0x10] sm:$0xf]
      %v334 = vld [vmem:[%s299 + $0x14] sm:$0x1]
      %v335 = vld [vmem:[%s299 + $0x20] sm:$0xf]
      %v336 = vld [vmem:[%s299 + $0x24] sm:$0x1]
      %v338 = vshrl.u32 %v331, 16
      %v340 = vrot.slane %v338, 4
      %v341 = vshll.u32 %v331, 16
      %v343 = vrot.slane %v341, 5
      %v344 = vor.u32 %v340, %v343
      %v345 = vrot.slane %v344, 4
      %v347 = vshll.u32 %v332, 16
      %v349 = vrot.slane %v347, 5
      %v350 = vsel %vm311, %v345, %v349
      %v352 = vshrl.u32 %v333, 16
      %v354 = vrot.slane %v352, 4
      %v355 = vshll.u32 %v333, 16
      %v357 = vrot.slane %v355, 5
      %v358 = vor.u32 %v354, %v357
      %v359 = vrot.slane %v358, 4
      %v361 = vshll.u32 %v334, 16
      %v363 = vrot.slane %v361, 5
      %v364 = vsel %vm311, %v359, %v363
      %v366 = vshrl.u32 %v335, 16
      %v368 = vrot.slane %v366, 4
      %v369 = vshll.u32 %v335, 16
      %v371 = vrot.slane %v369, 5
      %v372 = vor.u32 %v368, %v371
      %v373 = vrot.slane %v372, 4
      %v375 = vshll.u32 %v336, 16
      %v377 = vrot.slane %v375, 5
      %v378 = vsel %vm311, %v373, %v377
      %379 = vrot.lane.b32.xlu0 %v350, 32
      %v380 = vpop.permute.xlu0 %379
      %381 = vrot.lane.b32.xlu0 %v364, 32
      %v382 = vpop.permute.xlu0 %381
      %383 = vrot.lane.b32.xlu0 %v378, 32
      %v384 = vpop.permute.xlu0 %383
      %388 = vst.msk [vmem:[%s303] sm:$0xf] %vm329, %v380
      %389 = vst.msk [vmem:[%s303 + $0x8] sm:$0xf] %vm329, %v382
      %390 = vst.msk [vmem:[%s303 + $0x10] sm:$0xf] %vm329, %v384
      %v391 = vld [vmem:[%s266] sm:$0xf]
      %v392 = vld [vmem:[%s266 + $0x10] sm:$0xf]
      %v393 = vld [vmem:[%s266 + $0x20] sm:$0xf]
      %v394 = vld [vmem:[%s266 + $0x30] sm:$0xf]
      %399 = vrot.lane.b32.xlu0 %v391, 64
      %v400 = vpop.permute.xlu0 %399
      %401 = vrot.lane.b32.xlu0 %v392, 64
      %v402 = vpop.permute.xlu0 %401
      %403 = vrot.lane.b32.xlu0 %v393, 64
      %v404 = vpop.permute.xlu0 %403
      %405 = vrot.lane.b32.xlu0 %v394, 64
      %v406 = vpop.permute.xlu0 %405
      %vm411 = vcmask 781824
      %412 = vst.msk [vmem:[#allocation2] sm:$0xf] %vm411, %v400
      %413 = vst.msk [vmem:[#allocation2 + $0x8] sm:$0xf] %vm411, %v402
      %414 = vst.msk [vmem:[#allocation2 + $0x10] sm:$0xf] %vm411, %v404
      %415 = vst.msk [vmem:[#allocation2 + $0x18] sm:$0xf] %vm411, %v406
      %v416 = vld [vmem:[%s266] sm:$0xf]
      %v417 = vld [vmem:[%s266 + $0x4] sm:$0x1]
      %v418 = vld [vmem:[%s266 + $0x10] sm:$0xf]
      %v419 = vld [vmem:[%s266 + $0x14] sm:$0x1]
      %v420 = vld [vmem:[%s266 + $0x20] sm:$0xf]
      %v421 = vld [vmem:[%s266 + $0x24] sm:$0x1]
      %v422 = vld [vmem:[%s266 + $0x30] sm:$0xf]
      %v423 = vld [vmem:[%s266 + $0x34] sm:$0x1]
      %v425 = vshrl.u32 %v416, 16
      %v427 = vrot.slane %v425, 4
      %v428 = vshll.u32 %v416, 16
      %v430 = vrot.slane %v428, 5
      %v431 = vor.u32 %v427, %v430
      %v432 = vrot.slane %v431, 4
      %v434 = vshll.u32 %v417, 16
      %v436 = vrot.slane %v434, 5
      %v437 = vsel %vm311, %v432, %v436
      %v439 = vshrl.u32 %v418, 16
      %v441 = vrot.slane %v439, 4
      %v442 = vshll.u32 %v418, 16
      %v444 = vrot.slane %v442, 5
      %v445 = vor.u32 %v441, %v444
      %v446 = vrot.slane %v445, 4
      %v448 = vshll.u32 %v419, 16
      %v450 = vrot.slane %v448, 5
      %v451 = vsel %vm311, %v446, %v450
      %v453 = vshrl.u32 %v420, 16
      %v455 = vrot.slane %v453, 4
      %v456 = vshll.u32 %v420, 16
      %v458 = vrot.slane %v456, 5
      %v459 = vor.u32 %v455, %v458
      %v460 = vrot.slane %v459, 4
      %v462 = vshll.u32 %v421, 16
      %v464 = vrot.slane %v462, 5
      %v465 = vsel %vm311, %v460, %v464
      %v467 = vshrl.u32 %v422, 16
      %v469 = vrot.slane %v467, 4
      %v470 = vshll.u32 %v422, 16
      %v472 = vrot.slane %v470, 5
      %v473 = vor.u32 %v469, %v472
      %v474 = vrot.slane %v473, 4
      %v476 = vshll.u32 %v423, 16
      %v478 = vrot.slane %v476, 5
      %v479 = vsel %vm311, %v474, %v478
      %480 = vrot.lane.b32.xlu0 %v437, 96
      %v481 = vpop.permute.xlu0 %480
      %482 = vrot.lane.b32.xlu0 %v451, 96
      %v483 = vpop.permute.xlu0 %482
      %484 = vrot.lane.b32.xlu0 %v465, 96
      %v485 = vpop.permute.xlu0 %484
      %486 = vrot.lane.b32.xlu0 %v479, 96
      %v487 = vpop.permute.xlu0 %486
      %vm492 = vcmask 1044224
      %493 = vst.msk [vmem:[#allocation2] sm:$0xf] %vm492, %v481
      %494 = vst.msk [vmem:[#allocation2 + $0x8] sm:$0xf] %vm492, %v483
      %495 = vst.msk [vmem:[#allocation2 + $0x10] sm:$0xf] %vm492, %v485
      %496 = vst.msk [vmem:[#allocation2 + $0x18] sm:$0xf] %vm492, %v487
      %v497 = vld [vmem:[%s299] sm:$0xf]
      %v498 = vld [vmem:[%s299 + $0x10] sm:$0xf]
      %v499 = vld [vmem:[%s299 + $0x20] sm:$0xf]
      %v500 = vld [vmem:[%s299 + $0x30] sm:$0xf]
      %501 = vst.msk [vmem:[#allocation2 + $0x4] sm:$0xf] %vm297, %v497
      %502 = vst.msk [vmem:[#allocation2 + $0xc] sm:$0xf] %vm297, %v498
      %503 = vst.msk [vmem:[#allocation2 + $0x14] sm:$0xf] %vm297, %v499
      %504 = vst.msk [vmem:[#allocation2 + $0x1c] sm:$0xf] %vm297, %v500
      %v505 = vld [vmem:[%s299] sm:$0xf]
      %v506 = vld [vmem:[%s299 + $0x4] sm:$0x1]
      %v507 = vld [vmem:[%s299 + $0x10] sm:$0xf]
      %v508 = vld [vmem:[%s299 + $0x14] sm:$0x1]
      %v509 = vld [vmem:[%s299 + $0x20] sm:$0xf]
      %v510 = vld [vmem:[%s299 + $0x24] sm:$0x1]
      %v511 = vld [vmem:[%s299 + $0x30] sm:$0xf]
      %v512 = vld [vmem:[%s299 + $0x34] sm:$0x1]
      %v514 = vshrl.u32 %v505, 16
      %v516 = vrot.slane %v514, 4
      %v517 = vshll.u32 %v505, 16
      %v519 = vrot.slane %v517, 5
      %v520 = vor.u32 %v516, %v519
      %v521 = vrot.slane %v520, 4
      %v523 = vshll.u32 %v506, 16
      %v525 = vrot.slane %v523, 5
      %v526 = vsel %vm311, %v521, %v525
      %v528 = vshrl.u32 %v507, 16
      %v530 = vrot.slane %v528, 4
      %v531 = vshll.u32 %v507, 16
      %v533 = vrot.slane %v531, 5
      %v534 = vor.u32 %v530, %v533
      %v535 = vrot.slane %v534, 4
      %v537 = vshll.u32 %v508, 16
      %v539 = vrot.slane %v537, 5
      %v540 = vsel %vm311, %v535, %v539
      %v542 = vshrl.u32 %v509, 16
      %v544 = vrot.slane %v542, 4
      %v545 = vshll.u32 %v509, 16
      %v547 = vrot.slane %v545, 5
      %v548 = vor.u32 %v544, %v547
      %v549 = vrot.slane %v548, 4
      %v551 = vshll.u32 %v510, 16
      %v553 = vrot.slane %v551, 5
      %v554 = vsel %vm311, %v549, %v553
      %v556 = vshrl.u32 %v511, 16
      %v558 = vrot.slane %v556, 4
      %v559 = vshll.u32 %v511, 16
      %v561 = vrot.slane %v559, 5
      %v562 = vor.u32 %v558, %v561
      %v563 = vrot.slane %v562, 4
      %v565 = vshll.u32 %v512, 16
      %v567 = vrot.slane %v565, 5
      %v568 = vsel %vm311, %v563, %v567
      %569 = vrot.lane.b32.xlu0 %v526, 32
      %v570 = vpop.permute.xlu0 %569
      %571 = vrot.lane.b32.xlu0 %v540, 32
      %v572 = vpop.permute.xlu0 %571
      %573 = vrot.lane.b32.xlu0 %v554, 32
      %v574 = vpop.permute.xlu0 %573
      %575 = vrot.lane.b32.xlu0 %v568, 32
      %v576 = vpop.permute.xlu0 %575
      %581 = vst.msk [vmem:[#allocation2 + $0x4] sm:$0xf] %vm329, %v570
      %582 = vst.msk [vmem:[#allocation2 + $0xc] sm:$0xf] %vm329, %v572
      %583 = vst.msk [vmem:[#allocation2 + $0x14] sm:$0xf] %vm329, %v574
      %584 = vst.msk [vmem:[#allocation2 + $0x1c] sm:$0xf] %vm329, %v576
      %v585 = vld [vmem:[#allocation2] sm:$0xff]
      %v586 = vld [vmem:[#allocation2 + $0x8] sm:$0xff]
      %v587 = vld [vmem:[#allocation2 + $0x10] sm:$0xff]
      %v588 = vld [vmem:[#allocation2 + $0x18] sm:$0xff]
      %v589 = vld [vmem:[%s2] sm:$0xf]
      %v590 = vld [vmem:[%s2 + $0x4] sm:$0xf]
      %v591 = vld [vmem:[%s2 + $0x8] sm:$0xf]
      %v592 = vld [vmem:[%s2 + $0xc] sm:$0xf]
      %v593 = vld [vmem:[%s2 + $0x10] sm:$0xf]
      %v594 = vld [vmem:[%s2 + $0x14] sm:$0xf]
      %v595 = vld [vmem:[%s2 + $0x18] sm:$0xf]
      %v596 = vld [vmem:[%s2 + $0x1c] sm:$0xf]
      %v597 = vld [vmem:[%s2 + $0x20] sm:$0xf]
      %v598 = vld [vmem:[%s2 + $0x24] sm:$0xf]
      %v599 = vld [vmem:[%s2 + $0x28] sm:$0xf]
      %v600 = vld [vmem:[%s2 + $0x2c] sm:$0xf]
      %v601 = vld [vmem:[%s2 + $0x30] sm:$0xf]
      %v602 = vld [vmem:[%s2 + $0x34] sm:$0xf]
      %v603 = vld [vmem:[%s2 + $0x38] sm:$0xf]
      %v604 = vld [vmem:[%s2 + $0x3c] sm:$0xf]
      %v605 = vld [vmem:[%s2 + $0x40] sm:$0xf]
      %v606 = vld [vmem:[%s2 + $0x44] sm:$0xf]
      %v607 = vld [vmem:[%s2 + $0x48] sm:$0xf]
      %v608 = vld [vmem:[%s2 + $0x4c] sm:$0xf]
      %v609 = vld [vmem:[%s2 + $0x50] sm:$0xf]
      %v610 = vld [vmem:[%s2 + $0x54] sm:$0xf]
      %v611 = vld [vmem:[%s2 + $0x58] sm:$0xf]
      %v612 = vld [vmem:[%s2 + $0x5c] sm:$0xf]
      %v617 = vunpack.c.l.b16 %v585
      %v618 = vunpack.c.h.b16 %v585
      %v619 = vunpack.c.l.b16 %v586
      %v620 = vunpack.c.h.b16 %v586
      %v621 = vunpack.c.l.b16 %v587
      %v622 = vunpack.c.h.b16 %v587
      %v623 = vunpack.c.l.b16 %v588
      %v624 = vunpack.c.h.b16 %v588
      %v625 = vpack.c.b16 %v619, %v617
      %v626 = vpack.c.b16 %v620, %v618
      %v627 = vpack.c.b16 %v623, %v621
      %v628 = vpack.c.b16 %v624, %v622
      %v655 = vunpack.c.l.b16 %v589
      %v656 = vunpack.c.l.b16 %v590
      %v657 = vunpack.c.l.b16 %v591
      %v658 = vunpack.c.l.b16 %v592
      %v659 = vunpack.c.l.b16 %v593
      %v660 = vunpack.c.l.b16 %v594
      %v661 = vunpack.c.l.b16 %v595
      %v662 = vunpack.c.l.b16 %v596
      %v663 = vunpack.c.l.b16 %v597
      %v664 = vunpack.c.l.b16 %v598
      %v665 = vunpack.c.l.b16 %v599
      %v666 = vunpack.c.l.b16 %v600
      %v667 = vunpack.c.l.b16 %v601
      %v668 = vunpack.c.l.b16 %v602
      %v669 = vunpack.c.l.b16 %v603
      %v670 = vunpack.c.l.b16 %v604
      %v671 = vunpack.c.l.b16 %v605
      %v672 = vunpack.c.l.b16 %v606
      %v673 = vunpack.c.l.b16 %v607
      %v674 = vunpack.c.l.b16 %v608
      %v675 = vunpack.c.l.b16 %v609
      %v676 = vunpack.c.l.b16 %v610
      %v677 = vunpack.c.l.b16 %v611
      %v678 = vunpack.c.l.b16 %v612
      %v679 = vpack.c.b16 %v656, %v655
      %v680 = vpack.c.b16 %v658, %v657
      %v681 = vpack.c.b16 %v660, %v659
      %v682 = vpack.c.b16 %v662, %v661
      %v683 = vpack.c.b16 %v664, %v663
      %v684 = vpack.c.b16 %v666, %v665
      %v685 = vpack.c.b16 %v668, %v667
      %v686 = vpack.c.b16 %v670, %v669
      %v687 = vpack.c.b16 %v672, %v671
      %v688 = vpack.c.b16 %v674, %v673
      %v689 = vpack.c.b16 %v676, %v675
      %v690 = vpack.c.b16 %v678, %v677
      %vm703 = vcmask 523264
      %v705 = vsel %vm703, %v626, 0
      %v708 = vsel %vm703, %v628, 0
      %710 = vmatpush.bf16.msra.mxu0 %v686
      %711 = vmatpush.bf16.msra.mxu0 %v685
      %712 = vmatpush.bf16.msra.mxu0 %v684
      %713 = vmatpush.bf16.msra.mxu0 %v683
      %714 = vmatpush.bf16.msra.mxu0 %v682
      %715 = vmatpush.bf16.msra.mxu0 %v681
      %716 = vmatpush.bf16.msra.mxu0 %v680
      %717 = vmatpush.bf16.msra.mxu0 %v679
      %718 = vmatmul.bf16.gmra.mxu0 %v625
      %v719 = vpop.f32.mrf.mxu0
      %v720 = vadd.f32 0.0, %v719
      %v721 = vpop.f32.mrf.mxu0
      %v722 = vadd.f32 0.0, %v721
      %723 = vmatmul.bf16.gmra.mxu0 %v627
      %v724 = vpop.f32.mrf.mxu0
      %v725 = vadd.f32 0.0, %v724
      %v726 = vpop.f32.mrf.mxu0
      %v727 = vadd.f32 0.0, %v726
      %728 = vdwg.mxu0
      %729 = vmatpush.bf16.msra.mxu0 0
      %730 = vmatpush.bf16.msra.mxu0 0
      %731 = vmatpush.bf16.msra.mxu0 0
      %732 = vmatpush.bf16.msra.mxu0 0
      %733 = vmatpush.bf16.msra.mxu0 %v690
      %734 = vmatpush.bf16.msra.mxu0 %v689
      %735 = vmatpush.bf16.msra.mxu0 %v688
      %736 = vmatpush.bf16.msra.mxu0 %v687
      %737 = vmatmul.bf16.gmra.mxu0 %v705
      %v738 = vpop.f32.mrf.mxu0
      %v739 = vadd.f32 %v720, %v738
      %v740 = vpop.f32.mrf.mxu0
      %v741 = vadd.f32 %v722, %v740
      %742 = vmatmul.bf16.gmra.mxu0 %v708
      %v743 = vpop.f32.mrf.mxu0
      %v744 = vadd.f32 %v725, %v743
      %v745 = vpop.f32.mrf.mxu0
      %v746 = vadd.f32 %v727, %v745
      %747 = vdwg.mxu0
      %v748 = vpack.c.bf16 %v739, %v739
      %v749 = vpack.c.bf16 %v741, %v741
      %v750 = vpack.c.bf16 %v744, %v744
      %v751 = vpack.c.bf16 %v746, %v746
      %752 = vst.msk [vmem:[%s285] sm:$0xf] %vm297, %v748
      %753 = vst.msk [vmem:[%s285 + $0x4] sm:$0xf] %vm297, %v749
      %754 = vst.msk [vmem:[%s285 + $0x8] sm:$0xf] %vm297, %v750
      %755 = vst.msk [vmem:[%s285 + $0xc] sm:$0xf] %vm297, %v751
      %vm756 = vcmask 261120
      %v757 = vsel %vm756, %v739, 0.0
      %v758 = vsel %vm756, %v741, 0.0
      %v759 = vadd.f32 %v757, %v758
      %v760 = vsel %vm756, %v744, 0.0
      %v761 = vadd.f32 %v759, %v760
      %v762 = vsel %vm756, %v746, 0.0
      %v763 = vadd.f32 %v761, %v762
      %v764 = vrot.slane %v763, 4
      %v765 = vadd.f32 %v763, %v764
      %v766 = vrot.slane %v765, 2
      %v767 = vadd.f32 %v765, %v766
      %v768 = vrot.slane %v767, 1
      %v769 = vadd.f32 %v767, %v768
      %vm770 = vcmask 253952
      %771 = vst.msk [vmem:[%s294] sm:$0x1] %vm770, %v769
      %v772 = vmul.f32 %v739, %v739
      %v773 = vmul.f32 %v741, %v741
      %v774 = vmul.f32 %v744, %v744
      %v775 = vmul.f32 %v746, %v746
      %v776 = vsel %vm756, %v772, 0.0
      %v777 = vsel %vm756, %v773, 0.0
      %v778 = vadd.f32 %v776, %v777
      %v779 = vsel %vm756, %v774, 0.0
      %v780 = vadd.f32 %v778, %v779
      %v781 = vsel %vm756, %v775, 0.0
      %v782 = vadd.f32 %v780, %v781
      %v783 = vrot.slane %v782, 4
      %v784 = vadd.f32 %v782, %v783
      %v785 = vrot.slane %v784, 2
      %v786 = vadd.f32 %v784, %v785
      %v787 = vrot.slane %v786, 1
      %v788 = vadd.f32 %v786, %v787
      %789 = vst.msk [vmem:[%s294 + $0x1] sm:$0x1] %vm770, %v788
      %s790 = smul.u32 4, %s21
      %p791 = scmp.lt.s32.totalorder %s20, 1
      %s792 = scalar_select %p791, %s20, 1
      %p793 = scmp.lt.s32.totalorder %s790, 7
      %s794 = scalar_select %p793, %s790, 7
      %s795 = smul.addr %s792, 8
      %s796 = sadd.s32 %s794, %s795
      %s797 = smul.addr %s796, 4
      %s798 = scalar_lea.vmem %s3, %s797
      %p799 = scmp.lt.s32.totalorder %s20, 1
      %s800 = scalar_select %p799, %s20, 1
      %p801 = scmp.lt.s32.totalorder %s21, 1
      %s802 = scalar_select %p801, %s21, 1
      %s803 = smul.addr %s800, 2
      %s804 = sadd.s32 %s802, %s803
      %s805 = smul.addr %s804, 2
      %s806 = scalar_lea.vmem %s4, %s805
      // Predicated region
      $region33: #{encoder_forward.16} parent=31 // pred_check
        %p807 = pneg %p125
      $region34: #{encoder_forward.16} parent=31 // pred_check_branch
        %809 = sbr.rel (%p807) target = $region36
      $region35: #{encoder_forward.16} parent=31 // pred_region
        %s810 = smul.u32 4, %s21
      $region36: #{encoder_forward.16} parent=31 // pred_fallthru
        _
      // Predicated region
      $region37: #{encoder_forward.16} parent=31 // pred_check
        %p811 = pneg %p153
      $region38: #{encoder_forward.16} parent=31 // pred_check_branch
        %813 = sbr.rel (%p811) target = $region40
      $region39: #{encoder_forward.16} parent=31 // pred_region
        _
      $region40: #{encoder_forward.16} parent=31 // pred_fallthru
        _
    $region32: #{encoder_forward.16} parent=5 // pred_fallthru
      _
    %p814 = scmp.le.s32.totalorder 2, %s11
    // Predicated region
    $region41: #{encoder_forward.16} parent=5 // pred_check
      %p815 = pneg %p814
    $region42: #{encoder_forward.16} parent=5 // pred_check_branch
      %817 = sbr.rel (%p815) target = $region44
    $region43: #{encoder_forward.16} parent=5 // pred_region
      %s818 = ssub.s32 %s11, 2
      // Predicated region
      $region45: #{encoder_forward.16} parent=43 // pred_check
        %p819 = pneg %p131
      $region46: #{encoder_forward.16} parent=43 // pred_check_branch
        %821 = sbr.rel (%p819) target = $region48
      $region47: #{encoder_forward.16} parent=43 // pred_region
        %s822 = smul.u32 4, %s23
        %p823 = scmp.lt.s32.totalorder %s22, 1
        %s824 = scalar_select %p823, %s22, 1
        %p825 = scmp.lt.s32.totalorder %s822, 7
        %s826 = scalar_select %p825, %s822, 7
        %s827 = smul.addr %s824, 8
        %s828 = sadd.s32 %s826, %s827
        %s829 = smul.addr %s828, 4
        %s830 = scalar_lea.vmem %s3, %s829
      $region48: #{encoder_forward.16} parent=43 // pred_fallthru
        _
      // Predicated region
      $region49: #{encoder_forward.16} parent=43 // pred_check
        %p831 = pneg %p159
      $region50: #{encoder_forward.16} parent=43 // pred_check_branch
        %833 = sbr.rel (%p831) target = $region52
      $region51: #{encoder_forward.16} parent=43 // pred_region
        %p834 = scmp.lt.s32.totalorder %s22, 1
        %s835 = scalar_select %p834, %s22, 1
        %p836 = scmp.lt.s32.totalorder %s23, 1
        %s837 = scalar_select %p836, %s23, 1
        %s838 = smul.addr %s835, 2
        %s839 = sadd.s32 %s837, %s838
        %s840 = smul.addr %s839, 2
        %s841 = scalar_lea.vmem %s4, %s840
      $region52: #{encoder_forward.16} parent=43 // pred_fallthru
        _
    $region44: #{encoder_forward.16} parent=5 // pred_fallthru
      _
  $region6: #{encoder_forward.16} parent=0 // loop_footer
    %s15 = sadd.s32 1, %s11
  $region7: #{encoder_forward.16} parent=0 // loop_footer_branch
    %10 = sbr.rel target = $region3
  $region8: #{encoder_forward.16} parent=0 // loop_exit
    _

// kernel: encoder_forward.17
$region0: #{encoder_forward.17}
  #allocation0 [shape = 'u32[]', space=smem, size = 0x4, offset = 0x4, fixed_abs, tag = 'smem constant byte address 0x4 - core index']
  #allocation1 [shape = 'u32[72,128]{1,0:T(1,128)}', space=vmem, size = 0x9000, scoped, tag = 'internal scratch']
  %s0 = inlined_call_operand.vmem [shape: bf16[2,8,256], index: 0, kind: input, shape index: {}]
  %s1 = inlined_call_operand.vmem [shape: f32[2,1,256], index: 1, kind: input, shape index: {}]
  %s2 = inlined_call_operand.vmem [shape: f32[2,1,256], index: 2, kind: input, shape index: {}]
  %s3 = inlined_call_operand.vmem [shape: bf16[2,8,320], index: 3, kind: output, shape index: {}]
  %s4 = sld [smem:[#allocation0]]
  $region45: #{encoder_forward.17} parent=0
    _
  %s6 = ssub.s32 1, %s4
  %s7 = scalar_select 0, %s6, %s4
  loop: start=0, step=1, limit=4
  $region2: #{encoder_forward.17} parent=0 // loop_pre_header
    _
  $region3: #{encoder_forward.17} parent=0 // loop_header
    %s9 = sphi 0, %s13
    %p10 = scmp.ge.s32.totalorder %s9, 4
    %s16 = sphi 0, %s28
    %s17 = sphi 0, %s24
    %s18 = sphi 0, %s16
    %s19 = sphi 0, %s17
    %s20 = sphi 0, %s18
    %s21 = sphi 0, %s19
    %s33 = sphi 0, %s35
    %s36 = sphi 0, %s33
    %s37 = sphi 0, %s36
    %s53 = sphi 0, %s37
    %s59 = sphi 0, %s61
    %s62 = sphi 0, %s59
    %s63 = sphi 0, %s62
    %s79 = sphi 0, %s63
    %s85 = sphi 0, %s87
    %s88 = sphi 0, %s85
    %s89 = sphi 0, %s88
    %s105 = sphi 0, %s89
    %s113 = sphi 0, %s115
    %s116 = sphi 0, %s113
    %s117 = sphi 0, %s116
    %s133 = sphi 0, %s117
  $region4: #{encoder_forward.17} parent=0 // loop_header_branch
    %12 = sbr.rel (%p10) target = $region8
  $region5: #{encoder_forward.17} parent=0 // loop_body
    %s14 = ssub.s32 %s9, 1
    %s15 = ssub.s32 %s9, 2
    %s22 = sadd.s32 1, %s17
    %p23 = scmp.ge.s32.totalorder %s22, 1
    %s24 = scalar_select %p23, 0, %s22
    %s25 = sadd.s32 1, %s16
    %s26 = scalar_select %p23, %s25, %s16
    %p27 = scmp.ge.s32.totalorder %s26, 2
    %s28 = scalar_select %p27, 0, %s26
    %s29 = ssub.s32 %s16, %s28
    %s30 = ssub.s32 %s17, %s24
    %s31 = sor.u32 %s29, %s30
    %p32 = scmp.eq.s32.totalorder %s31, 0
    %s34 = sadd.s32 %s33, 1
    %s35 = scalar_select %p32, %s33, %s34
    %p38 = pneg %p32
    %p39 = scmp.eq.s32.totalorder %s9, 1
    %p40 = por %p38, %p39
    %p41 = scmp.ne.s32.totalorder %s33, %s36
    %p42 = scmp.eq.s32.totalorder %s9, 0
    %p43 = por %p41, %p42
    %p44 = scmp.ne.s32.totalorder %s33, %s36
    %p45 = scmp.eq.s32.totalorder %s14, 1
    %p46 = por %p44, %p45
    %p47 = scmp.ne.s32.totalorder %s36, %s37
    %p48 = scmp.eq.s32.totalorder %s14, 0
    %p49 = por %p47, %p48
    %p50 = scmp.ne.s32.totalorder %s36, %s37
    %p51 = scmp.eq.s32.totalorder %s15, 1
    %p52 = por %p50, %p51
    %p54 = scmp.ne.s32.totalorder %s37, %s53
    %p55 = scmp.eq.s32.totalorder %s15, 0
    %p56 = por %p54, %p55
    %s57 = ssub.s32 %s16, %s28
    %p58 = scmp.eq.s32.totalorder %s57, 0
    %s60 = sadd.s32 %s59, 1
    %s61 = scalar_select %p58, %s59, %s60
    %p64 = pneg %p58
    %p65 = scmp.eq.s32.totalorder %s9, 1
    %p66 = por %p64, %p65
    %p67 = scmp.ne.s32.totalorder %s59, %s62
    %p68 = scmp.eq.s32.totalorder %s9, 0
    %p69 = por %p67, %p68
    %p70 = scmp.ne.s32.totalorder %s59, %s62
    %p71 = scmp.eq.s32.totalorder %s14, 1
    %p72 = por %p70, %p71
    %p73 = scmp.ne.s32.totalorder %s62, %s63
    %p74 = scmp.eq.s32.totalorder %s14, 0
    %p75 = por %p73, %p74
    %p76 = scmp.ne.s32.totalorder %s62, %s63
    %p77 = scmp.eq.s32.totalorder %s15, 1
    %p78 = por %p76, %p77
    %p80 = scmp.ne.s32.totalorder %s63, %s79
    %p81 = scmp.eq.s32.totalorder %s15, 0
    %p82 = por %p80, %p81
    %s83 = ssub.s32 %s16, %s28
    %p84 = scmp.eq.s32.totalorder %s83, 0
    %s86 = sadd.s32 %s85, 1
    %s87 = scalar_select %p84, %s85, %s86
    %p90 = pneg %p84
    %p91 = scmp.eq.s32.totalorder %s9, 1
    %p92 = por %p90, %p91
    %p93 = scmp.ne.s32.totalorder %s85, %s88
    %p94 = scmp.eq.s32.totalorder %s9, 0
    %p95 = por %p93, %p94
    %p96 = scmp.ne.s32.totalorder %s85, %s88
    %p97 = scmp.eq.s32.totalorder %s14, 1
    %p98 = por %p96, %p97
    %p99 = scmp.ne.s32.totalorder %s88, %s89
    %p100 = scmp.eq.s32.totalorder %s14, 0
    %p101 = por %p99, %p100
    %p102 = scmp.ne.s32.totalorder %s88, %s89
    %p103 = scmp.eq.s32.totalorder %s15, 1
    %p104 = por %p102, %p103
    %p106 = scmp.ne.s32.totalorder %s89, %s105
    %p107 = scmp.eq.s32.totalorder %s15, 0
    %p108 = por %p106, %p107
    %s109 = ssub.s32 %s16, %s28
    %s110 = ssub.s32 %s17, %s24
    %s111 = sor.u32 %s109, %s110
    %p112 = scmp.eq.s32.totalorder %s111, 0
    %s114 = sadd.s32 %s113, 1
    %s115 = scalar_select %p112, %s113, %s114
    %p118 = pneg %p112
    %p119 = scmp.eq.s32.totalorder %s9, 1
    %p120 = por %p118, %p119
    %p121 = scmp.ne.s32.totalorder %s113, %s116
    %p122 = scmp.eq.s32.totalorder %s9, 0
    %p123 = por %p121, %p122
    %p124 = scmp.ne.s32.totalorder %s113, %s116
    %p125 = scmp.eq.s32.totalorder %s14, 1
    %p126 = por %p124, %p125
    %p127 = scmp.ne.s32.totalorder %s116, %s117
    %p128 = scmp.eq.s32.totalorder %s14, 0
    %p129 = por %p127, %p128
    %p130 = scmp.ne.s32.totalorder %s116, %s117
    %p131 = scmp.eq.s32.totalorder %s15, 1
    %p132 = por %p130, %p131
    %p134 = scmp.ne.s32.totalorder %s117, %s133
    %p135 = scmp.eq.s32.totalorder %s15, 0
    %p136 = por %p134, %p135
    %p137 = scmp.le.s32.totalorder 1, %s9
    %p138 = scmp.lt.s32.totalorder %s9, 3
    %p139 = pnand %p137, %p138
    %p140 = pneg %p139
    // Predicated region
    $region9: #{encoder_forward.17} parent=5 // pred_check
      _
    $region10: #{encoder_forward.17} parent=5 // pred_check_branch
      %142 = sbr.rel (%p139) target = $region12
    $region11: #{encoder_forward.17} parent=5 // pred_region
      %s143 = ssub.s32 %s9, 1
    $region12: #{encoder_forward.17} parent=5 // pred_fallthru
      _
    %p144 = scmp.lt.s32.totalorder %s9, 2
    // Predicated region
    $region13: #{encoder_forward.17} parent=5 // pred_check
      %p145 = pneg %p144
    $region14: #{encoder_forward.17} parent=5 // pred_check_branch
      %147 = sbr.rel (%p145) target = $region16
    $region15: #{encoder_forward.17} parent=5 // pred_region
      // Predicated region
      $region17: #{encoder_forward.17} parent=15 // pred_check
        %p148 = pneg %p43
      $region18: #{encoder_forward.17} parent=15 // pred_check_branch
        %150 = sbr.rel (%p148) target = $region20
      $region19: #{encoder_forward.17} parent=15 // pred_region
        %p151 = scmp.lt.s32.totalorder %s16, 1
        %s152 = scalar_select %p151, %s16, 1
        %p153 = scmp.lt.s32.totalorder %s17, 0
        %s154 = scalar_select %p153, %s17, 0
        %s155 = smul.addr %s154, 2
        %s156 = smul.addr %s152, 2
        %s157 = sadd.s32 %s155, %s156
        %s158 = smul.addr %s157, 4
        %s159 = scalar_lea.vmem %s0, %s158
      $region20: #{encoder_forward.17} parent=15 // pred_fallthru
        _
      // Predicated region
      $region21: #{encoder_forward.17} parent=15 // pred_check
        %p160 = pneg %p69
      $region22: #{encoder_forward.17} parent=15 // pred_check_branch
        %162 = sbr.rel (%p160) target = $region24
      $region23: #{encoder_forward.17} parent=15 // pred_region
        %p163 = scmp.lt.s32.totalorder %s16, 1
        %s164 = scalar_select %p163, %s16, 1
        %s165 = smul.addr %s164, 2
        %s166 = scalar_lea.vmem %s1, %s165
      $region24: #{encoder_forward.17} parent=15 // pred_fallthru
        _
      // Predicated region
      $region25: #{encoder_forward.17} parent=15 // pred_check
        %p167 = pneg %p95
      $region26: #{encoder_forward.17} parent=15 // pred_check_branch
        %169 = sbr.rel (%p167) target = $region28
      $region27: #{encoder_forward.17} parent=15 // pred_region
        %p170 = scmp.lt.s32.totalorder %s16, 1
        %s171 = scalar_select %p170, %s16, 1
        %s172 = smul.addr %s171, 2
        %s173 = scalar_lea.vmem %s2, %s172
      $region28: #{encoder_forward.17} parent=15 // pred_fallthru
        _
    $region16: #{encoder_forward.17} parent=5 // pred_fallthru
      _
    %p174 = scmp.le.s32.totalorder 1, %s9
    %p175 = scmp.lt.s32.totalorder %s9, 3
    %p176 = pnand %p174, %p175
    %p177 = pneg %p176
    // Predicated region
    $region29: #{encoder_forward.17} parent=5 // pred_check
      _
    $region30: #{encoder_forward.17} parent=5 // pred_check_branch
      %179 = sbr.rel (%p176) target = $region32
    $region31: #{encoder_forward.17} parent=5 // pred_region
      %s180 = ssub.s32 %s9, 1
      %p181 = scmp.lt.s32.totalorder %s18, 1
      %s182 = scalar_select %p181, %s18, 1
      %p183 = scmp.lt.s32.totalorder %s19, 0
      %s184 = scalar_select %p183, %s19, 0
      %s185 = smul.addr %s184, 2
      %s186 = smul.addr %s182, 2
      %s187 = sadd.s32 %s185, %s186
      %s188 = smul.addr %s187, 4
      %s189 = scalar_lea.vmem %s0, %s188
      %p190 = pneg %p49
      %p191 = pneg %p46
      %p192 = scmp.lt.s32.totalorder %s18, 1
      %s193 = scalar_select %p192, %s18, 1
      %s194 = smul.addr %s193, 2
      %s195 = scalar_lea.vmem %s1, %s194
      %p196 = pneg %p75
      %p197 = pneg %p72
      %p198 = scmp.lt.s32.totalorder %s18, 1
      %s199 = scalar_select %p198, %s18, 1
      %s200 = smul.addr %s199, 2
      %s201 = scalar_lea.vmem %s2, %s200
      %p202 = pneg %p101
      %p203 = pneg %p98
      %p204 = pneg %p129
      %p205 = pneg %p126
      %p206 = scmp.lt.s32.totalorder %s18, 1
      %s207 = scalar_select %p206, %s18, 1
      %p208 = scmp.lt.s32.totalorder %s19, 0
      %s209 = scalar_select %p208, %s19, 0
      %s210 = smul.addr %s209, 3
      %s211 = smul.addr %s207, 3
      %s212 = sadd.s32 %s210, %s211
      %s213 = smul.addr %s212, 4
      %s214 = scalar_lea.vmem %s3, %s213
      %p215 = scmp.lt.s32.totalorder %s18, 1
      %s216 = scalar_select %p215, %s18, 1
      %p217 = scmp.lt.s32.totalorder %s19, 0
      %s218 = scalar_select %p217, %s19, 0
      %s219 = smul.addr %s218, 2
      %s220 = smul.addr %s216, 2
      %s221 = sadd.s32 %s219, %s220
      %s222 = smul.addr %s221, 4
      %s223 = scalar_lea.vmem %s0, %s222
      %p224 = scmp.lt.s32.totalorder %s18, 1
      %s225 = scalar_select %p224, %s18, 1
      %s226 = smul.addr %s225, 2
      %s227 = scalar_lea.vmem %s1, %s226
      %p228 = scmp.lt.s32.totalorder %s18, 1
      %s229 = scalar_select %p228, %s18, 1
      %s230 = smul.addr %s229, 2
      %s231 = scalar_lea.vmem %s2, %s230
      %p232 = scmp.lt.s32.totalorder %s18, 1
      %s233 = scalar_select %p232, %s18, 1
      %p234 = scmp.lt.s32.totalorder %s19, 0
      %s235 = scalar_select %p234, %s19, 0
      %s236 = smul.addr %s235, 3
      %s237 = smul.addr %s233, 3
      %s238 = sadd.s32 %s236, %s237
      %s239 = smul.addr %s238, 4
      %s240 = scalar_lea.vmem %s3, %s239
      %v242 = vld [vmem:[%s223] sm:$0xff]
      %v243 = vunpack.c.l.bf16 %v242
      %v244 = vunpack.c.h.bf16 %v242
      %v245 = vld [vmem:[%s227] sm:$0x3]
      %v247 = vperm.slane %v245, 0
      %v248 = vperm.slane %v245, 1
      %v251 = vmul.f32 %v243, %v247
      %v252 = vmul.f32 %v244, %v248
      %v253 = vld [vmem:[%s231] sm:$0x3]
      %v255 = vperm.slane %v253, 0
      %v256 = vperm.slane %v253, 1
      %v259 = vadd.f32 %v251, %v255
      %v260 = vadd.f32 %v252, %v256
      %vm261 = vcmp.gt.f32.partialorder %v259, 0.0
      %vm262 = vcmp.gt.f32.partialorder %v260, 0.0
      %v263 = vmul.f32 %v259, 0.2
      %v264 = vmul.f32 %v260, 0.2
      %v265 = vsel %vm261, %v259, %v263
      %v266 = vsel %vm262, %v260, %v264
      %v267 = vpack.c.bf16 %v266, %v265
      %vm268 = vcmask 257024
      %269 = vst.msk [vmem:[%s240] sm:$0xf] %vm268, 0
      %271 = vrot.lane.b32.xlu0 %v267, 32
      %v272 = vpop.permute.xlu0 %271
      %v273 = vrot.slane %v272, 4
      %vm274 = vcmask 261120
      %v275 = vsel %vm274, %v273, %v272
      %vm278 = vcmask 1043712
      %vm279 = vcmask 1047556
      %vm280 = vmor %vm279, %vm278
      %281 = vst.msk [vmem:[%s240] sm:$0xff] %vm280, %v275
      %282 = vst.msk [vmem:[%s240 + $0x8] sm:$0xf] %vm268, %v273
      %vm283 = vcmask 519424
      %284 = vst.msk [vmem:[%s240 + $0x8] sm:$0xf] %vm283, 0
      %p285 = scmp.lt.s32.totalorder %s18, 1
      %s286 = scalar_select %p285, %s18, 1
      %p287 = scmp.lt.s32.totalorder %s19, 0
      %s288 = scalar_select %p287, %s19, 0
      %s289 = smul.addr %s288, 3
      %s290 = smul.addr %s286, 3
      %s291 = sadd.s32 %s289, %s290
      %s292 = smul.addr %s291, 4
      %s293 = scalar_lea.vmem %s3, %s292
      // Predicated region
      $region33: #{encoder_forward.17} parent=31 // pred_check
        %p294 = pneg %p126
      $region34: #{encoder_forward.17} parent=31 // pred_check_branch
        %296 = sbr.rel (%p294) target = $region36
      $region35: #{encoder_forward.17} parent=31 // pred_region
        _
      $region36: #{encoder_forward.17} parent=31 // pred_fallthru
        _
    $region32: #{encoder_forward.17} parent=5 // pred_fallthru
      _
    %p297 = scmp.le.s32.totalorder 2, %s9
    // Predicated region
    $region37: #{encoder_forward.17} parent=5 // pred_check
      %p298 = pneg %p297
    $region38: #{encoder_forward.17} parent=5 // pred_check_branch
      %300 = sbr.rel (%p298) target = $region40
    $region39: #{encoder_forward.17} parent=5 // pred_region
      %s301 = ssub.s32 %s9, 2
      // Predicated region
      $region41: #{encoder_forward.17} parent=39 // pred_check
        %p302 = pneg %p132
      $region42: #{encoder_forward.17} parent=39 // pred_check_branch
        %304 = sbr.rel (%p302) target = $region44
      $region43: #{encoder_forward.17} parent=39 // pred_region
        %p305 = scmp.lt.s32.totalorder %s20, 1
        %s306 = scalar_select %p305, %s20, 1
        %p307 = scmp.lt.s32.totalorder %s21, 0
        %s308 = scalar_select %p307, %s21, 0
        %s309 = smul.addr %s308, 3
        %s310 = smul.addr %s306, 3
        %s311 = sadd.s32 %s309, %s310
        %s312 = smul.addr %s311, 4
        %s313 = scalar_lea.vmem %s3, %s312
      $region44: #{encoder_forward.17} parent=39 // pred_fallthru
        _
    $region40: #{encoder_forward.17} parent=5 // pred_fallthru
      _
  $region6: #{encoder_forward.17} parent=0 // loop_footer
    %s13 = sadd.s32 1, %s9
  $region7: #{encoder_forward.17} parent=0 // loop_footer_branch
    %8 = sbr.rel target = $region3
  $region8: #{encoder_forward.17} parent=0 // loop_exit
    _

// kernel: encoder_forward.21
$region0: #{encoder_forward.21}
  #allocation0 [shape = 'u32[]', space=smem, size = 0x4, offset = 0x4, fixed_abs, tag = 'smem constant byte address 0x4 - core index']
  #allocation1 [shape = 'u32[72,128]{1,0:T(1,128)}', space=vmem, size = 0x9000, scoped, tag = 'internal scratch']
  %s0 = inlined_call_operand.vmem [shape: bf16[2,4,256], index: 0, kind: input, shape index: {}]
  %s1 = inlined_call_operand.vmem [shape: f32[2,1,256], index: 1, kind: input, shape index: {}]
  %s2 = inlined_call_operand.vmem [shape: f32[2,1,256], index: 2, kind: input, shape index: {}]
  %s3 = inlined_call_operand.vmem [shape: bf16[2,4,384], index: 3, kind: output, shape index: {}]
  %s4 = sld [smem:[#allocation0]]
  $region45: #{encoder_forward.21} parent=0
    _
  %s6 = ssub.s32 1, %s4
  %s7 = scalar_select 0, %s6, %s4
  loop: start=0, step=1, limit=4
  $region2: #{encoder_forward.21} parent=0 // loop_pre_header
    _
  $region3: #{encoder_forward.21} parent=0 // loop_header
    %s9 = sphi 0, %s13
    %p10 = scmp.ge.s32.totalorder %s9, 4
    %s16 = sphi 0, %s28
    %s17 = sphi 0, %s24
    %s18 = sphi 0, %s16
    %s19 = sphi 0, %s17
    %s20 = sphi 0, %s18
    %s21 = sphi 0, %s19
    %s33 = sphi 0, %s35
    %s36 = sphi 0, %s33
    %s37 = sphi 0, %s36
    %s53 = sphi 0, %s37
    %s59 = sphi 0, %s61
    %s62 = sphi 0, %s59
    %s63 = sphi 0, %s62
    %s79 = sphi 0, %s63
    %s85 = sphi 0, %s87
    %s88 = sphi 0, %s85
    %s89 = sphi 0, %s88
    %s105 = sphi 0, %s89
    %s113 = sphi 0, %s115
    %s116 = sphi 0, %s113
    %s117 = sphi 0, %s116
    %s133 = sphi 0, %s117
  $region4: #{encoder_forward.21} parent=0 // loop_header_branch
    %12 = sbr.rel (%p10) target = $region8
  $region5: #{encoder_forward.21} parent=0 // loop_body
    %s14 = ssub.s32 %s9, 1
    %s15 = ssub.s32 %s9, 2
    %s22 = sadd.s32 1, %s17
    %p23 = scmp.ge.s32.totalorder %s22, 1
    %s24 = scalar_select %p23, 0, %s22
    %s25 = sadd.s32 1, %s16
    %s26 = scalar_select %p23, %s25, %s16
    %p27 = scmp.ge.s32.totalorder %s26, 2
    %s28 = scalar_select %p27, 0, %s26
    %s29 = ssub.s32 %s16, %s28
    %s30 = ssub.s32 %s17, %s24
    %s31 = sor.u32 %s29, %s30
    %p32 = scmp.eq.s32.totalorder %s31, 0
    %s34 = sadd.s32 %s33, 1
    %s35 = scalar_select %p32, %s33, %s34
    %p38 = pneg %p32
    %p39 = scmp.eq.s32.totalorder %s9, 1
    %p40 = por %p38, %p39
    %p41 = scmp.ne.s32.totalorder %s33, %s36
    %p42 = scmp.eq.s32.totalorder %s9, 0
    %p43 = por %p41, %p42
    %p44 = scmp.ne.s32.totalorder %s33, %s36
    %p45 = scmp.eq.s32.totalorder %s14, 1
    %p46 = por %p44, %p45
    %p47 = scmp.ne.s32.totalorder %s36, %s37
    %p48 = scmp.eq.s32.totalorder %s14, 0
    %p49 = por %p47, %p48
    %p50 = scmp.ne.s32.totalorder %s36, %s37
    %p51 = scmp.eq.s32.totalorder %s15, 1
    %p52 = por %p50, %p51
    %p54 = scmp.ne.s32.totalorder %s37, %s53
    %p55 = scmp.eq.s32.totalorder %s15, 0
    %p56 = por %p54, %p55
    %s57 = ssub.s32 %s16, %s28
    %p58 = scmp.eq.s32.totalorder %s57, 0
    %s60 = sadd.s32 %s59, 1
    %s61 = scalar_select %p58, %s59, %s60
    %p64 = pneg %p58
    %p65 = scmp.eq.s32.totalorder %s9, 1
    %p66 = por %p64, %p65
    %p67 = scmp.ne.s32.totalorder %s59, %s62
    %p68 = scmp.eq.s32.totalorder %s9, 0
    %p69 = por %p67, %p68
    %p70 = scmp.ne.s32.totalorder %s59, %s62
    %p71 = scmp.eq.s32.totalorder %s14, 1
    %p72 = por %p70, %p71
    %p73 = scmp.ne.s32.totalorder %s62, %s63
    %p74 = scmp.eq.s32.totalorder %s14, 0
    %p75 = por %p73, %p74
    %p76 = scmp.ne.s32.totalorder %s62, %s63
    %p77 = scmp.eq.s32.totalorder %s15, 1
    %p78 = por %p76, %p77
    %p80 = scmp.ne.s32.totalorder %s63, %s79
    %p81 = scmp.eq.s32.totalorder %s15, 0
    %p82 = por %p80, %p81
    %s83 = ssub.s32 %s16, %s28
    %p84 = scmp.eq.s32.totalorder %s83, 0
    %s86 = sadd.s32 %s85, 1
    %s87 = scalar_select %p84, %s85, %s86
    %p90 = pneg %p84
    %p91 = scmp.eq.s32.totalorder %s9, 1
    %p92 = por %p90, %p91
    %p93 = scmp.ne.s32.totalorder %s85, %s88
    %p94 = scmp.eq.s32.totalorder %s9, 0
    %p95 = por %p93, %p94
    %p96 = scmp.ne.s32.totalorder %s85, %s88
    %p97 = scmp.eq.s32.totalorder %s14, 1
    %p98 = por %p96, %p97
    %p99 = scmp.ne.s32.totalorder %s88, %s89
    %p100 = scmp.eq.s32.totalorder %s14, 0
    %p101 = por %p99, %p100
    %p102 = scmp.ne.s32.totalorder %s88, %s89
    %p103 = scmp.eq.s32.totalorder %s15, 1
    %p104 = por %p102, %p103
    %p106 = scmp.ne.s32.totalorder %s89, %s105
    %p107 = scmp.eq.s32.totalorder %s15, 0
    %p108 = por %p106, %p107
    %s109 = ssub.s32 %s16, %s28
    %s110 = ssub.s32 %s17, %s24
    %s111 = sor.u32 %s109, %s110
    %p112 = scmp.eq.s32.totalorder %s111, 0
    %s114 = sadd.s32 %s113, 1
    %s115 = scalar_select %p112, %s113, %s114
    %p118 = pneg %p112
    %p119 = scmp.eq.s32.totalorder %s9, 1
    %p120 = por %p118, %p119
    %p121 = scmp.ne.s32.totalorder %s113, %s116
    %p122 = scmp.eq.s32.totalorder %s9, 0
    %p123 = por %p121, %p122
    %p124 = scmp.ne.s32.totalorder %s113, %s116
    %p125 = scmp.eq.s32.totalorder %s14, 1
    %p126 = por %p124, %p125
    %p127 = scmp.ne.s32.totalorder %s116, %s117
    %p128 = scmp.eq.s32.totalorder %s14, 0
    %p129 = por %p127, %p128
    %p130 = scmp.ne.s32.totalorder %s116, %s117
    %p131 = scmp.eq.s32.totalorder %s15, 1
    %p132 = por %p130, %p131
    %p134 = scmp.ne.s32.totalorder %s117, %s133
    %p135 = scmp.eq.s32.totalorder %s15, 0
    %p136 = por %p134, %p135
    %p137 = scmp.le.s32.totalorder 1, %s9
    %p138 = scmp.lt.s32.totalorder %s9, 3
    %p139 = pnand %p137, %p138
    %p140 = pneg %p139
    // Predicated region
    $region9: #{encoder_forward.21} parent=5 // pred_check
      _
    $region10: #{encoder_forward.21} parent=5 // pred_check_branch
      %142 = sbr.rel (%p139) target = $region12
    $region11: #{encoder_forward.21} parent=5 // pred_region
      %s143 = ssub.s32 %s9, 1
    $region12: #{encoder_forward.21} parent=5 // pred_fallthru
      _
    %p144 = scmp.lt.s32.totalorder %s9, 2
    // Predicated region
    $region13: #{encoder_forward.21} parent=5 // pred_check
      %p145 = pneg %p144
    $region14: #{encoder_forward.21} parent=5 // pred_check_branch
      %147 = sbr.rel (%p145) target = $region16
    $region15: #{encoder_forward.21} parent=5 // pred_region
      // Predicated region
      $region17: #{encoder_forward.21} parent=15 // pred_check
        %p148 = pneg %p43
      $region18: #{encoder_forward.21} parent=15 // pred_check_branch
        %150 = sbr.rel (%p148) target = $region20
      $region19: #{encoder_forward.21} parent=15 // pred_region
        %p151 = scmp.lt.s32.totalorder %s16, 1
        %s152 = scalar_select %p151, %s16, 1
        %p153 = scmp.lt.s32.totalorder %s17, 0
        %s154 = scalar_select %p153, %s17, 0
        %s155 = smul.addr %s154, 2
        %s156 = smul.addr %s152, 2
        %s157 = sadd.s32 %s155, %s156
        %s158 = smul.addr %s157, 2
        %s159 = scalar_lea.vmem %s0, %s158
      $region20: #{encoder_forward.21} parent=15 // pred_fallthru
        _
      // Predicated region
      $region21: #{encoder_forward.21} parent=15 // pred_check
        %p160 = pneg %p69
      $region22: #{encoder_forward.21} parent=15 // pred_check_branch
        %162 = sbr.rel (%p160) target = $region24
      $region23: #{encoder_forward.21} parent=15 // pred_region
        %p163 = scmp.lt.s32.totalorder %s16, 1
        %s164 = scalar_select %p163, %s16, 1
        %s165 = smul.addr %s164, 2
        %s166 = scalar_lea.vmem %s1, %s165
      $region24: #{encoder_forward.21} parent=15 // pred_fallthru
        _
      // Predicated region
      $region25: #{encoder_forward.21} parent=15 // pred_check
        %p167 = pneg %p95
      $region26: #{encoder_forward.21} parent=15 // pred_check_branch
        %169 = sbr.rel (%p167) target = $region28
      $region27: #{encoder_forward.21} parent=15 // pred_region
        %p170 = scmp.lt.s32.totalorder %s16, 1
        %s171 = scalar_select %p170, %s16, 1
        %s172 = smul.addr %s171, 2
        %s173 = scalar_lea.vmem %s2, %s172
      $region28: #{encoder_forward.21} parent=15 // pred_fallthru
        _
    $region16: #{encoder_forward.21} parent=5 // pred_fallthru
      _
    %p174 = scmp.le.s32.totalorder 1, %s9
    %p175 = scmp.lt.s32.totalorder %s9, 3
    %p176 = pnand %p174, %p175
    %p177 = pneg %p176
    // Predicated region
    $region29: #{encoder_forward.21} parent=5 // pred_check
      _
    $region30: #{encoder_forward.21} parent=5 // pred_check_branch
      %179 = sbr.rel (%p176) target = $region32
    $region31: #{encoder_forward.21} parent=5 // pred_region
      %s180 = ssub.s32 %s9, 1
      %p181 = scmp.lt.s32.totalorder %s18, 1
      %s182 = scalar_select %p181, %s18, 1
      %p183 = scmp.lt.s32.totalorder %s19, 0
      %s184 = scalar_select %p183, %s19, 0
      %s185 = smul.addr %s184, 2
      %s186 = smul.addr %s182, 2
      %s187 = sadd.s32 %s185, %s186
      %s188 = smul.addr %s187, 2
      %s189 = scalar_lea.vmem %s0, %s188
      %p190 = pneg %p49
      %p191 = pneg %p46
      %p192 = scmp.lt.s32.totalorder %s18, 1
      %s193 = scalar_select %p192, %s18, 1
      %s194 = smul.addr %s193, 2
      %s195 = scalar_lea.vmem %s1, %s194
      %p196 = pneg %p75
      %p197 = pneg %p72
      %p198 = scmp.lt.s32.totalorder %s18, 1
      %s199 = scalar_select %p198, %s18, 1
      %s200 = smul.addr %s199, 2
      %s201 = scalar_lea.vmem %s2, %s200
      %p202 = pneg %p101
      %p203 = pneg %p98
      %p204 = pneg %p129
      %p205 = pneg %p126
      %p206 = scmp.lt.s32.totalorder %s18, 1
      %s207 = scalar_select %p206, %s18, 1
      %p208 = scmp.lt.s32.totalorder %s19, 0
      %s209 = scalar_select %p208, %s19, 0
      %s210 = smul.addr %s209, 3
      %s211 = smul.addr %s207, 3
      %s212 = sadd.s32 %s210, %s211
      %s213 = smul.addr %s212, 2
      %s214 = scalar_lea.vmem %s3, %s213
      %p215 = scmp.lt.s32.totalorder %s18, 1
      %s216 = scalar_select %p215, %s18, 1
      %p217 = scmp.lt.s32.totalorder %s19, 0
      %s218 = scalar_select %p217, %s19, 0
      %s219 = smul.addr %s218, 2
      %s220 = smul.addr %s216, 2
      %s221 = sadd.s32 %s219, %s220
      %s222 = smul.addr %s221, 2
      %s223 = scalar_lea.vmem %s0, %s222
      %p224 = scmp.lt.s32.totalorder %s18, 1
      %s225 = scalar_select %p224, %s18, 1
      %s226 = smul.addr %s225, 2
      %s227 = scalar_lea.vmem %s1, %s226
      %p228 = scmp.lt.s32.totalorder %s18, 1
      %s229 = scalar_select %p228, %s18, 1
      %s230 = smul.addr %s229, 2
      %s231 = scalar_lea.vmem %s2, %s230
      %p232 = scmp.lt.s32.totalorder %s18, 1
      %s233 = scalar_select %p232, %s18, 1
      %p234 = scmp.lt.s32.totalorder %s19, 0
      %s235 = scalar_select %p234, %s19, 0
      %s236 = smul.addr %s235, 3
      %s237 = smul.addr %s233, 3
      %s238 = sadd.s32 %s236, %s237
      %s239 = smul.addr %s238, 2
      %s240 = scalar_lea.vmem %s3, %s239
      %v242 = vld [vmem:[%s223] sm:$0xf]
      %v243 = vunpack.c.l.bf16 %v242
      %v244 = vld [vmem:[%s227] sm:$0x3]
      %v246 = vperm.slane %v244, 0
      %v247 = vperm.slane %v244, 1
      %v248 = vrot.slane %v247, 4
      %vm249 = vcmask 1043456
      %v250 = vsel %vm249, %v246, %v248
      %v252 = vmul.f32 %v243, %v250
      %v253 = vld [vmem:[%s231] sm:$0x3]
      %v255 = vperm.slane %v253, 0
      %v256 = vperm.slane %v253, 1
      %v257 = vrot.slane %v256, 4
      %v258 = vsel %vm249, %v255, %v257
      %v260 = vadd.f32 %v252, %v258
      %vm261 = vcmp.gt.f32.partialorder %v260, 0.0
      %v262 = vmul.f32 %v260, 0.2
      %v263 = vsel %vm261, %v260, %v262
      %265 = vst [vmem:[#allocation1] ss:$2 sm:$0xff] %v263
      %v266 = vld.sshfl [vmem:[#allocation1] sm:$0xff pattern:$0x75316420]
      %v267 = vld.sshfl [vmem:[#allocation1 + $0x8] sm:$0xff pattern:$0x75316420]
      %v270 = vpack.c.bf16 %v267, %v266
      %vm271 = vcmask 517120
      %272 = vst.msk [vmem:[%s240] sm:$0x3] %vm271, 0
      %v274 = vrot.slane %v270, 2
      %vm275 = vcmask 1041408
      %v278 = vsel %vm275, %v270, %v274
      %280 = vrot.lane.b32.xlu0 %v278, 64
      %v281 = vpop.permute.xlu0 %280
      %v282 = vrot.slane %v281, 6
      %vm283 = vcmask 523264
      %v284 = vsel %vm283, %v282, %v281
      %vm286 = vcmask 1041920
      %vm287 = vcmask 1043458
      %vm288 = vmor %vm287, %vm286
      %vm289 = vcmask 521220
      %vm290 = vmor %vm289, %vm288
      %291 = vst.msk [vmem:[%s240] sm:$0x3f] %vm290, %v284
      %292 = vst.msk [vmem:[%s240 + $0x4] sm:$0x3] %vm286, 0
      %p293 = scmp.lt.s32.totalorder %s18, 1
      %s294 = scalar_select %p293, %s18, 1
      %p295 = scmp.lt.s32.totalorder %s19, 0
      %s296 = scalar_select %p295, %s19, 0
      %s297 = smul.addr %s296, 3
      %s298 = smul.addr %s294, 3
      %s299 = sadd.s32 %s297, %s298
      %s300 = smul.addr %s299, 2
      %s301 = scalar_lea.vmem %s3, %s300
      // Predicated region
      $region33: #{encoder_forward.21} parent=31 // pred_check
        %p302 = pneg %p126
      $region34: #{encoder_forward.21} parent=31 // pred_check_branch
        %304 = sbr.rel (%p302) target = $region36
      $region35: #{encoder_forward.21} parent=31 // pred_region
        _
      $region36: #{encoder_forward.21} parent=31 // pred_fallthru
        _
    $region32: #{encoder_forward.21} parent=5 // pred_fallthru
      _
    %p305 = scmp.le.s32.totalorder 2, %s9
    // Predicated region
    $region37: #{encoder_forward.21} parent=5 // pred_check
      %p306 = pneg %p305
    $region38: #{encoder_forward.21} parent=5 // pred_check_branch
      %308 = sbr.rel (%p306) target = $region40
    $region39: #{encoder_forward.21} parent=5 // pred_region
      %s309 = ssub.s32 %s9, 2
      // Predicated region
      $region41: #{encoder_forward.21} parent=39 // pred_check
        %p310 = pneg %p132
      $region42: #{encoder_forward.21} parent=39 // pred_check_branch
        %312 = sbr.rel (%p310) target = $region44
      $region43: #{encoder_forward.21} parent=39 // pred_region
        %p313 = scmp.lt.s32.totalorder %s20, 1
        %s314 = scalar_select %p313, %s20, 1
        %p315 = scmp.lt.s32.totalorder %s21, 0
        %s316 = scalar_select %p315, %s21, 0
        %s317 = smul.addr %s316, 3
        %s318 = smul.addr %s314, 3
        %s319 = sadd.s32 %s317, %s318
        %s320 = smul.addr %s319, 2
        %s321 = scalar_lea.vmem %s3, %s320
      $region44: #{encoder_forward.21} parent=39 // pred_fallthru
        _
    $region40: #{encoder_forward.21} parent=5 // pred_fallthru
      _
  $region6: #{encoder_forward.21} parent=0 // loop_footer
    %s13 = sadd.s32 1, %s9
  $region7: #{encoder_forward.21} parent=0 // loop_footer_branch
    %8 = sbr.rel target = $region3
  $region8: #{encoder_forward.21} parent=0 // loop_exit
    _

// kernel: encoder_forward.18
$region0: #{encoder_forward.18}
  #allocation0 [shape = 'u32[]', space=smem, size = 0x4, offset = 0x4, fixed_abs, tag = 'smem constant byte address 0x4 - core index']
  #allocation1 [shape = 'u32[72,128]{1,0:T(1,128)}', space=vmem, size = 0x9000, scoped, tag = 'internal scratch']
  #allocation2 [shape = 'bf16[4,8,288]{2,1,0:T(8,128)(2,1)}', space=vmem, size = 0x6000, scoped, tag = 'scratch operand']
  %s0 = inlined_call_operand.vmem [shape: bf16[2,8,1,10,32], index: 0, kind: input, shape index: {}]
  %s1 = inlined_call_operand.vmem [shape: bf16[2,2,2,10,32], index: 1, kind: input, shape index: {}]
  %s2 = inlined_call_operand.vmem [shape: bf16[288,32], index: 2, kind: input, shape index: {}]
  %s3 = inlined_call_operand.vmem [shape: bf16[2,8,8,32], index: 3, kind: output, shape index: {0}]
  %s4 = inlined_call_operand.vmem [shape: f32[2,2,2,32], index: 4, kind: output, shape index: {1}]
  %5 = xla_tuple %s3, %s4
  %s6 = sld [smem:[#allocation0]]
  $region53: #{encoder_forward.18} parent=0
    _
  %s8 = ssub.s32 1, %s6
  %s9 = scalar_select 0, %s8, %s6
  loop: start=0, step=1, limit=6
  $region2: #{encoder_forward.18} parent=0 // loop_pre_header
    _
  $region3: #{encoder_forward.18} parent=0 // loop_header
    %s11 = sphi 0, %s15
    %p12 = scmp.ge.s32.totalorder %s11, 6
    %s18 = sphi 0, %s30
    %s19 = sphi 0, %s26
    %s20 = sphi 0, %s18
    %s21 = sphi 0, %s19
    %s22 = sphi 0, %s20
    %s23 = sphi 0, %s21
    %s35 = sphi 0, %s37
    %s38 = sphi 0, %s35
    %s39 = sphi 0, %s38
    %s55 = sphi 0, %s39
    %s63 = sphi 0, %s65
    %s66 = sphi 0, %s63
    %s67 = sphi 0, %s66
    %s83 = sphi 0, %s67
    %s87 = sphi 0, %s87
    %s89 = sphi 0, %s87
    %s90 = sphi 0, %s89
    %s104 = sphi 0, %s90
    %s112 = sphi 0, %s114
    %s115 = sphi 0, %s112
    %s116 = sphi 0, %s115
    %s132 = sphi 0, %s116
    %s140 = sphi 0, %s142
    %s143 = sphi 0, %s140
    %s144 = sphi 0, %s143
    %s160 = sphi 0, %s144
  $region4: #{encoder_forward.18} parent=0 // loop_header_branch
    %14 = sbr.rel (%p12) target = $region8
  $region5: #{encoder_forward.18} parent=0 // loop_body
    %s16 = ssub.s32 %s11, 1
    %s17 = ssub.s32 %s11, 2
    %s24 = sadd.s32 1, %s19
    %p25 = scmp.ge.s32.totalorder %s24, 2
    %s26 = scalar_select %p25, 0, %s24
    %s27 = sadd.s32 1, %s18
    %s28 = scalar_select %p25, %s27, %s18
    %p29 = scmp.ge.s32.totalorder %s28, 2
    %s30 = scalar_select %p29, 0, %s28
    %s31 = ssub.s32 %s18, %s30
    %s32 = ssub.s32 %s19, %s26
    %s33 = sor.u32 %s31, %s32
    %p34 = scmp.eq.s32.totalorder %s33, 0
    %s36 = sadd.s32 %s35, 1
    %s37 = scalar_select %p34, %s35, %s36
    %p40 = pneg %p34
    %p41 = scmp.eq.s32.totalorder %s11, 3
    %p42 = por %p40, %p41
    %p43 = scmp.ne.s32.totalorder %s35, %s38
    %p44 = scmp.eq.s32.totalorder %s11, 0
    %p45 = por %p43, %p44
    %p46 = scmp.ne.s32.totalorder %s35, %s38
    %p47 = scmp.eq.s32.totalorder %s16, 3
    %p48 = por %p46, %p47
    %p49 = scmp.ne.s32.totalorder %s38, %s39
    %p50 = scmp.eq.s32.totalorder %s16, 0
    %p51 = por %p49, %p50
    %p52 = scmp.ne.s32.totalorder %s38, %s39
    %p53 = scmp.eq.s32.totalorder %s17, 3
    %p54 = por %p52, %p53
    %p56 = scmp.ne.s32.totalorder %s39, %s55
    %p57 = scmp.eq.s32.totalorder %s17, 0
    %p58 = por %p56, %p57
    %s59 = ssub.s32 %s18, %s30
    %s60 = ssub.s32 %s19, %s26
    %s61 = sor.u32 %s59, %s60
    %p62 = scmp.eq.s32.totalorder %s61, 0
    %s64 = sadd.s32 %s63, 1
    %s65 = scalar_select %p62, %s63, %s64
    %p68 = pneg %p62
    %p69 = scmp.eq.s32.totalorder %s11, 3
    %p70 = por %p68, %p69
    %p71 = scmp.ne.s32.totalorder %s63, %s66
    %p72 = scmp.eq.s32.totalorder %s11, 0
    %p73 = por %p71, %p72
    %p74 = scmp.ne.s32.totalorder %s63, %s66
    %p75 = scmp.eq.s32.totalorder %s16, 3
    %p76 = por %p74, %p75
    %p77 = scmp.ne.s32.totalorder %s66, %s67
    %p78 = scmp.eq.s32.totalorder %s16, 0
    %p79 = por %p77, %p78
    %p80 = scmp.ne.s32.totalorder %s66, %s67
    %p81 = scmp.eq.s32.totalorder %s17, 3
    %p82 = por %p80, %p81
    %p84 = scmp.ne.s32.totalorder %s67, %s83
    %p85 = scmp.eq.s32.totalorder %s17, 0
    %p86 = por %p84, %p85
    %s88 = sadd.s32 %s87, 1
    %p91 = scmp.eq.s32.totalorder %s11, 3
    %p92 = scmp.ne.s32.totalorder %s87, %s89
    %p93 = scmp.eq.s32.totalorder %s11, 0
    %p94 = por %p92, %p93
    %p95 = scmp.ne.s32.totalorder %s87, %s89
    %p96 = scmp.eq.s32.totalorder %s16, 3
    %p97 = por %p95, %p96
    %p98 = scmp.ne.s32.totalorder %s89, %s90
    %p99 = scmp.eq.s32.totalorder %s16, 0
    %p100 = por %p98, %p99
    %p101 = scmp.ne.s32.totalorder %s89, %s90
    %p102 = scmp.eq.s32.totalorder %s17, 3
    %p103 = por %p101, %p102
    %p105 = scmp.ne.s32.totalorder %s90, %s104
    %p106 = scmp.eq.s32.totalorder %s17, 0
    %p107 = por %p105, %p106
    %s108 = ssub.s32 %s18, %s30
    %s109 = ssub.s32 %s19, %s26
    %s110 = sor.u32 %s108, %s109
    %p111 = scmp.eq.s32.totalorder %s110, 0
    %s113 = sadd.s32 %s112, 1
    %s114 = scalar_select %p111, %s112, %s113
    %p117 = pneg %p111
    %p118 = scmp.eq.s32.totalorder %s11, 3
    %p119 = por %p117, %p118
    %p120 = scmp.ne.s32.totalorder %s112, %s115
    %p121 = scmp.eq.s32.totalorder %s11, 0
    %p122 = por %p120, %p121
    %p123 = scmp.ne.s32.totalorder %s112, %s115
    %p124 = scmp.eq.s32.totalorder %s16, 3
    %p125 = por %p123, %p124
    %p126 = scmp.ne.s32.totalorder %s115, %s116
    %p127 = scmp.eq.s32.totalorder %s16, 0
    %p128 = por %p126, %p127
    %p129 = scmp.ne.s32.totalorder %s115, %s116
    %p130 = scmp.eq.s32.totalorder %s17, 3
    %p131 = por %p129, %p130
    %p133 = scmp.ne.s32.totalorder %s116, %s132
    %p134 = scmp.eq.s32.totalorder %s17, 0
    %p135 = por %p133, %p134
    %s136 = ssub.s32 %s18, %s30
    %s137 = ssub.s32 %s19, %s26
    %s138 = sor.u32 %s136, %s137
    %p139 = scmp.eq.s32.totalorder %s138, 0
    %s141 = sadd.s32 %s140, 1
    %s142 = scalar_select %p139, %s140, %s141
    %p145 = pneg %p139
    %p146 = scmp.eq.s32.totalorder %s11, 3
    %p147 = por %p145, %p146
    %p148 = scmp.ne.s32.totalorder %s140, %s143
    %p149 = scmp.eq.s32.totalorder %s11, 0
    %p150 = por %p148, %p149
    %p151 = scmp.ne.s32.totalorder %s140, %s143
    %p152 = scmp.eq.s32.totalorder %s16, 3
    %p153 = por %p151, %p152
    %p154 = scmp.ne.s32.totalorder %s143, %s144
    %p155 = scmp.eq.s32.totalorder %s16, 0
    %p156 = por %p154, %p155
    %p157 = scmp.ne.s32.totalorder %s143, %s144
    %p158 = scmp.eq.s32.totalorder %s17, 3
    %p159 = por %p157, %p158
    %p161 = scmp.ne.s32.totalorder %s144, %s160
    %p162 = scmp.eq.s32.totalorder %s17, 0
    %p163 = por %p161, %p162
    %p164 = scmp.le.s32.totalorder 1, %s11
    %p165 = scmp.lt.s32.totalorder %s11, 5
    %p166 = pnand %p164, %p165
    %p167 = pneg %p166
    // Predicated region
    $region9: #{encoder_forward.18} parent=5 // pred_check
      _
    $region10: #{encoder_forward.18} parent=5 // pred_check_branch
      %169 = sbr.rel (%p166) target = $region12
    $region11: #{encoder_forward.18} parent=5 // pred_region
      %s170 = ssub.s32 %s11, 1
      // Predicated region
      $region13: #{encoder_forward.18} parent=11 // pred_check
        %p171 = pneg %p100
      $region14: #{encoder_forward.18} parent=11 // pred_check_branch
        %173 = sbr.rel (%p171) target = $region16
      $region15: #{encoder_forward.18} parent=11 // pred_region
        _
      $region16: #{encoder_forward.18} parent=11 // pred_fallthru
        _
    $region12: #{encoder_forward.18} parent=5 // pred_fallthru
      _
    %p174 = scmp.lt.s32.totalorder %s11, 4
    // Predicated region
    $region17: #{encoder_forward.18} parent=5 // pred_check
      %p175 = pneg %p174
    $region18: #{encoder_forward.18} parent=5 // pred_check_branch
      %177 = sbr.rel (%p175) target = $region20
    $region19: #{encoder_forward.18} parent=5 // pred_region
      // Predicated region
      $region21: #{encoder_forward.18} parent=19 // pred_check
        %p178 = pneg %p45
      $region22: #{encoder_forward.18} parent=19 // pred_check_branch
        %180 = sbr.rel (%p178) target = $region24
      $region23: #{encoder_forward.18} parent=19 // pred_region
        %s181 = smul.u32 4, %s19
        %p182 = scmp.lt.s32.totalorder %s18, 1
        %s183 = scalar_select %p182, %s18, 1
        %p184 = scmp.lt.s32.totalorder %s181, 7
        %s185 = scalar_select %p184, %s181, 7
        %s186 = smul.addr %s185, 2
        %s187 = smul.addr %s183, 16
        %s188 = sadd.s32 %s186, %s187
        %s189 = smul.addr %s188, 4
        %s190 = scalar_lea.vmem %s0, %s189
        %s191 = smul.u32 4, %s19
      $region24: #{encoder_forward.18} parent=19 // pred_fallthru
        _
      // Predicated region
      $region25: #{encoder_forward.18} parent=19 // pred_check
        %p192 = pneg %p73
      $region26: #{encoder_forward.18} parent=19 // pred_check_branch
        %194 = sbr.rel (%p192) target = $region28
      $region27: #{encoder_forward.18} parent=19 // pred_region
        %p195 = scmp.lt.s32.totalorder %s18, 1
        %s196 = scalar_select %p195, %s18, 1
        %p197 = scmp.lt.s32.totalorder %s19, 1
        %s198 = scalar_select %p197, %s19, 1
        %s199 = smul.addr %s198, 4
        %s200 = smul.addr %s196, 8
        %s201 = sadd.s32 %s199, %s200
        %s202 = smul.addr %s201, 4
        %s203 = scalar_lea.vmem %s1, %s202
      $region28: #{encoder_forward.18} parent=19 // pred_fallthru
        _
    $region20: #{encoder_forward.18} parent=5 // pred_fallthru
      _
    %p204 = scmp.le.s32.totalorder 1, %s11
    %p205 = scmp.lt.s32.totalorder %s11, 5
    %p206 = pnand %p204, %p205
    %p207 = pneg %p206
    // Predicated region
    $region29: #{encoder_forward.18} parent=5 // pred_check
      _
    $region30: #{encoder_forward.18} parent=5 // pred_check_branch
      %209 = sbr.rel (%p206) target = $region32
    $region31: #{encoder_forward.18} parent=5 // pred_region
      %s210 = ssub.s32 %s11, 1
      %s211 = smul.u32 4, %s21
      %p212 = scmp.lt.s32.totalorder %s20, 1
      %s213 = scalar_select %p212, %s20, 1
      %p214 = scmp.lt.s32.totalorder %s211, 7
      %s215 = scalar_select %p214, %s211, 7
      %s216 = smul.addr %s215, 2
      %s217 = smul.addr %s213, 16
      %s218 = sadd.s32 %s216, %s217
      %s219 = smul.addr %s218, 4
      %s220 = scalar_lea.vmem %s0, %s219
      %p221 = pneg %p51
      %p222 = pneg %p48
      %p223 = scmp.lt.s32.totalorder %s20, 1
      %s224 = scalar_select %p223, %s20, 1
      %p225 = scmp.lt.s32.totalorder %s21, 1
      %s226 = scalar_select %p225, %s21, 1
      %s227 = smul.addr %s226, 4
      %s228 = smul.addr %s224, 8
      %s229 = sadd.s32 %s227, %s228
      %s230 = smul.addr %s229, 4
      %s231 = scalar_lea.vmem %s1, %s230
      %p232 = pneg %p79
      %p233 = pneg %p76
      %p234 = pneg %p100
      %p235 = pneg %p97
      %p236 = pneg %p128
      %p237 = pneg %p125
      %s238 = smul.u32 4, %s21
      %p239 = scmp.lt.s32.totalorder %s20, 1
      %s240 = scalar_select %p239, %s20, 1
      %p241 = scmp.lt.s32.totalorder %s238, 7
      %s242 = scalar_select %p241, %s238, 7
      %s243 = smul.addr %s240, 8
      %s244 = sadd.s32 %s242, %s243
      %s245 = smul.addr %s244, 4
      %s246 = scalar_lea.vmem %s3, %s245
      %p247 = pneg %p156
      %p248 = pneg %p153
      %p249 = scmp.lt.s32.totalorder %s20, 1
      %s250 = scalar_select %p249, %s20, 1
      %p251 = scmp.lt.s32.totalorder %s21, 1
      %s252 = scalar_select %p251, %s21, 1
      %s253 = smul.addr %s250, 2
      %s254 = sadd.s32 %s252, %s253
      %s255 = smul.addr %s254, 2
      %s256 = scalar_lea.vmem %s4, %s255
      %s257 = smul.u32 4, %s21
      %p258 = scmp.lt.s32.totalorder %s20, 1
      %s259 = scalar_select %p258, %s20, 1
      %p260 = scmp.lt.s32.totalorder %s257, 7
      %s261 = scalar_select %p260, %s257, 7
      %s262 = smul.addr %s261, 2
      %s263 = smul.addr %s259, 16
      %s264 = sadd.s32 %s262, %s263
      %s265 = smul.addr %s264, 4
      %s266 = scalar_lea.vmem %s0, %s265
      %s267 = smul.u32 4, %s21
      %p268 = scmp.lt.s32.totalorder %s20, 1
      %s269 = scalar_select %p268, %s20, 1
      %p270 = scmp.lt.s32.totalorder %s21, 1
      %s271 = scalar_select %p270, %s21, 1
      %s272 = smul.addr %s271, 4
      %s273 = smul.addr %s269, 8
      %s274 = sadd.s32 %s272, %s273
      %s275 = smul.addr %s274, 4
      %s276 = scalar_lea.vmem %s1, %s275
      %s277 = smul.u32 4, %s21
      %p278 = scmp.lt.s32.totalorder %s20, 1
      %s279 = scalar_select %p278, %s20, 1
      %p280 = scmp.lt.s32.totalorder %s277, 7
      %s281 = scalar_select %p280, %s277, 7
      %s282 = smul.addr %s279, 8
      %s283 = sadd.s32 %s281, %s282
      %s284 = smul.addr %s283, 4
      %s285 = scalar_lea.vmem %s3, %s284
      %s286 = smul.u32 4, %s21
      %p287 = scmp.lt.s32.totalorder %s20, 1
      %s288 = scalar_select %p287, %s20, 1
      %p289 = scmp.lt.s32.totalorder %s21, 1
      %s290 = scalar_select %p289, %s21, 1
      %s291 = smul.addr %s288, 2
      %s292 = sadd.s32 %s290, %s291
      %s293 = smul.addr %s292, 2
      %s294 = scalar_lea.vmem %s4, %s293
      %v296 = vld [vmem:[%s276] sm:$0xf]
      %vm297 = vcmask 257024
      %298 = vst.msk [vmem:[#allocation2] sm:$0xf] %vm297, %v296
      %v299 = vld [vmem:[%s266] sm:$0xf]
      %v300 = vld [vmem:[%s266 + $0x8] sm:$0xf]
      %v301 = vld [vmem:[%s266 + $0x10] sm:$0xf]
      %s302 = scalar_lea.vmem [#allocation2], 12
      %303 = vst.msk [vmem:[%s302] sm:$0xf] %vm297, %v299
      %304 = vst.msk [vmem:[%s302 + $0xc] sm:$0xf] %vm297, %v300
      %305 = vst.msk [vmem:[%s302 + $0x18] sm:$0xf] %vm297, %v301
      %v306 = vld [vmem:[%s276] sm:$0xf]
      %v307 = vld [vmem:[%s276 + $0x4] sm:$0x1]
      %vm308 = vsmask.f32 3328
      %vm309 = vsmask.f32 7440
      %vm310 = vmor %vm308, %vm309
      %v312 = vshrl.u32 %v306, 16
      %v314 = vrot.slane %v312, 4
      %v315 = vshll.u32 %v306, 16
      %v317 = vrot.slane %v315, 5
      %v318 = vor.u32 %v314, %v317
      %v319 = vrot.slane %v318, 4
      %v321 = vshll.u32 %v307, 16
      %v323 = vrot.slane %v321, 5
      %v324 = vsel %vm310, %v319, %v323
      %325 = vrot.lane.b32.xlu0 %v324, 32
      %v326 = vpop.permute.xlu0 %325
      %vm328 = vcmask 519424
      %329 = vst.msk [vmem:[#allocation2] sm:$0xf] %vm328, %v326
      %v330 = vld [vmem:[%s266] sm:$0xf]
      %v331 = vld [vmem:[%s266 + $0x4] sm:$0x1]
      %v332 = vld [vmem:[%s266 + $0x8] sm:$0xf]
      %v333 = vld [vmem:[%s266 + $0xc] sm:$0x1]
      %v334 = vld [vmem:[%s266 + $0x10] sm:$0xf]
      %v335 = vld [vmem:[%s266 + $0x14] sm:$0x1]
      %v337 = vshrl.u32 %v330, 16
      %v339 = vrot.slane %v337, 4
      %v340 = vshll.u32 %v330, 16
      %v342 = vrot.slane %v340, 5
      %v343 = vor.u32 %v339, %v342
      %v344 = vrot.slane %v343, 4
      %v346 = vshll.u32 %v331, 16
      %v348 = vrot.slane %v346, 5
      %v349 = vsel %vm310, %v344, %v348
      %v351 = vshrl.u32 %v332, 16
      %v353 = vrot.slane %v351, 4
      %v354 = vshll.u32 %v332, 16
      %v356 = vrot.slane %v354, 5
      %v357 = vor.u32 %v353, %v356
      %v358 = vrot.slane %v357, 4
      %v360 = vshll.u32 %v333, 16
      %v362 = vrot.slane %v360, 5
      %v363 = vsel %vm310, %v358, %v362
      %v365 = vshrl.u32 %v334, 16
      %v367 = vrot.slane %v365, 4
      %v368 = vshll.u32 %v334, 16
      %v370 = vrot.slane %v368, 5
      %v371 = vor.u32 %v367, %v370
      %v372 = vrot.slane %v371, 4
      %v374 = vshll.u32 %v335, 16
      %v376 = vrot.slane %v374, 5
      %v377 = vsel %vm310, %v372, %v376
      %378 = vrot.lane.b32.xlu0 %v349, 32
      %v379 = vpop.permute.xlu0 %378
      %380 = vrot.lane.b32.xlu0 %v363, 32
      %v381 = vpop.permute.xlu0 %380
      %382 = vrot.lane.b32.xlu0 %v377, 32
      %v383 = vpop.permute.xlu0 %382
      %387 = vst.msk [vmem:[%s302] sm:$0xf] %vm328, %v379
      %388 = vst.msk [vmem:[%s302 + $0xc] sm:$0xf] %vm328, %v381
      %389 = vst.msk [vmem:[%s302 + $0x18] sm:$0xf] %vm328, %v383
      %v390 = vld [vmem:[%s276] sm:$0xe]
      %v391 = vld [vmem:[%s276 + $0x4] sm:$0x1]
      %vm394 = vcmask 1042432
      %vm395 = vcmask 1046532
      %vm396 = vmor %vm394, %vm395
      %v397 = vrot.slane %v390, 5
      %v398 = vrot.slane %v397, 4
      %v399 = vrot.slane %v391, 5
      %v400 = vsel %vm396, %v398, %v399
      %401 = vrot.lane.b32.xlu0 %v400, 64
      %v402 = vpop.permute.xlu0 %401
      %vm404 = vcmask 781824
      %405 = vst.msk [vmem:[#allocation2] sm:$0xf] %vm404, %v402
      %v406 = vld [vmem:[%s266] sm:$0xe]
      %v407 = vld [vmem:[%s266 + $0x4] sm:$0x1]
      %v408 = vld [vmem:[%s266 + $0x8] sm:$0xe]
      %v409 = vld [vmem:[%s266 + $0xc] sm:$0x1]
      %v410 = vld [vmem:[%s266 + $0x10] sm:$0xe]
      %v411 = vld [vmem:[%s266 + $0x14] sm:$0x1]
      %v418 = vrot.slane %v406, 5
      %v419 = vrot.slane %v418, 4
      %v420 = vrot.slane %v407, 5
      %v421 = vsel %vm396, %v419, %v420
      %v422 = vrot.slane %v408, 5
      %v423 = vrot.slane %v422, 4
      %v424 = vrot.slane %v409, 5
      %v425 = vsel %vm396, %v423, %v424
      %v426 = vrot.slane %v410, 5
      %v427 = vrot.slane %v426, 4
      %v428 = vrot.slane %v411, 5
      %v429 = vsel %vm396, %v427, %v428
      %430 = vrot.lane.b32.xlu0 %v421, 64
      %v431 = vpop.permute.xlu0 %430
      %432 = vrot.lane.b32.xlu0 %v425, 64
      %v433 = vpop.permute.xlu0 %432
      %434 = vrot.lane.b32.xlu0 %v429, 64
      %v435 = vpop.permute.xlu0 %434
      %439 = vst.msk [vmem:[%s302] sm:$0xf] %vm404, %v431
      %440 = vst.msk [vmem:[%s302 + $0xc] sm:$0xf] %vm404, %v433
      %441 = vst.msk [vmem:[%s302 + $0x18] sm:$0xf] %vm404, %v435
      %v442 = vld [vmem:[%s266] sm:$0xf]
      %v443 = vld [vmem:[%s266 + $0x8] sm:$0xf]
      %v444 = vld [vmem:[%s266 + $0x10] sm:$0xf]
      %v445 = vld [vmem:[%s266 + $0x18] sm:$0xf]
      %450 = vrot.lane.b32.xlu0 %v442, 96
      %v451 = vpop.permute.xlu0 %450
      %452 = vrot.lane.b32.xlu0 %v443, 96
      %v453 = vpop.permute.xlu0 %452
      %454 = vrot.lane.b32.xlu0 %v444, 96
      %v455 = vpop.permute.xlu0 %454
      %456 = vrot.lane.b32.xlu0 %v445, 96
      %v457 = vpop.permute.xlu0 %456
      %vm462 = vcmask 1044224
      %463 = vst.msk [vmem:[#allocation2] sm:$0xf] %vm462, %v451
      %464 = vst.msk [vmem:[#allocation2 + $0xc] sm:$0xf] %vm462, %v453
      %465 = vst.msk [vmem:[#allocation2 + $0x18] sm:$0xf] %vm462, %v455
      %466 = vst.msk [vmem:[#allocation2 + $0x24] sm:$0xf] %vm462, %v457
      %v467 = vld [vmem:[%s266] sm:$0xf]
      %v468 = vld [vmem:[%s266 + $0x4] sm:$0x1]
      %v469 = vld [vmem:[%s266 + $0x8] sm:$0xf]
      %v470 = vld [vmem:[%s266 + $0xc] sm:$0x1]
      %v471 = vld [vmem:[%s266 + $0x10] sm:$0xf]
      %v472 = vld [vmem:[%s266 + $0x14] sm:$0x1]
      %v473 = vld [vmem:[%s266 + $0x18] sm:$0xf]
      %v474 = vld [vmem:[%s266 + $0x1c] sm:$0x1]
      %v476 = vshrl.u32 %v467, 16
      %v478 = vrot.slane %v476, 4
      %v479 = vshll.u32 %v467, 16
      %v481 = vrot.slane %v479, 5
      %v482 = vor.u32 %v478, %v481
      %v483 = vrot.slane %v482, 4
      %v485 = vshll.u32 %v468, 16
      %v487 = vrot.slane %v485, 5
      %v488 = vsel %vm310, %v483, %v487
      %v490 = vshrl.u32 %v469, 16
      %v492 = vrot.slane %v490, 4
      %v493 = vshll.u32 %v469, 16
      %v495 = vrot.slane %v493, 5
      %v496 = vor.u32 %v492, %v495
      %v497 = vrot.slane %v496, 4
      %v499 = vshll.u32 %v470, 16
      %v501 = vrot.slane %v499, 5
      %v502 = vsel %vm310, %v497, %v501
      %v504 = vshrl.u32 %v471, 16
      %v506 = vrot.slane %v504, 4
      %v507 = vshll.u32 %v471, 16
      %v509 = vrot.slane %v507, 5
      %v510 = vor.u32 %v506, %v509
      %v511 = vrot.slane %v510, 4
      %v513 = vshll.u32 %v472, 16
      %v515 = vrot.slane %v513, 5
      %v516 = vsel %vm310, %v511, %v515
      %v518 = vshrl.u32 %v473, 16
      %v520 = vrot.slane %v518, 4
      %v521 = vshll.u32 %v473, 16
      %v523 = vrot.slane %v521, 5
      %v524 = vor.u32 %v520, %v523
      %v525 = vrot.slane %v524, 4
      %v527 = vshll.u32 %v474, 16
      %v529 = vrot.slane %v527, 5
      %v530 = vsel %vm310, %v525, %v529
      %535 = vst.msk [vmem:[#allocation2 + $0x4] sm:$0xf] %vm297, %v488
      %536 = vst.msk [vmem:[#allocation2 + $0x10] sm:$0xf] %vm297, %v502
      %537 = vst.msk [vmem:[#allocation2 + $0x1c] sm:$0xf] %vm297, %v516
      %538 = vst.msk [vmem:[#allocation2 + $0x28] sm:$0xf] %vm297, %v530
      %v539 = vld [vmem:[%s266] sm:$0xe]
      %v540 = vld [vmem:[%s266 + $0x4] sm:$0x1]
      %v541 = vld [vmem:[%s266 + $0x8] sm:$0xe]
      %v542 = vld [vmem:[%s266 + $0xc] sm:$0x1]
      %v543 = vld [vmem:[%s266 + $0x10] sm:$0xe]
      %v544 = vld [vmem:[%s266 + $0x14] sm:$0x1]
      %v545 = vld [vmem:[%s266 + $0x18] sm:$0xe]
      %v546 = vld [vmem:[%s266 + $0x1c] sm:$0x1]
      %v555 = vrot.slane %v539, 5
      %v556 = vrot.slane %v555, 4
      %v557 = vrot.slane %v540, 5
      %v558 = vsel %vm396, %v556, %v557
      %v559 = vrot.slane %v541, 5
      %v560 = vrot.slane %v559, 4
      %v561 = vrot.slane %v542, 5
      %v562 = vsel %vm396, %v560, %v561
      %v563 = vrot.slane %v543, 5
      %v564 = vrot.slane %v563, 4
      %v565 = vrot.slane %v544, 5
      %v566 = vsel %vm396, %v564, %v565
      %v567 = vrot.slane %v545, 5
      %v568 = vrot.slane %v567, 4
      %v569 = vrot.slane %v546, 5
      %v570 = vsel %vm396, %v568, %v569
      %571 = vrot.lane.b32.xlu0 %v558, 32
      %v572 = vpop.permute.xlu0 %571
      %573 = vrot.lane.b32.xlu0 %v562, 32
      %v574 = vpop.permute.xlu0 %573
      %575 = vrot.lane.b32.xlu0 %v566, 32
      %v576 = vpop.permute.xlu0 %575
      %577 = vrot.lane.b32.xlu0 %v570, 32
      %v578 = vpop.permute.xlu0 %577
      %583 = vst.msk [vmem:[#allocation2 + $0x4] sm:$0xf] %vm328, %v572
      %584 = vst.msk [vmem:[#allocation2 + $0x10] sm:$0xf] %vm328, %v574
      %585 = vst.msk [vmem:[#allocation2 + $0x1c] sm:$0xf] %vm328, %v576
      %586 = vst.msk [vmem:[#allocation2 + $0x28] sm:$0xf] %vm328, %v578
      %s587 = scalar_lea.vmem %s266, 8
      %v588 = vld [vmem:[%s587] sm:$0xf]
      %v589 = vld [vmem:[%s587 + $0x8] sm:$0xf]
      %v590 = vld [vmem:[%s587 + $0x10] sm:$0xf]
      %594 = vrot.lane.b32.xlu0 %v588, 64
      %v595 = vpop.permute.xlu0 %594
      %596 = vrot.lane.b32.xlu0 %v589, 64
      %v597 = vpop.permute.xlu0 %596
      %598 = vrot.lane.b32.xlu0 %v590, 64
      %v599 = vpop.permute.xlu0 %598
      %603 = vst.msk [vmem:[#allocation2 + $0x4] sm:$0xf] %vm404, %v595
      %604 = vst.msk [vmem:[#allocation2 + $0x10] sm:$0xf] %vm404, %v597
      %605 = vst.msk [vmem:[#allocation2 + $0x1c] sm:$0xf] %vm404, %v599
      %s606 = scalar_lea.vmem %s276, 8
      %v607 = vld [vmem:[%s606] sm:$0xf]
      %609 = vrot.lane.b32.xlu0 %v607, 64
      %v610 = vpop.permute.xlu0 %609
      %s612 = scalar_lea.vmem [#allocation2], 36
      %613 = vst.msk [vmem:[%s612 + $0x4] sm:$0xf] %vm404, %v610
      %v614 = vld [vmem:[%s587] sm:$0xf]
      %v615 = vld [vmem:[%s587 + $0x4] sm:$0x1]
      %v616 = vld [vmem:[%s587 + $0x8] sm:$0xf]
      %v617 = vld [vmem:[%s587 + $0xc] sm:$0x1]
      %v618 = vld [vmem:[%s587 + $0x10] sm:$0xf]
      %v619 = vld [vmem:[%s587 + $0x14] sm:$0x1]
      %v621 = vshrl.u32 %v614, 16
      %v623 = vrot.slane %v621, 4
      %v624 = vshll.u32 %v614, 16
      %v626 = vrot.slane %v624, 5
      %v627 = vor.u32 %v623, %v626
      %v628 = vrot.slane %v627, 4
      %v630 = vshll.u32 %v615, 16
      %v632 = vrot.slane %v630, 5
      %v633 = vsel %vm310, %v628, %v632
      %v635 = vshrl.u32 %v616, 16
      %v637 = vrot.slane %v635, 4
      %v638 = vshll.u32 %v616, 16
      %v640 = vrot.slane %v638, 5
      %v641 = vor.u32 %v637, %v640
      %v642 = vrot.slane %v641, 4
      %v644 = vshll.u32 %v617, 16
      %v646 = vrot.slane %v644, 5
      %v647 = vsel %vm310, %v642, %v646
      %v649 = vshrl.u32 %v618, 16
      %v651 = vrot.slane %v649, 4
      %v652 = vshll.u32 %v618, 16
      %v654 = vrot.slane %v652, 5
      %v655 = vor.u32 %v651, %v654
      %v656 = vrot.slane %v655, 4
      %v658 = vshll.u32 %v619, 16
      %v660 = vrot.slane %v658, 5
      %v661 = vsel %vm310, %v656, %v660
      %662 = vrot.lane.b32.xlu0 %v633, 96
      %v663 = vpop.permute.xlu0 %662
      %664 = vrot.lane.b32.xlu0 %v647, 96
      %v665 = vpop.permute.xlu0 %664
      %666 = vrot.lane.b32.xlu0 %v661, 96
      %v667 = vpop.permute.xlu0 %666
      %671 = vst.msk [vmem:[#allocation2 + $0x4] sm:$0xf] %vm462, %v663
      %672 = vst.msk [vmem:[#allocation2 + $0x10] sm:$0xf] %vm462, %v665
      %673 = vst.msk [vmem:[#allocation2 + $0x1c] sm:$0xf] %vm462, %v667
      %v674 = vld [vmem:[%s606] sm:$0xf]
      %v675 = vld [vmem:[%s606 + $0x4] sm:$0x1]
      %v677 = vshrl.u32 %v674, 16
      %v679 = vrot.slane %v677, 4
      %v680 = vshll.u32 %v674, 16
      %v682 = vrot.slane %v680, 5
      %v683 = vor.u32 %v679, %v682
      %v684 = vrot.slane %v683, 4
      %v686 = vshll.u32 %v675, 16
      %v688 = vrot.slane %v686, 5
      %v689 = vsel %vm310, %v684, %v688
      %690 = vrot.lane.b32.xlu0 %v689, 96
      %v691 = vpop.permute.xlu0 %690
      %693 = vst.msk [vmem:[%s612 + $0x4] sm:$0xf] %vm462, %v691
      %v694 = vld [vmem:[%s587] sm:$0xe]
      %v695 = vld [vmem:[%s587 + $0x4] sm:$0x1]
      %v696 = vld [vmem:[%s587 + $0x8] sm:$0xe]
      %v697 = vld [vmem:[%s587 + $0xc] sm:$0x1]
      %v698 = vld [vmem:[%s587 + $0x10] sm:$0xe]
      %v699 = vld [vmem:[%s587 + $0x14] sm:$0x1]
      %v706 = vrot.slane %v694, 5
      %v707 = vrot.slane %v706, 4
      %v708 = vrot.slane %v695, 5
      %v709 = vsel %vm396, %v707, %v708
      %v710 = vrot.slane %v696, 5
      %v711 = vrot.slane %v710, 4
      %v712 = vrot.slane %v697, 5
      %v713 = vsel %vm396, %v711, %v712
      %v714 = vrot.slane %v698, 5
      %v715 = vrot.slane %v714, 4
      %v716 = vrot.slane %v699, 5
      %v717 = vsel %vm396, %v715, %v716
      %721 = vst.msk [vmem:[#allocation2 + $0x8] sm:$0xf] %vm297, %v709
      %722 = vst.msk [vmem:[#allocation2 + $0x14] sm:$0xf] %vm297, %v713
      %723 = vst.msk [vmem:[#allocation2 + $0x20] sm:$0xf] %vm297, %v717
      %v724 = vld [vmem:[%s606] sm:$0xe]
      %v725 = vld [vmem:[%s606 + $0x4] sm:$0x1]
      %v728 = vrot.slane %v724, 5
      %v729 = vrot.slane %v728, 4
      %v730 = vrot.slane %v725, 5
      %v731 = vsel %vm396, %v729, %v730
      %733 = vst.msk [vmem:[%s612 + $0x8] sm:$0xf] %vm297, %v731
      %v734 = vld [vmem:[#allocation2] sm:$0xff]
      %v735 = vld [vmem:[#allocation2 + $0x8] sm:$0xf]
      %v736 = vld [vmem:[#allocation2 + $0xc] sm:$0xff]
      %v737 = vld [vmem:[#allocation2 + $0x14] sm:$0xf]
      %v738 = vld [vmem:[#allocation2 + $0x18] sm:$0xff]
      %v739 = vld [vmem:[#allocation2 + $0x20] sm:$0xf]
      %v740 = vld [vmem:[#allocation2 + $0x24] sm:$0xff]
      %v741 = vld [vmem:[#allocation2 + $0x2c] sm:$0xf]
      %v742 = vld [vmem:[%s2] sm:$0xf]
      %v743 = vld [vmem:[%s2 + $0x4] sm:$0xf]
      %v744 = vld [vmem:[%s2 + $0x8] sm:$0xf]
      %v745 = vld [vmem:[%s2 + $0xc] sm:$0xf]
      %v746 = vld [vmem:[%s2 + $0x10] sm:$0xf]
      %v747 = vld [vmem:[%s2 + $0x14] sm:$0xf]
      %v748 = vld [vmem:[%s2 + $0x18] sm:$0xf]
      %v749 = vld [vmem:[%s2 + $0x1c] sm:$0xf]
      %v750 = vld [vmem:[%s2 + $0x20] sm:$0xf]
      %v751 = vld [vmem:[%s2 + $0x24] sm:$0xf]
      %v752 = vld [vmem:[%s2 + $0x28] sm:$0xf]
      %v753 = vld [vmem:[%s2 + $0x2c] sm:$0xf]
      %v754 = vld [vmem:[%s2 + $0x30] sm:$0xf]
      %v755 = vld [vmem:[%s2 + $0x34] sm:$0xf]
      %v756 = vld [vmem:[%s2 + $0x38] sm:$0xf]
      %v757 = vld [vmem:[%s2 + $0x3c] sm:$0xf]
      %v758 = vld [vmem:[%s2 + $0x40] sm:$0xf]
      %v759 = vld [vmem:[%s2 + $0x44] sm:$0xf]
      %v760 = vld [vmem:[%s2 + $0x48] sm:$0xf]
      %v761 = vld [vmem:[%s2 + $0x4c] sm:$0xf]
      %v762 = vld [vmem:[%s2 + $0x50] sm:$0xf]
      %v763 = vld [vmem:[%s2 + $0x54] sm:$0xf]
      %v764 = vld [vmem:[%s2 + $0x58] sm:$0xf]
      %v765 = vld [vmem:[%s2 + $0x5c] sm:$0xf]
      %v766 = vld [vmem:[%s2 + $0x60] sm:$0xf]
      %v767 = vld [vmem:[%s2 + $0x64] sm:$0xf]
      %v768 = vld [vmem:[%s2 + $0x68] sm:$0xf]
      %v769 = vld [vmem:[%s2 + $0x6c] sm:$0xf]
      %v770 = vld [vmem:[%s2 + $0x70] sm:$0xf]
      %v771 = vld [vmem:[%s2 + $0x74] sm:$0xf]
      %v772 = vld [vmem:[%s2 + $0x78] sm:$0xf]
      %v773 = vld [vmem:[%s2 + $0x7c] sm:$0xf]
      %v774 = vld [vmem:[%s2 + $0x80] sm:$0xf]
      %v775 = vld [vmem:[%s2 + $0x84] sm:$0xf]
      %v776 = vld [vmem:[%s2 + $0x88] sm:$0xf]
      %v777 = vld [vmem:[%s2 + $0x8c] sm:$0xf]
      %v786 = vunpack.c.l.b16 %v734
      %v787 = vunpack.c.h.b16 %v734
      %v788 = vunpack.c.l.b16 %v735
      %v789 = vunpack.c.l.b16 %v736
      %v790 = vunpack.c.h.b16 %v736
      %v791 = vunpack.c.l.b16 %v737
      %v792 = vunpack.c.l.b16 %v738
      %v793 = vunpack.c.h.b16 %v738
      %v794 = vunpack.c.l.b16 %v739
      %v795 = vunpack.c.l.b16 %v740
      %v796 = vunpack.c.h.b16 %v740
      %v797 = vunpack.c.l.b16 %v741
      %v798 = vpack.c.b16 %v789, %v786
      %v799 = vpack.c.b16 %v790, %v787
      %v800 = vpack.c.b16 %v791, %v788
      %v801 = vpack.c.b16 %v795, %v792
      %v802 = vpack.c.b16 %v796, %v793
      %v803 = vpack.c.b16 %v797, %v794
      %v844 = vunpack.c.l.b16 %v742
      %v845 = vunpack.c.l.b16 %v743
      %v846 = vunpack.c.l.b16 %v744
      %v847 = vunpack.c.l.b16 %v745
      %v848 = vunpack.c.l.b16 %v746
      %v849 = vunpack.c.l.b16 %v747
      %v850 = vunpack.c.l.b16 %v748
      %v851 = vunpack.c.l.b16 %v749
      %v852 = vunpack.c.l.b16 %v750
      %v853 = vunpack.c.l.b16 %v751
      %v854 = vunpack.c.l.b16 %v752
      %v855 = vunpack.c.l.b16 %v753
      %v856 = vunpack.c.l.b16 %v754
      %v857 = vunpack.c.l.b16 %v755
      %v858 = vunpack.c.l.b16 %v756
      %v859 = vunpack.c.l.b16 %v757
      %v860 = vunpack.c.l.b16 %v758
      %v861 = vunpack.c.l.b16 %v759
      %v862 = vunpack.c.l.b16 %v760
      %v863 = vunpack.c.l.b16 %v761
      %v864 = vunpack.c.l.b16 %v762
      %v865 = vunpack.c.l.b16 %v763
      %v866 = vunpack.c.l.b16 %v764
      %v867 = vunpack.c.l.b16 %v765
      %v868 = vunpack.c.l.b16 %v766
      %v869 = vunpack.c.l.b16 %v767
      %v870 = vunpack.c.l.b16 %v768
      %v871 = vunpack.c.l.b16 %v769
      %v872 = vunpack.c.l.b16 %v770
      %v873 = vunpack.c.l.b16 %v771
      %v874 = vunpack.c.l.b16 %v772
      %v875 = vunpack.c.l.b16 %v773
      %v876 = vunpack.c.l.b16 %v774
      %v877 = vunpack.c.l.b16 %v775
      %v878 = vunpack.c.l.b16 %v776
      %v879 = vunpack.c.l.b16 %v777
      %v880 = vpack.c.b16 %v845, %v844
      %v881 = vpack.c.b16 %v847, %v846
      %v882 = vpack.c.b16 %v849, %v848
      %v883 = vpack.c.b16 %v851, %v850
      %v884 = vpack.c.b16 %v853, %v852
      %v885 = vpack.c.b16 %v855, %v854
      %v886 = vpack.c.b16 %v857, %v856
      %v887 = vpack.c.b16 %v859, %v858
      %v888 = vpack.c.b16 %v861, %v860
      %v889 = vpack.c.b16 %v863, %v862
      %v890 = vpack.c.b16 %v865, %v864
      %v891 = vpack.c.b16 %v867, %v866
      %v892 = vpack.c.b16 %v869, %v868
      %v893 = vpack.c.b16 %v871, %v870
      %v894 = vpack.c.b16 %v873, %v872
      %v895 = vpack.c.b16 %v875, %v874
      %v896 = vpack.c.b16 %v877, %v876
      %v897 = vpack.c.b16 %v879, %v878
      %vm916 = vcmask 261120
      %v918 = vsel %vm916, %v800, 0
      %v921 = vsel %vm916, %v803, 0
      %923 = vmatpush.bf16.msra.mxu0 %v887
      %924 = vmatpush.bf16.msra.mxu0 %v886
      %925 = vmatpush.bf16.msra.mxu0 %v885
      %926 = vmatpush.bf16.msra.mxu0 %v884
      %927 = vmatpush.bf16.msra.mxu0 %v883
      %928 = vmatpush.bf16.msra.mxu0 %v882
      %929 = vmatpush.bf16.msra.mxu0 %v881
      %930 = vmatpush.bf16.msra.mxu0 %v880
      %931 = vmatmul.bf16.gmra.mxu0 %v798
      %v932 = vpop.f32.mrf.mxu0
      %v933 = vadd.f32 0.0, %v932
      %v934 = vpop.f32.mrf.mxu0
      %v935 = vadd.f32 0.0, %v934
      %936 = vmatmul.bf16.gmra.mxu0 %v801
      %v937 = vpop.f32.mrf.mxu0
      %v938 = vadd.f32 0.0, %v937
      %v939 = vpop.f32.mrf.mxu0
      %v940 = vadd.f32 0.0, %v939
      %941 = vdwg.mxu0
      %942 = vmatpush.bf16.msra.mxu0 %v895
      %943 = vmatpush.bf16.msra.mxu0 %v894
      %944 = vmatpush.bf16.msra.mxu0 %v893
      %945 = vmatpush.bf16.msra.mxu0 %v892
      %946 = vmatpush.bf16.msra.mxu0 %v891
      %947 = vmatpush.bf16.msra.mxu0 %v890
      %948 = vmatpush.bf16.msra.mxu0 %v889
      %949 = vmatpush.bf16.msra.mxu0 %v888
      %950 = vmatmul.bf16.gmra.mxu0 %v799
      %v951 = vpop.f32.mrf.mxu0
      %v952 = vadd.f32 %v933, %v951
      %v953 = vpop.f32.mrf.mxu0
      %v954 = vadd.f32 %v935, %v953
      %955 = vmatmul.bf16.gmra.mxu0 %v802
      %v956 = vpop.f32.mrf.mxu0
      %v957 = vadd.f32 %v938, %v956
      %v958 = vpop.f32.mrf.mxu0
      %v959 = vadd.f32 %v940, %v958
      %960 = vdwg.mxu0
      %961 = vmatpush.bf16.msra.mxu0 0
      %962 = vmatpush.bf16.msra.mxu0 0
      %963 = vmatpush.bf16.msra.mxu0 0
      %964 = vmatpush.bf16.msra.mxu0 0
      %965 = vmatpush.bf16.msra.mxu0 0
      %966 = vmatpush.bf16.msra.mxu0 0
      %967 = vmatpush.bf16.msra.mxu0 %v897
      %968 = vmatpush.bf16.msra.mxu0 %v896
      %969 = vmatmul.bf16.gmra.mxu0 %v918
      %v970 = vpop.f32.mrf.mxu0
      %v971 = vadd.f32 %v952, %v970
      %v972 = vpop.f32.mrf.mxu0
      %v973 = vadd.f32 %v954, %v972
      %974 = vmatmul.bf16.gmra.mxu0 %v921
      %v975 = vpop.f32.mrf.mxu0
      %v976 = vadd.f32 %v957, %v975
      %v977 = vpop.f32.mrf.mxu0
      %v978 = vadd.f32 %v959, %v977
      %979 = vdwg.mxu0
      %v980 = vpack.c.bf16 %v971, %v971
      %v981 = vpack.c.bf16 %v973, %v973
      %v982 = vpack.c.bf16 %v976, %v976
      %v983 = vpack.c.bf16 %v978, %v978
      %984 = vst.msk [vmem:[%s285] sm:$0xf] %vm297, %v980
      %985 = vst.msk [vmem:[%s285 + $0x4] sm:$0xf] %vm297, %v981
      %986 = vst.msk [vmem:[%s285 + $0x8] sm:$0xf] %vm297, %v982
      %987 = vst.msk [vmem:[%s285 + $0xc] sm:$0xf] %vm297, %v983
      %v988 = vsel %vm916, %v971, 0.0
      %v989 = vsel %vm916, %v973, 0.0
      %v990 = vadd.f32 %v988, %v989
      %v991 = vsel %vm916, %v976, 0.0
      %v992 = vadd.f32 %v990, %v991
      %v993 = vsel %vm916, %v978, 0.0
      %v994 = vadd.f32 %v992, %v993
      %v995 = vrot.slane %v994, 4
      %v996 = vadd.f32 %v994, %v995
      %v997 = vrot.slane %v996, 2
      %v998 = vadd.f32 %v996, %v997
      %v999 = vrot.slane %v998, 1
      %v1000 = vadd.f32 %v998, %v999
      %vm1001 = vcmask 253952
      %1002 = vst.msk [vmem:[%s294] sm:$0x1] %vm1001, %v1000
      %v1003 = vmul.f32 %v971, %v971
      %v1004 = vmul.f32 %v973, %v973
      %v1005 = vmul.f32 %v976, %v976
      %v1006 = vmul.f32 %v978, %v978
      %v1007 = vsel %vm916, %v1003, 0.0
      %v1008 = vsel %vm916, %v1004, 0.0
      %v1009 = vadd.f32 %v1007, %v1008
      %v1010 = vsel %vm916, %v1005, 0.0
      %v1011 = vadd.f32 %v1009, %v1010
      %v1012 = vsel %vm916, %v1006, 0.0
      %v1013 = vadd.f32 %v1011, %v1012
      %v1014 = vrot.slane %v1013, 4
      %v1015 = vadd.f32 %v1013, %v1014
      %v1016 = vrot.slane %v1015, 2
      %v1017 = vadd.f32 %v1015, %v1016
      %v1018 = vrot.slane %v1017, 1
      %v1019 = vadd.f32 %v1017, %v1018
      %1020 = vst.msk [vmem:[%s294 + $0x1] sm:$0x1] %vm1001, %v1019
      %s1021 = smul.u32 4, %s21
      %p1022 = scmp.lt.s32.totalorder %s20, 1
      %s1023 = scalar_select %p1022, %s20, 1
      %p1024 = scmp.lt.s32.totalorder %s1021, 7
      %s1025 = scalar_select %p1024, %s1021, 7
      %s1026 = smul.addr %s1023, 8
      %s1027 = sadd.s32 %s1025, %s1026
      %s1028 = smul.addr %s1027, 4
      %s1029 = scalar_lea.vmem %s3, %s1028
      %p1030 = scmp.lt.s32.totalorder %s20, 1
      %s1031 = scalar_select %p1030, %s20, 1
      %p1032 = scmp.lt.s32.totalorder %s21, 1
      %s1033 = scalar_select %p1032, %s21, 1
      %s1034 = smul.addr %s1031, 2
      %s1035 = sadd.s32 %s1033, %s1034
      %s1036 = smul.addr %s1035, 2
      %s1037 = scalar_lea.vmem %s4, %s1036
      // Predicated region
      $region33: #{encoder_forward.18} parent=31 // pred_check
        %p1038 = pneg %p125
      $region34: #{encoder_forward.18} parent=31 // pred_check_branch
        %1040 = sbr.rel (%p1038) target = $region36
      $region35: #{encoder_forward.18} parent=31 // pred_region
        %s1041 = smul.u32 4, %s21
      $region36: #{encoder_forward.18} parent=31 // pred_fallthru
        _
      // Predicated region
      $region37: #{encoder_forward.18} parent=31 // pred_check
        %p1042 = pneg %p153
      $region38: #{encoder_forward.18} parent=31 // pred_check_branch
        %1044 = sbr.rel (%p1042) target = $region40
      $region39: #{encoder_forward.18} parent=31 // pred_region
        _
      $region40: #{encoder_forward.18} parent=31 // pred_fallthru
        _
    $region32: #{encoder_forward.18} parent=5 // pred_fallthru
      _
    %p1045 = scmp.le.s32.totalorder 2, %s11
    // Predicated region
    $region41: #{encoder_forward.18} parent=5 // pred_check
      %p1046 = pneg %p1045
    $region42: #{encoder_forward.18} parent=5 // pred_check_branch
      %1048 = sbr.rel (%p1046) target = $region44
    $region43: #{encoder_forward.18} parent=5 // pred_region
      %s1049 = ssub.s32 %s11, 2
      // Predicated region
      $region45: #{encoder_forward.18} parent=43 // pred_check
        %p1050 = pneg %p131
      $region46: #{encoder_forward.18} parent=43 // pred_check_branch
        %1052 = sbr.rel (%p1050) target = $region48
      $region47: #{encoder_forward.18} parent=43 // pred_region
        %s1053 = smul.u32 4, %s23
        %p1054 = scmp.lt.s32.totalorder %s22, 1
        %s1055 = scalar_select %p1054, %s22, 1
        %p1056 = scmp.lt.s32.totalorder %s1053, 7
        %s1057 = scalar_select %p1056, %s1053, 7
        %s1058 = smul.addr %s1055, 8
        %s1059 = sadd.s32 %s1057, %s1058
        %s1060 = smul.addr %s1059, 4
        %s1061 = scalar_lea.vmem %s3, %s1060
      $region48: #{encoder_forward.18} parent=43 // pred_fallthru
        _
      // Predicated region
      $region49: #{encoder_forward.18} parent=43 // pred_check
        %p1062 = pneg %p159
      $region50: #{encoder_forward.18} parent=43 // pred_check_branch
        %1064 = sbr.rel (%p1062) target = $region52
      $region51: #{encoder_forward.18} parent=43 // pred_region
        %p1065 = scmp.lt.s32.totalorder %s22, 1
        %s1066 = scalar_select %p1065, %s22, 1
        %p1067 = scmp.lt.s32.totalorder %s23, 1
        %s1068 = scalar_select %p1067, %s23, 1
        %s1069 = smul.addr %s1066, 2
        %s1070 = sadd.s32 %s1068, %s1069
        %s1071 = smul.addr %s1070, 2
        %s1072 = scalar_lea.vmem %s4, %s1071
      $region52: #{encoder_forward.18} parent=43 // pred_fallthru
        _
    $region44: #{encoder_forward.18} parent=5 // pred_fallthru
      _
  $region6: #{encoder_forward.18} parent=0 // loop_footer
    %s15 = sadd.s32 1, %s11
  $region7: #{encoder_forward.18} parent=0 // loop_footer_branch
    %10 = sbr.rel target = $region3
  $region8: #{encoder_forward.18} parent=0 // loop_exit
    _

// kernel: encoder_forward.20
$region0: #{encoder_forward.20}
  #allocation0 [shape = 'u32[]', space=smem, size = 0x4, offset = 0x4, fixed_abs, tag = 'smem constant byte address 0x4 - core index']
  #allocation1 [shape = 'u32[72,128]{1,0:T(1,128)}', space=vmem, size = 0x9000, scoped, tag = 'internal scratch']
  #allocation2 [shape = 'bf16[4,4,384]{2,1,0:T(4,128)(2,1)}', space=vmem, size = 0x3000, scoped, tag = 'scratch operand']
  %s0 = inlined_call_operand.vmem [shape: bf16[2,4,2,5,64], index: 0, kind: input, shape index: {}]
  %s1 = inlined_call_operand.vmem [shape: bf16[2,1,2,5,64], index: 1, kind: input, shape index: {}]
  %s2 = inlined_call_operand.vmem [shape: bf16[384,64], index: 2, kind: input, shape index: {}]
  %s3 = inlined_call_operand.vmem [shape: bf16[2,4,4,64], index: 3, kind: output, shape index: {0}]
  %s4 = inlined_call_operand.vmem [shape: f32[2,1,2,64], index: 4, kind: output, shape index: {1}]
  %5 = xla_tuple %s3, %s4
  %s6 = sld [smem:[#allocation0]]
  $region53: #{encoder_forward.20} parent=0
    _
  %s8 = ssub.s32 1, %s6
  %s9 = scalar_select 0, %s8, %s6
  loop: start=0, step=1, limit=4
  $region2: #{encoder_forward.20} parent=0 // loop_pre_header
    _
  $region3: #{encoder_forward.20} parent=0 // loop_header
    %s11 = sphi 0, %s15
    %p12 = scmp.ge.s32.totalorder %s11, 4
    %s18 = sphi 0, %s30
    %s19 = sphi 0, %s26
    %s20 = sphi 0, %s18
    %s21 = sphi 0, %s19
    %s22 = sphi 0, %s20
    %s23 = sphi 0, %s21
    %s35 = sphi 0, %s37
    %s38 = sphi 0, %s35
    %s39 = sphi 0, %s38
    %s55 = sphi 0, %s39
    %s63 = sphi 0, %s65
    %s66 = sphi 0, %s63
    %s67 = sphi 0, %s66
    %s83 = sphi 0, %s67
    %s87 = sphi 0, %s87
    %s89 = sphi 0, %s87
    %s90 = sphi 0, %s89
    %s104 = sphi 0, %s90
    %s112 = sphi 0, %s114
    %s115 = sphi 0, %s112
    %s116 = sphi 0, %s115
    %s132 = sphi 0, %s116
    %s140 = sphi 0, %s142
    %s143 = sphi 0, %s140
    %s144 = sphi 0, %s143
    %s160 = sphi 0, %s144
  $region4: #{encoder_forward.20} parent=0 // loop_header_branch
    %14 = sbr.rel (%p12) target = $region8
  $region5: #{encoder_forward.20} parent=0 // loop_body
    %s16 = ssub.s32 %s11, 1
    %s17 = ssub.s32 %s11, 2
    %s24 = sadd.s32 1, %s19
    %p25 = scmp.ge.s32.totalorder %s24, 1
    %s26 = scalar_select %p25, 0, %s24
    %s27 = sadd.s32 1, %s18
    %s28 = scalar_select %p25, %s27, %s18
    %p29 = scmp.ge.s32.totalorder %s28, 2
    %s30 = scalar_select %p29, 0, %s28
    %s31 = ssub.s32 %s18, %s30
    %s32 = ssub.s32 %s19, %s26
    %s33 = sor.u32 %s31, %s32
    %p34 = scmp.eq.s32.totalorder %s33, 0
    %s36 = sadd.s32 %s35, 1
    %s37 = scalar_select %p34, %s35, %s36
    %p40 = pneg %p34
    %p41 = scmp.eq.s32.totalorder %s11, 1
    %p42 = por %p40, %p41
    %p43 = scmp.ne.s32.totalorder %s35, %s38
    %p44 = scmp.eq.s32.totalorder %s11, 0
    %p45 = por %p43, %p44
    %p46 = scmp.ne.s32.totalorder %s35, %s38
    %p47 = scmp.eq.s32.totalorder %s16, 1
    %p48 = por %p46, %p47
    %p49 = scmp.ne.s32.totalorder %s38, %s39
    %p50 = scmp.eq.s32.totalorder %s16, 0
    %p51 = por %p49, %p50
    %p52 = scmp.ne.s32.totalorder %s38, %s39
    %p53 = scmp.eq.s32.totalorder %s17, 1
    %p54 = por %p52, %p53
    %p56 = scmp.ne.s32.totalorder %s39, %s55
    %p57 = scmp.eq.s32.totalorder %s17, 0
    %p58 = por %p56, %p57
    %s59 = ssub.s32 %s18, %s30
    %s60 = ssub.s32 %s19, %s26
    %s61 = sor.u32 %s59, %s60
    %p62 = scmp.eq.s32.totalorder %s61, 0
    %s64 = sadd.s32 %s63, 1
    %s65 = scalar_select %p62, %s63, %s64
    %p68 = pneg %p62
    %p69 = scmp.eq.s32.totalorder %s11, 1
    %p70 = por %p68, %p69
    %p71 = scmp.ne.s32.totalorder %s63, %s66
    %p72 = scmp.eq.s32.totalorder %s11, 0
    %p73 = por %p71, %p72
    %p74 = scmp.ne.s32.totalorder %s63, %s66
    %p75 = scmp.eq.s32.totalorder %s16, 1
    %p76 = por %p74, %p75
    %p77 = scmp.ne.s32.totalorder %s66, %s67
    %p78 = scmp.eq.s32.totalorder %s16, 0
    %p79 = por %p77, %p78
    %p80 = scmp.ne.s32.totalorder %s66, %s67
    %p81 = scmp.eq.s32.totalorder %s17, 1
    %p82 = por %p80, %p81
    %p84 = scmp.ne.s32.totalorder %s67, %s83
    %p85 = scmp.eq.s32.totalorder %s17, 0
    %p86 = por %p84, %p85
    %s88 = sadd.s32 %s87, 1
    %p91 = scmp.eq.s32.totalorder %s11, 1
    %p92 = scmp.ne.s32.totalorder %s87, %s89
    %p93 = scmp.eq.s32.totalorder %s11, 0
    %p94 = por %p92, %p93
    %p95 = scmp.ne.s32.totalorder %s87, %s89
    %p96 = scmp.eq.s32.totalorder %s16, 1
    %p97 = por %p95, %p96
    %p98 = scmp.ne.s32.totalorder %s89, %s90
    %p99 = scmp.eq.s32.totalorder %s16, 0
    %p100 = por %p98, %p99
    %p101 = scmp.ne.s32.totalorder %s89, %s90
    %p102 = scmp.eq.s32.totalorder %s17, 1
    %p103 = por %p101, %p102
    %p105 = scmp.ne.s32.totalorder %s90, %s104
    %p106 = scmp.eq.s32.totalorder %s17, 0
    %p107 = por %p105, %p106
    %s108 = ssub.s32 %s18, %s30
    %s109 = ssub.s32 %s19, %s26
    %s110 = sor.u32 %s108, %s109
    %p111 = scmp.eq.s32.totalorder %s110, 0
    %s113 = sadd.s32 %s112, 1
    %s114 = scalar_select %p111, %s112, %s113
    %p117 = pneg %p111
    %p118 = scmp.eq.s32.totalorder %s11, 1
    %p119 = por %p117, %p118
    %p120 = scmp.ne.s32.totalorder %s112, %s115
    %p121 = scmp.eq.s32.totalorder %s11, 0
    %p122 = por %p120, %p121
    %p123 = scmp.ne.s32.totalorder %s112, %s115
    %p124 = scmp.eq.s32.totalorder %s16, 1
    %p125 = por %p123, %p124
    %p126 = scmp.ne.s32.totalorder %s115, %s116
    %p127 = scmp.eq.s32.totalorder %s16, 0
    %p128 = por %p126, %p127
    %p129 = scmp.ne.s32.totalorder %s115, %s116
    %p130 = scmp.eq.s32.totalorder %s17, 1
    %p131 = por %p129, %p130
    %p133 = scmp.ne.s32.totalorder %s116, %s132
    %p134 = scmp.eq.s32.totalorder %s17, 0
    %p135 = por %p133, %p134
    %s136 = ssub.s32 %s18, %s30
    %s137 = ssub.s32 %s19, %s26
    %s138 = sor.u32 %s136, %s137
    %p139 = scmp.eq.s32.totalorder %s138, 0
    %s141 = sadd.s32 %s140, 1
    %s142 = scalar_select %p139, %s140, %s141
    %p145 = pneg %p139
    %p146 = scmp.eq.s32.totalorder %s11, 1
    %p147 = por %p145, %p146
    %p148 = scmp.ne.s32.totalorder %s140, %s143
    %p149 = scmp.eq.s32.totalorder %s11, 0
    %p150 = por %p148, %p149
    %p151 = scmp.ne.s32.totalorder %s140, %s143
    %p152 = scmp.eq.s32.totalorder %s16, 1
    %p153 = por %p151, %p152
    %p154 = scmp.ne.s32.totalorder %s143, %s144
    %p155 = scmp.eq.s32.totalorder %s16, 0
    %p156 = por %p154, %p155
    %p157 = scmp.ne.s32.totalorder %s143, %s144
    %p158 = scmp.eq.s32.totalorder %s17, 1
    %p159 = por %p157, %p158
    %p161 = scmp.ne.s32.totalorder %s144, %s160
    %p162 = scmp.eq.s32.totalorder %s17, 0
    %p163 = por %p161, %p162
    %p164 = scmp.le.s32.totalorder 1, %s11
    %p165 = scmp.lt.s32.totalorder %s11, 3
    %p166 = pnand %p164, %p165
    %p167 = pneg %p166
    // Predicated region
    $region9: #{encoder_forward.20} parent=5 // pred_check
      _
    $region10: #{encoder_forward.20} parent=5 // pred_check_branch
      %169 = sbr.rel (%p166) target = $region12
    $region11: #{encoder_forward.20} parent=5 // pred_region
      %s170 = ssub.s32 %s11, 1
      // Predicated region
      $region13: #{encoder_forward.20} parent=11 // pred_check
        %p171 = pneg %p100
      $region14: #{encoder_forward.20} parent=11 // pred_check_branch
        %173 = sbr.rel (%p171) target = $region16
      $region15: #{encoder_forward.20} parent=11 // pred_region
        _
      $region16: #{encoder_forward.20} parent=11 // pred_fallthru
        _
    $region12: #{encoder_forward.20} parent=5 // pred_fallthru
      _
    %p174 = scmp.lt.s32.totalorder %s11, 2
    // Predicated region
    $region17: #{encoder_forward.20} parent=5 // pred_check
      %p175 = pneg %p174
    $region18: #{encoder_forward.20} parent=5 // pred_check_branch
      %177 = sbr.rel (%p175) target = $region20
    $region19: #{encoder_forward.20} parent=5 // pred_region
      // Predicated region
      $region21: #{encoder_forward.20} parent=19 // pred_check
        %p178 = pneg %p45
      $region22: #{encoder_forward.20} parent=19 // pred_check_branch
        %180 = sbr.rel (%p178) target = $region24
      $region23: #{encoder_forward.20} parent=19 // pred_region
        %s181 = smul.u32 4, %s19
        %p182 = scmp.lt.s32.totalorder %s18, 1
        %s183 = scalar_select %p182, %s18, 1
        %p184 = scmp.lt.s32.totalorder %s181, 3
        %s185 = scalar_select %p184, %s181, 3
        %s186 = smul.addr %s185, 2
        %s187 = smul.addr %s183, 8
        %s188 = sadd.s32 %s186, %s187
        %s189 = smul.addr %s188, 4
        %s190 = scalar_lea.vmem %s0, %s189
        %s191 = smul.u32 4, %s19
      $region24: #{encoder_forward.20} parent=19 // pred_fallthru
        _
      // Predicated region
      $region25: #{encoder_forward.20} parent=19 // pred_check
        %p192 = pneg %p73
      $region26: #{encoder_forward.20} parent=19 // pred_check_branch
        %194 = sbr.rel (%p192) target = $region28
      $region27: #{encoder_forward.20} parent=19 // pred_region
        %p195 = scmp.lt.s32.totalorder %s18, 1
        %s196 = scalar_select %p195, %s18, 1
        %p197 = scmp.lt.s32.totalorder %s19, 0
        %s198 = scalar_select %p197, %s19, 0
        %s199 = smul.addr %s198, 2
        %s200 = smul.addr %s196, 2
        %s201 = sadd.s32 %s199, %s200
        %s202 = smul.addr %s201, 4
        %s203 = scalar_lea.vmem %s1, %s202
      $region28: #{encoder_forward.20} parent=19 // pred_fallthru
        _
    $region20: #{encoder_forward.20} parent=5 // pred_fallthru
      _
    %p204 = scmp.le.s32.totalorder 1, %s11
    %p205 = scmp.lt.s32.totalorder %s11, 3
    %p206 = pnand %p204, %p205
    %p207 = pneg %p206
    // Predicated region
    $region29: #{encoder_forward.20} parent=5 // pred_check
      _
    $region30: #{encoder_forward.20} parent=5 // pred_check_branch
      %209 = sbr.rel (%p206) target = $region32
    $region31: #{encoder_forward.20} parent=5 // pred_region
      %s210 = ssub.s32 %s11, 1
      %s211 = smul.u32 4, %s21
      %p212 = scmp.lt.s32.totalorder %s20, 1
      %s213 = scalar_select %p212, %s20, 1
      %p214 = scmp.lt.s32.totalorder %s211, 3
      %s215 = scalar_select %p214, %s211, 3
      %s216 = smul.addr %s215, 2
      %s217 = smul.addr %s213, 8
      %s218 = sadd.s32 %s216, %s217
      %s219 = smul.addr %s218, 4
      %s220 = scalar_lea.vmem %s0, %s219
      %p221 = pneg %p51
      %p222 = pneg %p48
      %p223 = scmp.lt.s32.totalorder %s20, 1
      %s224 = scalar_select %p223, %s20, 1
      %p225 = scmp.lt.s32.totalorder %s21, 0
      %s226 = scalar_select %p225, %s21, 0
      %s227 = smul.addr %s226, 2
      %s228 = smul.addr %s224, 2
      %s229 = sadd.s32 %s227, %s228
      %s230 = smul.addr %s229, 4
      %s231 = scalar_lea.vmem %s1, %s230
      %p232 = pneg %p79
      %p233 = pneg %p76
      %p234 = pneg %p100
      %p235 = pneg %p97
      %p236 = pneg %p128
      %p237 = pneg %p125
      %s238 = smul.u32 4, %s21
      %p239 = scmp.lt.s32.totalorder %s20, 1
      %s240 = scalar_select %p239, %s20, 1
      %p241 = scmp.lt.s32.totalorder %s238, 3
      %s242 = scalar_select %p241, %s238, 3
      %s243 = smul.addr %s240, 4
      %s244 = sadd.s32 %s242, %s243
      %s245 = smul.addr %s244, 2
      %s246 = scalar_lea.vmem %s3, %s245
      %p247 = pneg %p156
      %p248 = pneg %p153
      %p249 = scmp.lt.s32.totalorder %s20, 1
      %s250 = scalar_select %p249, %s20, 1
      %p251 = scmp.lt.s32.totalorder %s21, 0
      %s252 = scalar_select %p251, %s21, 0
      %s253 = sadd.s32 %s252, %s250
      %s254 = smul.addr %s253, 2
      %s255 = scalar_lea.vmem %s4, %s254
      %s256 = smul.u32 4, %s21
      %p257 = scmp.lt.s32.totalorder %s20, 1
      %s258 = scalar_select %p257, %s20, 1
      %p259 = scmp.lt.s32.totalorder %s256, 3
      %s260 = scalar_select %p259, %s256, 3
      %s261 = smul.addr %s260, 2
      %s262 = smul.addr %s258, 8
      %s263 = sadd.s32 %s261, %s262
      %s264 = smul.addr %s263, 4
      %s265 = scalar_lea.vmem %s0, %s264
      %s266 = smul.u32 4, %s21
      %p267 = scmp.lt.s32.totalorder %s20, 1
      %s268 = scalar_select %p267, %s20, 1
      %p269 = scmp.lt.s32.totalorder %s21, 0
      %s270 = scalar_select %p269, %s21, 0
      %s271 = smul.addr %s270, 2
      %s272 = smul.addr %s268, 2
      %s273 = sadd.s32 %s271, %s272
      %s274 = smul.addr %s273, 4
      %s275 = scalar_lea.vmem %s1, %s274
      %s276 = smul.u32 4, %s21
      %p277 = scmp.lt.s32.totalorder %s20, 1
      %s278 = scalar_select %p277, %s20, 1
      %p279 = scmp.lt.s32.totalorder %s276, 3
      %s280 = scalar_select %p279, %s276, 3
      %s281 = smul.addr %s278, 4
      %s282 = sadd.s32 %s280, %s281
      %s283 = smul.addr %s282, 2
      %s284 = scalar_lea.vmem %s3, %s283
      %s285 = smul.u32 4, %s21
      %p286 = scmp.lt.s32.totalorder %s20, 1
      %s287 = scalar_select %p286, %s20, 1
      %p288 = scmp.lt.s32.totalorder %s21, 0
      %s289 = scalar_select %p288, %s21, 0
      %s290 = sadd.s32 %s289, %s287
      %s291 = smul.addr %s290, 2
      %s292 = scalar_lea.vmem %s4, %s291
      %v293 = vld [vmem:[%s275] sm:$0x3]
      %vm294 = vcmask 517120
      %295 = vst.msk [vmem:[#allocation2] sm:$0x3] %vm294, %v293
      %s296 = scalar_lea.vmem %s265, 4
      %v297 = vld [vmem:[%s296] sm:$0x3]
      %v298 = vld [vmem:[%s296 + $0x8] sm:$0x3]
      %v299 = vld [vmem:[%s296 + $0x10] sm:$0x3]
      %s300 = scalar_lea.vmem [#allocation2], 6
      %301 = vst.msk [vmem:[%s300] sm:$0x3] %vm294, %v297
      %302 = vst.msk [vmem:[%s300 + $0x6] sm:$0x3] %vm294, %v298
      %303 = vst.msk [vmem:[%s300 + $0xc] sm:$0x3] %vm294, %v299
      %v304 = vld [vmem:[%s275] sm:$0x7]
      %v306 = vrot.slane %v304, 2
      %vm307 = vcmask 1041408
      %v310 = vsel %vm307, %v304, %v306
      %vm311 = vcmask 1043458
      %v312 = vsel %vm311, %v304, %v306
      %v314 = vrot.slane %v312, 2
      %vm315 = vsmask.f32 1280
      %vm316 = vsmask.f32 3336
      %vm317 = vmor %vm315, %vm316
      %vm318 = vsmask.f32 5392
      %vm319 = vmor %vm317, %vm318
      %vm320 = vsmask.f32 7448
      %vm321 = vmor %vm319, %vm320
      %v322 = vshrl.u32 %v310, 16
      %v324 = vrot.slane %v322, 6
      %v325 = vshll.u32 %v310, 16
      %v327 = vrot.slane %v325, 7
      %v328 = vor.u32 %v324, %v327
      %v329 = vrot.slane %v328, 2
      %v331 = vshll.u32 %v314, 16
      %v333 = vrot.slane %v331, 7
      %v334 = vsel %vm321, %v329, %v333
      %335 = vrot.lane.b32.xlu0 %v334, 64
      %v336 = vpop.permute.xlu0 %335
      %vm338 = vcmask 1041920
      %339 = vst.msk [vmem:[#allocation2] sm:$0x3] %vm338, %v336
      %v340 = vld [vmem:[%s296] sm:$0x7]
      %v341 = vld [vmem:[%s296 + $0x8] sm:$0x7]
      %v342 = vld [vmem:[%s296 + $0x10] sm:$0x7]
      %v346 = vrot.slane %v340, 2
      %v347 = vrot.slane %v341, 2
      %v348 = vrot.slane %v342, 2
      %v351 = vsel %vm307, %v340, %v346
      %v352 = vsel %vm311, %v340, %v346
      %v354 = vrot.slane %v352, 2
      %v357 = vsel %vm307, %v341, %v347
      %v358 = vsel %vm311, %v341, %v347
      %v360 = vrot.slane %v358, 2
      %v363 = vsel %vm307, %v342, %v348
      %v364 = vsel %vm311, %v342, %v348
      %v366 = vrot.slane %v364, 2
      %v367 = vshrl.u32 %v351, 16
      %v369 = vrot.slane %v367, 6
      %v370 = vshll.u32 %v351, 16
      %v372 = vrot.slane %v370, 7
      %v373 = vor.u32 %v369, %v372
      %v374 = vrot.slane %v373, 2
      %v376 = vshll.u32 %v354, 16
      %v378 = vrot.slane %v376, 7
      %v379 = vsel %vm321, %v374, %v378
      %v380 = vshrl.u32 %v357, 16
      %v382 = vrot.slane %v380, 6
      %v383 = vshll.u32 %v357, 16
      %v385 = vrot.slane %v383, 7
      %v386 = vor.u32 %v382, %v385
      %v387 = vrot.slane %v386, 2
      %v389 = vshll.u32 %v360, 16
      %v391 = vrot.slane %v389, 7
      %v392 = vsel %vm321, %v387, %v391
      %v393 = vshrl.u32 %v363, 16
      %v395 = vrot.slane %v393, 6
      %v396 = vshll.u32 %v363, 16
      %v398 = vrot.slane %v396, 7
      %v399 = vor.u32 %v395, %v398
      %v400 = vrot.slane %v399, 2
      %v402 = vshll.u32 %v366, 16
      %v404 = vrot.slane %v402, 7
      %v405 = vsel %vm321, %v400, %v404
      %406 = vrot.lane.b32.xlu0 %v379, 64
      %v407 = vpop.permute.xlu0 %406
      %408 = vrot.lane.b32.xlu0 %v392, 64
      %v409 = vpop.permute.xlu0 %408
      %410 = vrot.lane.b32.xlu0 %v405, 64
      %v411 = vpop.permute.xlu0 %410
      %415 = vst.msk [vmem:[%s300] sm:$0x3] %vm338, %v407
      %416 = vst.msk [vmem:[%s300 + $0x6] sm:$0x3] %vm338, %v409
      %417 = vst.msk [vmem:[%s300 + $0xc] sm:$0x3] %vm338, %v411
      %v418 = vld [vmem:[%s265] sm:$0x3]
      %v419 = vld [vmem:[%s265 + $0x8] sm:$0x3]
      %v420 = vld [vmem:[%s265 + $0x10] sm:$0x3]
      %v421 = vld [vmem:[%s265 + $0x18] sm:$0x3]
      %422 = vst.msk [vmem:[#allocation2 + $0x2] sm:$0x3] %vm294, %v418
      %423 = vst.msk [vmem:[#allocation2 + $0x8] sm:$0x3] %vm294, %v419
      %424 = vst.msk [vmem:[#allocation2 + $0xe] sm:$0x3] %vm294, %v420
      %425 = vst.msk [vmem:[#allocation2 + $0x14] sm:$0x3] %vm294, %v421
      %v426 = vld [vmem:[%s265] sm:$0x7]
      %v427 = vld [vmem:[%s265 + $0x8] sm:$0x7]
      %v428 = vld [vmem:[%s265 + $0x10] sm:$0x7]
      %v429 = vld [vmem:[%s265 + $0x18] sm:$0x7]
      %v434 = vrot.slane %v426, 2
      %v435 = vrot.slane %v427, 2
      %v436 = vrot.slane %v428, 2
      %v437 = vrot.slane %v429, 2
      %v440 = vsel %vm307, %v426, %v434
      %v441 = vsel %vm311, %v426, %v434
      %v443 = vrot.slane %v441, 2
      %v446 = vsel %vm307, %v427, %v435
      %v447 = vsel %vm311, %v427, %v435
      %v449 = vrot.slane %v447, 2
      %v452 = vsel %vm307, %v428, %v436
      %v453 = vsel %vm311, %v428, %v436
      %v455 = vrot.slane %v453, 2
      %v458 = vsel %vm307, %v429, %v437
      %v459 = vsel %vm311, %v429, %v437
      %v461 = vrot.slane %v459, 2
      %v462 = vshrl.u32 %v440, 16
      %v464 = vrot.slane %v462, 6
      %v465 = vshll.u32 %v440, 16
      %v467 = vrot.slane %v465, 7
      %v468 = vor.u32 %v464, %v467
      %v469 = vrot.slane %v468, 2
      %v471 = vshll.u32 %v443, 16
      %v473 = vrot.slane %v471, 7
      %v474 = vsel %vm321, %v469, %v473
      %v475 = vshrl.u32 %v446, 16
      %v477 = vrot.slane %v475, 6
      %v478 = vshll.u32 %v446, 16
      %v480 = vrot.slane %v478, 7
      %v481 = vor.u32 %v477, %v480
      %v482 = vrot.slane %v481, 2
      %v484 = vshll.u32 %v449, 16
      %v486 = vrot.slane %v484, 7
      %v487 = vsel %vm321, %v482, %v486
      %v488 = vshrl.u32 %v452, 16
      %v490 = vrot.slane %v488, 6
      %v491 = vshll.u32 %v452, 16
      %v493 = vrot.slane %v491, 7
      %v494 = vor.u32 %v490, %v493
      %v495 = vrot.slane %v494, 2
      %v497 = vshll.u32 %v455, 16
      %v499 = vrot.slane %v497, 7
      %v500 = vsel %vm321, %v495, %v499
      %v501 = vshrl.u32 %v458, 16
      %v503 = vrot.slane %v501, 6
      %v504 = vshll.u32 %v458, 16
      %v506 = vrot.slane %v504, 7
      %v507 = vor.u32 %v503, %v506
      %v508 = vrot.slane %v507, 2
      %v510 = vshll.u32 %v461, 16
      %v512 = vrot.slane %v510, 7
      %v513 = vsel %vm321, %v508, %v512
      %514 = vrot.lane.b32.xlu0 %v474, 64
      %v515 = vpop.permute.xlu0 %514
      %516 = vrot.lane.b32.xlu0 %v487, 64
      %v517 = vpop.permute.xlu0 %516
      %518 = vrot.lane.b32.xlu0 %v500, 64
      %v519 = vpop.permute.xlu0 %518
      %520 = vrot.lane.b32.xlu0 %v513, 64
      %v521 = vpop.permute.xlu0 %520
      %526 = vst.msk [vmem:[#allocation2 + $0x2] sm:$0x3] %vm338, %v515
      %527 = vst.msk [vmem:[#allocation2 + $0x8] sm:$0x3] %vm338, %v517
      %528 = vst.msk [vmem:[#allocation2 + $0xe] sm:$0x3] %vm338, %v519
      %529 = vst.msk [vmem:[#allocation2 + $0x14] sm:$0x3] %vm338, %v521
      %v530 = vld [vmem:[%s296] sm:$0x3]
      %v531 = vld [vmem:[%s296 + $0x8] sm:$0x3]
      %v532 = vld [vmem:[%s296 + $0x10] sm:$0x3]
      %v533 = vld [vmem:[%s296 + $0x18] sm:$0x3]
      %534 = vst.msk [vmem:[#allocation2 + $0x4] sm:$0x3] %vm294, %v530
      %535 = vst.msk [vmem:[#allocation2 + $0xa] sm:$0x3] %vm294, %v531
      %536 = vst.msk [vmem:[#allocation2 + $0x10] sm:$0x3] %vm294, %v532
      %537 = vst.msk [vmem:[#allocation2 + $0x16] sm:$0x3] %vm294, %v533
      %v538 = vld [vmem:[%s296] sm:$0x7]
      %v539 = vld [vmem:[%s296 + $0x8] sm:$0x7]
      %v540 = vld [vmem:[%s296 + $0x10] sm:$0x7]
      %v541 = vld [vmem:[%s296 + $0x18] sm:$0x7]
      %v546 = vrot.slane %v538, 2
      %v547 = vrot.slane %v539, 2
      %v548 = vrot.slane %v540, 2
      %v549 = vrot.slane %v541, 2
      %v552 = vsel %vm307, %v538, %v546
      %v553 = vsel %vm311, %v538, %v546
      %v555 = vrot.slane %v553, 2
      %v558 = vsel %vm307, %v539, %v547
      %v559 = vsel %vm311, %v539, %v547
      %v561 = vrot.slane %v559, 2
      %v564 = vsel %vm307, %v540, %v548
      %v565 = vsel %vm311, %v540, %v548
      %v567 = vrot.slane %v565, 2
      %v570 = vsel %vm307, %v541, %v549
      %v571 = vsel %vm311, %v541, %v549
      %v573 = vrot.slane %v571, 2
      %v574 = vshrl.u32 %v552, 16
      %v576 = vrot.slane %v574, 6
      %v577 = vshll.u32 %v552, 16
      %v579 = vrot.slane %v577, 7
      %v580 = vor.u32 %v576, %v579
      %v581 = vrot.slane %v580, 2
      %v583 = vshll.u32 %v555, 16
      %v585 = vrot.slane %v583, 7
      %v586 = vsel %vm321, %v581, %v585
      %v587 = vshrl.u32 %v558, 16
      %v589 = vrot.slane %v587, 6
      %v590 = vshll.u32 %v558, 16
      %v592 = vrot.slane %v590, 7
      %v593 = vor.u32 %v589, %v592
      %v594 = vrot.slane %v593, 2
      %v596 = vshll.u32 %v561, 16
      %v598 = vrot.slane %v596, 7
      %v599 = vsel %vm321, %v594, %v598
      %v600 = vshrl.u32 %v564, 16
      %v602 = vrot.slane %v600, 6
      %v603 = vshll.u32 %v564, 16
      %v605 = vrot.slane %v603, 7
      %v606 = vor.u32 %v602, %v605
      %v607 = vrot.slane %v606, 2
      %v609 = vshll.u32 %v567, 16
      %v611 = vrot.slane %v609, 7
      %v612 = vsel %vm321, %v607, %v611
      %v613 = vshrl.u32 %v570, 16
      %v615 = vrot.slane %v613, 6
      %v616 = vshll.u32 %v570, 16
      %v618 = vrot.slane %v616, 7
      %v619 = vor.u32 %v615, %v618
      %v620 = vrot.slane %v619, 2
      %v622 = vshll.u32 %v573, 16
      %v624 = vrot.slane %v622, 7
      %v625 = vsel %vm321, %v620, %v624
      %626 = vrot.lane.b32.xlu0 %v586, 64
      %v627 = vpop.permute.xlu0 %626
      %628 = vrot.lane.b32.xlu0 %v599, 64
      %v629 = vpop.permute.xlu0 %628
      %630 = vrot.lane.b32.xlu0 %v612, 64
      %v631 = vpop.permute.xlu0 %630
      %632 = vrot.lane.b32.xlu0 %v625, 64
      %v633 = vpop.permute.xlu0 %632
      %638 = vst.msk [vmem:[#allocation2 + $0x4] sm:$0x3] %vm338, %v627
      %639 = vst.msk [vmem:[#allocation2 + $0xa] sm:$0x3] %vm338, %v629
      %640 = vst.msk [vmem:[#allocation2 + $0x10] sm:$0x3] %vm338, %v631
      %641 = vst.msk [vmem:[#allocation2 + $0x16] sm:$0x3] %vm338, %v633
      %v642 = vld [vmem:[#allocation2] sm:$0x3f]
      %v643 = vld [vmem:[#allocation2 + $0x6] sm:$0x3f]
      %v644 = vld [vmem:[#allocation2 + $0xc] sm:$0x3f]
      %v645 = vld [vmem:[#allocation2 + $0x12] sm:$0x3f]
      %v646 = vld [vmem:[%s2] sm:$0xf]
      %v647 = vld [vmem:[%s2 + $0x4] sm:$0xf]
      %v648 = vld [vmem:[%s2 + $0x8] sm:$0xf]
      %v649 = vld [vmem:[%s2 + $0xc] sm:$0xf]
      %v650 = vld [vmem:[%s2 + $0x10] sm:$0xf]
      %v651 = vld [vmem:[%s2 + $0x14] sm:$0xf]
      %v652 = vld [vmem:[%s2 + $0x18] sm:$0xf]
      %v653 = vld [vmem:[%s2 + $0x1c] sm:$0xf]
      %v654 = vld [vmem:[%s2 + $0x20] sm:$0xf]
      %v655 = vld [vmem:[%s2 + $0x24] sm:$0xf]
      %v656 = vld [vmem:[%s2 + $0x28] sm:$0xf]
      %v657 = vld [vmem:[%s2 + $0x2c] sm:$0xf]
      %v658 = vld [vmem:[%s2 + $0x30] sm:$0xf]
      %v659 = vld [vmem:[%s2 + $0x34] sm:$0xf]
      %v660 = vld [vmem:[%s2 + $0x38] sm:$0xf]
      %v661 = vld [vmem:[%s2 + $0x3c] sm:$0xf]
      %v662 = vld [vmem:[%s2 + $0x40] sm:$0xf]
      %v663 = vld [vmem:[%s2 + $0x44] sm:$0xf]
      %v664 = vld [vmem:[%s2 + $0x48] sm:$0xf]
      %v665 = vld [vmem:[%s2 + $0x4c] sm:$0xf]
      %v666 = vld [vmem:[%s2 + $0x50] sm:$0xf]
      %v667 = vld [vmem:[%s2 + $0x54] sm:$0xf]
      %v668 = vld [vmem:[%s2 + $0x58] sm:$0xf]
      %v669 = vld [vmem:[%s2 + $0x5c] sm:$0xf]
      %v670 = vld [vmem:[%s2 + $0x60] sm:$0xf]
      %v671 = vld [vmem:[%s2 + $0x64] sm:$0xf]
      %v672 = vld [vmem:[%s2 + $0x68] sm:$0xf]
      %v673 = vld [vmem:[%s2 + $0x6c] sm:$0xf]
      %v674 = vld [vmem:[%s2 + $0x70] sm:$0xf]
      %v675 = vld [vmem:[%s2 + $0x74] sm:$0xf]
      %v676 = vld [vmem:[%s2 + $0x78] sm:$0xf]
      %v677 = vld [vmem:[%s2 + $0x7c] sm:$0xf]
      %v678 = vld [vmem:[%s2 + $0x80] sm:$0xf]
      %v679 = vld [vmem:[%s2 + $0x84] sm:$0xf]
      %v680 = vld [vmem:[%s2 + $0x88] sm:$0xf]
      %v681 = vld [vmem:[%s2 + $0x8c] sm:$0xf]
      %v682 = vld [vmem:[%s2 + $0x90] sm:$0xf]
      %v683 = vld [vmem:[%s2 + $0x94] sm:$0xf]
      %v684 = vld [vmem:[%s2 + $0x98] sm:$0xf]
      %v685 = vld [vmem:[%s2 + $0x9c] sm:$0xf]
      %v686 = vld [vmem:[%s2 + $0xa0] sm:$0xf]
      %v687 = vld [vmem:[%s2 + $0xa4] sm:$0xf]
      %v688 = vld [vmem:[%s2 + $0xa8] sm:$0xf]
      %v689 = vld [vmem:[%s2 + $0xac] sm:$0xf]
      %v690 = vld [vmem:[%s2 + $0xb0] sm:$0xf]
      %v691 = vld [vmem:[%s2 + $0xb4] sm:$0xf]
      %v692 = vld [vmem:[%s2 + $0xb8] sm:$0xf]
      %v693 = vld [vmem:[%s2 + $0xbc] sm:$0xf]
      %695 = vst [vmem:[#allocation1] ss:$4 sm:$0xff] %v642
      %s697 = scalar_lea.vmem [#allocation1], 1
      %698 = vst [vmem:[%s697] ss:$4 sm:$0xff] %v643
      %s700 = scalar_lea.vmem [#allocation1], 2
      %701 = vst [vmem:[%s700] ss:$4 sm:$0xff] %v644
      %s703 = scalar_lea.vmem [#allocation1], 3
      %704 = vst [vmem:[%s703] ss:$4 sm:$0xff] %v645
      %v705 = vld.sshfl [vmem:[#allocation1] sm:$0xff pattern:$0x73625140]
      %v706 = vld.sshfl [vmem:[#allocation1 + $0x8] sm:$0xff pattern:$0x73625140]
      %v707 = vld.sshfl [vmem:[#allocation1 + $0x10] sm:$0xff pattern:$0x73625140]
      %v759 = vunpack.c.l.b16 %v646
      %v760 = vunpack.c.l.b16 %v647
      %v761 = vunpack.c.l.b16 %v648
      %v762 = vunpack.c.l.b16 %v649
      %v763 = vunpack.c.l.b16 %v650
      %v764 = vunpack.c.l.b16 %v651
      %v765 = vunpack.c.l.b16 %v652
      %v766 = vunpack.c.l.b16 %v653
      %v767 = vunpack.c.l.b16 %v654
      %v768 = vunpack.c.l.b16 %v655
      %v769 = vunpack.c.l.b16 %v656
      %v770 = vunpack.c.l.b16 %v657
      %v771 = vunpack.c.l.b16 %v658
      %v772 = vunpack.c.l.b16 %v659
      %v773 = vunpack.c.l.b16 %v660
      %v774 = vunpack.c.l.b16 %v661
      %v775 = vunpack.c.l.b16 %v662
      %v776 = vunpack.c.l.b16 %v663
      %v777 = vunpack.c.l.b16 %v664
      %v778 = vunpack.c.l.b16 %v665
      %v779 = vunpack.c.l.b16 %v666
      %v780 = vunpack.c.l.b16 %v667
      %v781 = vunpack.c.l.b16 %v668
      %v782 = vunpack.c.l.b16 %v669
      %v783 = vunpack.c.l.b16 %v670
      %v784 = vunpack.c.l.b16 %v671
      %v785 = vunpack.c.l.b16 %v672
      %v786 = vunpack.c.l.b16 %v673
      %v787 = vunpack.c.l.b16 %v674
      %v788 = vunpack.c.l.b16 %v675
      %v789 = vunpack.c.l.b16 %v676
      %v790 = vunpack.c.l.b16 %v677
      %v791 = vunpack.c.l.b16 %v678
      %v792 = vunpack.c.l.b16 %v679
      %v793 = vunpack.c.l.b16 %v680
      %v794 = vunpack.c.l.b16 %v681
      %v795 = vunpack.c.l.b16 %v682
      %v796 = vunpack.c.l.b16 %v683
      %v797 = vunpack.c.l.b16 %v684
      %v798 = vunpack.c.l.b16 %v685
      %v799 = vunpack.c.l.b16 %v686
      %v800 = vunpack.c.l.b16 %v687
      %v801 = vunpack.c.l.b16 %v688
      %v802 = vunpack.c.l.b16 %v689
      %v803 = vunpack.c.l.b16 %v690
      %v804 = vunpack.c.l.b16 %v691
      %v805 = vunpack.c.l.b16 %v692
      %v806 = vunpack.c.l.b16 %v693
      %v807 = vpack.c.b16 %v760, %v759
      %v808 = vpack.c.b16 %v762, %v761
      %v809 = vpack.c.b16 %v764, %v763
      %v810 = vpack.c.b16 %v766, %v765
      %v811 = vpack.c.b16 %v768, %v767
      %v812 = vpack.c.b16 %v770, %v769
      %v813 = vpack.c.b16 %v772, %v771
      %v814 = vpack.c.b16 %v774, %v773
      %v815 = vpack.c.b16 %v776, %v775
      %v816 = vpack.c.b16 %v778, %v777
      %v817 = vpack.c.b16 %v780, %v779
      %v818 = vpack.c.b16 %v782, %v781
      %v819 = vpack.c.b16 %v784, %v783
      %v820 = vpack.c.b16 %v786, %v785
      %v821 = vpack.c.b16 %v788, %v787
      %v822 = vpack.c.b16 %v790, %v789
      %v823 = vpack.c.b16 %v792, %v791
      %v824 = vpack.c.b16 %v794, %v793
      %v825 = vpack.c.b16 %v796, %v795
      %v826 = vpack.c.b16 %v798, %v797
      %v827 = vpack.c.b16 %v800, %v799
      %v828 = vpack.c.b16 %v802, %v801
      %v829 = vpack.c.b16 %v804, %v803
      %v830 = vpack.c.b16 %v806, %v805
      %855 = vmatpush.bf16.msra.mxu0 %v814
      %856 = vmatpush.bf16.msra.mxu0 %v813
      %857 = vmatpush.bf16.msra.mxu0 %v812
      %858 = vmatpush.bf16.msra.mxu0 %v811
      %859 = vmatpush.bf16.msra.mxu0 %v810
      %860 = vmatpush.bf16.msra.mxu0 %v809
      %861 = vmatpush.bf16.msra.mxu0 %v808
      %862 = vmatpush.bf16.msra.mxu0 %v807
      %863 = vmatmul.bf16.gmra.mxu0 %v705
      %v864 = vpop.f32.mrf.mxu0
      %v865 = vadd.f32 0.0, %v864
      %v866 = vpop.f32.mrf.mxu0
      %v867 = vadd.f32 0.0, %v866
      %868 = vdwg.mxu0
      %869 = vmatpush.bf16.msra.mxu0 %v822
      %870 = vmatpush.bf16.msra.mxu0 %v821
      %871 = vmatpush.bf16.msra.mxu0 %v820
      %872 = vmatpush.bf16.msra.mxu0 %v819
      %873 = vmatpush.bf16.msra.mxu0 %v818
      %874 = vmatpush.bf16.msra.mxu0 %v817
      %875 = vmatpush.bf16.msra.mxu0 %v816
      %876 = vmatpush.bf16.msra.mxu0 %v815
      %877 = vmatmul.bf16.gmra.mxu0 %v706
      %v878 = vpop.f32.mrf.mxu0
      %v879 = vadd.f32 %v865, %v878
      %v880 = vpop.f32.mrf.mxu0
      %v881 = vadd.f32 %v867, %v880
      %882 = vdwg.mxu0
      %883 = vmatpush.bf16.msra.mxu0 %v830
      %884 = vmatpush.bf16.msra.mxu0 %v829
      %885 = vmatpush.bf16.msra.mxu0 %v828
      %886 = vmatpush.bf16.msra.mxu0 %v827
      %887 = vmatpush.bf16.msra.mxu0 %v826
      %888 = vmatpush.bf16.msra.mxu0 %v825
      %889 = vmatpush.bf16.msra.mxu0 %v824
      %890 = vmatpush.bf16.msra.mxu0 %v823
      %891 = vmatmul.bf16.gmra.mxu0 %v707
      %v892 = vpop.f32.mrf.mxu0
      %v893 = vadd.f32 %v879, %v892
      %v894 = vpop.f32.mrf.mxu0
      %v895 = vadd.f32 %v881, %v894
      %896 = vdwg.mxu0
      %v899 = vrot.slane %v893, 4
      %v900 = vrot.slane %v895, 4
      %v903 = vpack.c.bf16 %v893, %v893
      %v904 = vpack.c.bf16 %v899, %v899
      %v905 = vpack.c.bf16 %v895, %v895
      %v906 = vpack.c.bf16 %v900, %v900
      %907 = vst.msk [vmem:[%s284] sm:$0x3] %vm294, %v903
      %908 = vst.msk [vmem:[%s284 + $0x2] sm:$0x3] %vm294, %v904
      %909 = vst.msk [vmem:[%s284 + $0x4] sm:$0x3] %vm294, %v905
      %910 = vst.msk [vmem:[%s284 + $0x6] sm:$0x3] %vm294, %v906
      %vm911 = vcmask 523264
      %v912 = vsel %vm911, %v893, 0.0
      %v913 = vsel %vm911, %v895, 0.0
      %v914 = vadd.f32 %v912, %v913
      %v915 = vrot.slane %v914, 4
      %v916 = vadd.f32 %v914, %v915
      %v917 = vrot.slane %v916, 2
      %v918 = vadd.f32 %v916, %v917
      %v919 = vrot.slane %v918, 1
      %v920 = vadd.f32 %v918, %v919
      %vm921 = vcmask 516096
      %922 = vst.msk [vmem:[%s292] sm:$0x1] %vm921, %v920
      %v923 = vmul.f32 %v893, %v893
      %v924 = vmul.f32 %v895, %v895
      %v925 = vsel %vm911, %v923, 0.0
      %v926 = vsel %vm911, %v924, 0.0
      %v927 = vadd.f32 %v925, %v926
      %v928 = vrot.slane %v927, 4
      %v929 = vadd.f32 %v927, %v928
      %v930 = vrot.slane %v929, 2
      %v931 = vadd.f32 %v929, %v930
      %v932 = vrot.slane %v931, 1
      %v933 = vadd.f32 %v931, %v932
      %934 = vst.msk [vmem:[%s292 + $0x1] sm:$0x1] %vm921, %v933
      %s935 = smul.u32 4, %s21
      %p936 = scmp.lt.s32.totalorder %s20, 1
      %s937 = scalar_select %p936, %s20, 1
      %p938 = scmp.lt.s32.totalorder %s935, 3
      %s939 = scalar_select %p938, %s935, 3
      %s940 = smul.addr %s937, 4
      %s941 = sadd.s32 %s939, %s940
      %s942 = smul.addr %s941, 2
      %s943 = scalar_lea.vmem %s3, %s942
      %p944 = scmp.lt.s32.totalorder %s20, 1
      %s945 = scalar_select %p944, %s20, 1
      %p946 = scmp.lt.s32.totalorder %s21, 0
      %s947 = scalar_select %p946, %s21, 0
      %s948 = sadd.s32 %s947, %s945
      %s949 = smul.addr %s948, 2
      %s950 = scalar_lea.vmem %s4, %s949
      // Predicated region
      $region33: #{encoder_forward.20} parent=31 // pred_check
        %p951 = pneg %p125
      $region34: #{encoder_forward.20} parent=31 // pred_check_branch
        %953 = sbr.rel (%p951) target = $region36
      $region35: #{encoder_forward.20} parent=31 // pred_region
        %s954 = smul.u32 4, %s21
      $region36: #{encoder_forward.20} parent=31 // pred_fallthru
        _
      // Predicated region
      $region37: #{encoder_forward.20} parent=31 // pred_check
        %p955 = pneg %p153
      $region38: #{encoder_forward.20} parent=31 // pred_check_branch
        %957 = sbr.rel (%p955) target = $region40
      $region39: #{encoder_forward.20} parent=31 // pred_region
        _
      $region40: #{encoder_forward.20} parent=31 // pred_fallthru
        _
    $region32: #{encoder_forward.20} parent=5 // pred_fallthru
      _
    %p958 = scmp.le.s32.totalorder 2, %s11
    // Predicated region
    $region41: #{encoder_forward.20} parent=5 // pred_check
      %p959 = pneg %p958
    $region42: #{encoder_forward.20} parent=5 // pred_check_branch
      %961 = sbr.rel (%p959) target = $region44
    $region43: #{encoder_forward.20} parent=5 // pred_region
      %s962 = ssub.s32 %s11, 2
      // Predicated region
      $region45: #{encoder_forward.20} parent=43 // pred_check
        %p963 = pneg %p131
      $region46: #{encoder_forward.20} parent=43 // pred_check_branch
        %965 = sbr.rel (%p963) target = $region48
      $region47: #{encoder_forward.20} parent=43 // pred_region
        %s966 = smul.u32 4, %s23
        %p967 = scmp.lt.s32.totalorder %s22, 1
        %s968 = scalar_select %p967, %s22, 1
        %p969 = scmp.lt.s32.totalorder %s966, 3
        %s970 = scalar_select %p969, %s966, 3
        %s971 = smul.addr %s968, 4
        %s972 = sadd.s32 %s970, %s971
        %s973 = smul.addr %s972, 2
        %s974 = scalar_lea.vmem %s3, %s973
      $region48: #{encoder_forward.20} parent=43 // pred_fallthru
        _
      // Predicated region
      $region49: #{encoder_forward.20} parent=43 // pred_check
        %p975 = pneg %p159
      $region50: #{encoder_forward.20} parent=43 // pred_check_branch
        %977 = sbr.rel (%p975) target = $region52
      $region51: #{encoder_forward.20} parent=43 // pred_region
        %p978 = scmp.lt.s32.totalorder %s22, 1
        %s979 = scalar_select %p978, %s22, 1
        %p980 = scmp.lt.s32.totalorder %s23, 0
        %s981 = scalar_select %p980, %s23, 0
        %s982 = sadd.s32 %s981, %s979
        %s983 = smul.addr %s982, 2
        %s984 = scalar_lea.vmem %s4, %s983
      $region52: #{encoder_forward.20} parent=43 // pred_fallthru
        _
    $region44: #{encoder_forward.20} parent=5 // pred_fallthru
      _
  $region6: #{encoder_forward.20} parent=0 // loop_footer
    %s15 = sadd.s32 1, %s11
  $region7: #{encoder_forward.20} parent=0 // loop_footer_branch
    %10 = sbr.rel target = $region3
  $region8: #{encoder_forward.20} parent=0 // loop_exit
    _

// kernel: encoder_forward.22
$region0: #{encoder_forward.22}
  #allocation0 [shape = 'u32[]', space=smem, size = 0x4, offset = 0x4, fixed_abs, tag = 'smem constant byte address 0x4 - core index']
  #allocation1 [shape = 'u32[72,128]{1,0:T(1,128)}', space=vmem, size = 0x9000, scoped, tag = 'internal scratch']
  #allocation2 [shape = 'bf16[4,4,576]{2,1,0:T(4,128)(2,1)}', space=vmem, size = 0x5000, scoped, tag = 'scratch operand']
  %s0 = inlined_call_operand.vmem [shape: bf16[2,4,1,6,64], index: 0, kind: input, shape index: {}]
  %s1 = inlined_call_operand.vmem [shape: bf16[2,1,2,6,64], index: 1, kind: input, shape index: {}]
  %s2 = inlined_call_operand.vmem [shape: bf16[576,64], index: 2, kind: input, shape index: {}]
  %s3 = inlined_call_operand.vmem [shape: bf16[2,4,4,64], index: 3, kind: output, shape index: {0}]
  %s4 = inlined_call_operand.vmem [shape: f32[2,1,2,64], index: 4, kind: output, shape index: {1}]
  %5 = xla_tuple %s3, %s4
  %s6 = sld [smem:[#allocation0]]
  $region53: #{encoder_forward.22} parent=0
    _
  %s8 = ssub.s32 1, %s6
  %s9 = scalar_select 0, %s8, %s6
  loop: start=0, step=1, limit=4
  $region2: #{encoder_forward.22} parent=0 // loop_pre_header
    _
  $region3: #{encoder_forward.22} parent=0 // loop_header
    %s11 = sphi 0, %s15
    %p12 = scmp.ge.s32.totalorder %s11, 4
    %s18 = sphi 0, %s30
    %s19 = sphi 0, %s26
    %s20 = sphi 0, %s18
    %s21 = sphi 0, %s19
    %s22 = sphi 0, %s20
    %s23 = sphi 0, %s21
    %s35 = sphi 0, %s37
    %s38 = sphi 0, %s35
    %s39 = sphi 0, %s38
    %s55 = sphi 0, %s39
    %s63 = sphi 0, %s65
    %s66 = sphi 0, %s63
    %s67 = sphi 0, %s66
    %s83 = sphi 0, %s67
    %s87 = sphi 0, %s87
    %s89 = sphi 0, %s87
    %s90 = sphi 0, %s89
    %s104 = sphi 0, %s90
    %s112 = sphi 0, %s114
    %s115 = sphi 0, %s112
    %s116 = sphi 0, %s115
    %s132 = sphi 0, %s116
    %s140 = sphi 0, %s142
    %s143 = sphi 0, %s140
    %s144 = sphi 0, %s143
    %s160 = sphi 0, %s144
  $region4: #{encoder_forward.22} parent=0 // loop_header_branch
    %14 = sbr.rel (%p12) target = $region8
  $region5: #{encoder_forward.22} parent=0 // loop_body
    %s16 = ssub.s32 %s11, 1
    %s17 = ssub.s32 %s11, 2
    %s24 = sadd.s32 1, %s19
    %p25 = scmp.ge.s32.totalorder %s24, 1
    %s26 = scalar_select %p25, 0, %s24
    %s27 = sadd.s32 1, %s18
    %s28 = scalar_select %p25, %s27, %s18
    %p29 = scmp.ge.s32.totalorder %s28, 2
    %s30 = scalar_select %p29, 0, %s28
    %s31 = ssub.s32 %s18, %s30
    %s32 = ssub.s32 %s19, %s26
    %s33 = sor.u32 %s31, %s32
    %p34 = scmp.eq.s32.totalorder %s33, 0
    %s36 = sadd.s32 %s35, 1
    %s37 = scalar_select %p34, %s35, %s36
    %p40 = pneg %p34
    %p41 = scmp.eq.s32.totalorder %s11, 1
    %p42 = por %p40, %p41
    %p43 = scmp.ne.s32.totalorder %s35, %s38
    %p44 = scmp.eq.s32.totalorder %s11, 0
    %p45 = por %p43, %p44
    %p46 = scmp.ne.s32.totalorder %s35, %s38
    %p47 = scmp.eq.s32.totalorder %s16, 1
    %p48 = por %p46, %p47
    %p49 = scmp.ne.s32.totalorder %s38, %s39
    %p50 = scmp.eq.s32.totalorder %s16, 0
    %p51 = por %p49, %p50
    %p52 = scmp.ne.s32.totalorder %s38, %s39
    %p53 = scmp.eq.s32.totalorder %s17, 1
    %p54 = por %p52, %p53
    %p56 = scmp.ne.s32.totalorder %s39, %s55
    %p57 = scmp.eq.s32.totalorder %s17, 0
    %p58 = por %p56, %p57
    %s59 = ssub.s32 %s18, %s30
    %s60 = ssub.s32 %s19, %s26
    %s61 = sor.u32 %s59, %s60
    %p62 = scmp.eq.s32.totalorder %s61, 0
    %s64 = sadd.s32 %s63, 1
    %s65 = scalar_select %p62, %s63, %s64
    %p68 = pneg %p62
    %p69 = scmp.eq.s32.totalorder %s11, 1
    %p70 = por %p68, %p69
    %p71 = scmp.ne.s32.totalorder %s63, %s66
    %p72 = scmp.eq.s32.totalorder %s11, 0
    %p73 = por %p71, %p72
    %p74 = scmp.ne.s32.totalorder %s63, %s66
    %p75 = scmp.eq.s32.totalorder %s16, 1
    %p76 = por %p74, %p75
    %p77 = scmp.ne.s32.totalorder %s66, %s67
    %p78 = scmp.eq.s32.totalorder %s16, 0
    %p79 = por %p77, %p78
    %p80 = scmp.ne.s32.totalorder %s66, %s67
    %p81 = scmp.eq.s32.totalorder %s17, 1
    %p82 = por %p80, %p81
    %p84 = scmp.ne.s32.totalorder %s67, %s83
    %p85 = scmp.eq.s32.totalorder %s17, 0
    %p86 = por %p84, %p85
    %s88 = sadd.s32 %s87, 1
    %p91 = scmp.eq.s32.totalorder %s11, 1
    %p92 = scmp.ne.s32.totalorder %s87, %s89
    %p93 = scmp.eq.s32.totalorder %s11, 0
    %p94 = por %p92, %p93
    %p95 = scmp.ne.s32.totalorder %s87, %s89
    %p96 = scmp.eq.s32.totalorder %s16, 1
    %p97 = por %p95, %p96
    %p98 = scmp.ne.s32.totalorder %s89, %s90
    %p99 = scmp.eq.s32.totalorder %s16, 0
    %p100 = por %p98, %p99
    %p101 = scmp.ne.s32.totalorder %s89, %s90
    %p102 = scmp.eq.s32.totalorder %s17, 1
    %p103 = por %p101, %p102
    %p105 = scmp.ne.s32.totalorder %s90, %s104
    %p106 = scmp.eq.s32.totalorder %s17, 0
    %p107 = por %p105, %p106
    %s108 = ssub.s32 %s18, %s30
    %s109 = ssub.s32 %s19, %s26
    %s110 = sor.u32 %s108, %s109
    %p111 = scmp.eq.s32.totalorder %s110, 0
    %s113 = sadd.s32 %s112, 1
    %s114 = scalar_select %p111, %s112, %s113
    %p117 = pneg %p111
    %p118 = scmp.eq.s32.totalorder %s11, 1
    %p119 = por %p117, %p118
    %p120 = scmp.ne.s32.totalorder %s112, %s115
    %p121 = scmp.eq.s32.totalorder %s11, 0
    %p122 = por %p120, %p121
    %p123 = scmp.ne.s32.totalorder %s112, %s115
    %p124 = scmp.eq.s32.totalorder %s16, 1
    %p125 = por %p123, %p124
    %p126 = scmp.ne.s32.totalorder %s115, %s116
    %p127 = scmp.eq.s32.totalorder %s16, 0
    %p128 = por %p126, %p127
    %p129 = scmp.ne.s32.totalorder %s115, %s116
    %p130 = scmp.eq.s32.totalorder %s17, 1
    %p131 = por %p129, %p130
    %p133 = scmp.ne.s32.totalorder %s116, %s132
    %p134 = scmp.eq.s32.totalorder %s17, 0
    %p135 = por %p133, %p134
    %s136 = ssub.s32 %s18, %s30
    %s137 = ssub.s32 %s19, %s26
    %s138 = sor.u32 %s136, %s137
    %p139 = scmp.eq.s32.totalorder %s138, 0
    %s141 = sadd.s32 %s140, 1
    %s142 = scalar_select %p139, %s140, %s141
    %p145 = pneg %p139
    %p146 = scmp.eq.s32.totalorder %s11, 1
    %p147 = por %p145, %p146
    %p148 = scmp.ne.s32.totalorder %s140, %s143
    %p149 = scmp.eq.s32.totalorder %s11, 0
    %p150 = por %p148, %p149
    %p151 = scmp.ne.s32.totalorder %s140, %s143
    %p152 = scmp.eq.s32.totalorder %s16, 1
    %p153 = por %p151, %p152
    %p154 = scmp.ne.s32.totalorder %s143, %s144
    %p155 = scmp.eq.s32.totalorder %s16, 0
    %p156 = por %p154, %p155
    %p157 = scmp.ne.s32.totalorder %s143, %s144
    %p158 = scmp.eq.s32.totalorder %s17, 1
    %p159 = por %p157, %p158
    %p161 = scmp.ne.s32.totalorder %s144, %s160
    %p162 = scmp.eq.s32.totalorder %s17, 0
    %p163 = por %p161, %p162
    %p164 = scmp.le.s32.totalorder 1, %s11
    %p165 = scmp.lt.s32.totalorder %s11, 3
    %p166 = pnand %p164, %p165
    %p167 = pneg %p166
    // Predicated region
    $region9: #{encoder_forward.22} parent=5 // pred_check
      _
    $region10: #{encoder_forward.22} parent=5 // pred_check_branch
      %169 = sbr.rel (%p166) target = $region12
    $region11: #{encoder_forward.22} parent=5 // pred_region
      %s170 = ssub.s32 %s11, 1
      // Predicated region
      $region13: #{encoder_forward.22} parent=11 // pred_check
        %p171 = pneg %p100
      $region14: #{encoder_forward.22} parent=11 // pred_check_branch
        %173 = sbr.rel (%p171) target = $region16
      $region15: #{encoder_forward.22} parent=11 // pred_region
        _
      $region16: #{encoder_forward.22} parent=11 // pred_fallthru
        _
    $region12: #{encoder_forward.22} parent=5 // pred_fallthru
      _
    %p174 = scmp.lt.s32.totalorder %s11, 2
    // Predicated region
    $region17: #{encoder_forward.22} parent=5 // pred_check
      %p175 = pneg %p174
    $region18: #{encoder_forward.22} parent=5 // pred_check_branch
      %177 = sbr.rel (%p175) target = $region20
    $region19: #{encoder_forward.22} parent=5 // pred_region
      // Predicated region
      $region21: #{encoder_forward.22} parent=19 // pred_check
        %p178 = pneg %p45
      $region22: #{encoder_forward.22} parent=19 // pred_check_branch
        %180 = sbr.rel (%p178) target = $region24
      $region23: #{encoder_forward.22} parent=19 // pred_region
        %s181 = smul.u32 4, %s19
        %p182 = scmp.lt.s32.totalorder %s18, 1
        %s183 = scalar_select %p182, %s18, 1
        %p184 = scmp.lt.s32.totalorder %s181, 3
        %s185 = scalar_select %p184, %s181, 3
        %s186 = smul.addr %s183, 4
        %s187 = sadd.s32 %s185, %s186
        %s188 = smul.addr %s187, 4
        %s189 = scalar_lea.vmem %s0, %s188
        %s190 = smul.u32 4, %s19
      $region24: #{encoder_forward.22} parent=19 // pred_fallthru
        _
      // Predicated region
      $region25: #{encoder_forward.22} parent=19 // pred_check
        %p191 = pneg %p73
      $region26: #{encoder_forward.22} parent=19 // pred_check_branch
        %193 = sbr.rel (%p191) target = $region28
      $region27: #{encoder_forward.22} parent=19 // pred_region
        %p194 = scmp.lt.s32.totalorder %s18, 1
        %s195 = scalar_select %p194, %s18, 1
        %p196 = scmp.lt.s32.totalorder %s19, 0
        %s197 = scalar_select %p196, %s19, 0
        %s198 = smul.addr %s197, 2
        %s199 = smul.addr %s195, 2
        %s200 = sadd.s32 %s198, %s199
        %s201 = smul.addr %s200, 4
        %s202 = scalar_lea.vmem %s1, %s201
      $region28: #{encoder_forward.22} parent=19 // pred_fallthru
        _
    $region20: #{encoder_forward.22} parent=5 // pred_fallthru
      _
    %p203 = scmp.le.s32.totalorder 1, %s11
    %p204 = scmp.lt.s32.totalorder %s11, 3
    %p205 = pnand %p203, %p204
    %p206 = pneg %p205
    // Predicated region
    $region29: #{encoder_forward.22} parent=5 // pred_check
      _
    $region30: #{encoder_forward.22} parent=5 // pred_check_branch
      %208 = sbr.rel (%p205) target = $region32
    $region31: #{encoder_forward.22} parent=5 // pred_region
      %s209 = ssub.s32 %s11, 1
      %s210 = smul.u32 4, %s21
      %p211 = scmp.lt.s32.totalorder %s20, 1
      %s212 = scalar_select %p211, %s20, 1
      %p213 = scmp.lt.s32.totalorder %s210, 3
      %s214 = scalar_select %p213, %s210, 3
      %s215 = smul.addr %s212, 4
      %s216 = sadd.s32 %s214, %s215
      %s217 = smul.addr %s216, 4
      %s218 = scalar_lea.vmem %s0, %s217
      %p219 = pneg %p51
      %p220 = pneg %p48
      %p221 = scmp.lt.s32.totalorder %s20, 1
      %s222 = scalar_select %p221, %s20, 1
      %p223 = scmp.lt.s32.totalorder %s21, 0
      %s224 = scalar_select %p223, %s21, 0
      %s225 = smul.addr %s224, 2
      %s226 = smul.addr %s222, 2
      %s227 = sadd.s32 %s225, %s226
      %s228 = smul.addr %s227, 4
      %s229 = scalar_lea.vmem %s1, %s228
      %p230 = pneg %p79
      %p231 = pneg %p76
      %p232 = pneg %p100
      %p233 = pneg %p97
      %p234 = pneg %p128
      %p235 = pneg %p125
      %s236 = smul.u32 4, %s21
      %p237 = scmp.lt.s32.totalorder %s20, 1
      %s238 = scalar_select %p237, %s20, 1
      %p239 = scmp.lt.s32.totalorder %s236, 3
      %s240 = scalar_select %p239, %s236, 3
      %s241 = smul.addr %s238, 4
      %s242 = sadd.s32 %s240, %s241
      %s243 = smul.addr %s242, 2
      %s244 = scalar_lea.vmem %s3, %s243
      %p245 = pneg %p156
      %p246 = pneg %p153
      %p247 = scmp.lt.s32.totalorder %s20, 1
      %s248 = scalar_select %p247, %s20, 1
      %p249 = scmp.lt.s32.totalorder %s21, 0
      %s250 = scalar_select %p249, %s21, 0
      %s251 = sadd.s32 %s250, %s248
      %s252 = smul.addr %s251, 2
      %s253 = scalar_lea.vmem %s4, %s252
      %s254 = smul.u32 4, %s21
      %p255 = scmp.lt.s32.totalorder %s20, 1
      %s256 = scalar_select %p255, %s20, 1
      %p257 = scmp.lt.s32.totalorder %s254, 3
      %s258 = scalar_select %p257, %s254, 3
      %s259 = smul.addr %s256, 4
      %s260 = sadd.s32 %s258, %s259
      %s261 = smul.addr %s260, 4
      %s262 = scalar_lea.vmem %s0, %s261
      %s263 = smul.u32 4, %s21
      %p264 = scmp.lt.s32.totalorder %s20, 1
      %s265 = scalar_select %p264, %s20, 1
      %p266 = scmp.lt.s32.totalorder %s21, 0
      %s267 = scalar_select %p266, %s21, 0
      %s268 = smul.addr %s267, 2
      %s269 = smul.addr %s265, 2
      %s270 = sadd.s32 %s268, %s269
      %s271 = smul.addr %s270, 4
      %s272 = scalar_lea.vmem %s1, %s271
      %s273 = smul.u32 4, %s21
      %p274 = scmp.lt.s32.totalorder %s20, 1
      %s275 = scalar_select %p274, %s20, 1
      %p276 = scmp.lt.s32.totalorder %s273, 3
      %s277 = scalar_select %p276, %s273, 3
      %s278 = smul.addr %s275, 4
      %s279 = sadd.s32 %s277, %s278
      %s280 = smul.addr %s279, 2
      %s281 = scalar_lea.vmem %s3, %s280
      %s282 = smul.u32 4, %s21
      %p283 = scmp.lt.s32.totalorder %s20, 1
      %s284 = scalar_select %p283, %s20, 1
      %p285 = scmp.lt.s32.totalorder %s21, 0
      %s286 = scalar_select %p285, %s21, 0
      %s287 = sadd.s32 %s286, %s284
      %s288 = smul.addr %s287, 2
      %s289 = scalar_lea.vmem %s4, %s288
      %v291 = vld [vmem:[%s272] sm:$0x3]
      %vm292 = vcmask 517120
      %293 = vst.msk [vmem:[#allocation2] sm:$0x3] %vm292, %v291
      %v294 = vld [vmem:[%s262] sm:$0x3]
      %v295 = vld [vmem:[%s262 + $0x4] sm:$0x3]
      %v296 = vld [vmem:[%s262 + $0x8] sm:$0x3]
      %s297 = scalar_lea.vmem [#allocation2], 10
      %298 = vst.msk [vmem:[%s297] sm:$0x3] %vm292, %v294
      %299 = vst.msk [vmem:[%s297 + $0xa] sm:$0x3] %vm292, %v295
      %300 = vst.msk [vmem:[%s297 + $0x14] sm:$0x3] %vm292, %v296
      %v301 = vld [vmem:[%s272] sm:$0x7]
      %v303 = vrot.slane %v301, 2
      %vm304 = vcmask 1041408
      %v307 = vsel %vm304, %v301, %v303
      %vm308 = vcmask 1043458
      %v309 = vsel %vm308, %v301, %v303
      %v311 = vrot.slane %v309, 2
      %vm312 = vsmask.f32 1280
      %vm313 = vsmask.f32 3336
      %vm314 = vmor %vm312, %vm313
      %vm315 = vsmask.f32 5392
      %vm316 = vmor %vm314, %vm315
      %vm317 = vsmask.f32 7448
      %vm318 = vmor %vm316, %vm317
      %v319 = vshrl.u32 %v307, 16
      %v321 = vrot.slane %v319, 6
      %v322 = vshll.u32 %v307, 16
      %v324 = vrot.slane %v322, 7
      %v325 = vor.u32 %v321, %v324
      %v326 = vrot.slane %v325, 2
      %v328 = vshll.u32 %v311, 16
      %v330 = vrot.slane %v328, 7
      %v331 = vsel %vm318, %v326, %v330
      %332 = vrot.lane.b32.xlu0 %v331, 64
      %v333 = vpop.permute.xlu0 %332
      %vm335 = vcmask 1041920
      %336 = vst.msk [vmem:[#allocation2] sm:$0x3] %vm335, %v333
      %v337 = vld [vmem:[%s262] sm:$0x7]
      %v338 = vld [vmem:[%s262 + $0x4] sm:$0x7]
      %v339 = vld [vmem:[%s262 + $0x8] sm:$0x7]
      %v343 = vrot.slane %v337, 2
      %v344 = vrot.slane %v338, 2
      %v345 = vrot.slane %v339, 2
      %v348 = vsel %vm304, %v337, %v343
      %v349 = vsel %vm308, %v337, %v343
      %v351 = vrot.slane %v349, 2
      %v354 = vsel %vm304, %v338, %v344
      %v355 = vsel %vm308, %v338, %v344
      %v357 = vrot.slane %v355, 2
      %v360 = vsel %vm304, %v339, %v345
      %v361 = vsel %vm308, %v339, %v345
      %v363 = vrot.slane %v361, 2
      %v364 = vshrl.u32 %v348, 16
      %v366 = vrot.slane %v364, 6
      %v367 = vshll.u32 %v348, 16
      %v369 = vrot.slane %v367, 7
      %v370 = vor.u32 %v366, %v369
      %v371 = vrot.slane %v370, 2
      %v373 = vshll.u32 %v351, 16
      %v375 = vrot.slane %v373, 7
      %v376 = vsel %vm318, %v371, %v375
      %v377 = vshrl.u32 %v354, 16
      %v379 = vrot.slane %v377, 6
      %v380 = vshll.u32 %v354, 16
      %v382 = vrot.slane %v380, 7
      %v383 = vor.u32 %v379, %v382
      %v384 = vrot.slane %v383, 2
      %v386 = vshll.u32 %v357, 16
      %v388 = vrot.slane %v386, 7
      %v389 = vsel %vm318, %v384, %v388
      %v390 = vshrl.u32 %v360, 16
      %v392 = vrot.slane %v390, 6
      %v393 = vshll.u32 %v360, 16
      %v395 = vrot.slane %v393, 7
      %v396 = vor.u32 %v392, %v395
      %v397 = vrot.slane %v396, 2
      %v399 = vshll.u32 %v363, 16
      %v401 = vrot.slane %v399, 7
      %v402 = vsel %vm318, %v397, %v401
      %403 = vrot.lane.b32.xlu0 %v376, 64
      %v404 = vpop.permute.xlu0 %403
      %405 = vrot.lane.b32.xlu0 %v389, 64
      %v406 = vpop.permute.xlu0 %405
      %407 = vrot.lane.b32.xlu0 %v402, 64
      %v408 = vpop.permute.xlu0 %407
      %412 = vst.msk [vmem:[%s297] sm:$0x3] %vm335, %v404
      %413 = vst.msk [vmem:[%s297 + $0xa] sm:$0x3] %vm335, %v406
      %414 = vst.msk [vmem:[%s297 + $0x14] sm:$0x3] %vm335, %v408
      %v415 = vld [vmem:[%s272] sm:$0x6]
      %v417 = vrot.slane %v415, 2
      %v420 = vsel %vm304, %v415, %v417
      %v422 = vsel %vm308, %v415, %v417
      %v424 = vrot.slane %v422, 2
      %vm425 = vcmask 1040384
      %vm426 = vcmask 1042434
      %vm427 = vmor %vm425, %vm426
      %vm428 = vcmask 1044484
      %vm429 = vmor %vm427, %vm428
      %vm430 = vcmask 1046534
      %vm431 = vmor %vm429, %vm430
      %v432 = vrot.slane %v420, 7
      %v433 = vrot.slane %v432, 2
      %v434 = vrot.slane %v424, 7
      %v435 = vsel %vm431, %v433, %v434
      %437 = vst.msk [vmem:[#allocation2 + $0x2] sm:$0x3] %vm292, %v435
      %v438 = vld [vmem:[%s262] sm:$0x6]
      %v439 = vld [vmem:[%s262 + $0x4] sm:$0x6]
      %v440 = vld [vmem:[%s262 + $0x8] sm:$0x6]
      %v444 = vrot.slane %v438, 2
      %v445 = vrot.slane %v439, 2
      %v446 = vrot.slane %v440, 2
      %v449 = vsel %vm304, %v438, %v444
      %v451 = vsel %vm308, %v438, %v444
      %v453 = vrot.slane %v451, 2
      %v456 = vsel %vm304, %v439, %v445
      %v458 = vsel %vm308, %v439, %v445
      %v460 = vrot.slane %v458, 2
      %v463 = vsel %vm304, %v440, %v446
      %v465 = vsel %vm308, %v440, %v446
      %v467 = vrot.slane %v465, 2
      %v468 = vrot.slane %v449, 7
      %v469 = vrot.slane %v468, 2
      %v470 = vrot.slane %v453, 7
      %v471 = vsel %vm431, %v469, %v470
      %v472 = vrot.slane %v456, 7
      %v473 = vrot.slane %v472, 2
      %v474 = vrot.slane %v460, 7
      %v475 = vsel %vm431, %v473, %v474
      %v476 = vrot.slane %v463, 7
      %v477 = vrot.slane %v476, 2
      %v478 = vrot.slane %v467, 7
      %v479 = vsel %vm431, %v477, %v478
      %483 = vst.msk [vmem:[%s297 + $0x2] sm:$0x3] %vm292, %v471
      %484 = vst.msk [vmem:[%s297 + $0xc] sm:$0x3] %vm292, %v475
      %485 = vst.msk [vmem:[%s297 + $0x16] sm:$0x3] %vm292, %v479
      %v486 = vld [vmem:[%s262] sm:$0x3]
      %v487 = vld [vmem:[%s262 + $0x4] sm:$0x3]
      %v488 = vld [vmem:[%s262 + $0x8] sm:$0x3]
      %v489 = vld [vmem:[%s262 + $0xc] sm:$0x3]
      %v494 = vrot.slane %v486, 2
      %v495 = vrot.slane %v487, 2
      %v496 = vrot.slane %v488, 2
      %v497 = vrot.slane %v489, 2
      %v500 = vsel %vm304, %v486, %v494
      %v504 = vsel %vm304, %v487, %v495
      %v508 = vsel %vm304, %v488, %v496
      %v512 = vsel %vm304, %v489, %v497
      %514 = vrot.lane.b32.xlu0 %v500, 64
      %v515 = vpop.permute.xlu0 %514
      %516 = vrot.lane.b32.xlu0 %v504, 64
      %v517 = vpop.permute.xlu0 %516
      %518 = vrot.lane.b32.xlu0 %v508, 64
      %v519 = vpop.permute.xlu0 %518
      %520 = vrot.lane.b32.xlu0 %v512, 64
      %v521 = vpop.permute.xlu0 %520
      %526 = vst.msk [vmem:[#allocation2 + $0x2] sm:$0x3] %vm335, %v515
      %527 = vst.msk [vmem:[#allocation2 + $0xc] sm:$0x3] %vm335, %v517
      %528 = vst.msk [vmem:[#allocation2 + $0x16] sm:$0x3] %vm335, %v519
      %529 = vst.msk [vmem:[#allocation2 + $0x20] sm:$0x3] %vm335, %v521
      %v530 = vld [vmem:[%s262] sm:$0x7]
      %v531 = vld [vmem:[%s262 + $0x4] sm:$0x7]
      %v532 = vld [vmem:[%s262 + $0x8] sm:$0x7]
      %v533 = vld [vmem:[%s262 + $0xc] sm:$0x7]
      %v538 = vrot.slane %v530, 2
      %v539 = vrot.slane %v531, 2
      %v540 = vrot.slane %v532, 2
      %v541 = vrot.slane %v533, 2
      %v544 = vsel %vm304, %v530, %v538
      %v545 = vsel %vm308, %v530, %v538
      %v547 = vrot.slane %v545, 2
      %v550 = vsel %vm304, %v531, %v539
      %v551 = vsel %vm308, %v531, %v539
      %v553 = vrot.slane %v551, 2
      %v556 = vsel %vm304, %v532, %v540
      %v557 = vsel %vm308, %v532, %v540
      %v559 = vrot.slane %v557, 2
      %v562 = vsel %vm304, %v533, %v541
      %v563 = vsel %vm308, %v533, %v541
      %v565 = vrot.slane %v563, 2
      %v566 = vshrl.u32 %v544, 16
      %v568 = vrot.slane %v566, 6
      %v569 = vshll.u32 %v544, 16
      %v571 = vrot.slane %v569, 7
      %v572 = vor.u32 %v568, %v571
      %v573 = vrot.slane %v572, 2
      %v575 = vshll.u32 %v547, 16
      %v577 = vrot.slane %v575, 7
      %v578 = vsel %vm318, %v573, %v577
      %v579 = vshrl.u32 %v550, 16
      %v581 = vrot.slane %v579, 6
      %v582 = vshll.u32 %v550, 16
      %v584 = vrot.slane %v582, 7
      %v585 = vor.u32 %v581, %v584
      %v586 = vrot.slane %v585, 2
      %v588 = vshll.u32 %v553, 16
      %v590 = vrot.slane %v588, 7
      %v591 = vsel %vm318, %v586, %v590
      %v592 = vshrl.u32 %v556, 16
      %v594 = vrot.slane %v592, 6
      %v595 = vshll.u32 %v556, 16
      %v597 = vrot.slane %v595, 7
      %v598 = vor.u32 %v594, %v597
      %v599 = vrot.slane %v598, 2
      %v601 = vshll.u32 %v559, 16
      %v603 = vrot.slane %v601, 7
      %v604 = vsel %vm318, %v599, %v603
      %v605 = vshrl.u32 %v562, 16
      %v607 = vrot.slane %v605, 6
      %v608 = vshll.u32 %v562, 16
      %v610 = vrot.slane %v608, 7
      %v611 = vor.u32 %v607, %v610
      %v612 = vrot.slane %v611, 2
      %v614 = vshll.u32 %v565, 16
      %v616 = vrot.slane %v614, 7
      %v617 = vsel %vm318, %v612, %v616
      %622 = vst.msk [vmem:[#allocation2 + $0x4] sm:$0x3] %vm292, %v578
      %623 = vst.msk [vmem:[#allocation2 + $0xe] sm:$0x3] %vm292, %v591
      %624 = vst.msk [vmem:[#allocation2 + $0x18] sm:$0x3] %vm292, %v604
      %625 = vst.msk [vmem:[#allocation2 + $0x22] sm:$0x3] %vm292, %v617
      %v626 = vld [vmem:[%s262] sm:$0x6]
      %v627 = vld [vmem:[%s262 + $0x4] sm:$0x6]
      %v628 = vld [vmem:[%s262 + $0x8] sm:$0x6]
      %v629 = vld [vmem:[%s262 + $0xc] sm:$0x6]
      %v634 = vrot.slane %v626, 2
      %v635 = vrot.slane %v627, 2
      %v636 = vrot.slane %v628, 2
      %v637 = vrot.slane %v629, 2
      %v640 = vsel %vm304, %v626, %v634
      %v642 = vsel %vm308, %v626, %v634
      %v644 = vrot.slane %v642, 2
      %v647 = vsel %vm304, %v627, %v635
      %v649 = vsel %vm308, %v627, %v635
      %v651 = vrot.slane %v649, 2
      %v654 = vsel %vm304, %v628, %v636
      %v656 = vsel %vm308, %v628, %v636
      %v658 = vrot.slane %v656, 2
      %v661 = vsel %vm304, %v629, %v637
      %v663 = vsel %vm308, %v629, %v637
      %v665 = vrot.slane %v663, 2
      %v666 = vrot.slane %v640, 7
      %v667 = vrot.slane %v666, 2
      %v668 = vrot.slane %v644, 7
      %v669 = vsel %vm431, %v667, %v668
      %v670 = vrot.slane %v647, 7
      %v671 = vrot.slane %v670, 2
      %v672 = vrot.slane %v651, 7
      %v673 = vsel %vm431, %v671, %v672
      %v674 = vrot.slane %v654, 7
      %v675 = vrot.slane %v674, 2
      %v676 = vrot.slane %v658, 7
      %v677 = vsel %vm431, %v675, %v676
      %v678 = vrot.slane %v661, 7
      %v679 = vrot.slane %v678, 2
      %v680 = vrot.slane %v665, 7
      %v681 = vsel %vm431, %v679, %v680
      %682 = vrot.lane.b32.xlu0 %v669, 64
      %v683 = vpop.permute.xlu0 %682
      %684 = vrot.lane.b32.xlu0 %v673, 64
      %v685 = vpop.permute.xlu0 %684
      %686 = vrot.lane.b32.xlu0 %v677, 64
      %v687 = vpop.permute.xlu0 %686
      %688 = vrot.lane.b32.xlu0 %v681, 64
      %v689 = vpop.permute.xlu0 %688
      %694 = vst.msk [vmem:[#allocation2 + $0x4] sm:$0x3] %vm335, %v683
      %695 = vst.msk [vmem:[#allocation2 + $0xe] sm:$0x3] %vm335, %v685
      %696 = vst.msk [vmem:[#allocation2 + $0x18] sm:$0x3] %vm335, %v687
      %697 = vst.msk [vmem:[#allocation2 + $0x22] sm:$0x3] %vm335, %v689
      %s698 = scalar_lea.vmem %s262, 4
      %v699 = vld [vmem:[%s698] sm:$0x3]
      %v700 = vld [vmem:[%s698 + $0x4] sm:$0x3]
      %v701 = vld [vmem:[%s698 + $0x8] sm:$0x3]
      %702 = vst.msk [vmem:[#allocation2 + $0x6] sm:$0x3] %vm292, %v699
      %703 = vst.msk [vmem:[#allocation2 + $0x10] sm:$0x3] %vm292, %v700
      %704 = vst.msk [vmem:[#allocation2 + $0x1a] sm:$0x3] %vm292, %v701
      %s705 = scalar_lea.vmem %s272, 4
      %v706 = vld [vmem:[%s705] sm:$0x3]
      %s707 = scalar_lea.vmem [#allocation2], 30
      %708 = vst.msk [vmem:[%s707 + $0x6] sm:$0x3] %vm292, %v706
      %v709 = vld [vmem:[%s698] sm:$0x7]
      %v710 = vld [vmem:[%s698 + $0x4] sm:$0x7]
      %v711 = vld [vmem:[%s698 + $0x8] sm:$0x7]
      %v715 = vrot.slane %v709, 2
      %v716 = vrot.slane %v710, 2
      %v717 = vrot.slane %v711, 2
      %v720 = vsel %vm304, %v709, %v715
      %v721 = vsel %vm308, %v709, %v715
      %v723 = vrot.slane %v721, 2
      %v726 = vsel %vm304, %v710, %v716
      %v727 = vsel %vm308, %v710, %v716
      %v729 = vrot.slane %v727, 2
      %v732 = vsel %vm304, %v711, %v717
      %v733 = vsel %vm308, %v711, %v717
      %v735 = vrot.slane %v733, 2
      %v736 = vshrl.u32 %v720, 16
      %v738 = vrot.slane %v736, 6
      %v739 = vshll.u32 %v720, 16
      %v741 = vrot.slane %v739, 7
      %v742 = vor.u32 %v738, %v741
      %v743 = vrot.slane %v742, 2
      %v745 = vshll.u32 %v723, 16
      %v747 = vrot.slane %v745, 7
      %v748 = vsel %vm318, %v743, %v747
      %v749 = vshrl.u32 %v726, 16
      %v751 = vrot.slane %v749, 6
      %v752 = vshll.u32 %v726, 16
      %v754 = vrot.slane %v752, 7
      %v755 = vor.u32 %v751, %v754
      %v756 = vrot.slane %v755, 2
      %v758 = vshll.u32 %v729, 16
      %v760 = vrot.slane %v758, 7
      %v761 = vsel %vm318, %v756, %v760
      %v762 = vshrl.u32 %v732, 16
      %v764 = vrot.slane %v762, 6
      %v765 = vshll.u32 %v732, 16
      %v767 = vrot.slane %v765, 7
      %v768 = vor.u32 %v764, %v767
      %v769 = vrot.slane %v768, 2
      %v771 = vshll.u32 %v735, 16
      %v773 = vrot.slane %v771, 7
      %v774 = vsel %vm318, %v769, %v773
      %775 = vrot.lane.b32.xlu0 %v748, 64
      %v776 = vpop.permute.xlu0 %775
      %777 = vrot.lane.b32.xlu0 %v761, 64
      %v778 = vpop.permute.xlu0 %777
      %779 = vrot.lane.b32.xlu0 %v774, 64
      %v780 = vpop.permute.xlu0 %779
      %784 = vst.msk [vmem:[#allocation2 + $0x6] sm:$0x3] %vm335, %v776
      %785 = vst.msk [vmem:[#allocation2 + $0x10] sm:$0x3] %vm335, %v778
      %786 = vst.msk [vmem:[#allocation2 + $0x1a] sm:$0x3] %vm335, %v780
      %v787 = vld [vmem:[%s705] sm:$0x7]
      %v789 = vrot.slane %v787, 2
      %v792 = vsel %vm304, %v787, %v789
      %v793 = vsel %vm308, %v787, %v789
      %v795 = vrot.slane %v793, 2
      %v796 = vshrl.u32 %v792, 16
      %v798 = vrot.slane %v796, 6
      %v799 = vshll.u32 %v792, 16
      %v801 = vrot.slane %v799, 7
      %v802 = vor.u32 %v798, %v801
      %v803 = vrot.slane %v802, 2
      %v805 = vshll.u32 %v795, 16
      %v807 = vrot.slane %v805, 7
      %v808 = vsel %vm318, %v803, %v807
      %809 = vrot.lane.b32.xlu0 %v808, 64
      %v810 = vpop.permute.xlu0 %809
      %812 = vst.msk [vmem:[%s707 + $0x6] sm:$0x3] %vm335, %v810
      %v813 = vld [vmem:[%s698] sm:$0x6]
      %v814 = vld [vmem:[%s698 + $0x4] sm:$0x6]
      %v815 = vld [vmem:[%s698 + $0x8] sm:$0x6]
      %v819 = vrot.slane %v813, 2
      %v820 = vrot.slane %v814, 2
      %v821 = vrot.slane %v815, 2
      %v824 = vsel %vm304, %v813, %v819
      %v826 = vsel %vm308, %v813, %v819
      %v828 = vrot.slane %v826, 2
      %v831 = vsel %vm304, %v814, %v820
      %v833 = vsel %vm308, %v814, %v820
      %v835 = vrot.slane %v833, 2
      %v838 = vsel %vm304, %v815, %v821
      %v840 = vsel %vm308, %v815, %v821
      %v842 = vrot.slane %v840, 2
      %v843 = vrot.slane %v824, 7
      %v844 = vrot.slane %v843, 2
      %v845 = vrot.slane %v828, 7
      %v846 = vsel %vm431, %v844, %v845
      %v847 = vrot.slane %v831, 7
      %v848 = vrot.slane %v847, 2
      %v849 = vrot.slane %v835, 7
      %v850 = vsel %vm431, %v848, %v849
      %v851 = vrot.slane %v838, 7
      %v852 = vrot.slane %v851, 2
      %v853 = vrot.slane %v842, 7
      %v854 = vsel %vm431, %v852, %v853
      %858 = vst.msk [vmem:[#allocation2 + $0x8] sm:$0x3] %vm292, %v846
      %859 = vst.msk [vmem:[#allocation2 + $0x12] sm:$0x3] %vm292, %v850
      %860 = vst.msk [vmem:[#allocation2 + $0x1c] sm:$0x3] %vm292, %v854
      %v861 = vld [vmem:[%s705] sm:$0x6]
      %v863 = vrot.slane %v861, 2
      %v866 = vsel %vm304, %v861, %v863
      %v868 = vsel %vm308, %v861, %v863
      %v870 = vrot.slane %v868, 2
      %v871 = vrot.slane %v866, 7
      %v872 = vrot.slane %v871, 2
      %v873 = vrot.slane %v870, 7
      %v874 = vsel %vm431, %v872, %v873
      %876 = vst.msk [vmem:[%s707 + $0x8] sm:$0x3] %vm292, %v874
      %v877 = vld [vmem:[#allocation2] sm:$0xff]
      %v878 = vld [vmem:[#allocation2 + $0x8] sm:$0x3]
      %v879 = vld [vmem:[#allocation2 + $0xa] sm:$0xff]
      %v880 = vld [vmem:[#allocation2 + $0x12] sm:$0x3]
      %v881 = vld [vmem:[#allocation2 + $0x14] sm:$0xff]
      %v882 = vld [vmem:[#allocation2 + $0x1c] sm:$0x3]
      %v883 = vld [vmem:[#allocation2 + $0x1e] sm:$0xff]
      %v884 = vld [vmem:[#allocation2 + $0x26] sm:$0x3]
      %v885 = vld [vmem:[%s2] sm:$0xf]
      %v886 = vld [vmem:[%s2 + $0x4] sm:$0xf]
      %v887 = vld [vmem:[%s2 + $0x8] sm:$0xf]
      %v888 = vld [vmem:[%s2 + $0xc] sm:$0xf]
      %v889 = vld [vmem:[%s2 + $0x10] sm:$0xf]
      %v890 = vld [vmem:[%s2 + $0x14] sm:$0xf]
      %v891 = vld [vmem:[%s2 + $0x18] sm:$0xf]
      %v892 = vld [vmem:[%s2 + $0x1c] sm:$0xf]
      %v893 = vld [vmem:[%s2 + $0x20] sm:$0xf]
      %v894 = vld [vmem:[%s2 + $0x24] sm:$0xf]
      %v895 = vld [vmem:[%s2 + $0x28] sm:$0xf]
      %v896 = vld [vmem:[%s2 + $0x2c] sm:$0xf]
      %v897 = vld [vmem:[%s2 + $0x30] sm:$0xf]
      %v898 = vld [vmem:[%s2 + $0x34] sm:$0xf]
      %v899 = vld [vmem:[%s2 + $0x38] sm:$0xf]
      %v900 = vld [vmem:[%s2 + $0x3c] sm:$0xf]
      %v901 = vld [vmem:[%s2 + $0x40] sm:$0xf]
      %v902 = vld [vmem:[%s2 + $0x44] sm:$0xf]
      %v903 = vld [vmem:[%s2 + $0x48] sm:$0xf]
      %v904 = vld [vmem:[%s2 + $0x4c] sm:$0xf]
      %v905 = vld [vmem:[%s2 + $0x50] sm:$0xf]
      %v906 = vld [vmem:[%s2 + $0x54] sm:$0xf]
      %v907 = vld [vmem:[%s2 + $0x58] sm:$0xf]
      %v908 = vld [vmem:[%s2 + $0x5c] sm:$0xf]
      %v909 = vld [vmem:[%s2 + $0x60] sm:$0xf]
      %v910 = vld [vmem:[%s2 + $0x64] sm:$0xf]
      %v911 = vld [vmem:[%s2 + $0x68] sm:$0xf]
      %v912 = vld [vmem:[%s2 + $0x6c] sm:$0xf]
      %v913 = vld [vmem:[%s2 + $0x70] sm:$0xf]
      %v914 = vld [vmem:[%s2 + $0x74] sm:$0xf]
      %v915 = vld [vmem:[%s2 + $0x78] sm:$0xf]
      %v916 = vld [vmem:[%s2 + $0x7c] sm:$0xf]
      %v917 = vld [vmem:[%s2 + $0x80] sm:$0xf]
      %v918 = vld [vmem:[%s2 + $0x84] sm:$0xf]
      %v919 = vld [vmem:[%s2 + $0x88] sm:$0xf]
      %v920 = vld [vmem:[%s2 + $0x8c] sm:$0xf]
      %v921 = vld [vmem:[%s2 + $0x90] sm:$0xf]
      %v922 = vld [vmem:[%s2 + $0x94] sm:$0xf]
      %v923 = vld [vmem:[%s2 + $0x98] sm:$0xf]
      %v924 = vld [vmem:[%s2 + $0x9c] sm:$0xf]
      %v925 = vld [vmem:[%s2 + $0xa0] sm:$0xf]
      %v926 = vld [vmem:[%s2 + $0xa4] sm:$0xf]
      %v927 = vld [vmem:[%s2 + $0xa8] sm:$0xf]
      %v928 = vld [vmem:[%s2 + $0xac] sm:$0xf]
      %v929 = vld [vmem:[%s2 + $0xb0] sm:$0xf]
      %v930 = vld [vmem:[%s2 + $0xb4] sm:$0xf]
      %v931 = vld [vmem:[%s2 + $0xb8] sm:$0xf]
      %v932 = vld [vmem:[%s2 + $0xbc] sm:$0xf]
      %v933 = vld [vmem:[%s2 + $0xc0] sm:$0xf]
      %v934 = vld [vmem:[%s2 + $0xc4] sm:$0xf]
      %v935 = vld [vmem:[%s2 + $0xc8] sm:$0xf]
      %v936 = vld [vmem:[%s2 + $0xcc] sm:$0xf]
      %v937 = vld [vmem:[%s2 + $0xd0] sm:$0xf]
      %v938 = vld [vmem:[%s2 + $0xd4] sm:$0xf]
      %v939 = vld [vmem:[%s2 + $0xd8] sm:$0xf]
      %v940 = vld [vmem:[%s2 + $0xdc] sm:$0xf]
      %v941 = vld [vmem:[%s2 + $0xe0] sm:$0xf]
      %v942 = vld [vmem:[%s2 + $0xe4] sm:$0xf]
      %v943 = vld [vmem:[%s2 + $0xe8] sm:$0xf]
      %v944 = vld [vmem:[%s2 + $0xec] sm:$0xf]
      %v945 = vld [vmem:[%s2 + $0xf0] sm:$0xf]
      %v946 = vld [vmem:[%s2 + $0xf4] sm:$0xf]
      %v947 = vld [vmem:[%s2 + $0xf8] sm:$0xf]
      %v948 = vld [vmem:[%s2 + $0xfc] sm:$0xf]
      %v949 = vld [vmem:[%s2 + $0x100] sm:$0xf]
      %v950 = vld [vmem:[%s2 + $0x104] sm:$0xf]
      %v951 = vld [vmem:[%s2 + $0x108] sm:$0xf]
      %v952 = vld [vmem:[%s2 + $0x10c] sm:$0xf]
      %v953 = vld [vmem:[%s2 + $0x110] sm:$0xf]
      %v954 = vld [vmem:[%s2 + $0x114] sm:$0xf]
      %v955 = vld [vmem:[%s2 + $0x118] sm:$0xf]
      %v956 = vld [vmem:[%s2 + $0x11c] sm:$0xf]
      %958 = vst [vmem:[#allocation1] ss:$4 sm:$0xff] %v877
      %s960 = scalar_lea.vmem [#allocation1], 1
      %961 = vst [vmem:[%s960] ss:$4 sm:$0xff] %v879
      %s963 = scalar_lea.vmem [#allocation1], 2
      %964 = vst [vmem:[%s963] ss:$4 sm:$0xff] %v881
      %s966 = scalar_lea.vmem [#allocation1], 3
      %967 = vst [vmem:[%s966] ss:$4 sm:$0xff] %v883
      %s969 = scalar_lea.vmem [#allocation1], 32
      %970 = vst [vmem:[%s969] ss:$4 sm:$0xff] %v878
      %s972 = scalar_lea.vmem [#allocation1], 33
      %973 = vst [vmem:[%s972] ss:$4 sm:$0xff] %v880
      %s975 = scalar_lea.vmem [#allocation1], 34
      %976 = vst [vmem:[%s975] ss:$4 sm:$0xff] %v882
      %s978 = scalar_lea.vmem [#allocation1], 35
      %979 = vst [vmem:[%s978] ss:$4 sm:$0xff] %v884
      %v980 = vld.sshfl [vmem:[#allocation1] sm:$0xff pattern:$0x73625140]
      %v981 = vld.sshfl [vmem:[#allocation1 + $0x8] sm:$0xff pattern:$0x73625140]
      %v982 = vld.sshfl [vmem:[#allocation1 + $0x10] sm:$0xff pattern:$0x73625140]
      %v983 = vld.sshfl [vmem:[#allocation1 + $0x18] sm:$0xff pattern:$0x73625140]
      %v984 = vld.sshfl [vmem:[#allocation1 + $0x20] sm:$0xff pattern:$0x73625140]
      %v1061 = vunpack.c.l.b16 %v885
      %v1062 = vunpack.c.l.b16 %v886
      %v1063 = vunpack.c.l.b16 %v887
      %v1064 = vunpack.c.l.b16 %v888
      %v1065 = vunpack.c.l.b16 %v889
      %v1066 = vunpack.c.l.b16 %v890
      %v1067 = vunpack.c.l.b16 %v891
      %v1068 = vunpack.c.l.b16 %v892
      %v1069 = vunpack.c.l.b16 %v893
      %v1070 = vunpack.c.l.b16 %v894
      %v1071 = vunpack.c.l.b16 %v895
      %v1072 = vunpack.c.l.b16 %v896
      %v1073 = vunpack.c.l.b16 %v897
      %v1074 = vunpack.c.l.b16 %v898
      %v1075 = vunpack.c.l.b16 %v899
      %v1076 = vunpack.c.l.b16 %v900
      %v1077 = vunpack.c.l.b16 %v901
      %v1078 = vunpack.c.l.b16 %v902
      %v1079 = vunpack.c.l.b16 %v903
      %v1080 = vunpack.c.l.b16 %v904
      %v1081 = vunpack.c.l.b16 %v905
      %v1082 = vunpack.c.l.b16 %v906
      %v1083 = vunpack.c.l.b16 %v907
      %v1084 = vunpack.c.l.b16 %v908
      %v1085 = vunpack.c.l.b16 %v909
      %v1086 = vunpack.c.l.b16 %v910
      %v1087 = vunpack.c.l.b16 %v911
      %v1088 = vunpack.c.l.b16 %v912
      %v1089 = vunpack.c.l.b16 %v913
      %v1090 = vunpack.c.l.b16 %v914
      %v1091 = vunpack.c.l.b16 %v915
      %v1092 = vunpack.c.l.b16 %v916
      %v1093 = vunpack.c.l.b16 %v917
      %v1094 = vunpack.c.l.b16 %v918
      %v1095 = vunpack.c.l.b16 %v919
      %v1096 = vunpack.c.l.b16 %v920
      %v1097 = vunpack.c.l.b16 %v921
      %v1098 = vunpack.c.l.b16 %v922
      %v1099 = vunpack.c.l.b16 %v923
      %v1100 = vunpack.c.l.b16 %v924
      %v1101 = vunpack.c.l.b16 %v925
      %v1102 = vunpack.c.l.b16 %v926
      %v1103 = vunpack.c.l.b16 %v927
      %v1104 = vunpack.c.l.b16 %v928
      %v1105 = vunpack.c.l.b16 %v929
      %v1106 = vunpack.c.l.b16 %v930
      %v1107 = vunpack.c.l.b16 %v931
      %v1108 = vunpack.c.l.b16 %v932
      %v1109 = vunpack.c.l.b16 %v933
      %v1110 = vunpack.c.l.b16 %v934
      %v1111 = vunpack.c.l.b16 %v935
      %v1112 = vunpack.c.l.b16 %v936
      %v1113 = vunpack.c.l.b16 %v937
      %v1114 = vunpack.c.l.b16 %v938
      %v1115 = vunpack.c.l.b16 %v939
      %v1116 = vunpack.c.l.b16 %v940
      %v1117 = vunpack.c.l.b16 %v941
      %v1118 = vunpack.c.l.b16 %v942
      %v1119 = vunpack.c.l.b16 %v943
      %v1120 = vunpack.c.l.b16 %v944
      %v1121 = vunpack.c.l.b16 %v945
      %v1122 = vunpack.c.l.b16 %v946
      %v1123 = vunpack.c.l.b16 %v947
      %v1124 = vunpack.c.l.b16 %v948
      %v1125 = vunpack.c.l.b16 %v949
      %v1126 = vunpack.c.l.b16 %v950
      %v1127 = vunpack.c.l.b16 %v951
      %v1128 = vunpack.c.l.b16 %v952
      %v1129 = vunpack.c.l.b16 %v953
      %v1130 = vunpack.c.l.b16 %v954
      %v1131 = vunpack.c.l.b16 %v955
      %v1132 = vunpack.c.l.b16 %v956
      %v1133 = vpack.c.b16 %v1062, %v1061
      %v1134 = vpack.c.b16 %v1064, %v1063
      %v1135 = vpack.c.b16 %v1066, %v1065
      %v1136 = vpack.c.b16 %v1068, %v1067
      %v1137 = vpack.c.b16 %v1070, %v1069
      %v1138 = vpack.c.b16 %v1072, %v1071
      %v1139 = vpack.c.b16 %v1074, %v1073
      %v1140 = vpack.c.b16 %v1076, %v1075
      %v1141 = vpack.c.b16 %v1078, %v1077
      %v1142 = vpack.c.b16 %v1080, %v1079
      %v1143 = vpack.c.b16 %v1082, %v1081
      %v1144 = vpack.c.b16 %v1084, %v1083
      %v1145 = vpack.c.b16 %v1086, %v1085
      %v1146 = vpack.c.b16 %v1088, %v1087
      %v1147 = vpack.c.b16 %v1090, %v1089
      %v1148 = vpack.c.b16 %v1092, %v1091
      %v1149 = vpack.c.b16 %v1094, %v1093
      %v1150 = vpack.c.b16 %v1096, %v1095
      %v1151 = vpack.c.b16 %v1098, %v1097
      %v1152 = vpack.c.b16 %v1100, %v1099
      %v1153 = vpack.c.b16 %v1102, %v1101
      %v1154 = vpack.c.b16 %v1104, %v1103
      %v1155 = vpack.c.b16 %v1106, %v1105
      %v1156 = vpack.c.b16 %v1108, %v1107
      %v1157 = vpack.c.b16 %v1110, %v1109
      %v1158 = vpack.c.b16 %v1112, %v1111
      %v1159 = vpack.c.b16 %v1114, %v1113
      %v1160 = vpack.c.b16 %v1116, %v1115
      %v1161 = vpack.c.b16 %v1118, %v1117
      %v1162 = vpack.c.b16 %v1120, %v1119
      %v1163 = vpack.c.b16 %v1122, %v1121
      %v1164 = vpack.c.b16 %v1124, %v1123
      %v1165 = vpack.c.b16 %v1126, %v1125
      %v1166 = vpack.c.b16 %v1128, %v1127
      %v1167 = vpack.c.b16 %v1130, %v1129
      %v1168 = vpack.c.b16 %v1132, %v1131
      %vm1205 = vcmask 523264
      %v1206 = vsel %vm1205, %v984, 0
      %1208 = vmatpush.bf16.msra.mxu0 %v1140
      %1209 = vmatpush.bf16.msra.mxu0 %v1139
      %1210 = vmatpush.bf16.msra.mxu0 %v1138
      %1211 = vmatpush.bf16.msra.mxu0 %v1137
      %1212 = vmatpush.bf16.msra.mxu0 %v1136
      %1213 = vmatpush.bf16.msra.mxu0 %v1135
      %1214 = vmatpush.bf16.msra.mxu0 %v1134
      %1215 = vmatpush.bf16.msra.mxu0 %v1133
      %1216 = vmatmul.bf16.gmra.mxu0 %v980
      %v1217 = vpop.f32.mrf.mxu0
      %v1218 = vadd.f32 0.0, %v1217
      %v1219 = vpop.f32.mrf.mxu0
      %v1220 = vadd.f32 0.0, %v1219
      %1221 = vdwg.mxu0
      %1222 = vmatpush.bf16.msra.mxu0 %v1148
      %1223 = vmatpush.bf16.msra.mxu0 %v1147
      %1224 = vmatpush.bf16.msra.mxu0 %v1146
      %1225 = vmatpush.bf16.msra.mxu0 %v1145
      %1226 = vmatpush.bf16.msra.mxu0 %v1144
      %1227 = vmatpush.bf16.msra.mxu0 %v1143
      %1228 = vmatpush.bf16.msra.mxu0 %v1142
      %1229 = vmatpush.bf16.msra.mxu0 %v1141
      %1230 = vmatmul.bf16.gmra.mxu0 %v981
      %v1231 = vpop.f32.mrf.mxu0
      %v1232 = vadd.f32 %v1218, %v1231
      %v1233 = vpop.f32.mrf.mxu0
      %v1234 = vadd.f32 %v1220, %v1233
      %1235 = vdwg.mxu0
      %1236 = vmatpush.bf16.msra.mxu0 %v1156
      %1237 = vmatpush.bf16.msra.mxu0 %v1155
      %1238 = vmatpush.bf16.msra.mxu0 %v1154
      %1239 = vmatpush.bf16.msra.mxu0 %v1153
      %1240 = vmatpush.bf16.msra.mxu0 %v1152
      %1241 = vmatpush.bf16.msra.mxu0 %v1151
      %1242 = vmatpush.bf16.msra.mxu0 %v1150
      %1243 = vmatpush.bf16.msra.mxu0 %v1149
      %1244 = vmatmul.bf16.gmra.mxu0 %v982
      %v1245 = vpop.f32.mrf.mxu0
      %v1246 = vadd.f32 %v1232, %v1245
      %v1247 = vpop.f32.mrf.mxu0
      %v1248 = vadd.f32 %v1234, %v1247
      %1249 = vdwg.mxu0
      %1250 = vmatpush.bf16.msra.mxu0 %v1164
      %1251 = vmatpush.bf16.msra.mxu0 %v1163
      %1252 = vmatpush.bf16.msra.mxu0 %v1162
      %1253 = vmatpush.bf16.msra.mxu0 %v1161
      %1254 = vmatpush.bf16.msra.mxu0 %v1160
      %1255 = vmatpush.bf16.msra.mxu0 %v1159
      %1256 = vmatpush.bf16.msra.mxu0 %v1158
      %1257 = vmatpush.bf16.msra.mxu0 %v1157
      %1258 = vmatmul.bf16.gmra.mxu0 %v983
      %v1259 = vpop.f32.mrf.mxu0
      %v1260 = vadd.f32 %v1246, %v1259
      %v1261 = vpop.f32.mrf.mxu0
      %v1262 = vadd.f32 %v1248, %v1261
      %1263 = vdwg.mxu0
      %1264 = vmatpush.bf16.msra.mxu0 0
      %1265 = vmatpush.bf16.msra.mxu0 0
      %1266 = vmatpush.bf16.msra.mxu0 0
      %1267 = vmatpush.bf16.msra.mxu0 0
      %1268 = vmatpush.bf16.msra.mxu0 %v1168
      %1269 = vmatpush.bf16.msra.mxu0 %v1167
      %1270 = vmatpush.bf16.msra.mxu0 %v1166
      %1271 = vmatpush.bf16.msra.mxu0 %v1165
      %1272 = vmatmul.bf16.gmra.mxu0 %v1206
      %v1273 = vpop.f32.mrf.mxu0
      %v1274 = vadd.f32 %v1260, %v1273
      %v1275 = vpop.f32.mrf.mxu0
      %v1276 = vadd.f32 %v1262, %v1275
      %1277 = vdwg.mxu0
      %v1280 = vrot.slane %v1274, 4
      %v1281 = vrot.slane %v1276, 4
      %v1284 = vpack.c.bf16 %v1274, %v1274
      %v1285 = vpack.c.bf16 %v1280, %v1280
      %v1286 = vpack.c.bf16 %v1276, %v1276
      %v1287 = vpack.c.bf16 %v1281, %v1281
      %1288 = vst.msk [vmem:[%s281] sm:$0x3] %vm292, %v1284
      %1289 = vst.msk [vmem:[%s281 + $0x2] sm:$0x3] %vm292, %v1285
      %1290 = vst.msk [vmem:[%s281 + $0x4] sm:$0x3] %vm292, %v1286
      %1291 = vst.msk [vmem:[%s281 + $0x6] sm:$0x3] %vm292, %v1287
      %v1292 = vsel %vm1205, %v1274, 0.0
      %v1293 = vsel %vm1205, %v1276, 0.0
      %v1294 = vadd.f32 %v1292, %v1293
      %v1295 = vrot.slane %v1294, 4
      %v1296 = vadd.f32 %v1294, %v1295
      %v1297 = vrot.slane %v1296, 2
      %v1298 = vadd.f32 %v1296, %v1297
      %v1299 = vrot.slane %v1298, 1
      %v1300 = vadd.f32 %v1298, %v1299
      %vm1301 = vcmask 516096
      %1302 = vst.msk [vmem:[%s289] sm:$0x1] %vm1301, %v1300
      %v1303 = vmul.f32 %v1274, %v1274
      %v1304 = vmul.f32 %v1276, %v1276
      %v1305 = vsel %vm1205, %v1303, 0.0
      %v1306 = vsel %vm1205, %v1304, 0.0
      %v1307 = vadd.f32 %v1305, %v1306
      %v1308 = vrot.slane %v1307, 4
      %v1309 = vadd.f32 %v1307, %v1308
      %v1310 = vrot.slane %v1309, 2
      %v1311 = vadd.f32 %v1309, %v1310
      %v1312 = vrot.slane %v1311, 1
      %v1313 = vadd.f32 %v1311, %v1312
      %1314 = vst.msk [vmem:[%s289 + $0x1] sm:$0x1] %vm1301, %v1313
      %s1315 = smul.u32 4, %s21
      %p1316 = scmp.lt.s32.totalorder %s20, 1
      %s1317 = scalar_select %p1316, %s20, 1
      %p1318 = scmp.lt.s32.totalorder %s1315, 3
      %s1319 = scalar_select %p1318, %s1315, 3
      %s1320 = smul.addr %s1317, 4
      %s1321 = sadd.s32 %s1319, %s1320
      %s1322 = smul.addr %s1321, 2
      %s1323 = scalar_lea.vmem %s3, %s1322
      %p1324 = scmp.lt.s32.totalorder %s20, 1
      %s1325 = scalar_select %p1324, %s20, 1
      %p1326 = scmp.lt.s32.totalorder %s21, 0
      %s1327 = scalar_select %p1326, %s21, 0
      %s1328 = sadd.s32 %s1327, %s1325
      %s1329 = smul.addr %s1328, 2
      %s1330 = scalar_lea.vmem %s4, %s1329
      // Predicated region
      $region33: #{encoder_forward.22} parent=31 // pred_check
        %p1331 = pneg %p125
      $region34: #{encoder_forward.22} parent=31 // pred_check_branch
        %1333 = sbr.rel (%p1331) target = $region36
      $region35: #{encoder_forward.22} parent=31 // pred_region
        %s1334 = smul.u32 4, %s21
      $region36: #{encoder_forward.22} parent=31 // pred_fallthru
        _
      // Predicated region
      $region37: #{encoder_forward.22} parent=31 // pred_check
        %p1335 = pneg %p153
      $region38: #{encoder_forward.22} parent=31 // pred_check_branch
        %1337 = sbr.rel (%p1335) target = $region40
      $region39: #{encoder_forward.22} parent=31 // pred_region
        _
      $region40: #{encoder_forward.22} parent=31 // pred_fallthru
        _
    $region32: #{encoder_forward.22} parent=5 // pred_fallthru
      _
    %p1338 = scmp.le.s32.totalorder 2, %s11
    // Predicated region
    $region41: #{encoder_forward.22} parent=5 // pred_check
      %p1339 = pneg %p1338
    $region42: #{encoder_forward.22} parent=5 // pred_check_branch
      %1341 = sbr.rel (%p1339) target = $region44
    $region43: #{encoder_forward.22} parent=5 // pred_region
      %s1342 = ssub.s32 %s11, 2
      // Predicated region
      $region45: #{encoder_forward.22} parent=43 // pred_check
        %p1343 = pneg %p131
      $region46: #{encoder_forward.22} parent=43 // pred_check_branch
        %1345 = sbr.rel (%p1343) target = $region48
      $region47: #{encoder_forward.22} parent=43 // pred_region
        %s1346 = smul.u32 4, %s23
        %p1347 = scmp.lt.s32.totalorder %s22, 1
        %s1348 = scalar_select %p1347, %s22, 1
        %p1349 = scmp.lt.s32.totalorder %s1346, 3
        %s1350 = scalar_select %p1349, %s1346, 3
        %s1351 = smul.addr %s1348, 4
        %s1352 = sadd.s32 %s1350, %s1351
        %s1353 = smul.addr %s1352, 2
        %s1354 = scalar_lea.vmem %s3, %s1353
      $region48: #{encoder_forward.22} parent=43 // pred_fallthru
        _
      // Predicated region
      $region49: #{encoder_forward.22} parent=43 // pred_check
        %p1355 = pneg %p159
      $region50: #{encoder_forward.22} parent=43 // pred_check_branch
        %1357 = sbr.rel (%p1355) target = $region52
      $region51: #{encoder_forward.22} parent=43 // pred_region
        %p1358 = scmp.lt.s32.totalorder %s22, 1
        %s1359 = scalar_select %p1358, %s22, 1
        %p1360 = scmp.lt.s32.totalorder %s23, 0
        %s1361 = scalar_select %p1360, %s23, 0
        %s1362 = sadd.s32 %s1361, %s1359
        %s1363 = smul.addr %s1362, 2
        %s1364 = scalar_lea.vmem %s4, %s1363
      $region52: #{encoder_forward.22} parent=43 // pred_fallthru
        _
    $region44: #{encoder_forward.22} parent=5 // pred_fallthru
      _
  $region6: #{encoder_forward.22} parent=0 // loop_footer
    %s15 = sadd.s32 1, %s11
  $region7: #{encoder_forward.22} parent=0 // loop_footer_branch
    %10 = sbr.rel target = $region3
  $region8: #{encoder_forward.22} parent=0 // loop_exit
    _

</llo_original>
